<compile_context>
chip_gen: v7x
topology: tpu7x:2x2x1
jax: 0.10.0
libtpu: 0.0.40
codegen_flags: <defaults>
</compile_context>

<pallas_src>
import functools

import jax
import jax.numpy as jnp
from jax import lax
from jax.experimental import pallas as pl
from jax.experimental.pallas import tpu as pltpu

_VMEM_LIMIT = 48 * 1024 * 1024      # portable: below v7x's 64 MiB physical VMEM
_BLOCK_BUDGET = 24 * 1024 * 1024    # target for double-buffered in+out blocks


def _round_up(n, m):
    return ((n + m - 1) // m) * m


def _pick_lane_tile(n_lanes, ch_in, ch_out):
    """Largest lane tile dividing n_lanes whose double-buffered blocks fit budget."""
    for t in (16384, 8192, 4096, 2048, 1024, 512, 256, 128):
        if n_lanes % t == 0 and 2 * (ch_in + ch_out) * t * 4 <= _BLOCK_BUDGET:
            return t
    return 128


def _pick_channel_tile(c, h, w):
    """Largest channel tile for the depthwise kernel that keeps blocks in budget."""
    for t in (64, 32, 16, 8, 4, 2, 1):
        if c % t == 0 and 4 * t * h * w * 4 <= _BLOCK_BUDGET:   # 2 bufs x (in+out)
            return t
    return 1


# --------------------------------------------------------------------------
# 1x1 conv (project_in): channel matmul over lane-dense spatial tiles
# --------------------------------------------------------------------------
def _pw_kernel(w_ref, x_ref, o_ref):
    o_ref[0] = jnp.dot(w_ref[...], x_ref[0], preferred_element_type=jnp.float32)


def pointwise_conv(x_bcn, w):
    """1x1 conv, no bias.  x: (B, Cin, N), w: (Cout, Cin) -> (B, Cout, N)."""
    B, Cin, N = x_bcn.shape
    Cout = w.shape[0]
    Np = _round_up(N, 128)
    x = x_bcn.astype(jnp.float32)
    if Np != N:                                   # only for non-128-multiple H*W
        x = jnp.pad(x, ((0, 0), (0, 0), (0, Np - N)))
    TN = _pick_lane_tile(Np, Cin, Cout)
    out = pl.pallas_call(
        _pw_kernel,
        out_shape=jax.ShapeDtypeStruct((B, Cout, Np), jnp.float32),
        grid=(B, Np // TN),
        in_specs=[
            pl.BlockSpec((Cout, Cin), lambda b, n: (0, 0)),        # resident weight
            pl.BlockSpec((1, Cin, TN), lambda b, n: (b, 0, n)),
        ],
        out_specs=pl.BlockSpec((1, Cout, TN), lambda b, n: (b, 0, n)),
        compiler_params=pltpu.CompilerParams(
            dimension_semantics=("parallel", "parallel"),
            vmem_limit_bytes=_VMEM_LIMIT),
    )(w.astype(jnp.float32), x)
    if Np != N:
        out = out[:, :, :N]
    return out


# --------------------------------------------------------------------------
# depthwise 3x3 conv, stride 1, dilation 2, padding 2 (groups == channels)
# NCHW layout, tiled over (batch, channel-tiles); halo built inside VMEM.
# --------------------------------------------------------------------------
def _dw_kernel(w_ref, x_ref, o_ref, *, H, W):
    # x_ref: (1, TC, H, W); w_ref: (9, TC, 1, 1); o_ref: (1, TC, H, W)
    x = x_ref[0]                                        # (TC, H, W)
    TC = x.shape[0]
    # zero halo of 2 along W (lanes) and H (sublanes), built in VMEM only
    zw = jnp.zeros((TC, H, 2), jnp.float32)
    zh = jnp.zeros((TC, 2, W + 4), jnp.float32)
    xp = jnp.concatenate([zw, x, zw], axis=2)           # (TC, H, W+4)
    xp = jnp.concatenate([zh, xp, zh], axis=1)          # (TC, H+4, W+4)
    acc = jnp.zeros((TC, H, W), jnp.float32)
    for ky in range(3):                                 # dilation 2 -> offsets 0, 2, 4
        for kx in range(3):
            tap = w_ref[3 * ky + kx]                    # (TC, 1, 1) per-channel scalar
            acc = acc + tap * xp[:, 2 * ky:2 * ky + H, 2 * kx:2 * kx + W]
    o_ref[0] = acc                                      # single final store per tile


def depthwise_conv3x3_d2(x_nchw, w_c33):
    """Depthwise 3x3, stride 1, dilation 2, padding 2, no bias.  NCHW in/out."""
    B, C, H, W = x_nchw.shape
    TC = _pick_channel_tile(C, H, W)
    w9 = w_c33.reshape(C, 9).T.reshape(9, C, 1, 1).astype(jnp.float32)
    return pl.pallas_call(
        functools.partial(_dw_kernel, H=H, W=W),
        out_shape=jax.ShapeDtypeStruct((B, C, H, W), jnp.float32),
        grid=(B, C // TC),
        in_specs=[
            pl.BlockSpec((9, TC, 1, 1), lambda b, c: (0, c, 0, 0)),
            pl.BlockSpec((1, TC, H, W), lambda b, c: (b, c, 0, 0)),
        ],
        out_specs=pl.BlockSpec((1, TC, H, W), lambda b, c: (b, c, 0, 0)),
        compiler_params=pltpu.CompilerParams(
            dimension_semantics=("parallel", "parallel"),
            vmem_limit_bytes=_VMEM_LIMIT),
    )(w9, x_nchw.astype(jnp.float32))


# --------------------------------------------------------------------------
# fused: chunk -> silu(x1) * x2 -> project_out (1x1 conv)
# --------------------------------------------------------------------------
def _gate_proj_kernel(w_ref, x_ref, o_ref, *, hidden):
    x = x_ref[0]                                        # (2*hidden, TN)
    x1 = x[:hidden]                                     # sublane-aligned slices
    x2 = x[hidden:]
    # silu(x1) * x2 ; exp goes to the EUP slot.  (pl.reciprocal(..., approx=True)
    # would also move the divide to EUP, at a small accuracy cost.)
    gate = x1 * (1.0 / (1.0 + jnp.exp(-x1))) * x2
    o_ref[0] = jnp.dot(w_ref[...], gate, preferred_element_type=jnp.float32)


def gate_project_out(x_bcn, w, hidden):
    """x: (B, 2*hidden, N), w: (dim, hidden) -> (B, dim, N)."""
    B, C2, N = x_bcn.shape
    dim = w.shape[0]
    Np = _round_up(N, 128)
    x = x_bcn.astype(jnp.float32)
    if Np != N:
        x = jnp.pad(x, ((0, 0), (0, 0), (0, Np - N)))
    TN = _pick_lane_tile(Np, C2, dim)
    out = pl.pallas_call(
        functools.partial(_gate_proj_kernel, hidden=hidden),
        out_shape=jax.ShapeDtypeStruct((B, dim, Np), jnp.float32),
        grid=(B, Np // TN),
        in_specs=[
            pl.BlockSpec((dim, hidden), lambda b, n: (0, 0)),      # resident weight
            pl.BlockSpec((1, C2, TN), lambda b, n: (b, 0, n)),
        ],
        out_specs=pl.BlockSpec((1, dim, TN), lambda b, n: (b, 0, n)),
        compiler_params=pltpu.CompilerParams(
            dimension_semantics=("parallel", "parallel"),
            vmem_limit_bytes=_VMEM_LIMIT),
    )(w.astype(jnp.float32), x)
    if Np != N:
        out = out[:, :, :N]
    return out


# --------------------------------------------------------------------------
# pad/unpad of the last (W) dim, as in the PyTorch module
# --------------------------------------------------------------------------
def _pad_last(x, factor):
    hw = x.shape[-1]
    if hw % factor == 0:
        return x, (0, 0)
    pad = (hw // factor + 1) * factor - hw
    cfg = [(0, 0)] * (x.ndim - 1) + [(0, pad)]
    return jnp.pad(x, cfg), (0, pad)


def _unpad_last(x, t_pad):
    if t_pad[1] == 0:
        return x
    hw = x.shape[-1]
    return x[..., t_pad[0]:hw - t_pad[1]]


# --------------------------------------------------------------------------
# full forward (Pallas) and pure-JAX reference
# --------------------------------------------------------------------------
def feedforward_forward(x, params, *, hidden):
    B, Cin, H, W = x.shape
    C2 = 2 * hidden
    dim = params["w_out"].shape[0]
    # project_in: lane-dense channel matmul; reshape to NCHW is a free bitcast
    y = pointwise_conv(x.reshape(B, Cin, H * W), params["w_in"]).reshape(B, C2, H, W)
    # depthwise 3x3 dilation-2 conv, directly in NCHW (no XLA pad / transpose)
    y = depthwise_conv3x3_d2(y, params["w_dw"])
    # pad W to even, as in the torch module
    y, t_pad = _pad_last(y, 2)
    # TODO(synk): rfft2/irfft2 have no Pallas TPU primitive; the per-channel
    # complex scale + bias stays as one fused XLA elementwise on the spectrum.
    yf = jnp.fft.rfft2(y.astype(jnp.float32))
    yf = params["fft_w"][None, :, None, None] * yf + params["fft_b"][None, :, None, None]
    y = jnp.fft.irfft2(yf)
    y = _unpad_last(y, t_pad)
    # fused chunk -> silu(x1) * x2 -> project_out
    out = gate_project_out(y.reshape(B, C2, H * W), params["w_out"], hidden)
    return out.reshape(B, dim, H, W)


def feedforward_ref(x, params, *, hidden):
    C2 = 2 * hidden
    y = jnp.einsum("oi,bihw->bohw", params["w_in"], x,
                   precision=lax.Precision.HIGHEST)
    y = lax.conv_general_dilated(
        y, params["w_dw"].reshape(C2, 1, 3, 3),
        window_strides=(1, 1), padding=((2, 2), (2, 2)), rhs_dilation=(2, 2),
        dimension_numbers=("NCHW", "OIHW", "NCHW"),
        feature_group_count=C2, precision=lax.Precision.HIGHEST)
    y, t_pad = _pad_last(y, 2)
    yf = jnp.fft.rfft2(y)
    yf = params["fft_w"][None, :, None, None] * yf \
         + params["fft_b"][None, :, None, None]
    y = jnp.fft.irfft2(yf)
    y = _unpad_last(y, t_pad)
    x1, x2 = jnp.split(y, 2, axis=1)
    y = jax.nn.silu(x1) * x2
    return jnp.einsum("oi,bihw->bohw", params["w_out"], y,
                      precision=lax.Precision.HIGHEST)


# --------------------------------------------------------------------------
if __name__ == "__main__":
    B, dim, H, W = 2, 8, 16, 16
    ffn_expansion_factor = 2
    hidden = int(dim * ffn_expansion_factor)    # 16
    C2 = 2 * hidden                             # 32

    key = jax.random.PRNGKey(0)
    k1, k2, k3, k4, k5, kx = jax.random.split(key, 6)
    params = dict(
        w_in=0.2 * jax.random.normal(k1, (C2, dim), jnp.float32),
        w_dw=0.2 * jax.random.normal(k2, (C2, 3, 3), jnp.float32),
        w_out=0.2 * jax.random.normal(k3, (dim, hidden), jnp.float32),
        fft_w=jax.random.normal(k4, (C2,), jnp.float32),   # fft_channel_weight
        fft_b=jax.random.normal(k5, (C2,), jnp.float32),   # fft_channel_bias
    )
    x = jax.random.normal(kx, (B, dim, H, W), jnp.float32)

    fwd = jax.jit(functools.partial(feedforward_forward, hidden=hidden))
    out = jax.block_until_ready(fwd(x, params))

    ref = jax.block_until_ready(feedforward_ref(x, params, hidden=hidden))

    assert out.shape == (B, dim, H, W), out.shape
    max_err = float(jnp.max(jnp.abs(out - ref)))
    assert jnp.allclose(out, ref, atol=1e-3, rtol=1e-3), f"max_err={max_err}"
    print("KERNEL_OK")
</pallas_src>

<mosaic_0001>
module attributes {stable_mosaic.version = 11 : i64} {
  func.func @_pw_kernel(%arg0: i32, %arg1: i32, %arg2: memref<32x8xf32, #tpu.memory_space<vmem>>, %arg3: memref<1x8x256xf32, #tpu.memory_space<vmem>>, %arg4: memref<1x32x256xf32, #tpu.memory_space<vmem>>) attributes {dimension_semantics = [#tpu.dimension_semantics<parallel>, #tpu.dimension_semantics<parallel>], iteration_bounds = array<i64: 2, 1>, scalar_prefetch = 0 : i64, scratch_operands = 0 : i64, tpu.core_type = #tpu.core_type<tc>, window_params = [{pipeline_mode = #tpu.pipeline_mode<synchronous>, transform_indices = @transform_0, window_bounds = array<i64: 32, 8>}, {transform_indices = @transform_1, window_bounds = array<i64: 1, 8, 256>}, {transform_indices = @transform_2, window_bounds = array<i64: 1, 32, 256>}]} {
    %c0 = arith.constant 0 : index
    %c0_0 = arith.constant 0 : index
    %0 = vector.load %arg2[%c0, %c0_0] : memref<32x8xf32, #tpu.memory_space<vmem>>, vector<32x8xf32>
    %c0_1 = arith.constant 0 : index
    %c0_2 = arith.constant 0 : index
    %c0_3 = arith.constant 0 : index
    %1 = vector.load %arg3[%c0_1, %c0_2, %c0_3] : memref<1x8x256xf32, #tpu.memory_space<vmem>>, vector<1x8x256xf32>
    %2 = vector.shape_cast %1 : vector<1x8x256xf32> to vector<8x256xf32>
    %cst = arith.constant dense<0.000000e+00> : vector<32x256xf32>
    %3 = tpu.matmul %0, %2, %cst {dimension_numbers = #tpu.dot_dimension_numbers<[1], [0], [0], [1], [0, 0, 1, 1], [], []>} : vector<32x8xf32>, vector<8x256xf32>, vector<32x256xf32> -> vector<32x256xf32>
    %c0_4 = arith.constant 0 : index
    %c0_5 = arith.constant 0 : index
    %c0_6 = arith.constant 0 : index
    %4 = vector.load %arg4[%c0_4, %c0_5, %c0_6] : memref<1x32x256xf32, #tpu.memory_space<vmem>>, vector<1x32x256xf32>
    %5 = vector.shape_cast %4 : vector<1x32x256xf32> to vector<32x256xf32>
    %6 = vector.shape_cast %3 : vector<32x256xf32> to vector<1x32x256xf32>
    tpu.vector_store %arg4[%c0_4, %c0_5, %c0_6], %6 {strides = array<i32>} : memref<1x32x256xf32, #tpu.memory_space<vmem>>, vector<1x32x256xf32>,
    return
  }
  func.func @transform_0(%arg0: i32, %arg1: i32) -> (i32, i32) {
    %c0_i32 = arith.constant 0 : i32
    %c0_i32_0 = arith.constant 0 : i32
    %c0_i32_1 = arith.constant 0 : i32
    return %c0_i32, %c0_i32_0 : i32, i32
  }
  func.func @transform_1(%arg0: i32, %arg1: i32) -> (i32, i32, i32) {
    %c0_i32 = arith.constant 0 : i32
    %c0_i32_0 = arith.constant 0 : i32
    return %arg0, %c0_i32, %arg1 : i32, i32, i32
  }
  func.func @transform_2(%arg0: i32, %arg1: i32) -> (i32, i32, i32) {
    %c0_i32 = arith.constant 0 : i32
    %c0_i32_0 = arith.constant 0 : i32
    return %arg0, %c0_i32, %arg1 : i32, i32, i32
  }
}

module attributes {stable_mosaic.version = 11 : i64} {
  func.func @_dw_kernel(%arg0: i32, %arg1: i32, %arg2: memref<9x32x1x1xf32, #tpu.memory_space<vmem>>, %arg3: memref<1x32x16x16xf32, #tpu.memory_space<vmem>>, %arg4: memref<1x32x16x16xf32, #tpu.memory_space<vmem>>) attributes {dimension_semantics = [#tpu.dimension_semantics<parallel>, #tpu.dimension_semantics<parallel>], iteration_bounds = array<i64: 2, 1>, scalar_prefetch = 0 : i64, scratch_operands = 0 : i64, tpu.core_type = #tpu.core_type<tc>, window_params = [{transform_indices = @transform_0, window_bounds = array<i64: 9, 32, 1, 1>}, {transform_indices = @transform_1, window_bounds = array<i64: 1, 32, 16, 16>}, {transform_indices = @transform_2, window_bounds = array<i64: 1, 32, 16, 16>}]} {
    %c0 = arith.constant 0 : index
    %c0_0 = arith.constant 0 : index
    %c0_1 = arith.constant 0 : index
    %c0_2 = arith.constant 0 : index
    %0 = vector.load %arg3[%c0, %c0_0, %c0_1, %c0_2] : memref<1x32x16x16xf32, #tpu.memory_space<vmem>>, vector<1x32x16x16xf32>
    %1 = vector.shape_cast %0 : vector<1x32x16x16xf32> to vector<32x16x16xf32>
    %cst = arith.constant 0.000000e+00 : f32
    %2 = vector.broadcast %cst : f32 to vector<32x16x2xf32>
    %cst_3 = arith.constant 0.000000e+00 : f32
    %3 = vector.broadcast %cst_3 : f32 to vector<32x2x20xf32>
    %4 = tpu.concatenate %2, %1, %2 in 2 : vector<32x16x2xf32>, vector<32x16x16xf32>, vector<32x16x2xf32> -> vector<32x16x20xf32>
    %5 = tpu.concatenate %3, %4, %3 in 1 : vector<32x2x20xf32>, vector<32x16x20xf32>, vector<32x2x20xf32> -> vector<32x20x20xf32>
    %cst_4 = arith.constant 0.000000e+00 : f32
    %6 = vector.broadcast %cst_4 : f32 to vector<32x16x16xf32>
    %c0_5 = arith.constant 0 : index
    %c0_6 = arith.constant 0 : index
    %c0_7 = arith.constant 0 : index
    %c0_8 = arith.constant 0 : index
    %7 = vector.load %arg2[%c0_5, %c0_6, %c0_7, %c0_8] : memref<9x32x1x1xf32, #tpu.memory_space<vmem>>, vector<1x32x1x1xf32>
    %8 = vector.shape_cast %7 : vector<1x32x1x1xf32> to vector<32x1x1xf32>
    %9 = vector.extract_strided_slice %5 {offsets = [0, 0, 0], sizes = [32, 16, 16], strides = [1, 1, 1]} : vector<32x20x20xf32> to vector<32x16x16xf32>
    %10 = vector.broadcast %8 : vector<32x1x1xf32> to vector<32x16x16xf32>
    %11 = arith.mulf %10, %9 : vector<32x16x16xf32>
    %12 = arith.addf %6, %11 : vector<32x16x16xf32>
    %c1 = arith.constant 1 : index
    %c0_9 = arith.constant 0 : index
    %c0_10 = arith.constant 0 : index
    %c0_11 = arith.constant 0 : index
    %13 = vector.load %arg2[%c1, %c0_9, %c0_10, %c0_11] : memref<9x32x1x1xf32, #tpu.memory_space<vmem>>, vector<1x32x1x1xf32>
    %14 = vector.shape_cast %13 : vector<1x32x1x1xf32> to vector<32x1x1xf32>
    %15 = vector.extract_strided_slice %5 {offsets = [0, 0, 2], sizes = [32, 16, 16], strides = [1, 1, 1]} : vector<32x20x20xf32> to vector<32x16x16xf32>
    %16 = vector.broadcast %14 : vector<32x1x1xf32> to vector<32x16x16xf32>
    %17 = arith.mulf %16, %15 : vector<32x16x16xf32>
    %18 = arith.addf %12, %17 : vector<32x16x16xf32>
    %c2 = arith.constant 2 : index
    %c0_12 = arith.constant 0 : index
    %c0_13 = arith.constant 0 : index
    %c0_14 = arith.constant 0 : index
    %19 = vector.load %arg2[%c2, %c0_12, %c0_13, %c0_14] : memref<9x32x1x1xf32, #tpu.memory_space<vmem>>, vector<1x32x1x1xf32>
    %20 = vector.shape_cast %19 : vector<1x32x1x1xf32> to vector<32x1x1xf32>
    %21 = vector.extract_strided_slice %5 {offsets = [0, 0, 4], sizes = [32, 16, 16], strides = [1, 1, 1]} : vector<32x20x20xf32> to vector<32x16x16xf32>
    %22 = vector.broadcast %20 : vector<32x1x1xf32> to vector<32x16x16xf32>
    %23 = arith.mulf %22, %21 : vector<32x16x16xf32>
    %24 = arith.addf %18, %23 : vector<32x16x16xf32>
    %c3 = arith.constant 3 : index
    %c0_15 = arith.constant 0 : index
    %c0_16 = arith.constant 0 : index
    %c0_17 = arith.constant 0 : index
    %25 = vector.load %arg2[%c3, %c0_15, %c0_16, %c0_17] : memref<9x32x1x1xf32, #tpu.memory_space<vmem>>, vector<1x32x1x1xf32>
    %26 = vector.shape_cast %25 : vector<1x32x1x1xf32> to vector<32x1x1xf32>
    %27 = vector.extract_strided_slice %5 {offsets = [0, 2, 0], sizes = [32, 16, 16], strides = [1, 1, 1]} : vector<32x20x20xf32> to vector<32x16x16xf32>
    %28 = vector.broadcast %26 : vector<32x1x1xf32> to vector<32x16x16xf32>
    %29 = arith.mulf %28, %27 : vector<32x16x16xf32>
    %30 = arith.addf %24, %29 : vector<32x16x16xf32>
    %c4 = arith.constant 4 : index
    %c0_18 = arith.constant 0 : index
    %c0_19 = arith.constant 0 : index
    %c0_20 = arith.constant 0 : index
    %31 = vector.load %arg2[%c4, %c0_18, %c0_19, %c0_20] : memref<9x32x1x1xf32, #tpu.memory_space<vmem>>, vector<1x32x1x1xf32>
    %32 = vector.shape_cast %31 : vector<1x32x1x1xf32> to vector<32x1x1xf32>
    %33 = vector.extract_strided_slice %5 {offsets = [0, 2, 2], sizes = [32, 16, 16], strides = [1, 1, 1]} : vector<32x20x20xf32> to vector<32x16x16xf32>
    %34 = vector.broadcast %32 : vector<32x1x1xf32> to vector<32x16x16xf32>
    %35 = arith.mulf %34, %33 : vector<32x16x16xf32>
    %36 = arith.addf %30, %35 : vector<32x16x16xf32>
    %c5 = arith.constant 5 : index
    %c0_21 = arith.constant 0 : index
    %c0_22 = arith.constant 0 : index
    %c0_23 = arith.constant 0 : index
    %37 = vector.load %arg2[%c5, %c0_21, %c0_22, %c0_23] : memref<9x32x1x1xf32, #tpu.memory_space<vmem>>, vector<1x32x1x1xf32>
    %38 = vector.shape_cast %37 : vector<1x32x1x1xf32> to vector<32x1x1xf32>
    %39 = vector.extract_strided_slice %5 {offsets = [0, 2, 4], sizes = [32, 16, 16], strides = [1, 1, 1]} : vector<32x20x20xf32> to vector<32x16x16xf32>
    %40 = vector.broadcast %38 : vector<32x1x1xf32> to vector<32x16x16xf32>
    %41 = arith.mulf %40, %39 : vector<32x16x16xf32>
    %42 = arith.addf %36, %41 : vector<32x16x16xf32>
    %c6 = arith.constant 6 : index
    %c0_24 = arith.constant 0 : index
    %c0_25 = arith.constant 0 : index
    %c0_26 = arith.constant 0 : index
    %43 = vector.load %arg2[%c6, %c0_24, %c0_25, %c0_26] : memref<9x32x1x1xf32, #tpu.memory_space<vmem>>, vector<1x32x1x1xf32>
    %44 = vector.shape_cast %43 : vector<1x32x1x1xf32> to vector<32x1x1xf32>
    %45 = vector.extract_strided_slice %5 {offsets = [0, 4, 0], sizes = [32, 16, 16], strides = [1, 1, 1]} : vector<32x20x20xf32> to vector<32x16x16xf32>
    %46 = vector.broadcast %44 : vector<32x1x1xf32> to vector<32x16x16xf32>
    %47 = arith.mulf %46, %45 : vector<32x16x16xf32>
    %48 = arith.addf %42, %47 : vector<32x16x16xf32>
    %c7 = arith.constant 7 : index
    %c0_27 = arith.constant 0 : index
    %c0_28 = arith.constant 0 : index
    %c0_29 = arith.constant 0 : index
    %49 = vector.load %arg2[%c7, %c0_27, %c0_28, %c0_29] : memref<9x32x1x1xf32, #tpu.memory_space<vmem>>, vector<1x32x1x1xf32>
    %50 = vector.shape_cast %49 : vector<1x32x1x1xf32> to vector<32x1x1xf32>
    %51 = vector.extract_strided_slice %5 {offsets = [0, 4, 2], sizes = [32, 16, 16], strides = [1, 1, 1]} : vector<32x20x20xf32> to vector<32x16x16xf32>
    %52 = vector.broadcast %50 : vector<32x1x1xf32> to vector<32x16x16xf32>
    %53 = arith.mulf %52, %51 : vector<32x16x16xf32>
    %54 = arith.addf %48, %53 : vector<32x16x16xf32>
    %c8 = arith.constant 8 : index
    %c0_30 = arith.constant 0 : index
    %c0_31 = arith.constant 0 : index
    %c0_32 = arith.constant 0 : index
    %55 = vector.load %arg2[%c8, %c0_30, %c0_31, %c0_32] : memref<9x32x1x1xf32, #tpu.memory_space<vmem>>, vector<1x32x1x1xf32>
    %56 = vector.shape_cast %55 : vector<1x32x1x1xf32> to vector<32x1x1xf32>
    %57 = vector.extract_strided_slice %5 {offsets = [0, 4, 4], sizes = [32, 16, 16], strides = [1, 1, 1]} : vector<32x20x20xf32> to vector<32x16x16xf32>
    %58 = vector.broadcast %56 : vector<32x1x1xf32> to vector<32x16x16xf32>
    %59 = arith.mulf %58, %57 : vector<32x16x16xf32>
    %60 = arith.addf %54, %59 : vector<32x16x16xf32>
    %c0_33 = arith.constant 0 : index
    %c0_34 = arith.constant 0 : index
    %c0_35 = arith.constant 0 : index
    %c0_36 = arith.constant 0 : index
    %61 = vector.load %arg4[%c0_33, %c0_34, %c0_35, %c0_36] : memref<1x32x16x16xf32, #tpu.memory_space<vmem>>, vector<1x32x16x16xf32>
    %62 = vector.shape_cast %61 : vector<1x32x16x16xf32> to vector<32x16x16xf32>
    %63 = vector.shape_cast %60 : vector<32x16x16xf32> to vector<1x32x16x16xf32>
    tpu.vector_store %arg4[%c0_33, %c0_34, %c0_35, %c0_36], %63 {strides = array<i32>} : memref<1x32x16x16xf32, #tpu.memory_space<vmem>>, vector<1x32x16x16xf32>,
    return
  }
  func.func @transform_0(%arg0: i32, %arg1: i32) -> (i32, i32, i32, i32) {
    %c0_i32 = arith.constant 0 : i32
    %c0_i32_0 = arith.constant 0 : i32
    %c0_i32_1 = arith.constant 0 : i32
    %c0_i32_2 = arith.constant 0 : i32
    return %c0_i32, %arg1, %c0_i32_0, %c0_i32_1 : i32, i32, i32, i32
  }
  func.func @transform_1(%arg0: i32, %arg1: i32) -> (i32, i32, i32, i32) {
    %c0_i32 = arith.constant 0 : i32
    %c0_i32_0 = arith.constant 0 : i32
    %c0_i32_1 = arith.constant 0 : i32
    return %arg0, %arg1, %c0_i32, %c0_i32_0 : i32, i32, i32, i32
  }
  func.func @transform_2(%arg0: i32, %arg1: i32) -> (i32, i32, i32, i32) {
    %c0_i32 = arith.constant 0 : i32
    %c0_i32_0 = arith.constant 0 : i32
    %c0_i32_1 = arith.constant 0 : i32
    return %arg0, %arg1, %c0_i32, %c0_i32_0 : i32, i32, i32, i32
  }
}

module attributes {stable_mosaic.version = 11 : i64} {
  func.func @_gate_proj_kernel(%arg0: i32, %arg1: i32, %arg2: memref<8x16xf32, #tpu.memory_space<vmem>>, %arg3: memref<1x32x256xf32, #tpu.memory_space<vmem>>, %arg4: memref<1x8x256xf32, #tpu.memory_space<vmem>>) attributes {dimension_semantics = [#tpu.dimension_semantics<parallel>, #tpu.dimension_semantics<parallel>], iteration_bounds = array<i64: 2, 1>, scalar_prefetch = 0 : i64, scratch_operands = 0 : i64, tpu.core_type = #tpu.core_type<tc>, window_params = [{pipeline_mode = #tpu.pipeline_mode<synchronous>, transform_indices = @transform_0, window_bounds = array<i64: 8, 16>}, {transform_indices = @transform_1, window_bounds = array<i64: 1, 32, 256>}, {transform_indices = @transform_2, window_bounds = array<i64: 1, 8, 256>}]} {
    %c0 = arith.constant 0 : index
    %c0_0 = arith.constant 0 : index
    %c0_1 = arith.constant 0 : index
    %0 = vector.load %arg3[%c0, %c0_0, %c0_1] : memref<1x32x256xf32, #tpu.memory_space<vmem>>, vector<1x32x256xf32>
    %1 = vector.shape_cast %0 : vector<1x32x256xf32> to vector<32x256xf32>
    %2 = vector.extract_strided_slice %1 {offsets = [0, 0], sizes = [16, 256], strides = [1, 1]} : vector<32x256xf32> to vector<16x256xf32>
    %3 = vector.extract_strided_slice %1 {offsets = [16, 0], sizes = [16, 256], strides = [1, 1]} : vector<32x256xf32> to vector<16x256xf32>
    %cst = arith.constant 0.000000e+00 : f32
    %4 = vector.broadcast %cst : f32 to vector<16x256xf32>
    %5 = arith.subf %4, %2 : vector<16x256xf32>
    %6 = math.exp %5 : vector<16x256xf32>
    %cst_2 = arith.constant 1.000000e+00 : f32
    %7 = vector.broadcast %cst_2 : f32 to vector<16x256xf32>
    %8 = arith.addf %7, %6 : vector<16x256xf32>
    %cst_3 = arith.constant 1.000000e+00 : f32
    %9 = vector.broadcast %cst_3 : f32 to vector<16x256xf32>
    %10 = arith.divf %9, %8 : vector<16x256xf32>
    %11 = arith.mulf %2, %10 : vector<16x256xf32>
    %12 = arith.mulf %11, %3 : vector<16x256xf32>
    %c0_4 = arith.constant 0 : index
    %c0_5 = arith.constant 0 : index
    %13 = vector.load %arg2[%c0_4, %c0_5] : memref<8x16xf32, #tpu.memory_space<vmem>>, vector<8x16xf32>
    %cst_6 = arith.constant dense<0.000000e+00> : vector<8x256xf32>
    %14 = tpu.matmul %13, %12, %cst_6 {dimension_numbers = #tpu.dot_dimension_numbers<[1], [0], [0], [1], [0, 0, 1, 1], [], []>} : vector<8x16xf32>, vector<16x256xf32>, vector<8x256xf32> -> vector<8x256xf32>
    %c0_7 = arith.constant 0 : index
    %c0_8 = arith.constant 0 : index
    %c0_9 = arith.constant 0 : index
    %15 = vector.load %arg4[%c0_7, %c0_8, %c0_9] : memref<1x8x256xf32, #tpu.memory_space<vmem>>, vector<1x8x256xf32>
    %16 = vector.shape_cast %15 : vector<1x8x256xf32> to vector<8x256xf32>
    %17 = vector.shape_cast %14 : vector<8x256xf32> to vector<1x8x256xf32>
    tpu.vector_store %arg4[%c0_7, %c0_8, %c0_9], %17 {strides = array<i32>} : memref<1x8x256xf32, #tpu.memory_space<vmem>>, vector<1x8x256xf32>,
    return
  }
  func.func @transform_0(%arg0: i32, %arg1: i32) -> (i32, i32) {
    %c0_i32 = arith.constant 0 : i32
    %c0_i32_0 = arith.constant 0 : i32
    %c0_i32_1 = arith.constant 0 : i32
    return %c0_i32, %c0_i32_0 : i32, i32
  }
  func.func @transform_1(%arg0: i32, %arg1: i32) -> (i32, i32, i32) {
    %c0_i32 = arith.constant 0 : i32
    %c0_i32_0 = arith.constant 0 : i32
    return %arg0, %c0_i32, %arg1 : i32, i32, i32
  }
  func.func @transform_2(%arg0: i32, %arg1: i32) -> (i32, i32, i32) {
    %c0_i32 = arith.constant 0 : i32
    %c0_i32_0 = arith.constant 0 : i32
    return %arg0, %c0_i32, %arg1 : i32, i32, i32
  }
}

</mosaic_0001>

<llo_original>
// kernel: feedforward_forward.3
$region0: #{feedforward_forward.3}
  #allocation0 [shape = 'u32[]', space=smem, size = 0x4, offset = 0x4, fixed_abs, tag = 'smem constant byte address 0x4 - core index']
  #allocation1 [shape = 'u32[144,128]{1,0:T(1,128)}', space=vmem, size = 0x12000, scoped, tag = 'internal scratch']
  %s0 = inlined_call_operand.vmem [shape: f32[32,8], index: 0, kind: input, shape index: {}]
  %s1 = inlined_call_operand.vmem [shape: f32[2,8,256], index: 1, kind: input, shape index: {}]
  %s2 = inlined_call_operand.vmem [shape: f32[2,32,256], index: 2, kind: output, shape index: {}]
  %s3 = sld [smem:[#allocation0]]
  $region41: #{feedforward_forward.3} parent=0
    _
  %s5 = ssub.s32 1, %s3
  %s6 = scalar_select 0, %s5, %s3
  loop: start=0, step=1, limit=4
  $region2: #{feedforward_forward.3} parent=0 // loop_pre_header
    _
  $region3: #{feedforward_forward.3} parent=0 // loop_header
    %s8 = sphi 0, %s12
    %p9 = scmp.ge.s32.totalorder %s8, 4
    %s15 = sphi 0, %s27
    %s16 = sphi 0, %s23
    %s17 = sphi 0, %s15
    %s18 = sphi 0, %s16
    %s19 = sphi 0, %s17
    %s20 = sphi 0, %s18
    %s28 = sphi 0, %s28
    %s30 = sphi 0, %s28
    %s31 = sphi 0, %s30
    %s45 = sphi 0, %s31
    %s53 = sphi 0, %s55
    %s56 = sphi 0, %s53
    %s57 = sphi 0, %s56
    %s73 = sphi 0, %s57
    %s81 = sphi 0, %s83
    %s84 = sphi 0, %s81
    %s85 = sphi 0, %s84
    %s101 = sphi 0, %s85
  $region4: #{feedforward_forward.3} parent=0 // loop_header_branch
    %11 = sbr.rel (%p9) target = $region8
  $region5: #{feedforward_forward.3} parent=0 // loop_body
    %s13 = ssub.s32 %s8, 1
    %s14 = ssub.s32 %s8, 2
    %s21 = sadd.s32 1, %s16
    %p22 = scmp.ge.s32.totalorder %s21, 1
    %s23 = scalar_select %p22, 0, %s21
    %s24 = sadd.s32 1, %s15
    %s25 = scalar_select %p22, %s24, %s15
    %p26 = scmp.ge.s32.totalorder %s25, 2
    %s27 = scalar_select %p26, 0, %s25
    %s29 = sadd.s32 %s28, 1
    %p32 = scmp.eq.s32.totalorder %s8, 1
    %p33 = scmp.ne.s32.totalorder %s28, %s30
    %p34 = scmp.eq.s32.totalorder %s8, 0
    %p35 = por %p33, %p34
    %p36 = scmp.ne.s32.totalorder %s28, %s30
    %p37 = scmp.eq.s32.totalorder %s13, 1
    %p38 = por %p36, %p37
    %p39 = scmp.ne.s32.totalorder %s30, %s31
    %p40 = scmp.eq.s32.totalorder %s13, 0
    %p41 = por %p39, %p40
    %p42 = scmp.ne.s32.totalorder %s30, %s31
    %p43 = scmp.eq.s32.totalorder %s14, 1
    %p44 = por %p42, %p43
    %p46 = scmp.ne.s32.totalorder %s31, %s45
    %p47 = scmp.eq.s32.totalorder %s14, 0
    %p48 = por %p46, %p47
    %s49 = ssub.s32 %s15, %s27
    %s50 = ssub.s32 %s16, %s23
    %s51 = sor.u32 %s49, %s50
    %p52 = scmp.eq.s32.totalorder %s51, 0
    %s54 = sadd.s32 %s53, 1
    %s55 = scalar_select %p52, %s53, %s54
    %p58 = pneg %p52
    %p59 = scmp.eq.s32.totalorder %s8, 1
    %p60 = por %p58, %p59
    %p61 = scmp.ne.s32.totalorder %s53, %s56
    %p62 = scmp.eq.s32.totalorder %s8, 0
    %p63 = por %p61, %p62
    %p64 = scmp.ne.s32.totalorder %s53, %s56
    %p65 = scmp.eq.s32.totalorder %s13, 1
    %p66 = por %p64, %p65
    %p67 = scmp.ne.s32.totalorder %s56, %s57
    %p68 = scmp.eq.s32.totalorder %s13, 0
    %p69 = por %p67, %p68
    %p70 = scmp.ne.s32.totalorder %s56, %s57
    %p71 = scmp.eq.s32.totalorder %s14, 1
    %p72 = por %p70, %p71
    %p74 = scmp.ne.s32.totalorder %s57, %s73
    %p75 = scmp.eq.s32.totalorder %s14, 0
    %p76 = por %p74, %p75
    %s77 = ssub.s32 %s15, %s27
    %s78 = ssub.s32 %s16, %s23
    %s79 = sor.u32 %s77, %s78
    %p80 = scmp.eq.s32.totalorder %s79, 0
    %s82 = sadd.s32 %s81, 1
    %s83 = scalar_select %p80, %s81, %s82
    %p86 = pneg %p80
    %p87 = scmp.eq.s32.totalorder %s8, 1
    %p88 = por %p86, %p87
    %p89 = scmp.ne.s32.totalorder %s81, %s84
    %p90 = scmp.eq.s32.totalorder %s8, 0
    %p91 = por %p89, %p90
    %p92 = scmp.ne.s32.totalorder %s81, %s84
    %p93 = scmp.eq.s32.totalorder %s13, 1
    %p94 = por %p92, %p93
    %p95 = scmp.ne.s32.totalorder %s84, %s85
    %p96 = scmp.eq.s32.totalorder %s13, 0
    %p97 = por %p95, %p96
    %p98 = scmp.ne.s32.totalorder %s84, %s85
    %p99 = scmp.eq.s32.totalorder %s14, 1
    %p100 = por %p98, %p99
    %p102 = scmp.ne.s32.totalorder %s85, %s101
    %p103 = scmp.eq.s32.totalorder %s14, 0
    %p104 = por %p102, %p103
    %p105 = scmp.le.s32.totalorder 1, %s8
    %p106 = scmp.lt.s32.totalorder %s8, 3
    %p107 = pnand %p105, %p106
    %p108 = pneg %p107
    // Predicated region
    $region9: #{feedforward_forward.3} parent=5 // pred_check
      _
    $region10: #{feedforward_forward.3} parent=5 // pred_check_branch
      %110 = sbr.rel (%p107) target = $region12
    $region11: #{feedforward_forward.3} parent=5 // pred_region
      %s111 = ssub.s32 %s8, 1
      // Predicated region
      $region13: #{feedforward_forward.3} parent=11 // pred_check
        %p112 = pneg %p41
      $region14: #{feedforward_forward.3} parent=11 // pred_check_branch
        %114 = sbr.rel (%p112) target = $region16
      $region15: #{feedforward_forward.3} parent=11 // pred_region
        _
      $region16: #{feedforward_forward.3} parent=11 // pred_fallthru
        _
    $region12: #{feedforward_forward.3} parent=5 // pred_fallthru
      _
    %p115 = scmp.lt.s32.totalorder %s8, 2
    // Predicated region
    $region17: #{feedforward_forward.3} parent=5 // pred_check
      %p116 = pneg %p115
    $region18: #{feedforward_forward.3} parent=5 // pred_check_branch
      %118 = sbr.rel (%p116) target = $region20
    $region19: #{feedforward_forward.3} parent=5 // pred_region
      // Predicated region
      $region21: #{feedforward_forward.3} parent=19 // pred_check
        %p119 = pneg %p63
      $region22: #{feedforward_forward.3} parent=19 // pred_check_branch
        %121 = sbr.rel (%p119) target = $region24
      $region23: #{feedforward_forward.3} parent=19 // pred_region
        %s122 = smul.u32 2, %s16
        %p123 = scmp.lt.s32.totalorder %s15, 1
        %s124 = scalar_select %p123, %s15, 1
        %p125 = scmp.lt.s32.totalorder %s122, 1
        %s126 = scalar_select %p125, %s122, 1
        %s127 = smul.addr %s124, 2
        %s128 = sadd.s32 %s126, %s127
        %s129 = smul.addr %s128, 8
        %s130 = scalar_lea.vmem %s1, %s129
        %s131 = smul.u32 2, %s16
      $region24: #{feedforward_forward.3} parent=19 // pred_fallthru
        _
    $region20: #{feedforward_forward.3} parent=5 // pred_fallthru
      _
    %p132 = scmp.le.s32.totalorder 1, %s8
    %p133 = scmp.lt.s32.totalorder %s8, 3
    %p134 = pnand %p132, %p133
    %p135 = pneg %p134
    // Predicated region
    $region25: #{feedforward_forward.3} parent=5 // pred_check
      _
    $region26: #{feedforward_forward.3} parent=5 // pred_check_branch
      %137 = sbr.rel (%p134) target = $region28
    $region27: #{feedforward_forward.3} parent=5 // pred_region
      %s138 = ssub.s32 %s8, 1
      %p139 = pneg %p41
      %p140 = pneg %p38
      %s141 = smul.u32 2, %s18
      %p142 = scmp.lt.s32.totalorder %s17, 1
      %s143 = scalar_select %p142, %s17, 1
      %p144 = scmp.lt.s32.totalorder %s141, 1
      %s145 = scalar_select %p144, %s141, 1
      %s146 = smul.addr %s143, 2
      %s147 = sadd.s32 %s145, %s146
      %s148 = smul.addr %s147, 8
      %s149 = scalar_lea.vmem %s1, %s148
      %p150 = pneg %p69
      %p151 = pneg %p66
      %p152 = pneg %p97
      %p153 = pneg %p94
      %s154 = smul.u32 2, %s18
      %p155 = scmp.lt.s32.totalorder %s17, 1
      %s156 = scalar_select %p155, %s17, 1
      %p157 = scmp.lt.s32.totalorder %s154, 1
      %s158 = scalar_select %p157, %s154, 1
      %s159 = smul.addr %s156, 8
      %s160 = sadd.s32 %s158, %s159
      %s161 = smul.addr %s160, 8
      %s162 = scalar_lea.vmem %s2, %s161
      %s163 = smul.u32 2, %s18
      %p164 = scmp.lt.s32.totalorder %s17, 1
      %s165 = scalar_select %p164, %s17, 1
      %p166 = scmp.lt.s32.totalorder %s163, 1
      %s167 = scalar_select %p166, %s163, 1
      %s168 = smul.addr %s165, 2
      %s169 = sadd.s32 %s167, %s168
      %s170 = smul.addr %s169, 8
      %s171 = scalar_lea.vmem %s1, %s170
      %s172 = smul.u32 2, %s18
      %s173 = smul.u32 2, %s18
      %p174 = scmp.lt.s32.totalorder %s17, 1
      %s175 = scalar_select %p174, %s17, 1
      %p176 = scmp.lt.s32.totalorder %s173, 1
      %s177 = scalar_select %p176, %s173, 1
      %s178 = smul.addr %s175, 8
      %s179 = sadd.s32 %s177, %s178
      %s180 = smul.addr %s179, 8
      %s181 = scalar_lea.vmem %s2, %s180
      %s182 = smul.u32 2, %s18
      %v183 = vld [vmem:[%s0] sm:$0xff]
      %v184 = vld [vmem:[%s0 + $0x8] sm:$0xff]
      %v185 = vld [vmem:[%s0 + $0x10] sm:$0xff]
      %v186 = vld [vmem:[%s0 + $0x18] sm:$0xff]
      %v187 = vld [vmem:[%s171] sm:$0xff]
      %v188 = vld [vmem:[%s171 + $0x8] sm:$0xff]
      %vm189 = vcmask 64512
      %v191 = vsel %vm189, %v183, 0
      %v194 = vsel %vm189, %v184, 0
      %v197 = vsel %vm189, %v185, 0
      %v200 = vsel %vm189, %v186, 0
      %202 = vmatprep.subr.mxu0 %v188
      %203 = vmatpush1.msra.mxu0 %v187
      %204 = vmatprep.subr.mxu0 0.0
      %205 = vmatpush1.msra.mxu0 0.0
      %206 = vmatprep.subr.mxu0 0.0
      %207 = vmatpush1.msra.mxu0 0.0
      %208 = vmatprep.subr.mxu0 0.0
      %209 = vmatpush1.msra.mxu0 0.0
      %210 = vmatprep.subr.mxu0 0.0
      %211 = vmatpush1.msra.mxu0 0.0
      %212 = vmatprep.subr.mxu0 0.0
      %213 = vmatpush1.msra.mxu0 0.0
      %214 = vmatprep.subr.mxu0 0.0
      %215 = vmatpush1.msra.mxu0 0.0
      %216 = vmatprep.subr.mxu0 0.0
      %217 = vmatpush1.msra.mxu0 0.0
      %218 = vmatprep.subr.mxu0 0.0
      %219 = vmatpush1.msra.mxu0 0.0
      %220 = vmatprep.subr.mxu0 0.0
      %221 = vmatpush1.msra.mxu0 0.0
      %222 = vmatprep.subr.mxu0 0.0
      %223 = vmatpush1.msra.mxu0 0.0
      %224 = vmatprep.subr.mxu0 0.0
      %225 = vmatpush1.msra.mxu0 0.0
      %226 = vmatprep.subr.mxu0 0.0
      %227 = vmatpush1.msra.mxu0 0.0
      %228 = vmatprep.subr.mxu0 0.0
      %229 = vmatpush1.msra.mxu0 0.0
      %230 = vmatprep.subr.mxu0 0.0
      %231 = vmatpush1.msra.mxu0 0.0
      %232 = vmatprep.subr.mxu0 0.0
      %233 = vmatpush1.msra.mxu0 0.0
      %234 = vmatprep.subr.mxu0 0.0
      %235 = vmatpush1.msra.mxu0 0.0
      %236 = vmatprep.subr.mxu0 0.0
      %237 = vmatpush1.msra.mxu0 0.0
      %238 = vmatprep.subr.mxu0 0.0
      %239 = vmatpush1.msra.mxu0 0.0
      %240 = vmatprep.subr.mxu0 0.0
      %241 = vmatpush1.msra.mxu0 0.0
      %242 = vmatprep.subr.mxu0 0.0
      %243 = vmatpush1.msra.mxu0 0.0
      %244 = vmatprep.subr.mxu0 0.0
      %245 = vmatpush1.msra.mxu0 0.0
      %246 = vmatprep.subr.mxu0 0.0
      %247 = vmatpush1.msra.mxu0 0.0
      %248 = vmatprep.subr.mxu0 0.0
      %249 = vmatpush1.msra.mxu0 0.0
      %250 = vmatprep.subr.mxu0 0.0
      %251 = vmatpush1.msra.mxu0 0.0
      %252 = vmatprep.subr.mxu0 0.0
      %253 = vmatpush1.msra.mxu0 0.0
      %254 = vmatprep.subr.mxu0 0.0
      %255 = vmatpush1.msra.mxu0 0.0
      %256 = vmatprep.subr.mxu0 0.0
      %257 = vmatpush1.msra.mxu0 0.0
      %258 = vmatprep.subr.mxu0 0.0
      %259 = vmatpush1.msra.mxu0 0.0
      %260 = vmatprep.subr.mxu0 0.0
      %261 = vmatpush1.msra.mxu0 0.0
      %262 = vmatprep.subr.mxu0 0.0
      %263 = vmatpush1.msra.mxu0 0.0
      %264 = vmatprep.subr.mxu0 0.0
      %265 = vmatpush1.msra.mxu0 0.0
      %266 = vmatprep.mubr.f32.mxu0 0.0
      %267 = vmatmul.mubr.f32.gmra.mrb[0].mxu0 %v191
      %v268 = vpop.f32.mrb[0].mxu0
      %v269 = vadd.f32 0.0, %v268
      %v270 = vpop.f32.mrb[0].mxu0
      %v271 = vadd.f32 0.0, %v270
      %272 = vmatprep.mubr.f32.mxu0 0.0
      %273 = vmatmul.mubr.f32.gmra.mrb[0].mxu0 %v194
      %v274 = vpop.f32.mrb[0].mxu0
      %v275 = vadd.f32 0.0, %v274
      %v276 = vpop.f32.mrb[0].mxu0
      %v277 = vadd.f32 0.0, %v276
      %278 = vmatprep.mubr.f32.mxu0 0.0
      %279 = vmatmul.mubr.f32.gmra.mrb[0].mxu0 %v197
      %v280 = vpop.f32.mrb[0].mxu0
      %v281 = vadd.f32 0.0, %v280
      %v282 = vpop.f32.mrb[0].mxu0
      %v283 = vadd.f32 0.0, %v282
      %284 = vmatprep.mubr.f32.mxu0 0.0
      %285 = vmatmul.mubr.f32.gmra.mrb[0].mxu0 %v200
      %v286 = vpop.f32.mrb[0].mxu0
      %v287 = vadd.f32 0.0, %v286
      %v288 = vpop.f32.mrb[0].mxu0
      %v289 = vadd.f32 0.0, %v288
      %290 = vdwg.mxu0
      %291 = vst [vmem:[%s181] sm:$0xff] %v269
      %292 = vst [vmem:[%s181 + $0x8] sm:$0xff] %v271
      %293 = vst [vmem:[%s181 + $0x10] sm:$0xff] %v275
      %294 = vst [vmem:[%s181 + $0x18] sm:$0xff] %v277
      %295 = vst [vmem:[%s181 + $0x20] sm:$0xff] %v281
      %296 = vst [vmem:[%s181 + $0x28] sm:$0xff] %v283
      %297 = vst [vmem:[%s181 + $0x30] sm:$0xff] %v287
      %298 = vst [vmem:[%s181 + $0x38] sm:$0xff] %v289
      %s299 = smul.u32 2, %s18
      %p300 = scmp.lt.s32.totalorder %s17, 1
      %s301 = scalar_select %p300, %s17, 1
      %p302 = scmp.lt.s32.totalorder %s299, 1
      %s303 = scalar_select %p302, %s299, 1
      %s304 = smul.addr %s301, 8
      %s305 = sadd.s32 %s303, %s304
      %s306 = smul.addr %s305, 8
      %s307 = scalar_lea.vmem %s2, %s306
      // Predicated region
      $region29: #{feedforward_forward.3} parent=27 // pred_check
        %p308 = pneg %p94
      $region30: #{feedforward_forward.3} parent=27 // pred_check_branch
        %310 = sbr.rel (%p308) target = $region32
      $region31: #{feedforward_forward.3} parent=27 // pred_region
        %s311 = smul.u32 2, %s18
      $region32: #{feedforward_forward.3} parent=27 // pred_fallthru
        _
    $region28: #{feedforward_forward.3} parent=5 // pred_fallthru
      _
    %p312 = scmp.le.s32.totalorder 2, %s8
    // Predicated region
    $region33: #{feedforward_forward.3} parent=5 // pred_check
      %p313 = pneg %p312
    $region34: #{feedforward_forward.3} parent=5 // pred_check_branch
      %315 = sbr.rel (%p313) target = $region36
    $region35: #{feedforward_forward.3} parent=5 // pred_region
      %s316 = ssub.s32 %s8, 2
      // Predicated region
      $region37: #{feedforward_forward.3} parent=35 // pred_check
        %p317 = pneg %p100
      $region38: #{feedforward_forward.3} parent=35 // pred_check_branch
        %319 = sbr.rel (%p317) target = $region40
      $region39: #{feedforward_forward.3} parent=35 // pred_region
        %s320 = smul.u32 2, %s20
        %p321 = scmp.lt.s32.totalorder %s19, 1
        %s322 = scalar_select %p321, %s19, 1
        %p323 = scmp.lt.s32.totalorder %s320, 1
        %s324 = scalar_select %p323, %s320, 1
        %s325 = smul.addr %s322, 8
        %s326 = sadd.s32 %s324, %s325
        %s327 = smul.addr %s326, 8
        %s328 = scalar_lea.vmem %s2, %s327
      $region40: #{feedforward_forward.3} parent=35 // pred_fallthru
        _
    $region36: #{feedforward_forward.3} parent=5 // pred_fallthru
      _
  $region6: #{feedforward_forward.3} parent=0 // loop_footer
    %s12 = sadd.s32 1, %s8
  $region7: #{feedforward_forward.3} parent=0 // loop_footer_branch
    %7 = sbr.rel target = $region3
  $region8: #{feedforward_forward.3} parent=0 // loop_exit
    _

// kernel: feedforward_forward.4
$region0: #{feedforward_forward.4}
  #allocation0 [shape = 'u32[]', space=smem, size = 0x4, offset = 0x4, fixed_abs, tag = 'smem constant byte address 0x4 - core index']
  #allocation1 [shape = 'u32[144,128]{1,0:T(1,128)}', space=vmem, size = 0x12000, scoped, tag = 'internal scratch']
  %s0 = inlined_call_operand.vmem [shape: f32[9,32,1,1], index: 0, kind: input, shape index: {}]
  %s1 = inlined_call_operand.vmem [shape: f32[2,32,16,16], index: 1, kind: input, shape index: {}]
  %s2 = inlined_call_operand.vmem [shape: f32[2,32,16,16], index: 2, kind: output, shape index: {}]
  %s3 = sld [smem:[#allocation0]]
  $region41: #{feedforward_forward.4} parent=0
    _
  %s5 = ssub.s32 1, %s3
  %s6 = scalar_select 0, %s5, %s3
  loop: start=0, step=1, limit=4
  $region2: #{feedforward_forward.4} parent=0 // loop_pre_header
    _
  $region3: #{feedforward_forward.4} parent=0 // loop_header
    %s8 = sphi 0, %s12
    %p9 = scmp.ge.s32.totalorder %s8, 4
    %s15 = sphi 0, %s27
    %s16 = sphi 0, %s23
    %s17 = sphi 0, %s15
    %s18 = sphi 0, %s16
    %s19 = sphi 0, %s17
    %s20 = sphi 0, %s18
    %s30 = sphi 0, %s32
    %s33 = sphi 0, %s30
    %s34 = sphi 0, %s33
    %s50 = sphi 0, %s34
    %s58 = sphi 0, %s60
    %s61 = sphi 0, %s58
    %s62 = sphi 0, %s61
    %s78 = sphi 0, %s62
    %s86 = sphi 0, %s88
    %s89 = sphi 0, %s86
    %s90 = sphi 0, %s89
    %s106 = sphi 0, %s90
  $region4: #{feedforward_forward.4} parent=0 // loop_header_branch
    %11 = sbr.rel (%p9) target = $region8
  $region5: #{feedforward_forward.4} parent=0 // loop_body
    %s13 = ssub.s32 %s8, 1
    %s14 = ssub.s32 %s8, 2
    %s21 = sadd.s32 1, %s16
    %p22 = scmp.ge.s32.totalorder %s21, 1
    %s23 = scalar_select %p22, 0, %s21
    %s24 = sadd.s32 1, %s15
    %s25 = scalar_select %p22, %s24, %s15
    %p26 = scmp.ge.s32.totalorder %s25, 2
    %s27 = scalar_select %p26, 0, %s25
    %s28 = ssub.s32 %s16, %s23
    %p29 = scmp.eq.s32.totalorder %s28, 0
    %s31 = sadd.s32 %s30, 1
    %s32 = scalar_select %p29, %s30, %s31
    %p35 = pneg %p29
    %p36 = scmp.eq.s32.totalorder %s8, 1
    %p37 = por %p35, %p36
    %p38 = scmp.ne.s32.totalorder %s30, %s33
    %p39 = scmp.eq.s32.totalorder %s8, 0
    %p40 = por %p38, %p39
    %p41 = scmp.ne.s32.totalorder %s30, %s33
    %p42 = scmp.eq.s32.totalorder %s13, 1
    %p43 = por %p41, %p42
    %p44 = scmp.ne.s32.totalorder %s33, %s34
    %p45 = scmp.eq.s32.totalorder %s13, 0
    %p46 = por %p44, %p45
    %p47 = scmp.ne.s32.totalorder %s33, %s34
    %p48 = scmp.eq.s32.totalorder %s14, 1
    %p49 = por %p47, %p48
    %p51 = scmp.ne.s32.totalorder %s34, %s50
    %p52 = scmp.eq.s32.totalorder %s14, 0
    %p53 = por %p51, %p52
    %s54 = ssub.s32 %s15, %s27
    %s55 = ssub.s32 %s16, %s23
    %s56 = sor.u32 %s54, %s55
    %p57 = scmp.eq.s32.totalorder %s56, 0
    %s59 = sadd.s32 %s58, 1
    %s60 = scalar_select %p57, %s58, %s59
    %p63 = pneg %p57
    %p64 = scmp.eq.s32.totalorder %s8, 1
    %p65 = por %p63, %p64
    %p66 = scmp.ne.s32.totalorder %s58, %s61
    %p67 = scmp.eq.s32.totalorder %s8, 0
    %p68 = por %p66, %p67
    %p69 = scmp.ne.s32.totalorder %s58, %s61
    %p70 = scmp.eq.s32.totalorder %s13, 1
    %p71 = por %p69, %p70
    %p72 = scmp.ne.s32.totalorder %s61, %s62
    %p73 = scmp.eq.s32.totalorder %s13, 0
    %p74 = por %p72, %p73
    %p75 = scmp.ne.s32.totalorder %s61, %s62
    %p76 = scmp.eq.s32.totalorder %s14, 1
    %p77 = por %p75, %p76
    %p79 = scmp.ne.s32.totalorder %s62, %s78
    %p80 = scmp.eq.s32.totalorder %s14, 0
    %p81 = por %p79, %p80
    %s82 = ssub.s32 %s15, %s27
    %s83 = ssub.s32 %s16, %s23
    %s84 = sor.u32 %s82, %s83
    %p85 = scmp.eq.s32.totalorder %s84, 0
    %s87 = sadd.s32 %s86, 1
    %s88 = scalar_select %p85, %s86, %s87
    %p91 = pneg %p85
    %p92 = scmp.eq.s32.totalorder %s8, 1
    %p93 = por %p91, %p92
    %p94 = scmp.ne.s32.totalorder %s86, %s89
    %p95 = scmp.eq.s32.totalorder %s8, 0
    %p96 = por %p94, %p95
    %p97 = scmp.ne.s32.totalorder %s86, %s89
    %p98 = scmp.eq.s32.totalorder %s13, 1
    %p99 = por %p97, %p98
    %p100 = scmp.ne.s32.totalorder %s89, %s90
    %p101 = scmp.eq.s32.totalorder %s13, 0
    %p102 = por %p100, %p101
    %p103 = scmp.ne.s32.totalorder %s89, %s90
    %p104 = scmp.eq.s32.totalorder %s14, 1
    %p105 = por %p103, %p104
    %p107 = scmp.ne.s32.totalorder %s90, %s106
    %p108 = scmp.eq.s32.totalorder %s14, 0
    %p109 = por %p107, %p108
    %p110 = scmp.le.s32.totalorder 1, %s8
    %p111 = scmp.lt.s32.totalorder %s8, 3
    %p112 = pnand %p110, %p111
    %p113 = pneg %p112
    // Predicated region
    $region9: #{feedforward_forward.4} parent=5 // pred_check
      _
    $region10: #{feedforward_forward.4} parent=5 // pred_check_branch
      %115 = sbr.rel (%p112) target = $region12
    $region11: #{feedforward_forward.4} parent=5 // pred_region
      %s116 = ssub.s32 %s8, 1
      // Predicated region
      $region13: #{feedforward_forward.4} parent=11 // pred_check
        %p117 = pneg %p46
      $region14: #{feedforward_forward.4} parent=11 // pred_check_branch
        %119 = sbr.rel (%p117) target = $region16
      $region15: #{feedforward_forward.4} parent=11 // pred_region
        %s120 = smul.u32 32, %s18
        %p121 = scmp.lt.s32.totalorder %s120, 31
        %s122 = scalar_select %p121, %s120, 31
        %s123 = scalar_lea.vmem %s0, %s122
        %s124 = smul.u32 32, %s18
      $region16: #{feedforward_forward.4} parent=11 // pred_fallthru
        _
    $region12: #{feedforward_forward.4} parent=5 // pred_fallthru
      _
    %p125 = scmp.lt.s32.totalorder %s8, 2
    // Predicated region
    $region17: #{feedforward_forward.4} parent=5 // pred_check
      %p126 = pneg %p125
    $region18: #{feedforward_forward.4} parent=5 // pred_check_branch
      %128 = sbr.rel (%p126) target = $region20
    $region19: #{feedforward_forward.4} parent=5 // pred_region
      // Predicated region
      $region21: #{feedforward_forward.4} parent=19 // pred_check
        %p129 = pneg %p68
      $region22: #{feedforward_forward.4} parent=19 // pred_check_branch
        %131 = sbr.rel (%p129) target = $region24
      $region23: #{feedforward_forward.4} parent=19 // pred_region
        %s132 = smul.u32 32, %s16
        %p133 = scmp.lt.s32.totalorder %s15, 1
        %s134 = scalar_select %p133, %s15, 1
        %p135 = scmp.lt.s32.totalorder %s132, 31
        %s136 = scalar_select %p135, %s132, 31
        %s137 = smul.addr %s136, 2
        %s138 = smul.addr %s134, 64
        %s139 = sadd.s32 %s137, %s138
        %s140 = smul.addr %s139, 8
        %s141 = scalar_lea.vmem %s1, %s140
        %s142 = smul.u32 32, %s16
      $region24: #{feedforward_forward.4} parent=19 // pred_fallthru
        _
    $region20: #{feedforward_forward.4} parent=5 // pred_fallthru
      _
    %p143 = scmp.le.s32.totalorder 1, %s8
    %p144 = scmp.lt.s32.totalorder %s8, 3
    %p145 = pnand %p143, %p144
    %p146 = pneg %p145
    // Predicated region
    $region25: #{feedforward_forward.4} parent=5 // pred_check
      _
    $region26: #{feedforward_forward.4} parent=5 // pred_check_branch
      %148 = sbr.rel (%p145) target = $region28
    $region27: #{feedforward_forward.4} parent=5 // pred_region
      %s149 = ssub.s32 %s8, 1
      %s150 = smul.u32 32, %s18
      %p151 = scmp.lt.s32.totalorder %s150, 31
      %s152 = scalar_select %p151, %s150, 31
      %s153 = scalar_lea.vmem %s0, %s152
      %p154 = pneg %p46
      %p155 = pneg %p43
      %s156 = smul.u32 32, %s18
      %p157 = scmp.lt.s32.totalorder %s17, 1
      %s158 = scalar_select %p157, %s17, 1
      %p159 = scmp.lt.s32.totalorder %s156, 31
      %s160 = scalar_select %p159, %s156, 31
      %s161 = smul.addr %s160, 2
      %s162 = smul.addr %s158, 64
      %s163 = sadd.s32 %s161, %s162
      %s164 = smul.addr %s163, 8
      %s165 = scalar_lea.vmem %s1, %s164
      %p166 = pneg %p74
      %p167 = pneg %p71
      %p168 = pneg %p102
      %p169 = pneg %p99
      %s170 = smul.u32 32, %s18
      %p171 = scmp.lt.s32.totalorder %s17, 1
      %s172 = scalar_select %p171, %s17, 1
      %p173 = scmp.lt.s32.totalorder %s170, 31
      %s174 = scalar_select %p173, %s170, 31
      %s175 = smul.addr %s174, 2
      %s176 = smul.addr %s172, 64
      %s177 = sadd.s32 %s175, %s176
      %s178 = smul.addr %s177, 8
      %s179 = scalar_lea.vmem %s2, %s178
      %s180 = smul.u32 32, %s18
      %p181 = scmp.lt.s32.totalorder %s180, 31
      %s182 = scalar_select %p181, %s180, 31
      %s183 = scalar_lea.vmem %s0, %s182
      %s184 = smul.u32 32, %s18
      %s185 = smul.u32 32, %s18
      %p186 = scmp.lt.s32.totalorder %s17, 1
      %s187 = scalar_select %p186, %s17, 1
      %p188 = scmp.lt.s32.totalorder %s185, 31
      %s189 = scalar_select %p188, %s185, 31
      %s190 = smul.addr %s189, 2
      %s191 = smul.addr %s187, 64
      %s192 = sadd.s32 %s190, %s191
      %s193 = smul.addr %s192, 8
      %s194 = scalar_lea.vmem %s1, %s193
      %s195 = smul.u32 32, %s18
      %s196 = smul.u32 32, %s18
      %p197 = scmp.lt.s32.totalorder %s17, 1
      %s198 = scalar_select %p197, %s17, 1
      %p199 = scmp.lt.s32.totalorder %s196, 31
      %s200 = scalar_select %p199, %s196, 31
      %s201 = smul.addr %s200, 2
      %s202 = smul.addr %s198, 64
      %s203 = sadd.s32 %s201, %s202
      %s204 = smul.addr %s203, 8
      %s205 = scalar_lea.vmem %s2, %s204
      %s206 = smul.u32 32, %s18
      %v207 = vld [vmem:[%s194] sm:$0xff]
      %v208 = vld [vmem:[%s194 + $0x8] sm:$0xff]
      %v209 = vld [vmem:[%s194 + $0x10] sm:$0xff]
      %v210 = vld [vmem:[%s194 + $0x18] sm:$0xff]
      %v211 = vld [vmem:[%s194 + $0x20] sm:$0xff]
      %v212 = vld [vmem:[%s194 + $0x28] sm:$0xff]
      %v213 = vld [vmem:[%s194 + $0x30] sm:$0xff]
      %v214 = vld [vmem:[%s194 + $0x38] sm:$0xff]
      %v215 = vld [vmem:[%s194 + $0x40] sm:$0xff]
      %v216 = vld [vmem:[%s194 + $0x48] sm:$0xff]
      %v217 = vld [vmem:[%s194 + $0x50] sm:$0xff]
      %v218 = vld [vmem:[%s194 + $0x58] sm:$0xff]
      %v219 = vld [vmem:[%s194 + $0x60] sm:$0xff]
      %v220 = vld [vmem:[%s194 + $0x68] sm:$0xff]
      %v221 = vld [vmem:[%s194 + $0x70] sm:$0xff]
      %v222 = vld [vmem:[%s194 + $0x78] sm:$0xff]
      %v223 = vld [vmem:[%s194 + $0x80] sm:$0xff]
      %v224 = vld [vmem:[%s194 + $0x88] sm:$0xff]
      %v225 = vld [vmem:[%s194 + $0x90] sm:$0xff]
      %v226 = vld [vmem:[%s194 + $0x98] sm:$0xff]
      %v227 = vld [vmem:[%s194 + $0xa0] sm:$0xff]
      %v228 = vld [vmem:[%s194 + $0xa8] sm:$0xff]
      %v229 = vld [vmem:[%s194 + $0xb0] sm:$0xff]
      %v230 = vld [vmem:[%s194 + $0xb8] sm:$0xff]
      %v231 = vld [vmem:[%s194 + $0xc0] sm:$0xff]
      %v232 = vld [vmem:[%s194 + $0xc8] sm:$0xff]
      %v233 = vld [vmem:[%s194 + $0xd0] sm:$0xff]
      %v234 = vld [vmem:[%s194 + $0xd8] sm:$0xff]
      %v235 = vld [vmem:[%s194 + $0xe0] sm:$0xff]
      %v236 = vld [vmem:[%s194 + $0xe8] sm:$0xff]
      %v237 = vld [vmem:[%s194 + $0xf0] sm:$0xff]
      %v238 = vld [vmem:[%s194 + $0xf8] sm:$0xff]
      %v239 = vld [vmem:[%s194 + $0x100] sm:$0xff]
      %v240 = vld [vmem:[%s194 + $0x108] sm:$0xff]
      %v241 = vld [vmem:[%s194 + $0x110] sm:$0xff]
      %v242 = vld [vmem:[%s194 + $0x118] sm:$0xff]
      %v243 = vld [vmem:[%s194 + $0x120] sm:$0xff]
      %v244 = vld [vmem:[%s194 + $0x128] sm:$0xff]
      %v245 = vld [vmem:[%s194 + $0x130] sm:$0xff]
      %v246 = vld [vmem:[%s194 + $0x138] sm:$0xff]
      %v247 = vld [vmem:[%s194 + $0x140] sm:$0xff]
      %v248 = vld [vmem:[%s194 + $0x148] sm:$0xff]
      %v249 = vld [vmem:[%s194 + $0x150] sm:$0xff]
      %v250 = vld [vmem:[%s194 + $0x158] sm:$0xff]
      %v251 = vld [vmem:[%s194 + $0x160] sm:$0xff]
      %v252 = vld [vmem:[%s194 + $0x168] sm:$0xff]
      %v253 = vld [vmem:[%s194 + $0x170] sm:$0xff]
      %v254 = vld [vmem:[%s194 + $0x178] sm:$0xff]
      %v255 = vld [vmem:[%s194 + $0x180] sm:$0xff]
      %v256 = vld [vmem:[%s194 + $0x188] sm:$0xff]
      %v257 = vld [vmem:[%s194 + $0x190] sm:$0xff]
      %v258 = vld [vmem:[%s194 + $0x198] sm:$0xff]
      %v259 = vld [vmem:[%s194 + $0x1a0] sm:$0xff]
      %v260 = vld [vmem:[%s194 + $0x1a8] sm:$0xff]
      %v261 = vld [vmem:[%s194 + $0x1b0] sm:$0xff]
      %v262 = vld [vmem:[%s194 + $0x1b8] sm:$0xff]
      %v263 = vld [vmem:[%s194 + $0x1c0] sm:$0xff]
      %v264 = vld [vmem:[%s194 + $0x1c8] sm:$0xff]
      %v265 = vld [vmem:[%s194 + $0x1d0] sm:$0xff]
      %v266 = vld [vmem:[%s194 + $0x1d8] sm:$0xff]
      %v267 = vld [vmem:[%s194 + $0x1e0] sm:$0xff]
      %v268 = vld [vmem:[%s194 + $0x1e8] sm:$0xff]
      %v269 = vld [vmem:[%s194 + $0x1f0] sm:$0xff]
      %v270 = vld [vmem:[%s194 + $0x1f8] sm:$0xff]
      %335 = vrot.lane.b32.xlu0 %v207, 2
      %v336 = vpop.permute.xlu0 %335
      %337 = vrot.lane.b32.xlu0 %v208, 2
      %v338 = vpop.permute.xlu0 %337
      %339 = vrot.lane.b32.xlu0 %v209, 2
      %v340 = vpop.permute.xlu0 %339
      %341 = vrot.lane.b32.xlu0 %v210, 2
      %v342 = vpop.permute.xlu0 %341
      %343 = vrot.lane.b32.xlu0 %v211, 2
      %v344 = vpop.permute.xlu0 %343
      %345 = vrot.lane.b32.xlu0 %v212, 2
      %v346 = vpop.permute.xlu0 %345
      %347 = vrot.lane.b32.xlu0 %v213, 2
      %v348 = vpop.permute.xlu0 %347
      %349 = vrot.lane.b32.xlu0 %v214, 2
      %v350 = vpop.permute.xlu0 %349
      %351 = vrot.lane.b32.xlu0 %v215, 2
      %v352 = vpop.permute.xlu0 %351
      %353 = vrot.lane.b32.xlu0 %v216, 2
      %v354 = vpop.permute.xlu0 %353
      %355 = vrot.lane.b32.xlu0 %v217, 2
      %v356 = vpop.permute.xlu0 %355
      %357 = vrot.lane.b32.xlu0 %v218, 2
      %v358 = vpop.permute.xlu0 %357
      %359 = vrot.lane.b32.xlu0 %v219, 2
      %v360 = vpop.permute.xlu0 %359
      %361 = vrot.lane.b32.xlu0 %v220, 2
      %v362 = vpop.permute.xlu0 %361
      %363 = vrot.lane.b32.xlu0 %v221, 2
      %v364 = vpop.permute.xlu0 %363
      %365 = vrot.lane.b32.xlu0 %v222, 2
      %v366 = vpop.permute.xlu0 %365
      %367 = vrot.lane.b32.xlu0 %v223, 2
      %v368 = vpop.permute.xlu0 %367
      %369 = vrot.lane.b32.xlu0 %v224, 2
      %v370 = vpop.permute.xlu0 %369
      %371 = vrot.lane.b32.xlu0 %v225, 2
      %v372 = vpop.permute.xlu0 %371
      %373 = vrot.lane.b32.xlu0 %v226, 2
      %v374 = vpop.permute.xlu0 %373
      %375 = vrot.lane.b32.xlu0 %v227, 2
      %v376 = vpop.permute.xlu0 %375
      %377 = vrot.lane.b32.xlu0 %v228, 2
      %v378 = vpop.permute.xlu0 %377
      %379 = vrot.lane.b32.xlu0 %v229, 2
      %v380 = vpop.permute.xlu0 %379
      %381 = vrot.lane.b32.xlu0 %v230, 2
      %v382 = vpop.permute.xlu0 %381
      %383 = vrot.lane.b32.xlu0 %v231, 2
      %v384 = vpop.permute.xlu0 %383
      %385 = vrot.lane.b32.xlu0 %v232, 2
      %v386 = vpop.permute.xlu0 %385
      %387 = vrot.lane.b32.xlu0 %v233, 2
      %v388 = vpop.permute.xlu0 %387
      %389 = vrot.lane.b32.xlu0 %v234, 2
      %v390 = vpop.permute.xlu0 %389
      %391 = vrot.lane.b32.xlu0 %v235, 2
      %v392 = vpop.permute.xlu0 %391
      %393 = vrot.lane.b32.xlu0 %v236, 2
      %v394 = vpop.permute.xlu0 %393
      %395 = vrot.lane.b32.xlu0 %v237, 2
      %v396 = vpop.permute.xlu0 %395
      %397 = vrot.lane.b32.xlu0 %v238, 2
      %v398 = vpop.permute.xlu0 %397
      %399 = vrot.lane.b32.xlu0 %v239, 2
      %v400 = vpop.permute.xlu0 %399
      %401 = vrot.lane.b32.xlu0 %v240, 2
      %v402 = vpop.permute.xlu0 %401
      %403 = vrot.lane.b32.xlu0 %v241, 2
      %v404 = vpop.permute.xlu0 %403
      %405 = vrot.lane.b32.xlu0 %v242, 2
      %v406 = vpop.permute.xlu0 %405
      %407 = vrot.lane.b32.xlu0 %v243, 2
      %v408 = vpop.permute.xlu0 %407
      %409 = vrot.lane.b32.xlu0 %v244, 2
      %v410 = vpop.permute.xlu0 %409
      %411 = vrot.lane.b32.xlu0 %v245, 2
      %v412 = vpop.permute.xlu0 %411
      %413 = vrot.lane.b32.xlu0 %v246, 2
      %v414 = vpop.permute.xlu0 %413
      %415 = vrot.lane.b32.xlu0 %v247, 2
      %v416 = vpop.permute.xlu0 %415
      %417 = vrot.lane.b32.xlu0 %v248, 2
      %v418 = vpop.permute.xlu0 %417
      %419 = vrot.lane.b32.xlu0 %v249, 2
      %v420 = vpop.permute.xlu0 %419
      %421 = vrot.lane.b32.xlu0 %v250, 2
      %v422 = vpop.permute.xlu0 %421
      %423 = vrot.lane.b32.xlu0 %v251, 2
      %v424 = vpop.permute.xlu0 %423
      %425 = vrot.lane.b32.xlu0 %v252, 2
      %v426 = vpop.permute.xlu0 %425
      %427 = vrot.lane.b32.xlu0 %v253, 2
      %v428 = vpop.permute.xlu0 %427
      %429 = vrot.lane.b32.xlu0 %v254, 2
      %v430 = vpop.permute.xlu0 %429
      %431 = vrot.lane.b32.xlu0 %v255, 2
      %v432 = vpop.permute.xlu0 %431
      %433 = vrot.lane.b32.xlu0 %v256, 2
      %v434 = vpop.permute.xlu0 %433
      %435 = vrot.lane.b32.xlu0 %v257, 2
      %v436 = vpop.permute.xlu0 %435
      %437 = vrot.lane.b32.xlu0 %v258, 2
      %v438 = vpop.permute.xlu0 %437
      %439 = vrot.lane.b32.xlu0 %v259, 2
      %v440 = vpop.permute.xlu0 %439
      %441 = vrot.lane.b32.xlu0 %v260, 2
      %v442 = vpop.permute.xlu0 %441
      %443 = vrot.lane.b32.xlu0 %v261, 2
      %v444 = vpop.permute.xlu0 %443
      %445 = vrot.lane.b32.xlu0 %v262, 2
      %v446 = vpop.permute.xlu0 %445
      %447 = vrot.lane.b32.xlu0 %v263, 2
      %v448 = vpop.permute.xlu0 %447
      %449 = vrot.lane.b32.xlu0 %v264, 2
      %v450 = vpop.permute.xlu0 %449
      %451 = vrot.lane.b32.xlu0 %v265, 2
      %v452 = vpop.permute.xlu0 %451
      %453 = vrot.lane.b32.xlu0 %v266, 2
      %v454 = vpop.permute.xlu0 %453
      %455 = vrot.lane.b32.xlu0 %v267, 2
      %v456 = vpop.permute.xlu0 %455
      %457 = vrot.lane.b32.xlu0 %v268, 2
      %v458 = vpop.permute.xlu0 %457
      %459 = vrot.lane.b32.xlu0 %v269, 2
      %v460 = vpop.permute.xlu0 %459
      %461 = vrot.lane.b32.xlu0 %v270, 2
      %v462 = vpop.permute.xlu0 %461
      %vm527 = vcmask 15360
      %v528 = vsel %vm527, 0.0, %v336
      %v529 = vsel %vm527, 0.0, %v338
      %v530 = vsel %vm527, 0.0, %v340
      %v531 = vsel %vm527, 0.0, %v342
      %v532 = vsel %vm527, 0.0, %v344
      %v533 = vsel %vm527, 0.0, %v346
      %v534 = vsel %vm527, 0.0, %v348
      %v535 = vsel %vm527, 0.0, %v350
      %v536 = vsel %vm527, 0.0, %v352
      %v537 = vsel %vm527, 0.0, %v354
      %v538 = vsel %vm527, 0.0, %v356
      %v539 = vsel %vm527, 0.0, %v358
      %v540 = vsel %vm527, 0.0, %v360
      %v541 = vsel %vm527, 0.0, %v362
      %v542 = vsel %vm527, 0.0, %v364
      %v543 = vsel %vm527, 0.0, %v366
      %v544 = vsel %vm527, 0.0, %v368
      %v545 = vsel %vm527, 0.0, %v370
      %v546 = vsel %vm527, 0.0, %v372
      %v547 = vsel %vm527, 0.0, %v374
      %v548 = vsel %vm527, 0.0, %v376
      %v549 = vsel %vm527, 0.0, %v378
      %v550 = vsel %vm527, 0.0, %v380
      %v551 = vsel %vm527, 0.0, %v382
      %v552 = vsel %vm527, 0.0, %v384
      %v553 = vsel %vm527, 0.0, %v386
      %v554 = vsel %vm527, 0.0, %v388
      %v555 = vsel %vm527, 0.0, %v390
      %v556 = vsel %vm527, 0.0, %v392
      %v557 = vsel %vm527, 0.0, %v394
      %v558 = vsel %vm527, 0.0, %v396
      %v559 = vsel %vm527, 0.0, %v398
      %v560 = vsel %vm527, 0.0, %v400
      %v561 = vsel %vm527, 0.0, %v402
      %v562 = vsel %vm527, 0.0, %v404
      %v563 = vsel %vm527, 0.0, %v406
      %v564 = vsel %vm527, 0.0, %v408
      %v565 = vsel %vm527, 0.0, %v410
      %v566 = vsel %vm527, 0.0, %v412
      %v567 = vsel %vm527, 0.0, %v414
      %v568 = vsel %vm527, 0.0, %v416
      %v569 = vsel %vm527, 0.0, %v418
      %v570 = vsel %vm527, 0.0, %v420
      %v571 = vsel %vm527, 0.0, %v422
      %v572 = vsel %vm527, 0.0, %v424
      %v573 = vsel %vm527, 0.0, %v426
      %v574 = vsel %vm527, 0.0, %v428
      %v575 = vsel %vm527, 0.0, %v430
      %v576 = vsel %vm527, 0.0, %v432
      %v577 = vsel %vm527, 0.0, %v434
      %v578 = vsel %vm527, 0.0, %v436
      %v579 = vsel %vm527, 0.0, %v438
      %v580 = vsel %vm527, 0.0, %v440
      %v581 = vsel %vm527, 0.0, %v442
      %v582 = vsel %vm527, 0.0, %v444
      %v583 = vsel %vm527, 0.0, %v446
      %v584 = vsel %vm527, 0.0, %v448
      %v585 = vsel %vm527, 0.0, %v450
      %v586 = vsel %vm527, 0.0, %v452
      %v587 = vsel %vm527, 0.0, %v454
      %v588 = vsel %vm527, 0.0, %v456
      %v589 = vsel %vm527, 0.0, %v458
      %v590 = vsel %vm527, 0.0, %v460
      %v591 = vsel %vm527, 0.0, %v462
      %vm592 = vcmask 146432
      %v593 = vsel %vm592, %v528, 0.0
      %v594 = vsel %vm592, %v529, 0.0
      %v595 = vsel %vm592, %v530, 0.0
      %v596 = vsel %vm592, %v531, 0.0
      %v597 = vsel %vm592, %v532, 0.0
      %v598 = vsel %vm592, %v533, 0.0
      %v599 = vsel %vm592, %v534, 0.0
      %v600 = vsel %vm592, %v535, 0.0
      %v601 = vsel %vm592, %v536, 0.0
      %v602 = vsel %vm592, %v537, 0.0
      %v603 = vsel %vm592, %v538, 0.0
      %v604 = vsel %vm592, %v539, 0.0
      %v605 = vsel %vm592, %v540, 0.0
      %v606 = vsel %vm592, %v541, 0.0
      %v607 = vsel %vm592, %v542, 0.0
      %v608 = vsel %vm592, %v543, 0.0
      %v609 = vsel %vm592, %v544, 0.0
      %v610 = vsel %vm592, %v545, 0.0
      %v611 = vsel %vm592, %v546, 0.0
      %v612 = vsel %vm592, %v547, 0.0
      %v613 = vsel %vm592, %v548, 0.0
      %v614 = vsel %vm592, %v549, 0.0
      %v615 = vsel %vm592, %v550, 0.0
      %v616 = vsel %vm592, %v551, 0.0
      %v617 = vsel %vm592, %v552, 0.0
      %v618 = vsel %vm592, %v553, 0.0
      %v619 = vsel %vm592, %v554, 0.0
      %v620 = vsel %vm592, %v555, 0.0
      %v621 = vsel %vm592, %v556, 0.0
      %v622 = vsel %vm592, %v557, 0.0
      %v623 = vsel %vm592, %v558, 0.0
      %v624 = vsel %vm592, %v559, 0.0
      %v625 = vsel %vm592, %v560, 0.0
      %v626 = vsel %vm592, %v561, 0.0
      %v627 = vsel %vm592, %v562, 0.0
      %v628 = vsel %vm592, %v563, 0.0
      %v629 = vsel %vm592, %v564, 0.0
      %v630 = vsel %vm592, %v565, 0.0
      %v631 = vsel %vm592, %v566, 0.0
      %v632 = vsel %vm592, %v567, 0.0
      %v633 = vsel %vm592, %v568, 0.0
      %v634 = vsel %vm592, %v569, 0.0
      %v635 = vsel %vm592, %v570, 0.0
      %v636 = vsel %vm592, %v571, 0.0
      %v637 = vsel %vm592, %v572, 0.0
      %v638 = vsel %vm592, %v573, 0.0
      %v639 = vsel %vm592, %v574, 0.0
      %v640 = vsel %vm592, %v575, 0.0
      %v641 = vsel %vm592, %v576, 0.0
      %v642 = vsel %vm592, %v577, 0.0
      %v643 = vsel %vm592, %v578, 0.0
      %v644 = vsel %vm592, %v579, 0.0
      %v645 = vsel %vm592, %v580, 0.0
      %v646 = vsel %vm592, %v581, 0.0
      %v647 = vsel %vm592, %v582, 0.0
      %v648 = vsel %vm592, %v583, 0.0
      %v649 = vsel %vm592, %v584, 0.0
      %v650 = vsel %vm592, %v585, 0.0
      %v651 = vsel %vm592, %v586, 0.0
      %v652 = vsel %vm592, %v587, 0.0
      %v653 = vsel %vm592, %v588, 0.0
      %v654 = vsel %vm592, %v589, 0.0
      %v655 = vsel %vm592, %v590, 0.0
      %v656 = vsel %vm592, %v591, 0.0
      %vm721 = vcmask 1041408
      %v722 = vrot.slane %v593, 6
      %v723 = vrot.slane %v594, 6
      %v724 = vsel %vm721, %v722, %v723
      %v725 = vrot.slane %v595, 6
      %v726 = vrot.slane %v596, 6
      %v727 = vsel %vm721, %v725, %v726
      %v728 = vrot.slane %v597, 6
      %v729 = vrot.slane %v598, 6
      %v730 = vsel %vm721, %v728, %v729
      %v731 = vrot.slane %v599, 6
      %v732 = vrot.slane %v600, 6
      %v733 = vsel %vm721, %v731, %v732
      %v734 = vrot.slane %v601, 6
      %v735 = vrot.slane %v602, 6
      %v736 = vsel %vm721, %v734, %v735
      %v737 = vrot.slane %v603, 6
      %v738 = vrot.slane %v604, 6
      %v739 = vsel %vm721, %v737, %v738
      %v740 = vrot.slane %v605, 6
      %v741 = vrot.slane %v606, 6
      %v742 = vsel %vm721, %v740, %v741
      %v743 = vrot.slane %v607, 6
      %v744 = vrot.slane %v608, 6
      %v745 = vsel %vm721, %v743, %v744
      %v746 = vrot.slane %v609, 6
      %v747 = vrot.slane %v610, 6
      %v748 = vsel %vm721, %v746, %v747
      %v749 = vrot.slane %v611, 6
      %v750 = vrot.slane %v612, 6
      %v751 = vsel %vm721, %v749, %v750
      %v752 = vrot.slane %v613, 6
      %v753 = vrot.slane %v614, 6
      %v754 = vsel %vm721, %v752, %v753
      %v755 = vrot.slane %v615, 6
      %v756 = vrot.slane %v616, 6
      %v757 = vsel %vm721, %v755, %v756
      %v758 = vrot.slane %v617, 6
      %v759 = vrot.slane %v618, 6
      %v760 = vsel %vm721, %v758, %v759
      %v761 = vrot.slane %v619, 6
      %v762 = vrot.slane %v620, 6
      %v763 = vsel %vm721, %v761, %v762
      %v764 = vrot.slane %v621, 6
      %v765 = vrot.slane %v622, 6
      %v766 = vsel %vm721, %v764, %v765
      %v767 = vrot.slane %v623, 6
      %v768 = vrot.slane %v624, 6
      %v769 = vsel %vm721, %v767, %v768
      %v770 = vrot.slane %v625, 6
      %v771 = vrot.slane %v626, 6
      %v772 = vsel %vm721, %v770, %v771
      %v773 = vrot.slane %v627, 6
      %v774 = vrot.slane %v628, 6
      %v775 = vsel %vm721, %v773, %v774
      %v776 = vrot.slane %v629, 6
      %v777 = vrot.slane %v630, 6
      %v778 = vsel %vm721, %v776, %v777
      %v779 = vrot.slane %v631, 6
      %v780 = vrot.slane %v632, 6
      %v781 = vsel %vm721, %v779, %v780
      %v782 = vrot.slane %v633, 6
      %v783 = vrot.slane %v634, 6
      %v784 = vsel %vm721, %v782, %v783
      %v785 = vrot.slane %v635, 6
      %v786 = vrot.slane %v636, 6
      %v787 = vsel %vm721, %v785, %v786
      %v788 = vrot.slane %v637, 6
      %v789 = vrot.slane %v638, 6
      %v790 = vsel %vm721, %v788, %v789
      %v791 = vrot.slane %v639, 6
      %v792 = vrot.slane %v640, 6
      %v793 = vsel %vm721, %v791, %v792
      %v794 = vrot.slane %v641, 6
      %v795 = vrot.slane %v642, 6
      %v796 = vsel %vm721, %v794, %v795
      %v797 = vrot.slane %v643, 6
      %v798 = vrot.slane %v644, 6
      %v799 = vsel %vm721, %v797, %v798
      %v800 = vrot.slane %v645, 6
      %v801 = vrot.slane %v646, 6
      %v802 = vsel %vm721, %v800, %v801
      %v803 = vrot.slane %v647, 6
      %v804 = vrot.slane %v648, 6
      %v805 = vsel %vm721, %v803, %v804
      %v806 = vrot.slane %v649, 6
      %v807 = vrot.slane %v650, 6
      %v808 = vsel %vm721, %v806, %v807
      %v809 = vrot.slane %v651, 6
      %v810 = vrot.slane %v652, 6
      %v811 = vsel %vm721, %v809, %v810
      %v812 = vrot.slane %v653, 6
      %v813 = vrot.slane %v654, 6
      %v814 = vsel %vm721, %v812, %v813
      %v815 = vrot.slane %v655, 6
      %v816 = vrot.slane %v656, 6
      %v817 = vsel %vm721, %v815, %v816
      %v914 = vsel %vm721, 0.0, %v722
      %v915 = vsel %vm721, 0.0, %v725
      %v916 = vsel %vm721, 0.0, %v728
      %v917 = vsel %vm721, 0.0, %v731
      %v918 = vsel %vm721, 0.0, %v734
      %v919 = vsel %vm721, 0.0, %v737
      %v920 = vsel %vm721, 0.0, %v740
      %v921 = vsel %vm721, 0.0, %v743
      %v922 = vsel %vm721, 0.0, %v746
      %v923 = vsel %vm721, 0.0, %v749
      %v924 = vsel %vm721, 0.0, %v752
      %v925 = vsel %vm721, 0.0, %v755
      %v926 = vsel %vm721, 0.0, %v758
      %v927 = vsel %vm721, 0.0, %v761
      %v928 = vsel %vm721, 0.0, %v764
      %v929 = vsel %vm721, 0.0, %v767
      %v930 = vsel %vm721, 0.0, %v770
      %v931 = vsel %vm721, 0.0, %v773
      %v932 = vsel %vm721, 0.0, %v776
      %v933 = vsel %vm721, 0.0, %v779
      %v934 = vsel %vm721, 0.0, %v782
      %v935 = vsel %vm721, 0.0, %v785
      %v936 = vsel %vm721, 0.0, %v788
      %v937 = vsel %vm721, 0.0, %v791
      %v938 = vsel %vm721, 0.0, %v794
      %v939 = vsel %vm721, 0.0, %v797
      %v940 = vsel %vm721, 0.0, %v800
      %v941 = vsel %vm721, 0.0, %v803
      %v942 = vsel %vm721, 0.0, %v806
      %v943 = vsel %vm721, 0.0, %v809
      %v944 = vsel %vm721, 0.0, %v812
      %v945 = vsel %vm721, 0.0, %v815
      %v946 = vsel %vm721, %v723, 0.0
      %v947 = vsel %vm721, %v726, 0.0
      %v948 = vsel %vm721, %v729, 0.0
      %v949 = vsel %vm721, %v732, 0.0
      %v950 = vsel %vm721, %v735, 0.0
      %v951 = vsel %vm721, %v738, 0.0
      %v952 = vsel %vm721, %v741, 0.0
      %v953 = vsel %vm721, %v744, 0.0
      %v954 = vsel %vm721, %v747, 0.0
      %v955 = vsel %vm721, %v750, 0.0
      %v956 = vsel %vm721, %v753, 0.0
      %v957 = vsel %vm721, %v756, 0.0
      %v958 = vsel %vm721, %v759, 0.0
      %v959 = vsel %vm721, %v762, 0.0
      %v960 = vsel %vm721, %v765, 0.0
      %v961 = vsel %vm721, %v768, 0.0
      %v962 = vsel %vm721, %v771, 0.0
      %v963 = vsel %vm721, %v774, 0.0
      %v964 = vsel %vm721, %v777, 0.0
      %v965 = vsel %vm721, %v780, 0.0
      %v966 = vsel %vm721, %v783, 0.0
      %v967 = vsel %vm721, %v786, 0.0
      %v968 = vsel %vm721, %v789, 0.0
      %v969 = vsel %vm721, %v792, 0.0
      %v970 = vsel %vm721, %v795, 0.0
      %v971 = vsel %vm721, %v798, 0.0
      %v972 = vsel %vm721, %v801, 0.0
      %v973 = vsel %vm721, %v804, 0.0
      %v974 = vsel %vm721, %v807, 0.0
      %v975 = vsel %vm721, %v810, 0.0
      %v976 = vsel %vm721, %v813, 0.0
      %v977 = vsel %vm721, %v816, 0.0
      %v978 = vld [vmem:[%s183] sm:$0x1]
      %v979 = vld [vmem:[%s183 + $0x1] sm:$0x1]
      %v980 = vld [vmem:[%s183 + $0x2] sm:$0x1]
      %v981 = vld [vmem:[%s183 + $0x3] sm:$0x1]
      %v982 = vld [vmem:[%s183 + $0x4] sm:$0x1]
      %v983 = vld [vmem:[%s183 + $0x5] sm:$0x1]
      %v984 = vld [vmem:[%s183 + $0x6] sm:$0x1]
      %v985 = vld [vmem:[%s183 + $0x7] sm:$0x1]
      %v986 = vld [vmem:[%s183 + $0x8] sm:$0x1]
      %v987 = vld [vmem:[%s183 + $0x9] sm:$0x1]
      %v988 = vld [vmem:[%s183 + $0xa] sm:$0x1]
      %v989 = vld [vmem:[%s183 + $0xb] sm:$0x1]
      %v990 = vld [vmem:[%s183 + $0xc] sm:$0x1]
      %v991 = vld [vmem:[%s183 + $0xd] sm:$0x1]
      %v992 = vld [vmem:[%s183 + $0xe] sm:$0x1]
      %v993 = vld [vmem:[%s183 + $0xf] sm:$0x1]
      %v994 = vld [vmem:[%s183 + $0x10] sm:$0x1]
      %v995 = vld [vmem:[%s183 + $0x11] sm:$0x1]
      %v996 = vld [vmem:[%s183 + $0x12] sm:$0x1]
      %v997 = vld [vmem:[%s183 + $0x13] sm:$0x1]
      %v998 = vld [vmem:[%s183 + $0x14] sm:$0x1]
      %v999 = vld [vmem:[%s183 + $0x15] sm:$0x1]
      %v1000 = vld [vmem:[%s183 + $0x16] sm:$0x1]
      %v1001 = vld [vmem:[%s183 + $0x17] sm:$0x1]
      %v1002 = vld [vmem:[%s183 + $0x18] sm:$0x1]
      %v1003 = vld [vmem:[%s183 + $0x19] sm:$0x1]
      %v1004 = vld [vmem:[%s183 + $0x1a] sm:$0x1]
      %v1005 = vld [vmem:[%s183 + $0x1b] sm:$0x1]
      %v1006 = vld [vmem:[%s183 + $0x1c] sm:$0x1]
      %v1007 = vld [vmem:[%s183 + $0x1d] sm:$0x1]
      %v1008 = vld [vmem:[%s183 + $0x1e] sm:$0x1]
      %v1009 = vld [vmem:[%s183 + $0x1f] sm:$0x1]
      %v1042 = vlaneseq
      %v1043 = vshrl.u32 %v1042, 7
      %v1044 = vsub.s32 0, %v1043
      %v1045 = vrot.slane %v978, %v1044
      %v1046 = vlaneseq
      %v1047 = vshrl.u32 %v1046, 7
      %v1048 = vsub.s32 0, %v1047
      %v1049 = vrot.slane %v979, %v1048
      %v1050 = vlaneseq
      %v1051 = vshrl.u32 %v1050, 7
      %v1052 = vsub.s32 0, %v1051
      %v1053 = vrot.slane %v980, %v1052
      %v1054 = vlaneseq
      %v1055 = vshrl.u32 %v1054, 7
      %v1056 = vsub.s32 0, %v1055
      %v1057 = vrot.slane %v981, %v1056
      %v1058 = vlaneseq
      %v1059 = vshrl.u32 %v1058, 7
      %v1060 = vsub.s32 0, %v1059
      %v1061 = vrot.slane %v982, %v1060
      %v1062 = vlaneseq
      %v1063 = vshrl.u32 %v1062, 7
      %v1064 = vsub.s32 0, %v1063
      %v1065 = vrot.slane %v983, %v1064
      %v1066 = vlaneseq
      %v1067 = vshrl.u32 %v1066, 7
      %v1068 = vsub.s32 0, %v1067
      %v1069 = vrot.slane %v984, %v1068
      %v1070 = vlaneseq
      %v1071 = vshrl.u32 %v1070, 7
      %v1072 = vsub.s32 0, %v1071
      %v1073 = vrot.slane %v985, %v1072
      %v1074 = vlaneseq
      %v1075 = vshrl.u32 %v1074, 7
      %v1076 = vsub.s32 0, %v1075
      %v1077 = vrot.slane %v986, %v1076
      %v1078 = vlaneseq
      %v1079 = vshrl.u32 %v1078, 7
      %v1080 = vsub.s32 0, %v1079
      %v1081 = vrot.slane %v987, %v1080
      %v1082 = vlaneseq
      %v1083 = vshrl.u32 %v1082, 7
      %v1084 = vsub.s32 0, %v1083
      %v1085 = vrot.slane %v988, %v1084
      %v1086 = vlaneseq
      %v1087 = vshrl.u32 %v1086, 7
      %v1088 = vsub.s32 0, %v1087
      %v1089 = vrot.slane %v989, %v1088
      %v1090 = vlaneseq
      %v1091 = vshrl.u32 %v1090, 7
      %v1092 = vsub.s32 0, %v1091
      %v1093 = vrot.slane %v990, %v1092
      %v1094 = vlaneseq
      %v1095 = vshrl.u32 %v1094, 7
      %v1096 = vsub.s32 0, %v1095
      %v1097 = vrot.slane %v991, %v1096
      %v1098 = vlaneseq
      %v1099 = vshrl.u32 %v1098, 7
      %v1100 = vsub.s32 0, %v1099
      %v1101 = vrot.slane %v992, %v1100
      %v1102 = vlaneseq
      %v1103 = vshrl.u32 %v1102, 7
      %v1104 = vsub.s32 0, %v1103
      %v1105 = vrot.slane %v993, %v1104
      %v1106 = vlaneseq
      %v1107 = vshrl.u32 %v1106, 7
      %v1108 = vsub.s32 0, %v1107
      %v1109 = vrot.slane %v994, %v1108
      %v1110 = vlaneseq
      %v1111 = vshrl.u32 %v1110, 7
      %v1112 = vsub.s32 0, %v1111
      %v1113 = vrot.slane %v995, %v1112
      %v1114 = vlaneseq
      %v1115 = vshrl.u32 %v1114, 7
      %v1116 = vsub.s32 0, %v1115
      %v1117 = vrot.slane %v996, %v1116
      %v1118 = vlaneseq
      %v1119 = vshrl.u32 %v1118, 7
      %v1120 = vsub.s32 0, %v1119
      %v1121 = vrot.slane %v997, %v1120
      %v1122 = vlaneseq
      %v1123 = vshrl.u32 %v1122, 7
      %v1124 = vsub.s32 0, %v1123
      %v1125 = vrot.slane %v998, %v1124
      %v1126 = vlaneseq
      %v1127 = vshrl.u32 %v1126, 7
      %v1128 = vsub.s32 0, %v1127
      %v1129 = vrot.slane %v999, %v1128
      %v1130 = vlaneseq
      %v1131 = vshrl.u32 %v1130, 7
      %v1132 = vsub.s32 0, %v1131
      %v1133 = vrot.slane %v1000, %v1132
      %v1134 = vlaneseq
      %v1135 = vshrl.u32 %v1134, 7
      %v1136 = vsub.s32 0, %v1135
      %v1137 = vrot.slane %v1001, %v1136
      %v1138 = vlaneseq
      %v1139 = vshrl.u32 %v1138, 7
      %v1140 = vsub.s32 0, %v1139
      %v1141 = vrot.slane %v1002, %v1140
      %v1142 = vlaneseq
      %v1143 = vshrl.u32 %v1142, 7
      %v1144 = vsub.s32 0, %v1143
      %v1145 = vrot.slane %v1003, %v1144
      %v1146 = vlaneseq
      %v1147 = vshrl.u32 %v1146, 7
      %v1148 = vsub.s32 0, %v1147
      %v1149 = vrot.slane %v1004, %v1148
      %v1150 = vlaneseq
      %v1151 = vshrl.u32 %v1150, 7
      %v1152 = vsub.s32 0, %v1151
      %v1153 = vrot.slane %v1005, %v1152
      %v1154 = vlaneseq
      %v1155 = vshrl.u32 %v1154, 7
      %v1156 = vsub.s32 0, %v1155
      %v1157 = vrot.slane %v1006, %v1156
      %v1158 = vlaneseq
      %v1159 = vshrl.u32 %v1158, 7
      %v1160 = vsub.s32 0, %v1159
      %v1161 = vrot.slane %v1007, %v1160
      %v1162 = vlaneseq
      %v1163 = vshrl.u32 %v1162, 7
      %v1164 = vsub.s32 0, %v1163
      %v1165 = vrot.slane %v1008, %v1164
      %v1166 = vlaneseq
      %v1167 = vshrl.u32 %v1166, 7
      %v1168 = vsub.s32 0, %v1167
      %v1169 = vrot.slane %v1009, %v1168
      %1170 = vset.pattern.permute.xlu0 0
      %1171 = vperm.xlu0 %1170, %v1045
      %v1172 = vpop.permute.xlu0 %1171
      %1174 = vset.pattern.permute.xlu0 0
      %1175 = vperm.xlu0 %1174, %v1049
      %v1176 = vpop.permute.xlu0 %1175
      %1178 = vset.pattern.permute.xlu0 0
      %1179 = vperm.xlu0 %1178, %v1053
      %v1180 = vpop.permute.xlu0 %1179
      %1182 = vset.pattern.permute.xlu0 0
      %1183 = vperm.xlu0 %1182, %v1057
      %v1184 = vpop.permute.xlu0 %1183
      %1186 = vset.pattern.permute.xlu0 0
      %1187 = vperm.xlu0 %1186, %v1061
      %v1188 = vpop.permute.xlu0 %1187
      %1190 = vset.pattern.permute.xlu0 0
      %1191 = vperm.xlu0 %1190, %v1065
      %v1192 = vpop.permute.xlu0 %1191
      %1194 = vset.pattern.permute.xlu0 0
      %1195 = vperm.xlu0 %1194, %v1069
      %v1196 = vpop.permute.xlu0 %1195
      %1198 = vset.pattern.permute.xlu0 0
      %1199 = vperm.xlu0 %1198, %v1073
      %v1200 = vpop.permute.xlu0 %1199
      %1202 = vset.pattern.permute.xlu0 0
      %1203 = vperm.xlu0 %1202, %v1077
      %v1204 = vpop.permute.xlu0 %1203
      %1206 = vset.pattern.permute.xlu0 0
      %1207 = vperm.xlu0 %1206, %v1081
      %v1208 = vpop.permute.xlu0 %1207
      %1210 = vset.pattern.permute.xlu0 0
      %1211 = vperm.xlu0 %1210, %v1085
      %v1212 = vpop.permute.xlu0 %1211
      %1214 = vset.pattern.permute.xlu0 0
      %1215 = vperm.xlu0 %1214, %v1089
      %v1216 = vpop.permute.xlu0 %1215
      %1218 = vset.pattern.permute.xlu0 0
      %1219 = vperm.xlu0 %1218, %v1093
      %v1220 = vpop.permute.xlu0 %1219
      %1222 = vset.pattern.permute.xlu0 0
      %1223 = vperm.xlu0 %1222, %v1097
      %v1224 = vpop.permute.xlu0 %1223
      %1226 = vset.pattern.permute.xlu0 0
      %1227 = vperm.xlu0 %1226, %v1101
      %v1228 = vpop.permute.xlu0 %1227
      %1230 = vset.pattern.permute.xlu0 0
      %1231 = vperm.xlu0 %1230, %v1105
      %v1232 = vpop.permute.xlu0 %1231
      %1234 = vset.pattern.permute.xlu0 0
      %1235 = vperm.xlu0 %1234, %v1109
      %v1236 = vpop.permute.xlu0 %1235
      %1238 = vset.pattern.permute.xlu0 0
      %1239 = vperm.xlu0 %1238, %v1113
      %v1240 = vpop.permute.xlu0 %1239
      %1242 = vset.pattern.permute.xlu0 0
      %1243 = vperm.xlu0 %1242, %v1117
      %v1244 = vpop.permute.xlu0 %1243
      %1246 = vset.pattern.permute.xlu0 0
      %1247 = vperm.xlu0 %1246, %v1121
      %v1248 = vpop.permute.xlu0 %1247
      %1250 = vset.pattern.permute.xlu0 0
      %1251 = vperm.xlu0 %1250, %v1125
      %v1252 = vpop.permute.xlu0 %1251
      %1254 = vset.pattern.permute.xlu0 0
      %1255 = vperm.xlu0 %1254, %v1129
      %v1256 = vpop.permute.xlu0 %1255
      %1258 = vset.pattern.permute.xlu0 0
      %1259 = vperm.xlu0 %1258, %v1133
      %v1260 = vpop.permute.xlu0 %1259
      %1262 = vset.pattern.permute.xlu0 0
      %1263 = vperm.xlu0 %1262, %v1137
      %v1264 = vpop.permute.xlu0 %1263
      %1266 = vset.pattern.permute.xlu0 0
      %1267 = vperm.xlu0 %1266, %v1141
      %v1268 = vpop.permute.xlu0 %1267
      %1270 = vset.pattern.permute.xlu0 0
      %1271 = vperm.xlu0 %1270, %v1145
      %v1272 = vpop.permute.xlu0 %1271
      %1274 = vset.pattern.permute.xlu0 0
      %1275 = vperm.xlu0 %1274, %v1149
      %v1276 = vpop.permute.xlu0 %1275
      %1278 = vset.pattern.permute.xlu0 0
      %1279 = vperm.xlu0 %1278, %v1153
      %v1280 = vpop.permute.xlu0 %1279
      %1282 = vset.pattern.permute.xlu0 0
      %1283 = vperm.xlu0 %1282, %v1157
      %v1284 = vpop.permute.xlu0 %1283
      %1286 = vset.pattern.permute.xlu0 0
      %1287 = vperm.xlu0 %1286, %v1161
      %v1288 = vpop.permute.xlu0 %1287
      %1290 = vset.pattern.permute.xlu0 0
      %1291 = vperm.xlu0 %1290, %v1165
      %v1292 = vpop.permute.xlu0 %1291
      %1294 = vset.pattern.permute.xlu0 0
      %1295 = vperm.xlu0 %1294, %v1169
      %v1296 = vpop.permute.xlu0 %1295
      %v1298 = vmul.f32 %v1172, %v914
      %v1299 = vmul.f32 %v1172, %v724
      %v1300 = vmul.f32 %v1176, %v915
      %v1301 = vmul.f32 %v1176, %v727
      %v1302 = vmul.f32 %v1180, %v916
      %v1303 = vmul.f32 %v1180, %v730
      %v1304 = vmul.f32 %v1184, %v917
      %v1305 = vmul.f32 %v1184, %v733
      %v1306 = vmul.f32 %v1188, %v918
      %v1307 = vmul.f32 %v1188, %v736
      %v1308 = vmul.f32 %v1192, %v919
      %v1309 = vmul.f32 %v1192, %v739
      %v1310 = vmul.f32 %v1196, %v920
      %v1311 = vmul.f32 %v1196, %v742
      %v1312 = vmul.f32 %v1200, %v921
      %v1313 = vmul.f32 %v1200, %v745
      %v1314 = vmul.f32 %v1204, %v922
      %v1315 = vmul.f32 %v1204, %v748
      %v1316 = vmul.f32 %v1208, %v923
      %v1317 = vmul.f32 %v1208, %v751
      %v1318 = vmul.f32 %v1212, %v924
      %v1319 = vmul.f32 %v1212, %v754
      %v1320 = vmul.f32 %v1216, %v925
      %v1321 = vmul.f32 %v1216, %v757
      %v1322 = vmul.f32 %v1220, %v926
      %v1323 = vmul.f32 %v1220, %v760
      %v1324 = vmul.f32 %v1224, %v927
      %v1325 = vmul.f32 %v1224, %v763
      %v1326 = vmul.f32 %v1228, %v928
      %v1327 = vmul.f32 %v1228, %v766
      %v1328 = vmul.f32 %v1232, %v929
      %v1329 = vmul.f32 %v1232, %v769
      %v1330 = vmul.f32 %v1236, %v930
      %v1331 = vmul.f32 %v1236, %v772
      %v1332 = vmul.f32 %v1240, %v931
      %v1333 = vmul.f32 %v1240, %v775
      %v1334 = vmul.f32 %v1244, %v932
      %v1335 = vmul.f32 %v1244, %v778
      %v1336 = vmul.f32 %v1248, %v933
      %v1337 = vmul.f32 %v1248, %v781
      %v1338 = vmul.f32 %v1252, %v934
      %v1339 = vmul.f32 %v1252, %v784
      %v1340 = vmul.f32 %v1256, %v935
      %v1341 = vmul.f32 %v1256, %v787
      %v1342 = vmul.f32 %v1260, %v936
      %v1343 = vmul.f32 %v1260, %v790
      %v1344 = vmul.f32 %v1264, %v937
      %v1345 = vmul.f32 %v1264, %v793
      %v1346 = vmul.f32 %v1268, %v938
      %v1347 = vmul.f32 %v1268, %v796
      %v1348 = vmul.f32 %v1272, %v939
      %v1349 = vmul.f32 %v1272, %v799
      %v1350 = vmul.f32 %v1276, %v940
      %v1351 = vmul.f32 %v1276, %v802
      %v1352 = vmul.f32 %v1280, %v941
      %v1353 = vmul.f32 %v1280, %v805
      %v1354 = vmul.f32 %v1284, %v942
      %v1355 = vmul.f32 %v1284, %v808
      %v1356 = vmul.f32 %v1288, %v943
      %v1357 = vmul.f32 %v1288, %v811
      %v1358 = vmul.f32 %v1292, %v944
      %v1359 = vmul.f32 %v1292, %v814
      %v1360 = vmul.f32 %v1296, %v945
      %v1361 = vmul.f32 %v1296, %v817
      %v1362 = vadd.f32 %v1298, 0.0
      %v1363 = vadd.f32 %v1299, 0.0
      %v1364 = vadd.f32 %v1300, 0.0
      %v1365 = vadd.f32 %v1301, 0.0
      %v1366 = vadd.f32 %v1302, 0.0
      %v1367 = vadd.f32 %v1303, 0.0
      %v1368 = vadd.f32 %v1304, 0.0
      %v1369 = vadd.f32 %v1305, 0.0
      %v1370 = vadd.f32 %v1306, 0.0
      %v1371 = vadd.f32 %v1307, 0.0
      %v1372 = vadd.f32 %v1308, 0.0
      %v1373 = vadd.f32 %v1309, 0.0
      %v1374 = vadd.f32 %v1310, 0.0
      %v1375 = vadd.f32 %v1311, 0.0
      %v1376 = vadd.f32 %v1312, 0.0
      %v1377 = vadd.f32 %v1313, 0.0
      %v1378 = vadd.f32 %v1314, 0.0
      %v1379 = vadd.f32 %v1315, 0.0
      %v1380 = vadd.f32 %v1316, 0.0
      %v1381 = vadd.f32 %v1317, 0.0
      %v1382 = vadd.f32 %v1318, 0.0
      %v1383 = vadd.f32 %v1319, 0.0
      %v1384 = vadd.f32 %v1320, 0.0
      %v1385 = vadd.f32 %v1321, 0.0
      %v1386 = vadd.f32 %v1322, 0.0
      %v1387 = vadd.f32 %v1323, 0.0
      %v1388 = vadd.f32 %v1324, 0.0
      %v1389 = vadd.f32 %v1325, 0.0
      %v1390 = vadd.f32 %v1326, 0.0
      %v1391 = vadd.f32 %v1327, 0.0
      %v1392 = vadd.f32 %v1328, 0.0
      %v1393 = vadd.f32 %v1329, 0.0
      %v1394 = vadd.f32 %v1330, 0.0
      %v1395 = vadd.f32 %v1331, 0.0
      %v1396 = vadd.f32 %v1332, 0.0
      %v1397 = vadd.f32 %v1333, 0.0
      %v1398 = vadd.f32 %v1334, 0.0
      %v1399 = vadd.f32 %v1335, 0.0
      %v1400 = vadd.f32 %v1336, 0.0
      %v1401 = vadd.f32 %v1337, 0.0
      %v1402 = vadd.f32 %v1338, 0.0
      %v1403 = vadd.f32 %v1339, 0.0
      %v1404 = vadd.f32 %v1340, 0.0
      %v1405 = vadd.f32 %v1341, 0.0
      %v1406 = vadd.f32 %v1342, 0.0
      %v1407 = vadd.f32 %v1343, 0.0
      %v1408 = vadd.f32 %v1344, 0.0
      %v1409 = vadd.f32 %v1345, 0.0
      %v1410 = vadd.f32 %v1346, 0.0
      %v1411 = vadd.f32 %v1347, 0.0
      %v1412 = vadd.f32 %v1348, 0.0
      %v1413 = vadd.f32 %v1349, 0.0
      %v1414 = vadd.f32 %v1350, 0.0
      %v1415 = vadd.f32 %v1351, 0.0
      %v1416 = vadd.f32 %v1352, 0.0
      %v1417 = vadd.f32 %v1353, 0.0
      %v1418 = vadd.f32 %v1354, 0.0
      %v1419 = vadd.f32 %v1355, 0.0
      %v1420 = vadd.f32 %v1356, 0.0
      %v1421 = vadd.f32 %v1357, 0.0
      %v1422 = vadd.f32 %v1358, 0.0
      %v1423 = vadd.f32 %v1359, 0.0
      %v1424 = vadd.f32 %v1360, 0.0
      %v1425 = vadd.f32 %v1361, 0.0
      %s1426 = scalar_lea.vmem %s183, 32
      %v1427 = vld [vmem:[%s1426] sm:$0x1]
      %v1428 = vld [vmem:[%s1426 + $0x1] sm:$0x1]
      %v1429 = vld [vmem:[%s1426 + $0x2] sm:$0x1]
      %v1430 = vld [vmem:[%s1426 + $0x3] sm:$0x1]
      %v1431 = vld [vmem:[%s1426 + $0x4] sm:$0x1]
      %v1432 = vld [vmem:[%s1426 + $0x5] sm:$0x1]
      %v1433 = vld [vmem:[%s1426 + $0x6] sm:$0x1]
      %v1434 = vld [vmem:[%s1426 + $0x7] sm:$0x1]
      %v1435 = vld [vmem:[%s1426 + $0x8] sm:$0x1]
      %v1436 = vld [vmem:[%s1426 + $0x9] sm:$0x1]
      %v1437 = vld [vmem:[%s1426 + $0xa] sm:$0x1]
      %v1438 = vld [vmem:[%s1426 + $0xb] sm:$0x1]
      %v1439 = vld [vmem:[%s1426 + $0xc] sm:$0x1]
      %v1440 = vld [vmem:[%s1426 + $0xd] sm:$0x1]
      %v1441 = vld [vmem:[%s1426 + $0xe] sm:$0x1]
      %v1442 = vld [vmem:[%s1426 + $0xf] sm:$0x1]
      %v1443 = vld [vmem:[%s1426 + $0x10] sm:$0x1]
      %v1444 = vld [vmem:[%s1426 + $0x11] sm:$0x1]
      %v1445 = vld [vmem:[%s1426 + $0x12] sm:$0x1]
      %v1446 = vld [vmem:[%s1426 + $0x13] sm:$0x1]
      %v1447 = vld [vmem:[%s1426 + $0x14] sm:$0x1]
      %v1448 = vld [vmem:[%s1426 + $0x15] sm:$0x1]
      %v1449 = vld [vmem:[%s1426 + $0x16] sm:$0x1]
      %v1450 = vld [vmem:[%s1426 + $0x17] sm:$0x1]
      %v1451 = vld [vmem:[%s1426 + $0x18] sm:$0x1]
      %v1452 = vld [vmem:[%s1426 + $0x19] sm:$0x1]
      %v1453 = vld [vmem:[%s1426 + $0x1a] sm:$0x1]
      %v1454 = vld [vmem:[%s1426 + $0x1b] sm:$0x1]
      %v1455 = vld [vmem:[%s1426 + $0x1c] sm:$0x1]
      %v1456 = vld [vmem:[%s1426 + $0x1d] sm:$0x1]
      %v1457 = vld [vmem:[%s1426 + $0x1e] sm:$0x1]
      %v1458 = vld [vmem:[%s1426 + $0x1f] sm:$0x1]
      %v1491 = vlaneseq
      %v1492 = vshrl.u32 %v1491, 7
      %v1493 = vsub.s32 0, %v1492
      %v1494 = vrot.slane %v1427, %v1493
      %v1495 = vlaneseq
      %v1496 = vshrl.u32 %v1495, 7
      %v1497 = vsub.s32 0, %v1496
      %v1498 = vrot.slane %v1428, %v1497
      %v1499 = vlaneseq
      %v1500 = vshrl.u32 %v1499, 7
      %v1501 = vsub.s32 0, %v1500
      %v1502 = vrot.slane %v1429, %v1501
      %v1503 = vlaneseq
      %v1504 = vshrl.u32 %v1503, 7
      %v1505 = vsub.s32 0, %v1504
      %v1506 = vrot.slane %v1430, %v1505
      %v1507 = vlaneseq
      %v1508 = vshrl.u32 %v1507, 7
      %v1509 = vsub.s32 0, %v1508
      %v1510 = vrot.slane %v1431, %v1509
      %v1511 = vlaneseq
      %v1512 = vshrl.u32 %v1511, 7
      %v1513 = vsub.s32 0, %v1512
      %v1514 = vrot.slane %v1432, %v1513
      %v1515 = vlaneseq
      %v1516 = vshrl.u32 %v1515, 7
      %v1517 = vsub.s32 0, %v1516
      %v1518 = vrot.slane %v1433, %v1517
      %v1519 = vlaneseq
      %v1520 = vshrl.u32 %v1519, 7
      %v1521 = vsub.s32 0, %v1520
      %v1522 = vrot.slane %v1434, %v1521
      %v1523 = vlaneseq
      %v1524 = vshrl.u32 %v1523, 7
      %v1525 = vsub.s32 0, %v1524
      %v1526 = vrot.slane %v1435, %v1525
      %v1527 = vlaneseq
      %v1528 = vshrl.u32 %v1527, 7
      %v1529 = vsub.s32 0, %v1528
      %v1530 = vrot.slane %v1436, %v1529
      %v1531 = vlaneseq
      %v1532 = vshrl.u32 %v1531, 7
      %v1533 = vsub.s32 0, %v1532
      %v1534 = vrot.slane %v1437, %v1533
      %v1535 = vlaneseq
      %v1536 = vshrl.u32 %v1535, 7
      %v1537 = vsub.s32 0, %v1536
      %v1538 = vrot.slane %v1438, %v1537
      %v1539 = vlaneseq
      %v1540 = vshrl.u32 %v1539, 7
      %v1541 = vsub.s32 0, %v1540
      %v1542 = vrot.slane %v1439, %v1541
      %v1543 = vlaneseq
      %v1544 = vshrl.u32 %v1543, 7
      %v1545 = vsub.s32 0, %v1544
      %v1546 = vrot.slane %v1440, %v1545
      %v1547 = vlaneseq
      %v1548 = vshrl.u32 %v1547, 7
      %v1549 = vsub.s32 0, %v1548
      %v1550 = vrot.slane %v1441, %v1549
      %v1551 = vlaneseq
      %v1552 = vshrl.u32 %v1551, 7
      %v1553 = vsub.s32 0, %v1552
      %v1554 = vrot.slane %v1442, %v1553
      %v1555 = vlaneseq
      %v1556 = vshrl.u32 %v1555, 7
      %v1557 = vsub.s32 0, %v1556
      %v1558 = vrot.slane %v1443, %v1557
      %v1559 = vlaneseq
      %v1560 = vshrl.u32 %v1559, 7
      %v1561 = vsub.s32 0, %v1560
      %v1562 = vrot.slane %v1444, %v1561
      %v1563 = vlaneseq
      %v1564 = vshrl.u32 %v1563, 7
      %v1565 = vsub.s32 0, %v1564
      %v1566 = vrot.slane %v1445, %v1565
      %v1567 = vlaneseq
      %v1568 = vshrl.u32 %v1567, 7
      %v1569 = vsub.s32 0, %v1568
      %v1570 = vrot.slane %v1446, %v1569
      %v1571 = vlaneseq
      %v1572 = vshrl.u32 %v1571, 7
      %v1573 = vsub.s32 0, %v1572
      %v1574 = vrot.slane %v1447, %v1573
      %v1575 = vlaneseq
      %v1576 = vshrl.u32 %v1575, 7
      %v1577 = vsub.s32 0, %v1576
      %v1578 = vrot.slane %v1448, %v1577
      %v1579 = vlaneseq
      %v1580 = vshrl.u32 %v1579, 7
      %v1581 = vsub.s32 0, %v1580
      %v1582 = vrot.slane %v1449, %v1581
      %v1583 = vlaneseq
      %v1584 = vshrl.u32 %v1583, 7
      %v1585 = vsub.s32 0, %v1584
      %v1586 = vrot.slane %v1450, %v1585
      %v1587 = vlaneseq
      %v1588 = vshrl.u32 %v1587, 7
      %v1589 = vsub.s32 0, %v1588
      %v1590 = vrot.slane %v1451, %v1589
      %v1591 = vlaneseq
      %v1592 = vshrl.u32 %v1591, 7
      %v1593 = vsub.s32 0, %v1592
      %v1594 = vrot.slane %v1452, %v1593
      %v1595 = vlaneseq
      %v1596 = vshrl.u32 %v1595, 7
      %v1597 = vsub.s32 0, %v1596
      %v1598 = vrot.slane %v1453, %v1597
      %v1599 = vlaneseq
      %v1600 = vshrl.u32 %v1599, 7
      %v1601 = vsub.s32 0, %v1600
      %v1602 = vrot.slane %v1454, %v1601
      %v1603 = vlaneseq
      %v1604 = vshrl.u32 %v1603, 7
      %v1605 = vsub.s32 0, %v1604
      %v1606 = vrot.slane %v1455, %v1605
      %v1607 = vlaneseq
      %v1608 = vshrl.u32 %v1607, 7
      %v1609 = vsub.s32 0, %v1608
      %v1610 = vrot.slane %v1456, %v1609
      %v1611 = vlaneseq
      %v1612 = vshrl.u32 %v1611, 7
      %v1613 = vsub.s32 0, %v1612
      %v1614 = vrot.slane %v1457, %v1613
      %v1615 = vlaneseq
      %v1616 = vshrl.u32 %v1615, 7
      %v1617 = vsub.s32 0, %v1616
      %v1618 = vrot.slane %v1458, %v1617
      %1619 = vset.pattern.permute.xlu0 0
      %1620 = vperm.xlu0 %1619, %v1494
      %v1621 = vpop.permute.xlu0 %1620
      %1623 = vset.pattern.permute.xlu0 0
      %1624 = vperm.xlu0 %1623, %v1498
      %v1625 = vpop.permute.xlu0 %1624
      %1627 = vset.pattern.permute.xlu0 0
      %1628 = vperm.xlu0 %1627, %v1502
      %v1629 = vpop.permute.xlu0 %1628
      %1631 = vset.pattern.permute.xlu0 0
      %1632 = vperm.xlu0 %1631, %v1506
      %v1633 = vpop.permute.xlu0 %1632
      %1635 = vset.pattern.permute.xlu0 0
      %1636 = vperm.xlu0 %1635, %v1510
      %v1637 = vpop.permute.xlu0 %1636
      %1639 = vset.pattern.permute.xlu0 0
      %1640 = vperm.xlu0 %1639, %v1514
      %v1641 = vpop.permute.xlu0 %1640
      %1643 = vset.pattern.permute.xlu0 0
      %1644 = vperm.xlu0 %1643, %v1518
      %v1645 = vpop.permute.xlu0 %1644
      %1647 = vset.pattern.permute.xlu0 0
      %1648 = vperm.xlu0 %1647, %v1522
      %v1649 = vpop.permute.xlu0 %1648
      %1651 = vset.pattern.permute.xlu0 0
      %1652 = vperm.xlu0 %1651, %v1526
      %v1653 = vpop.permute.xlu0 %1652
      %1655 = vset.pattern.permute.xlu0 0
      %1656 = vperm.xlu0 %1655, %v1530
      %v1657 = vpop.permute.xlu0 %1656
      %1659 = vset.pattern.permute.xlu0 0
      %1660 = vperm.xlu0 %1659, %v1534
      %v1661 = vpop.permute.xlu0 %1660
      %1663 = vset.pattern.permute.xlu0 0
      %1664 = vperm.xlu0 %1663, %v1538
      %v1665 = vpop.permute.xlu0 %1664
      %1667 = vset.pattern.permute.xlu0 0
      %1668 = vperm.xlu0 %1667, %v1542
      %v1669 = vpop.permute.xlu0 %1668
      %1671 = vset.pattern.permute.xlu0 0
      %1672 = vperm.xlu0 %1671, %v1546
      %v1673 = vpop.permute.xlu0 %1672
      %1675 = vset.pattern.permute.xlu0 0
      %1676 = vperm.xlu0 %1675, %v1550
      %v1677 = vpop.permute.xlu0 %1676
      %1679 = vset.pattern.permute.xlu0 0
      %1680 = vperm.xlu0 %1679, %v1554
      %v1681 = vpop.permute.xlu0 %1680
      %1683 = vset.pattern.permute.xlu0 0
      %1684 = vperm.xlu0 %1683, %v1558
      %v1685 = vpop.permute.xlu0 %1684
      %1687 = vset.pattern.permute.xlu0 0
      %1688 = vperm.xlu0 %1687, %v1562
      %v1689 = vpop.permute.xlu0 %1688
      %1691 = vset.pattern.permute.xlu0 0
      %1692 = vperm.xlu0 %1691, %v1566
      %v1693 = vpop.permute.xlu0 %1692
      %1695 = vset.pattern.permute.xlu0 0
      %1696 = vperm.xlu0 %1695, %v1570
      %v1697 = vpop.permute.xlu0 %1696
      %1699 = vset.pattern.permute.xlu0 0
      %1700 = vperm.xlu0 %1699, %v1574
      %v1701 = vpop.permute.xlu0 %1700
      %1703 = vset.pattern.permute.xlu0 0
      %1704 = vperm.xlu0 %1703, %v1578
      %v1705 = vpop.permute.xlu0 %1704
      %1707 = vset.pattern.permute.xlu0 0
      %1708 = vperm.xlu0 %1707, %v1582
      %v1709 = vpop.permute.xlu0 %1708
      %1711 = vset.pattern.permute.xlu0 0
      %1712 = vperm.xlu0 %1711, %v1586
      %v1713 = vpop.permute.xlu0 %1712
      %1715 = vset.pattern.permute.xlu0 0
      %1716 = vperm.xlu0 %1715, %v1590
      %v1717 = vpop.permute.xlu0 %1716
      %1719 = vset.pattern.permute.xlu0 0
      %1720 = vperm.xlu0 %1719, %v1594
      %v1721 = vpop.permute.xlu0 %1720
      %1723 = vset.pattern.permute.xlu0 0
      %1724 = vperm.xlu0 %1723, %v1598
      %v1725 = vpop.permute.xlu0 %1724
      %1727 = vset.pattern.permute.xlu0 0
      %1728 = vperm.xlu0 %1727, %v1602
      %v1729 = vpop.permute.xlu0 %1728
      %1731 = vset.pattern.permute.xlu0 0
      %1732 = vperm.xlu0 %1731, %v1606
      %v1733 = vpop.permute.xlu0 %1732
      %1735 = vset.pattern.permute.xlu0 0
      %1736 = vperm.xlu0 %1735, %v1610
      %v1737 = vpop.permute.xlu0 %1736
      %1739 = vset.pattern.permute.xlu0 0
      %1740 = vperm.xlu0 %1739, %v1614
      %v1741 = vpop.permute.xlu0 %1740
      %1743 = vset.pattern.permute.xlu0 0
      %1744 = vperm.xlu0 %1743, %v1618
      %v1745 = vpop.permute.xlu0 %1744
      %v1747 = vmul.f32 %v1621, %v914
      %v1748 = vmul.f32 %v1621, %v724
      %v1749 = vmul.f32 %v1625, %v915
      %v1750 = vmul.f32 %v1625, %v727
      %v1751 = vmul.f32 %v1629, %v916
      %v1752 = vmul.f32 %v1629, %v730
      %v1753 = vmul.f32 %v1633, %v917
      %v1754 = vmul.f32 %v1633, %v733
      %v1755 = vmul.f32 %v1637, %v918
      %v1756 = vmul.f32 %v1637, %v736
      %v1757 = vmul.f32 %v1641, %v919
      %v1758 = vmul.f32 %v1641, %v739
      %v1759 = vmul.f32 %v1645, %v920
      %v1760 = vmul.f32 %v1645, %v742
      %v1761 = vmul.f32 %v1649, %v921
      %v1762 = vmul.f32 %v1649, %v745
      %v1763 = vmul.f32 %v1653, %v922
      %v1764 = vmul.f32 %v1653, %v748
      %v1765 = vmul.f32 %v1657, %v923
      %v1766 = vmul.f32 %v1657, %v751
      %v1767 = vmul.f32 %v1661, %v924
      %v1768 = vmul.f32 %v1661, %v754
      %v1769 = vmul.f32 %v1665, %v925
      %v1770 = vmul.f32 %v1665, %v757
      %v1771 = vmul.f32 %v1669, %v926
      %v1772 = vmul.f32 %v1669, %v760
      %v1773 = vmul.f32 %v1673, %v927
      %v1774 = vmul.f32 %v1673, %v763
      %v1775 = vmul.f32 %v1677, %v928
      %v1776 = vmul.f32 %v1677, %v766
      %v1777 = vmul.f32 %v1681, %v929
      %v1778 = vmul.f32 %v1681, %v769
      %v1779 = vmul.f32 %v1685, %v930
      %v1780 = vmul.f32 %v1685, %v772
      %v1781 = vmul.f32 %v1689, %v931
      %v1782 = vmul.f32 %v1689, %v775
      %v1783 = vmul.f32 %v1693, %v932
      %v1784 = vmul.f32 %v1693, %v778
      %v1785 = vmul.f32 %v1697, %v933
      %v1786 = vmul.f32 %v1697, %v781
      %v1787 = vmul.f32 %v1701, %v934
      %v1788 = vmul.f32 %v1701, %v784
      %v1789 = vmul.f32 %v1705, %v935
      %v1790 = vmul.f32 %v1705, %v787
      %v1791 = vmul.f32 %v1709, %v936
      %v1792 = vmul.f32 %v1709, %v790
      %v1793 = vmul.f32 %v1713, %v937
      %v1794 = vmul.f32 %v1713, %v793
      %v1795 = vmul.f32 %v1717, %v938
      %v1796 = vmul.f32 %v1717, %v796
      %v1797 = vmul.f32 %v1721, %v939
      %v1798 = vmul.f32 %v1721, %v799
      %v1799 = vmul.f32 %v1725, %v940
      %v1800 = vmul.f32 %v1725, %v802
      %v1801 = vmul.f32 %v1729, %v941
      %v1802 = vmul.f32 %v1729, %v805
      %v1803 = vmul.f32 %v1733, %v942
      %v1804 = vmul.f32 %v1733, %v808
      %v1805 = vmul.f32 %v1737, %v943
      %v1806 = vmul.f32 %v1737, %v811
      %v1807 = vmul.f32 %v1741, %v944
      %v1808 = vmul.f32 %v1741, %v814
      %v1809 = vmul.f32 %v1745, %v945
      %v1810 = vmul.f32 %v1745, %v817
      %1875 = vrot.lane.b32.xlu0 %v1747, 126
      %v1876 = vpop.permute.xlu0 %1875
      %1877 = vrot.lane.b32.xlu0 %v1748, 126
      %v1878 = vpop.permute.xlu0 %1877
      %1879 = vrot.lane.b32.xlu0 %v1749, 126
      %v1880 = vpop.permute.xlu0 %1879
      %1881 = vrot.lane.b32.xlu0 %v1750, 126
      %v1882 = vpop.permute.xlu0 %1881
      %1883 = vrot.lane.b32.xlu0 %v1751, 126
      %v1884 = vpop.permute.xlu0 %1883
      %1885 = vrot.lane.b32.xlu0 %v1752, 126
      %v1886 = vpop.permute.xlu0 %1885
      %1887 = vrot.lane.b32.xlu0 %v1753, 126
      %v1888 = vpop.permute.xlu0 %1887
      %1889 = vrot.lane.b32.xlu0 %v1754, 126
      %v1890 = vpop.permute.xlu0 %1889
      %1891 = vrot.lane.b32.xlu0 %v1755, 126
      %v1892 = vpop.permute.xlu0 %1891
      %1893 = vrot.lane.b32.xlu0 %v1756, 126
      %v1894 = vpop.permute.xlu0 %1893
      %1895 = vrot.lane.b32.xlu0 %v1757, 126
      %v1896 = vpop.permute.xlu0 %1895
      %1897 = vrot.lane.b32.xlu0 %v1758, 126
      %v1898 = vpop.permute.xlu0 %1897
      %1899 = vrot.lane.b32.xlu0 %v1759, 126
      %v1900 = vpop.permute.xlu0 %1899
      %1901 = vrot.lane.b32.xlu0 %v1760, 126
      %v1902 = vpop.permute.xlu0 %1901
      %1903 = vrot.lane.b32.xlu0 %v1761, 126
      %v1904 = vpop.permute.xlu0 %1903
      %1905 = vrot.lane.b32.xlu0 %v1762, 126
      %v1906 = vpop.permute.xlu0 %1905
      %1907 = vrot.lane.b32.xlu0 %v1763, 126
      %v1908 = vpop.permute.xlu0 %1907
      %1909 = vrot.lane.b32.xlu0 %v1764, 126
      %v1910 = vpop.permute.xlu0 %1909
      %1911 = vrot.lane.b32.xlu0 %v1765, 126
      %v1912 = vpop.permute.xlu0 %1911
      %1913 = vrot.lane.b32.xlu0 %v1766, 126
      %v1914 = vpop.permute.xlu0 %1913
      %1915 = vrot.lane.b32.xlu0 %v1767, 126
      %v1916 = vpop.permute.xlu0 %1915
      %1917 = vrot.lane.b32.xlu0 %v1768, 126
      %v1918 = vpop.permute.xlu0 %1917
      %1919 = vrot.lane.b32.xlu0 %v1769, 126
      %v1920 = vpop.permute.xlu0 %1919
      %1921 = vrot.lane.b32.xlu0 %v1770, 126
      %v1922 = vpop.permute.xlu0 %1921
      %1923 = vrot.lane.b32.xlu0 %v1771, 126
      %v1924 = vpop.permute.xlu0 %1923
      %1925 = vrot.lane.b32.xlu0 %v1772, 126
      %v1926 = vpop.permute.xlu0 %1925
      %1927 = vrot.lane.b32.xlu0 %v1773, 126
      %v1928 = vpop.permute.xlu0 %1927
      %1929 = vrot.lane.b32.xlu0 %v1774, 126
      %v1930 = vpop.permute.xlu0 %1929
      %1931 = vrot.lane.b32.xlu0 %v1775, 126
      %v1932 = vpop.permute.xlu0 %1931
      %1933 = vrot.lane.b32.xlu0 %v1776, 126
      %v1934 = vpop.permute.xlu0 %1933
      %1935 = vrot.lane.b32.xlu0 %v1777, 126
      %v1936 = vpop.permute.xlu0 %1935
      %1937 = vrot.lane.b32.xlu0 %v1778, 126
      %v1938 = vpop.permute.xlu0 %1937
      %1939 = vrot.lane.b32.xlu0 %v1779, 126
      %v1940 = vpop.permute.xlu0 %1939
      %1941 = vrot.lane.b32.xlu0 %v1780, 126
      %v1942 = vpop.permute.xlu0 %1941
      %1943 = vrot.lane.b32.xlu0 %v1781, 126
      %v1944 = vpop.permute.xlu0 %1943
      %1945 = vrot.lane.b32.xlu0 %v1782, 126
      %v1946 = vpop.permute.xlu0 %1945
      %1947 = vrot.lane.b32.xlu0 %v1783, 126
      %v1948 = vpop.permute.xlu0 %1947
      %1949 = vrot.lane.b32.xlu0 %v1784, 126
      %v1950 = vpop.permute.xlu0 %1949
      %1951 = vrot.lane.b32.xlu0 %v1785, 126
      %v1952 = vpop.permute.xlu0 %1951
      %1953 = vrot.lane.b32.xlu0 %v1786, 126
      %v1954 = vpop.permute.xlu0 %1953
      %1955 = vrot.lane.b32.xlu0 %v1787, 126
      %v1956 = vpop.permute.xlu0 %1955
      %1957 = vrot.lane.b32.xlu0 %v1788, 126
      %v1958 = vpop.permute.xlu0 %1957
      %1959 = vrot.lane.b32.xlu0 %v1789, 126
      %v1960 = vpop.permute.xlu0 %1959
      %1961 = vrot.lane.b32.xlu0 %v1790, 126
      %v1962 = vpop.permute.xlu0 %1961
      %1963 = vrot.lane.b32.xlu0 %v1791, 126
      %v1964 = vpop.permute.xlu0 %1963
      %1965 = vrot.lane.b32.xlu0 %v1792, 126
      %v1966 = vpop.permute.xlu0 %1965
      %1967 = vrot.lane.b32.xlu0 %v1793, 126
      %v1968 = vpop.permute.xlu0 %1967
      %1969 = vrot.lane.b32.xlu0 %v1794, 126
      %v1970 = vpop.permute.xlu0 %1969
      %1971 = vrot.lane.b32.xlu0 %v1795, 126
      %v1972 = vpop.permute.xlu0 %1971
      %1973 = vrot.lane.b32.xlu0 %v1796, 126
      %v1974 = vpop.permute.xlu0 %1973
      %1975 = vrot.lane.b32.xlu0 %v1797, 126
      %v1976 = vpop.permute.xlu0 %1975
      %1977 = vrot.lane.b32.xlu0 %v1798, 126
      %v1978 = vpop.permute.xlu0 %1977
      %1979 = vrot.lane.b32.xlu0 %v1799, 126
      %v1980 = vpop.permute.xlu0 %1979
      %1981 = vrot.lane.b32.xlu0 %v1800, 126
      %v1982 = vpop.permute.xlu0 %1981
      %1983 = vrot.lane.b32.xlu0 %v1801, 126
      %v1984 = vpop.permute.xlu0 %1983
      %1985 = vrot.lane.b32.xlu0 %v1802, 126
      %v1986 = vpop.permute.xlu0 %1985
      %1987 = vrot.lane.b32.xlu0 %v1803, 126
      %v1988 = vpop.permute.xlu0 %1987
      %1989 = vrot.lane.b32.xlu0 %v1804, 126
      %v1990 = vpop.permute.xlu0 %1989
      %1991 = vrot.lane.b32.xlu0 %v1805, 126
      %v1992 = vpop.permute.xlu0 %1991
      %1993 = vrot.lane.b32.xlu0 %v1806, 126
      %v1994 = vpop.permute.xlu0 %1993
      %1995 = vrot.lane.b32.xlu0 %v1807, 126
      %v1996 = vpop.permute.xlu0 %1995
      %1997 = vrot.lane.b32.xlu0 %v1808, 126
      %v1998 = vpop.permute.xlu0 %1997
      %1999 = vrot.lane.b32.xlu0 %v1809, 126
      %v2000 = vpop.permute.xlu0 %1999
      %2001 = vrot.lane.b32.xlu0 %v1810, 126
      %v2002 = vpop.permute.xlu0 %2001
      %v2067 = vadd.f32 %v1362, %v1876
      %v2068 = vadd.f32 %v1363, %v1878
      %v2069 = vadd.f32 %v1364, %v1880
      %v2070 = vadd.f32 %v1365, %v1882
      %v2071 = vadd.f32 %v1366, %v1884
      %v2072 = vadd.f32 %v1367, %v1886
      %v2073 = vadd.f32 %v1368, %v1888
      %v2074 = vadd.f32 %v1369, %v1890
      %v2075 = vadd.f32 %v1370, %v1892
      %v2076 = vadd.f32 %v1371, %v1894
      %v2077 = vadd.f32 %v1372, %v1896
      %v2078 = vadd.f32 %v1373, %v1898
      %v2079 = vadd.f32 %v1374, %v1900
      %v2080 = vadd.f32 %v1375, %v1902
      %v2081 = vadd.f32 %v1376, %v1904
      %v2082 = vadd.f32 %v1377, %v1906
      %v2083 = vadd.f32 %v1378, %v1908
      %v2084 = vadd.f32 %v1379, %v1910
      %v2085 = vadd.f32 %v1380, %v1912
      %v2086 = vadd.f32 %v1381, %v1914
      %v2087 = vadd.f32 %v1382, %v1916
      %v2088 = vadd.f32 %v1383, %v1918
      %v2089 = vadd.f32 %v1384, %v1920
      %v2090 = vadd.f32 %v1385, %v1922
      %v2091 = vadd.f32 %v1386, %v1924
      %v2092 = vadd.f32 %v1387, %v1926
      %v2093 = vadd.f32 %v1388, %v1928
      %v2094 = vadd.f32 %v1389, %v1930
      %v2095 = vadd.f32 %v1390, %v1932
      %v2096 = vadd.f32 %v1391, %v1934
      %v2097 = vadd.f32 %v1392, %v1936
      %v2098 = vadd.f32 %v1393, %v1938
      %v2099 = vadd.f32 %v1394, %v1940
      %v2100 = vadd.f32 %v1395, %v1942
      %v2101 = vadd.f32 %v1396, %v1944
      %v2102 = vadd.f32 %v1397, %v1946
      %v2103 = vadd.f32 %v1398, %v1948
      %v2104 = vadd.f32 %v1399, %v1950
      %v2105 = vadd.f32 %v1400, %v1952
      %v2106 = vadd.f32 %v1401, %v1954
      %v2107 = vadd.f32 %v1402, %v1956
      %v2108 = vadd.f32 %v1403, %v1958
      %v2109 = vadd.f32 %v1404, %v1960
      %v2110 = vadd.f32 %v1405, %v1962
      %v2111 = vadd.f32 %v1406, %v1964
      %v2112 = vadd.f32 %v1407, %v1966
      %v2113 = vadd.f32 %v1408, %v1968
      %v2114 = vadd.f32 %v1409, %v1970
      %v2115 = vadd.f32 %v1410, %v1972
      %v2116 = vadd.f32 %v1411, %v1974
      %v2117 = vadd.f32 %v1412, %v1976
      %v2118 = vadd.f32 %v1413, %v1978
      %v2119 = vadd.f32 %v1414, %v1980
      %v2120 = vadd.f32 %v1415, %v1982
      %v2121 = vadd.f32 %v1416, %v1984
      %v2122 = vadd.f32 %v1417, %v1986
      %v2123 = vadd.f32 %v1418, %v1988
      %v2124 = vadd.f32 %v1419, %v1990
      %v2125 = vadd.f32 %v1420, %v1992
      %v2126 = vadd.f32 %v1421, %v1994
      %v2127 = vadd.f32 %v1422, %v1996
      %v2128 = vadd.f32 %v1423, %v1998
      %v2129 = vadd.f32 %v1424, %v2000
      %v2130 = vadd.f32 %v1425, %v2002
      %s2131 = scalar_lea.vmem %s183, 64
      %v2132 = vld [vmem:[%s2131] sm:$0x1]
      %v2133 = vld [vmem:[%s2131 + $0x1] sm:$0x1]
      %v2134 = vld [vmem:[%s2131 + $0x2] sm:$0x1]
      %v2135 = vld [vmem:[%s2131 + $0x3] sm:$0x1]
      %v2136 = vld [vmem:[%s2131 + $0x4] sm:$0x1]
      %v2137 = vld [vmem:[%s2131 + $0x5] sm:$0x1]
      %v2138 = vld [vmem:[%s2131 + $0x6] sm:$0x1]
      %v2139 = vld [vmem:[%s2131 + $0x7] sm:$0x1]
      %v2140 = vld [vmem:[%s2131 + $0x8] sm:$0x1]
      %v2141 = vld [vmem:[%s2131 + $0x9] sm:$0x1]
      %v2142 = vld [vmem:[%s2131 + $0xa] sm:$0x1]
      %v2143 = vld [vmem:[%s2131 + $0xb] sm:$0x1]
      %v2144 = vld [vmem:[%s2131 + $0xc] sm:$0x1]
      %v2145 = vld [vmem:[%s2131 + $0xd] sm:$0x1]
      %v2146 = vld [vmem:[%s2131 + $0xe] sm:$0x1]
      %v2147 = vld [vmem:[%s2131 + $0xf] sm:$0x1]
      %v2148 = vld [vmem:[%s2131 + $0x10] sm:$0x1]
      %v2149 = vld [vmem:[%s2131 + $0x11] sm:$0x1]
      %v2150 = vld [vmem:[%s2131 + $0x12] sm:$0x1]
      %v2151 = vld [vmem:[%s2131 + $0x13] sm:$0x1]
      %v2152 = vld [vmem:[%s2131 + $0x14] sm:$0x1]
      %v2153 = vld [vmem:[%s2131 + $0x15] sm:$0x1]
      %v2154 = vld [vmem:[%s2131 + $0x16] sm:$0x1]
      %v2155 = vld [vmem:[%s2131 + $0x17] sm:$0x1]
      %v2156 = vld [vmem:[%s2131 + $0x18] sm:$0x1]
      %v2157 = vld [vmem:[%s2131 + $0x19] sm:$0x1]
      %v2158 = vld [vmem:[%s2131 + $0x1a] sm:$0x1]
      %v2159 = vld [vmem:[%s2131 + $0x1b] sm:$0x1]
      %v2160 = vld [vmem:[%s2131 + $0x1c] sm:$0x1]
      %v2161 = vld [vmem:[%s2131 + $0x1d] sm:$0x1]
      %v2162 = vld [vmem:[%s2131 + $0x1e] sm:$0x1]
      %v2163 = vld [vmem:[%s2131 + $0x1f] sm:$0x1]
      %v2196 = vlaneseq
      %v2197 = vshrl.u32 %v2196, 7
      %v2198 = vsub.s32 0, %v2197
      %v2199 = vrot.slane %v2132, %v2198
      %v2200 = vlaneseq
      %v2201 = vshrl.u32 %v2200, 7
      %v2202 = vsub.s32 0, %v2201
      %v2203 = vrot.slane %v2133, %v2202
      %v2204 = vlaneseq
      %v2205 = vshrl.u32 %v2204, 7
      %v2206 = vsub.s32 0, %v2205
      %v2207 = vrot.slane %v2134, %v2206
      %v2208 = vlaneseq
      %v2209 = vshrl.u32 %v2208, 7
      %v2210 = vsub.s32 0, %v2209
      %v2211 = vrot.slane %v2135, %v2210
      %v2212 = vlaneseq
      %v2213 = vshrl.u32 %v2212, 7
      %v2214 = vsub.s32 0, %v2213
      %v2215 = vrot.slane %v2136, %v2214
      %v2216 = vlaneseq
      %v2217 = vshrl.u32 %v2216, 7
      %v2218 = vsub.s32 0, %v2217
      %v2219 = vrot.slane %v2137, %v2218
      %v2220 = vlaneseq
      %v2221 = vshrl.u32 %v2220, 7
      %v2222 = vsub.s32 0, %v2221
      %v2223 = vrot.slane %v2138, %v2222
      %v2224 = vlaneseq
      %v2225 = vshrl.u32 %v2224, 7
      %v2226 = vsub.s32 0, %v2225
      %v2227 = vrot.slane %v2139, %v2226
      %v2228 = vlaneseq
      %v2229 = vshrl.u32 %v2228, 7
      %v2230 = vsub.s32 0, %v2229
      %v2231 = vrot.slane %v2140, %v2230
      %v2232 = vlaneseq
      %v2233 = vshrl.u32 %v2232, 7
      %v2234 = vsub.s32 0, %v2233
      %v2235 = vrot.slane %v2141, %v2234
      %v2236 = vlaneseq
      %v2237 = vshrl.u32 %v2236, 7
      %v2238 = vsub.s32 0, %v2237
      %v2239 = vrot.slane %v2142, %v2238
      %v2240 = vlaneseq
      %v2241 = vshrl.u32 %v2240, 7
      %v2242 = vsub.s32 0, %v2241
      %v2243 = vrot.slane %v2143, %v2242
      %v2244 = vlaneseq
      %v2245 = vshrl.u32 %v2244, 7
      %v2246 = vsub.s32 0, %v2245
      %v2247 = vrot.slane %v2144, %v2246
      %v2248 = vlaneseq
      %v2249 = vshrl.u32 %v2248, 7
      %v2250 = vsub.s32 0, %v2249
      %v2251 = vrot.slane %v2145, %v2250
      %v2252 = vlaneseq
      %v2253 = vshrl.u32 %v2252, 7
      %v2254 = vsub.s32 0, %v2253
      %v2255 = vrot.slane %v2146, %v2254
      %v2256 = vlaneseq
      %v2257 = vshrl.u32 %v2256, 7
      %v2258 = vsub.s32 0, %v2257
      %v2259 = vrot.slane %v2147, %v2258
      %v2260 = vlaneseq
      %v2261 = vshrl.u32 %v2260, 7
      %v2262 = vsub.s32 0, %v2261
      %v2263 = vrot.slane %v2148, %v2262
      %v2264 = vlaneseq
      %v2265 = vshrl.u32 %v2264, 7
      %v2266 = vsub.s32 0, %v2265
      %v2267 = vrot.slane %v2149, %v2266
      %v2268 = vlaneseq
      %v2269 = vshrl.u32 %v2268, 7
      %v2270 = vsub.s32 0, %v2269
      %v2271 = vrot.slane %v2150, %v2270
      %v2272 = vlaneseq
      %v2273 = vshrl.u32 %v2272, 7
      %v2274 = vsub.s32 0, %v2273
      %v2275 = vrot.slane %v2151, %v2274
      %v2276 = vlaneseq
      %v2277 = vshrl.u32 %v2276, 7
      %v2278 = vsub.s32 0, %v2277
      %v2279 = vrot.slane %v2152, %v2278
      %v2280 = vlaneseq
      %v2281 = vshrl.u32 %v2280, 7
      %v2282 = vsub.s32 0, %v2281
      %v2283 = vrot.slane %v2153, %v2282
      %v2284 = vlaneseq
      %v2285 = vshrl.u32 %v2284, 7
      %v2286 = vsub.s32 0, %v2285
      %v2287 = vrot.slane %v2154, %v2286
      %v2288 = vlaneseq
      %v2289 = vshrl.u32 %v2288, 7
      %v2290 = vsub.s32 0, %v2289
      %v2291 = vrot.slane %v2155, %v2290
      %v2292 = vlaneseq
      %v2293 = vshrl.u32 %v2292, 7
      %v2294 = vsub.s32 0, %v2293
      %v2295 = vrot.slane %v2156, %v2294
      %v2296 = vlaneseq
      %v2297 = vshrl.u32 %v2296, 7
      %v2298 = vsub.s32 0, %v2297
      %v2299 = vrot.slane %v2157, %v2298
      %v2300 = vlaneseq
      %v2301 = vshrl.u32 %v2300, 7
      %v2302 = vsub.s32 0, %v2301
      %v2303 = vrot.slane %v2158, %v2302
      %v2304 = vlaneseq
      %v2305 = vshrl.u32 %v2304, 7
      %v2306 = vsub.s32 0, %v2305
      %v2307 = vrot.slane %v2159, %v2306
      %v2308 = vlaneseq
      %v2309 = vshrl.u32 %v2308, 7
      %v2310 = vsub.s32 0, %v2309
      %v2311 = vrot.slane %v2160, %v2310
      %v2312 = vlaneseq
      %v2313 = vshrl.u32 %v2312, 7
      %v2314 = vsub.s32 0, %v2313
      %v2315 = vrot.slane %v2161, %v2314
      %v2316 = vlaneseq
      %v2317 = vshrl.u32 %v2316, 7
      %v2318 = vsub.s32 0, %v2317
      %v2319 = vrot.slane %v2162, %v2318
      %v2320 = vlaneseq
      %v2321 = vshrl.u32 %v2320, 7
      %v2322 = vsub.s32 0, %v2321
      %v2323 = vrot.slane %v2163, %v2322
      %2324 = vset.pattern.permute.xlu0 0
      %2325 = vperm.xlu0 %2324, %v2199
      %v2326 = vpop.permute.xlu0 %2325
      %2328 = vset.pattern.permute.xlu0 0
      %2329 = vperm.xlu0 %2328, %v2203
      %v2330 = vpop.permute.xlu0 %2329
      %2332 = vset.pattern.permute.xlu0 0
      %2333 = vperm.xlu0 %2332, %v2207
      %v2334 = vpop.permute.xlu0 %2333
      %2336 = vset.pattern.permute.xlu0 0
      %2337 = vperm.xlu0 %2336, %v2211
      %v2338 = vpop.permute.xlu0 %2337
      %2340 = vset.pattern.permute.xlu0 0
      %2341 = vperm.xlu0 %2340, %v2215
      %v2342 = vpop.permute.xlu0 %2341
      %2344 = vset.pattern.permute.xlu0 0
      %2345 = vperm.xlu0 %2344, %v2219
      %v2346 = vpop.permute.xlu0 %2345
      %2348 = vset.pattern.permute.xlu0 0
      %2349 = vperm.xlu0 %2348, %v2223
      %v2350 = vpop.permute.xlu0 %2349
      %2352 = vset.pattern.permute.xlu0 0
      %2353 = vperm.xlu0 %2352, %v2227
      %v2354 = vpop.permute.xlu0 %2353
      %2356 = vset.pattern.permute.xlu0 0
      %2357 = vperm.xlu0 %2356, %v2231
      %v2358 = vpop.permute.xlu0 %2357
      %2360 = vset.pattern.permute.xlu0 0
      %2361 = vperm.xlu0 %2360, %v2235
      %v2362 = vpop.permute.xlu0 %2361
      %2364 = vset.pattern.permute.xlu0 0
      %2365 = vperm.xlu0 %2364, %v2239
      %v2366 = vpop.permute.xlu0 %2365
      %2368 = vset.pattern.permute.xlu0 0
      %2369 = vperm.xlu0 %2368, %v2243
      %v2370 = vpop.permute.xlu0 %2369
      %2372 = vset.pattern.permute.xlu0 0
      %2373 = vperm.xlu0 %2372, %v2247
      %v2374 = vpop.permute.xlu0 %2373
      %2376 = vset.pattern.permute.xlu0 0
      %2377 = vperm.xlu0 %2376, %v2251
      %v2378 = vpop.permute.xlu0 %2377
      %2380 = vset.pattern.permute.xlu0 0
      %2381 = vperm.xlu0 %2380, %v2255
      %v2382 = vpop.permute.xlu0 %2381
      %2384 = vset.pattern.permute.xlu0 0
      %2385 = vperm.xlu0 %2384, %v2259
      %v2386 = vpop.permute.xlu0 %2385
      %2388 = vset.pattern.permute.xlu0 0
      %2389 = vperm.xlu0 %2388, %v2263
      %v2390 = vpop.permute.xlu0 %2389
      %2392 = vset.pattern.permute.xlu0 0
      %2393 = vperm.xlu0 %2392, %v2267
      %v2394 = vpop.permute.xlu0 %2393
      %2396 = vset.pattern.permute.xlu0 0
      %2397 = vperm.xlu0 %2396, %v2271
      %v2398 = vpop.permute.xlu0 %2397
      %2400 = vset.pattern.permute.xlu0 0
      %2401 = vperm.xlu0 %2400, %v2275
      %v2402 = vpop.permute.xlu0 %2401
      %2404 = vset.pattern.permute.xlu0 0
      %2405 = vperm.xlu0 %2404, %v2279
      %v2406 = vpop.permute.xlu0 %2405
      %2408 = vset.pattern.permute.xlu0 0
      %2409 = vperm.xlu0 %2408, %v2283
      %v2410 = vpop.permute.xlu0 %2409
      %2412 = vset.pattern.permute.xlu0 0
      %2413 = vperm.xlu0 %2412, %v2287
      %v2414 = vpop.permute.xlu0 %2413
      %2416 = vset.pattern.permute.xlu0 0
      %2417 = vperm.xlu0 %2416, %v2291
      %v2418 = vpop.permute.xlu0 %2417
      %2420 = vset.pattern.permute.xlu0 0
      %2421 = vperm.xlu0 %2420, %v2295
      %v2422 = vpop.permute.xlu0 %2421
      %2424 = vset.pattern.permute.xlu0 0
      %2425 = vperm.xlu0 %2424, %v2299
      %v2426 = vpop.permute.xlu0 %2425
      %2428 = vset.pattern.permute.xlu0 0
      %2429 = vperm.xlu0 %2428, %v2303
      %v2430 = vpop.permute.xlu0 %2429
      %2432 = vset.pattern.permute.xlu0 0
      %2433 = vperm.xlu0 %2432, %v2307
      %v2434 = vpop.permute.xlu0 %2433
      %2436 = vset.pattern.permute.xlu0 0
      %2437 = vperm.xlu0 %2436, %v2311
      %v2438 = vpop.permute.xlu0 %2437
      %2440 = vset.pattern.permute.xlu0 0
      %2441 = vperm.xlu0 %2440, %v2315
      %v2442 = vpop.permute.xlu0 %2441
      %2444 = vset.pattern.permute.xlu0 0
      %2445 = vperm.xlu0 %2444, %v2319
      %v2446 = vpop.permute.xlu0 %2445
      %2448 = vset.pattern.permute.xlu0 0
      %2449 = vperm.xlu0 %2448, %v2323
      %v2450 = vpop.permute.xlu0 %2449
      %v2452 = vmul.f32 %v2326, %v914
      %v2453 = vmul.f32 %v2326, %v724
      %v2454 = vmul.f32 %v2330, %v915
      %v2455 = vmul.f32 %v2330, %v727
      %v2456 = vmul.f32 %v2334, %v916
      %v2457 = vmul.f32 %v2334, %v730
      %v2458 = vmul.f32 %v2338, %v917
      %v2459 = vmul.f32 %v2338, %v733
      %v2460 = vmul.f32 %v2342, %v918
      %v2461 = vmul.f32 %v2342, %v736
      %v2462 = vmul.f32 %v2346, %v919
      %v2463 = vmul.f32 %v2346, %v739
      %v2464 = vmul.f32 %v2350, %v920
      %v2465 = vmul.f32 %v2350, %v742
      %v2466 = vmul.f32 %v2354, %v921
      %v2467 = vmul.f32 %v2354, %v745
      %v2468 = vmul.f32 %v2358, %v922
      %v2469 = vmul.f32 %v2358, %v748
      %v2470 = vmul.f32 %v2362, %v923
      %v2471 = vmul.f32 %v2362, %v751
      %v2472 = vmul.f32 %v2366, %v924
      %v2473 = vmul.f32 %v2366, %v754
      %v2474 = vmul.f32 %v2370, %v925
      %v2475 = vmul.f32 %v2370, %v757
      %v2476 = vmul.f32 %v2374, %v926
      %v2477 = vmul.f32 %v2374, %v760
      %v2478 = vmul.f32 %v2378, %v927
      %v2479 = vmul.f32 %v2378, %v763
      %v2480 = vmul.f32 %v2382, %v928
      %v2481 = vmul.f32 %v2382, %v766
      %v2482 = vmul.f32 %v2386, %v929
      %v2483 = vmul.f32 %v2386, %v769
      %v2484 = vmul.f32 %v2390, %v930
      %v2485 = vmul.f32 %v2390, %v772
      %v2486 = vmul.f32 %v2394, %v931
      %v2487 = vmul.f32 %v2394, %v775
      %v2488 = vmul.f32 %v2398, %v932
      %v2489 = vmul.f32 %v2398, %v778
      %v2490 = vmul.f32 %v2402, %v933
      %v2491 = vmul.f32 %v2402, %v781
      %v2492 = vmul.f32 %v2406, %v934
      %v2493 = vmul.f32 %v2406, %v784
      %v2494 = vmul.f32 %v2410, %v935
      %v2495 = vmul.f32 %v2410, %v787
      %v2496 = vmul.f32 %v2414, %v936
      %v2497 = vmul.f32 %v2414, %v790
      %v2498 = vmul.f32 %v2418, %v937
      %v2499 = vmul.f32 %v2418, %v793
      %v2500 = vmul.f32 %v2422, %v938
      %v2501 = vmul.f32 %v2422, %v796
      %v2502 = vmul.f32 %v2426, %v939
      %v2503 = vmul.f32 %v2426, %v799
      %v2504 = vmul.f32 %v2430, %v940
      %v2505 = vmul.f32 %v2430, %v802
      %v2506 = vmul.f32 %v2434, %v941
      %v2507 = vmul.f32 %v2434, %v805
      %v2508 = vmul.f32 %v2438, %v942
      %v2509 = vmul.f32 %v2438, %v808
      %v2510 = vmul.f32 %v2442, %v943
      %v2511 = vmul.f32 %v2442, %v811
      %v2512 = vmul.f32 %v2446, %v944
      %v2513 = vmul.f32 %v2446, %v814
      %v2514 = vmul.f32 %v2450, %v945
      %v2515 = vmul.f32 %v2450, %v817
      %2580 = vrot.lane.b32.xlu0 %v2452, 124
      %v2581 = vpop.permute.xlu0 %2580
      %2582 = vrot.lane.b32.xlu0 %v2453, 124
      %v2583 = vpop.permute.xlu0 %2582
      %2584 = vrot.lane.b32.xlu0 %v2454, 124
      %v2585 = vpop.permute.xlu0 %2584
      %2586 = vrot.lane.b32.xlu0 %v2455, 124
      %v2587 = vpop.permute.xlu0 %2586
      %2588 = vrot.lane.b32.xlu0 %v2456, 124
      %v2589 = vpop.permute.xlu0 %2588
      %2590 = vrot.lane.b32.xlu0 %v2457, 124
      %v2591 = vpop.permute.xlu0 %2590
      %2592 = vrot.lane.b32.xlu0 %v2458, 124
      %v2593 = vpop.permute.xlu0 %2592
      %2594 = vrot.lane.b32.xlu0 %v2459, 124
      %v2595 = vpop.permute.xlu0 %2594
      %2596 = vrot.lane.b32.xlu0 %v2460, 124
      %v2597 = vpop.permute.xlu0 %2596
      %2598 = vrot.lane.b32.xlu0 %v2461, 124
      %v2599 = vpop.permute.xlu0 %2598
      %2600 = vrot.lane.b32.xlu0 %v2462, 124
      %v2601 = vpop.permute.xlu0 %2600
      %2602 = vrot.lane.b32.xlu0 %v2463, 124
      %v2603 = vpop.permute.xlu0 %2602
      %2604 = vrot.lane.b32.xlu0 %v2464, 124
      %v2605 = vpop.permute.xlu0 %2604
      %2606 = vrot.lane.b32.xlu0 %v2465, 124
      %v2607 = vpop.permute.xlu0 %2606
      %2608 = vrot.lane.b32.xlu0 %v2466, 124
      %v2609 = vpop.permute.xlu0 %2608
      %2610 = vrot.lane.b32.xlu0 %v2467, 124
      %v2611 = vpop.permute.xlu0 %2610
      %2612 = vrot.lane.b32.xlu0 %v2468, 124
      %v2613 = vpop.permute.xlu0 %2612
      %2614 = vrot.lane.b32.xlu0 %v2469, 124
      %v2615 = vpop.permute.xlu0 %2614
      %2616 = vrot.lane.b32.xlu0 %v2470, 124
      %v2617 = vpop.permute.xlu0 %2616
      %2618 = vrot.lane.b32.xlu0 %v2471, 124
      %v2619 = vpop.permute.xlu0 %2618
      %2620 = vrot.lane.b32.xlu0 %v2472, 124
      %v2621 = vpop.permute.xlu0 %2620
      %2622 = vrot.lane.b32.xlu0 %v2473, 124
      %v2623 = vpop.permute.xlu0 %2622
      %2624 = vrot.lane.b32.xlu0 %v2474, 124
      %v2625 = vpop.permute.xlu0 %2624
      %2626 = vrot.lane.b32.xlu0 %v2475, 124
      %v2627 = vpop.permute.xlu0 %2626
      %2628 = vrot.lane.b32.xlu0 %v2476, 124
      %v2629 = vpop.permute.xlu0 %2628
      %2630 = vrot.lane.b32.xlu0 %v2477, 124
      %v2631 = vpop.permute.xlu0 %2630
      %2632 = vrot.lane.b32.xlu0 %v2478, 124
      %v2633 = vpop.permute.xlu0 %2632
      %2634 = vrot.lane.b32.xlu0 %v2479, 124
      %v2635 = vpop.permute.xlu0 %2634
      %2636 = vrot.lane.b32.xlu0 %v2480, 124
      %v2637 = vpop.permute.xlu0 %2636
      %2638 = vrot.lane.b32.xlu0 %v2481, 124
      %v2639 = vpop.permute.xlu0 %2638
      %2640 = vrot.lane.b32.xlu0 %v2482, 124
      %v2641 = vpop.permute.xlu0 %2640
      %2642 = vrot.lane.b32.xlu0 %v2483, 124
      %v2643 = vpop.permute.xlu0 %2642
      %2644 = vrot.lane.b32.xlu0 %v2484, 124
      %v2645 = vpop.permute.xlu0 %2644
      %2646 = vrot.lane.b32.xlu0 %v2485, 124
      %v2647 = vpop.permute.xlu0 %2646
      %2648 = vrot.lane.b32.xlu0 %v2486, 124
      %v2649 = vpop.permute.xlu0 %2648
      %2650 = vrot.lane.b32.xlu0 %v2487, 124
      %v2651 = vpop.permute.xlu0 %2650
      %2652 = vrot.lane.b32.xlu0 %v2488, 124
      %v2653 = vpop.permute.xlu0 %2652
      %2654 = vrot.lane.b32.xlu0 %v2489, 124
      %v2655 = vpop.permute.xlu0 %2654
      %2656 = vrot.lane.b32.xlu0 %v2490, 124
      %v2657 = vpop.permute.xlu0 %2656
      %2658 = vrot.lane.b32.xlu0 %v2491, 124
      %v2659 = vpop.permute.xlu0 %2658
      %2660 = vrot.lane.b32.xlu0 %v2492, 124
      %v2661 = vpop.permute.xlu0 %2660
      %2662 = vrot.lane.b32.xlu0 %v2493, 124
      %v2663 = vpop.permute.xlu0 %2662
      %2664 = vrot.lane.b32.xlu0 %v2494, 124
      %v2665 = vpop.permute.xlu0 %2664
      %2666 = vrot.lane.b32.xlu0 %v2495, 124
      %v2667 = vpop.permute.xlu0 %2666
      %2668 = vrot.lane.b32.xlu0 %v2496, 124
      %v2669 = vpop.permute.xlu0 %2668
      %2670 = vrot.lane.b32.xlu0 %v2497, 124
      %v2671 = vpop.permute.xlu0 %2670
      %2672 = vrot.lane.b32.xlu0 %v2498, 124
      %v2673 = vpop.permute.xlu0 %2672
      %2674 = vrot.lane.b32.xlu0 %v2499, 124
      %v2675 = vpop.permute.xlu0 %2674
      %2676 = vrot.lane.b32.xlu0 %v2500, 124
      %v2677 = vpop.permute.xlu0 %2676
      %2678 = vrot.lane.b32.xlu0 %v2501, 124
      %v2679 = vpop.permute.xlu0 %2678
      %2680 = vrot.lane.b32.xlu0 %v2502, 124
      %v2681 = vpop.permute.xlu0 %2680
      %2682 = vrot.lane.b32.xlu0 %v2503, 124
      %v2683 = vpop.permute.xlu0 %2682
      %2684 = vrot.lane.b32.xlu0 %v2504, 124
      %v2685 = vpop.permute.xlu0 %2684
      %2686 = vrot.lane.b32.xlu0 %v2505, 124
      %v2687 = vpop.permute.xlu0 %2686
      %2688 = vrot.lane.b32.xlu0 %v2506, 124
      %v2689 = vpop.permute.xlu0 %2688
      %2690 = vrot.lane.b32.xlu0 %v2507, 124
      %v2691 = vpop.permute.xlu0 %2690
      %2692 = vrot.lane.b32.xlu0 %v2508, 124
      %v2693 = vpop.permute.xlu0 %2692
      %2694 = vrot.lane.b32.xlu0 %v2509, 124
      %v2695 = vpop.permute.xlu0 %2694
      %2696 = vrot.lane.b32.xlu0 %v2510, 124
      %v2697 = vpop.permute.xlu0 %2696
      %2698 = vrot.lane.b32.xlu0 %v2511, 124
      %v2699 = vpop.permute.xlu0 %2698
      %2700 = vrot.lane.b32.xlu0 %v2512, 124
      %v2701 = vpop.permute.xlu0 %2700
      %2702 = vrot.lane.b32.xlu0 %v2513, 124
      %v2703 = vpop.permute.xlu0 %2702
      %2704 = vrot.lane.b32.xlu0 %v2514, 124
      %v2705 = vpop.permute.xlu0 %2704
      %2706 = vrot.lane.b32.xlu0 %v2515, 124
      %v2707 = vpop.permute.xlu0 %2706
      %v2772 = vadd.f32 %v2067, %v2581
      %v2773 = vadd.f32 %v2068, %v2583
      %v2774 = vadd.f32 %v2069, %v2585
      %v2775 = vadd.f32 %v2070, %v2587
      %v2776 = vadd.f32 %v2071, %v2589
      %v2777 = vadd.f32 %v2072, %v2591
      %v2778 = vadd.f32 %v2073, %v2593
      %v2779 = vadd.f32 %v2074, %v2595
      %v2780 = vadd.f32 %v2075, %v2597
      %v2781 = vadd.f32 %v2076, %v2599
      %v2782 = vadd.f32 %v2077, %v2601
      %v2783 = vadd.f32 %v2078, %v2603
      %v2784 = vadd.f32 %v2079, %v2605
      %v2785 = vadd.f32 %v2080, %v2607
      %v2786 = vadd.f32 %v2081, %v2609
      %v2787 = vadd.f32 %v2082, %v2611
      %v2788 = vadd.f32 %v2083, %v2613
      %v2789 = vadd.f32 %v2084, %v2615
      %v2790 = vadd.f32 %v2085, %v2617
      %v2791 = vadd.f32 %v2086, %v2619
      %v2792 = vadd.f32 %v2087, %v2621
      %v2793 = vadd.f32 %v2088, %v2623
      %v2794 = vadd.f32 %v2089, %v2625
      %v2795 = vadd.f32 %v2090, %v2627
      %v2796 = vadd.f32 %v2091, %v2629
      %v2797 = vadd.f32 %v2092, %v2631
      %v2798 = vadd.f32 %v2093, %v2633
      %v2799 = vadd.f32 %v2094, %v2635
      %v2800 = vadd.f32 %v2095, %v2637
      %v2801 = vadd.f32 %v2096, %v2639
      %v2802 = vadd.f32 %v2097, %v2641
      %v2803 = vadd.f32 %v2098, %v2643
      %v2804 = vadd.f32 %v2099, %v2645
      %v2805 = vadd.f32 %v2100, %v2647
      %v2806 = vadd.f32 %v2101, %v2649
      %v2807 = vadd.f32 %v2102, %v2651
      %v2808 = vadd.f32 %v2103, %v2653
      %v2809 = vadd.f32 %v2104, %v2655
      %v2810 = vadd.f32 %v2105, %v2657
      %v2811 = vadd.f32 %v2106, %v2659
      %v2812 = vadd.f32 %v2107, %v2661
      %v2813 = vadd.f32 %v2108, %v2663
      %v2814 = vadd.f32 %v2109, %v2665
      %v2815 = vadd.f32 %v2110, %v2667
      %v2816 = vadd.f32 %v2111, %v2669
      %v2817 = vadd.f32 %v2112, %v2671
      %v2818 = vadd.f32 %v2113, %v2673
      %v2819 = vadd.f32 %v2114, %v2675
      %v2820 = vadd.f32 %v2115, %v2677
      %v2821 = vadd.f32 %v2116, %v2679
      %v2822 = vadd.f32 %v2117, %v2681
      %v2823 = vadd.f32 %v2118, %v2683
      %v2824 = vadd.f32 %v2119, %v2685
      %v2825 = vadd.f32 %v2120, %v2687
      %v2826 = vadd.f32 %v2121, %v2689
      %v2827 = vadd.f32 %v2122, %v2691
      %v2828 = vadd.f32 %v2123, %v2693
      %v2829 = vadd.f32 %v2124, %v2695
      %v2830 = vadd.f32 %v2125, %v2697
      %v2831 = vadd.f32 %v2126, %v2699
      %v2832 = vadd.f32 %v2127, %v2701
      %v2833 = vadd.f32 %v2128, %v2703
      %v2834 = vadd.f32 %v2129, %v2705
      %v2835 = vadd.f32 %v2130, %v2707
      %s2836 = scalar_lea.vmem %s183, 96
      %v2837 = vld [vmem:[%s2836] sm:$0x1]
      %v2838 = vld [vmem:[%s2836 + $0x1] sm:$0x1]
      %v2839 = vld [vmem:[%s2836 + $0x2] sm:$0x1]
      %v2840 = vld [vmem:[%s2836 + $0x3] sm:$0x1]
      %v2841 = vld [vmem:[%s2836 + $0x4] sm:$0x1]
      %v2842 = vld [vmem:[%s2836 + $0x5] sm:$0x1]
      %v2843 = vld [vmem:[%s2836 + $0x6] sm:$0x1]
      %v2844 = vld [vmem:[%s2836 + $0x7] sm:$0x1]
      %v2845 = vld [vmem:[%s2836 + $0x8] sm:$0x1]
      %v2846 = vld [vmem:[%s2836 + $0x9] sm:$0x1]
      %v2847 = vld [vmem:[%s2836 + $0xa] sm:$0x1]
      %v2848 = vld [vmem:[%s2836 + $0xb] sm:$0x1]
      %v2849 = vld [vmem:[%s2836 + $0xc] sm:$0x1]
      %v2850 = vld [vmem:[%s2836 + $0xd] sm:$0x1]
      %v2851 = vld [vmem:[%s2836 + $0xe] sm:$0x1]
      %v2852 = vld [vmem:[%s2836 + $0xf] sm:$0x1]
      %v2853 = vld [vmem:[%s2836 + $0x10] sm:$0x1]
      %v2854 = vld [vmem:[%s2836 + $0x11] sm:$0x1]
      %v2855 = vld [vmem:[%s2836 + $0x12] sm:$0x1]
      %v2856 = vld [vmem:[%s2836 + $0x13] sm:$0x1]
      %v2857 = vld [vmem:[%s2836 + $0x14] sm:$0x1]
      %v2858 = vld [vmem:[%s2836 + $0x15] sm:$0x1]
      %v2859 = vld [vmem:[%s2836 + $0x16] sm:$0x1]
      %v2860 = vld [vmem:[%s2836 + $0x17] sm:$0x1]
      %v2861 = vld [vmem:[%s2836 + $0x18] sm:$0x1]
      %v2862 = vld [vmem:[%s2836 + $0x19] sm:$0x1]
      %v2863 = vld [vmem:[%s2836 + $0x1a] sm:$0x1]
      %v2864 = vld [vmem:[%s2836 + $0x1b] sm:$0x1]
      %v2865 = vld [vmem:[%s2836 + $0x1c] sm:$0x1]
      %v2866 = vld [vmem:[%s2836 + $0x1d] sm:$0x1]
      %v2867 = vld [vmem:[%s2836 + $0x1e] sm:$0x1]
      %v2868 = vld [vmem:[%s2836 + $0x1f] sm:$0x1]
      %v2901 = vlaneseq
      %v2902 = vshrl.u32 %v2901, 7
      %v2903 = vsub.s32 0, %v2902
      %v2904 = vrot.slane %v2837, %v2903
      %v2905 = vlaneseq
      %v2906 = vshrl.u32 %v2905, 7
      %v2907 = vsub.s32 0, %v2906
      %v2908 = vrot.slane %v2838, %v2907
      %v2909 = vlaneseq
      %v2910 = vshrl.u32 %v2909, 7
      %v2911 = vsub.s32 0, %v2910
      %v2912 = vrot.slane %v2839, %v2911
      %v2913 = vlaneseq
      %v2914 = vshrl.u32 %v2913, 7
      %v2915 = vsub.s32 0, %v2914
      %v2916 = vrot.slane %v2840, %v2915
      %v2917 = vlaneseq
      %v2918 = vshrl.u32 %v2917, 7
      %v2919 = vsub.s32 0, %v2918
      %v2920 = vrot.slane %v2841, %v2919
      %v2921 = vlaneseq
      %v2922 = vshrl.u32 %v2921, 7
      %v2923 = vsub.s32 0, %v2922
      %v2924 = vrot.slane %v2842, %v2923
      %v2925 = vlaneseq
      %v2926 = vshrl.u32 %v2925, 7
      %v2927 = vsub.s32 0, %v2926
      %v2928 = vrot.slane %v2843, %v2927
      %v2929 = vlaneseq
      %v2930 = vshrl.u32 %v2929, 7
      %v2931 = vsub.s32 0, %v2930
      %v2932 = vrot.slane %v2844, %v2931
      %v2933 = vlaneseq
      %v2934 = vshrl.u32 %v2933, 7
      %v2935 = vsub.s32 0, %v2934
      %v2936 = vrot.slane %v2845, %v2935
      %v2937 = vlaneseq
      %v2938 = vshrl.u32 %v2937, 7
      %v2939 = vsub.s32 0, %v2938
      %v2940 = vrot.slane %v2846, %v2939
      %v2941 = vlaneseq
      %v2942 = vshrl.u32 %v2941, 7
      %v2943 = vsub.s32 0, %v2942
      %v2944 = vrot.slane %v2847, %v2943
      %v2945 = vlaneseq
      %v2946 = vshrl.u32 %v2945, 7
      %v2947 = vsub.s32 0, %v2946
      %v2948 = vrot.slane %v2848, %v2947
      %v2949 = vlaneseq
      %v2950 = vshrl.u32 %v2949, 7
      %v2951 = vsub.s32 0, %v2950
      %v2952 = vrot.slane %v2849, %v2951
      %v2953 = vlaneseq
      %v2954 = vshrl.u32 %v2953, 7
      %v2955 = vsub.s32 0, %v2954
      %v2956 = vrot.slane %v2850, %v2955
      %v2957 = vlaneseq
      %v2958 = vshrl.u32 %v2957, 7
      %v2959 = vsub.s32 0, %v2958
      %v2960 = vrot.slane %v2851, %v2959
      %v2961 = vlaneseq
      %v2962 = vshrl.u32 %v2961, 7
      %v2963 = vsub.s32 0, %v2962
      %v2964 = vrot.slane %v2852, %v2963
      %v2965 = vlaneseq
      %v2966 = vshrl.u32 %v2965, 7
      %v2967 = vsub.s32 0, %v2966
      %v2968 = vrot.slane %v2853, %v2967
      %v2969 = vlaneseq
      %v2970 = vshrl.u32 %v2969, 7
      %v2971 = vsub.s32 0, %v2970
      %v2972 = vrot.slane %v2854, %v2971
      %v2973 = vlaneseq
      %v2974 = vshrl.u32 %v2973, 7
      %v2975 = vsub.s32 0, %v2974
      %v2976 = vrot.slane %v2855, %v2975
      %v2977 = vlaneseq
      %v2978 = vshrl.u32 %v2977, 7
      %v2979 = vsub.s32 0, %v2978
      %v2980 = vrot.slane %v2856, %v2979
      %v2981 = vlaneseq
      %v2982 = vshrl.u32 %v2981, 7
      %v2983 = vsub.s32 0, %v2982
      %v2984 = vrot.slane %v2857, %v2983
      %v2985 = vlaneseq
      %v2986 = vshrl.u32 %v2985, 7
      %v2987 = vsub.s32 0, %v2986
      %v2988 = vrot.slane %v2858, %v2987
      %v2989 = vlaneseq
      %v2990 = vshrl.u32 %v2989, 7
      %v2991 = vsub.s32 0, %v2990
      %v2992 = vrot.slane %v2859, %v2991
      %v2993 = vlaneseq
      %v2994 = vshrl.u32 %v2993, 7
      %v2995 = vsub.s32 0, %v2994
      %v2996 = vrot.slane %v2860, %v2995
      %v2997 = vlaneseq
      %v2998 = vshrl.u32 %v2997, 7
      %v2999 = vsub.s32 0, %v2998
      %v3000 = vrot.slane %v2861, %v2999
      %v3001 = vlaneseq
      %v3002 = vshrl.u32 %v3001, 7
      %v3003 = vsub.s32 0, %v3002
      %v3004 = vrot.slane %v2862, %v3003
      %v3005 = vlaneseq
      %v3006 = vshrl.u32 %v3005, 7
      %v3007 = vsub.s32 0, %v3006
      %v3008 = vrot.slane %v2863, %v3007
      %v3009 = vlaneseq
      %v3010 = vshrl.u32 %v3009, 7
      %v3011 = vsub.s32 0, %v3010
      %v3012 = vrot.slane %v2864, %v3011
      %v3013 = vlaneseq
      %v3014 = vshrl.u32 %v3013, 7
      %v3015 = vsub.s32 0, %v3014
      %v3016 = vrot.slane %v2865, %v3015
      %v3017 = vlaneseq
      %v3018 = vshrl.u32 %v3017, 7
      %v3019 = vsub.s32 0, %v3018
      %v3020 = vrot.slane %v2866, %v3019
      %v3021 = vlaneseq
      %v3022 = vshrl.u32 %v3021, 7
      %v3023 = vsub.s32 0, %v3022
      %v3024 = vrot.slane %v2867, %v3023
      %v3025 = vlaneseq
      %v3026 = vshrl.u32 %v3025, 7
      %v3027 = vsub.s32 0, %v3026
      %v3028 = vrot.slane %v2868, %v3027
      %3029 = vset.pattern.permute.xlu0 0
      %3030 = vperm.xlu0 %3029, %v2904
      %v3031 = vpop.permute.xlu0 %3030
      %3033 = vset.pattern.permute.xlu0 0
      %3034 = vperm.xlu0 %3033, %v2908
      %v3035 = vpop.permute.xlu0 %3034
      %3037 = vset.pattern.permute.xlu0 0
      %3038 = vperm.xlu0 %3037, %v2912
      %v3039 = vpop.permute.xlu0 %3038
      %3041 = vset.pattern.permute.xlu0 0
      %3042 = vperm.xlu0 %3041, %v2916
      %v3043 = vpop.permute.xlu0 %3042
      %3045 = vset.pattern.permute.xlu0 0
      %3046 = vperm.xlu0 %3045, %v2920
      %v3047 = vpop.permute.xlu0 %3046
      %3049 = vset.pattern.permute.xlu0 0
      %3050 = vperm.xlu0 %3049, %v2924
      %v3051 = vpop.permute.xlu0 %3050
      %3053 = vset.pattern.permute.xlu0 0
      %3054 = vperm.xlu0 %3053, %v2928
      %v3055 = vpop.permute.xlu0 %3054
      %3057 = vset.pattern.permute.xlu0 0
      %3058 = vperm.xlu0 %3057, %v2932
      %v3059 = vpop.permute.xlu0 %3058
      %3061 = vset.pattern.permute.xlu0 0
      %3062 = vperm.xlu0 %3061, %v2936
      %v3063 = vpop.permute.xlu0 %3062
      %3065 = vset.pattern.permute.xlu0 0
      %3066 = vperm.xlu0 %3065, %v2940
      %v3067 = vpop.permute.xlu0 %3066
      %3069 = vset.pattern.permute.xlu0 0
      %3070 = vperm.xlu0 %3069, %v2944
      %v3071 = vpop.permute.xlu0 %3070
      %3073 = vset.pattern.permute.xlu0 0
      %3074 = vperm.xlu0 %3073, %v2948
      %v3075 = vpop.permute.xlu0 %3074
      %3077 = vset.pattern.permute.xlu0 0
      %3078 = vperm.xlu0 %3077, %v2952
      %v3079 = vpop.permute.xlu0 %3078
      %3081 = vset.pattern.permute.xlu0 0
      %3082 = vperm.xlu0 %3081, %v2956
      %v3083 = vpop.permute.xlu0 %3082
      %3085 = vset.pattern.permute.xlu0 0
      %3086 = vperm.xlu0 %3085, %v2960
      %v3087 = vpop.permute.xlu0 %3086
      %3089 = vset.pattern.permute.xlu0 0
      %3090 = vperm.xlu0 %3089, %v2964
      %v3091 = vpop.permute.xlu0 %3090
      %3093 = vset.pattern.permute.xlu0 0
      %3094 = vperm.xlu0 %3093, %v2968
      %v3095 = vpop.permute.xlu0 %3094
      %3097 = vset.pattern.permute.xlu0 0
      %3098 = vperm.xlu0 %3097, %v2972
      %v3099 = vpop.permute.xlu0 %3098
      %3101 = vset.pattern.permute.xlu0 0
      %3102 = vperm.xlu0 %3101, %v2976
      %v3103 = vpop.permute.xlu0 %3102
      %3105 = vset.pattern.permute.xlu0 0
      %3106 = vperm.xlu0 %3105, %v2980
      %v3107 = vpop.permute.xlu0 %3106
      %3109 = vset.pattern.permute.xlu0 0
      %3110 = vperm.xlu0 %3109, %v2984
      %v3111 = vpop.permute.xlu0 %3110
      %3113 = vset.pattern.permute.xlu0 0
      %3114 = vperm.xlu0 %3113, %v2988
      %v3115 = vpop.permute.xlu0 %3114
      %3117 = vset.pattern.permute.xlu0 0
      %3118 = vperm.xlu0 %3117, %v2992
      %v3119 = vpop.permute.xlu0 %3118
      %3121 = vset.pattern.permute.xlu0 0
      %3122 = vperm.xlu0 %3121, %v2996
      %v3123 = vpop.permute.xlu0 %3122
      %3125 = vset.pattern.permute.xlu0 0
      %3126 = vperm.xlu0 %3125, %v3000
      %v3127 = vpop.permute.xlu0 %3126
      %3129 = vset.pattern.permute.xlu0 0
      %3130 = vperm.xlu0 %3129, %v3004
      %v3131 = vpop.permute.xlu0 %3130
      %3133 = vset.pattern.permute.xlu0 0
      %3134 = vperm.xlu0 %3133, %v3008
      %v3135 = vpop.permute.xlu0 %3134
      %3137 = vset.pattern.permute.xlu0 0
      %3138 = vperm.xlu0 %3137, %v3012
      %v3139 = vpop.permute.xlu0 %3138
      %3141 = vset.pattern.permute.xlu0 0
      %3142 = vperm.xlu0 %3141, %v3016
      %v3143 = vpop.permute.xlu0 %3142
      %3145 = vset.pattern.permute.xlu0 0
      %3146 = vperm.xlu0 %3145, %v3020
      %v3147 = vpop.permute.xlu0 %3146
      %3149 = vset.pattern.permute.xlu0 0
      %3150 = vperm.xlu0 %3149, %v3024
      %v3151 = vpop.permute.xlu0 %3150
      %3153 = vset.pattern.permute.xlu0 0
      %3154 = vperm.xlu0 %3153, %v3028
      %v3155 = vpop.permute.xlu0 %3154
      %v3157 = vmul.f32 %v3031, %v914
      %v3158 = vmul.f32 %v3031, %v724
      %v3159 = vmul.f32 %v3031, %v946
      %v3160 = vmul.f32 %v3035, %v915
      %v3161 = vmul.f32 %v3035, %v727
      %v3162 = vmul.f32 %v3035, %v947
      %v3163 = vmul.f32 %v3039, %v916
      %v3164 = vmul.f32 %v3039, %v730
      %v3165 = vmul.f32 %v3039, %v948
      %v3166 = vmul.f32 %v3043, %v917
      %v3167 = vmul.f32 %v3043, %v733
      %v3168 = vmul.f32 %v3043, %v949
      %v3169 = vmul.f32 %v3047, %v918
      %v3170 = vmul.f32 %v3047, %v736
      %v3171 = vmul.f32 %v3047, %v950
      %v3172 = vmul.f32 %v3051, %v919
      %v3173 = vmul.f32 %v3051, %v739
      %v3174 = vmul.f32 %v3051, %v951
      %v3175 = vmul.f32 %v3055, %v920
      %v3176 = vmul.f32 %v3055, %v742
      %v3177 = vmul.f32 %v3055, %v952
      %v3178 = vmul.f32 %v3059, %v921
      %v3179 = vmul.f32 %v3059, %v745
      %v3180 = vmul.f32 %v3059, %v953
      %v3181 = vmul.f32 %v3063, %v922
      %v3182 = vmul.f32 %v3063, %v748
      %v3183 = vmul.f32 %v3063, %v954
      %v3184 = vmul.f32 %v3067, %v923
      %v3185 = vmul.f32 %v3067, %v751
      %v3186 = vmul.f32 %v3067, %v955
      %v3187 = vmul.f32 %v3071, %v924
      %v3188 = vmul.f32 %v3071, %v754
      %v3189 = vmul.f32 %v3071, %v956
      %v3190 = vmul.f32 %v3075, %v925
      %v3191 = vmul.f32 %v3075, %v757
      %v3192 = vmul.f32 %v3075, %v957
      %v3193 = vmul.f32 %v3079, %v926
      %v3194 = vmul.f32 %v3079, %v760
      %v3195 = vmul.f32 %v3079, %v958
      %v3196 = vmul.f32 %v3083, %v927
      %v3197 = vmul.f32 %v3083, %v763
      %v3198 = vmul.f32 %v3083, %v959
      %v3199 = vmul.f32 %v3087, %v928
      %v3200 = vmul.f32 %v3087, %v766
      %v3201 = vmul.f32 %v3087, %v960
      %v3202 = vmul.f32 %v3091, %v929
      %v3203 = vmul.f32 %v3091, %v769
      %v3204 = vmul.f32 %v3091, %v961
      %v3205 = vmul.f32 %v3095, %v930
      %v3206 = vmul.f32 %v3095, %v772
      %v3207 = vmul.f32 %v3095, %v962
      %v3208 = vmul.f32 %v3099, %v931
      %v3209 = vmul.f32 %v3099, %v775
      %v3210 = vmul.f32 %v3099, %v963
      %v3211 = vmul.f32 %v3103, %v932
      %v3212 = vmul.f32 %v3103, %v778
      %v3213 = vmul.f32 %v3103, %v964
      %v3214 = vmul.f32 %v3107, %v933
      %v3215 = vmul.f32 %v3107, %v781
      %v3216 = vmul.f32 %v3107, %v965
      %v3217 = vmul.f32 %v3111, %v934
      %v3218 = vmul.f32 %v3111, %v784
      %v3219 = vmul.f32 %v3111, %v966
      %v3220 = vmul.f32 %v3115, %v935
      %v3221 = vmul.f32 %v3115, %v787
      %v3222 = vmul.f32 %v3115, %v967
      %v3223 = vmul.f32 %v3119, %v936
      %v3224 = vmul.f32 %v3119, %v790
      %v3225 = vmul.f32 %v3119, %v968
      %v3226 = vmul.f32 %v3123, %v937
      %v3227 = vmul.f32 %v3123, %v793
      %v3228 = vmul.f32 %v3123, %v969
      %v3229 = vmul.f32 %v3127, %v938
      %v3230 = vmul.f32 %v3127, %v796
      %v3231 = vmul.f32 %v3127, %v970
      %v3232 = vmul.f32 %v3131, %v939
      %v3233 = vmul.f32 %v3131, %v799
      %v3234 = vmul.f32 %v3131, %v971
      %v3235 = vmul.f32 %v3135, %v940
      %v3236 = vmul.f32 %v3135, %v802
      %v3237 = vmul.f32 %v3135, %v972
      %v3238 = vmul.f32 %v3139, %v941
      %v3239 = vmul.f32 %v3139, %v805
      %v3240 = vmul.f32 %v3139, %v973
      %v3241 = vmul.f32 %v3143, %v942
      %v3242 = vmul.f32 %v3143, %v808
      %v3243 = vmul.f32 %v3143, %v974
      %v3244 = vmul.f32 %v3147, %v943
      %v3245 = vmul.f32 %v3147, %v811
      %v3246 = vmul.f32 %v3147, %v975
      %v3247 = vmul.f32 %v3151, %v944
      %v3248 = vmul.f32 %v3151, %v814
      %v3249 = vmul.f32 %v3151, %v976
      %v3250 = vmul.f32 %v3155, %v945
      %v3251 = vmul.f32 %v3155, %v817
      %v3252 = vmul.f32 %v3155, %v977
      %vm3349 = vcmask 1045504
      %v3350 = vrot.slane %v3157, 2
      %v3351 = vrot.slane %v3158, 2
      %v3352 = vsel %vm3349, %v3350, %v3351
      %v3353 = vrot.slane %v3159, 2
      %v3354 = vsel %vm3349, %v3351, %v3353
      %v3355 = vrot.slane %v3160, 2
      %v3356 = vrot.slane %v3161, 2
      %v3357 = vsel %vm3349, %v3355, %v3356
      %v3358 = vrot.slane %v3162, 2
      %v3359 = vsel %vm3349, %v3356, %v3358
      %v3360 = vrot.slane %v3163, 2
      %v3361 = vrot.slane %v3164, 2
      %v3362 = vsel %vm3349, %v3360, %v3361
      %v3363 = vrot.slane %v3165, 2
      %v3364 = vsel %vm3349, %v3361, %v3363
      %v3365 = vrot.slane %v3166, 2
      %v3366 = vrot.slane %v3167, 2
      %v3367 = vsel %vm3349, %v3365, %v3366
      %v3368 = vrot.slane %v3168, 2
      %v3369 = vsel %vm3349, %v3366, %v3368
      %v3370 = vrot.slane %v3169, 2
      %v3371 = vrot.slane %v3170, 2
      %v3372 = vsel %vm3349, %v3370, %v3371
      %v3373 = vrot.slane %v3171, 2
      %v3374 = vsel %vm3349, %v3371, %v3373
      %v3375 = vrot.slane %v3172, 2
      %v3376 = vrot.slane %v3173, 2
      %v3377 = vsel %vm3349, %v3375, %v3376
      %v3378 = vrot.slane %v3174, 2
      %v3379 = vsel %vm3349, %v3376, %v3378
      %v3380 = vrot.slane %v3175, 2
      %v3381 = vrot.slane %v3176, 2
      %v3382 = vsel %vm3349, %v3380, %v3381
      %v3383 = vrot.slane %v3177, 2
      %v3384 = vsel %vm3349, %v3381, %v3383
      %v3385 = vrot.slane %v3178, 2
      %v3386 = vrot.slane %v3179, 2
      %v3387 = vsel %vm3349, %v3385, %v3386
      %v3388 = vrot.slane %v3180, 2
      %v3389 = vsel %vm3349, %v3386, %v3388
      %v3390 = vrot.slane %v3181, 2
      %v3391 = vrot.slane %v3182, 2
      %v3392 = vsel %vm3349, %v3390, %v3391
      %v3393 = vrot.slane %v3183, 2
      %v3394 = vsel %vm3349, %v3391, %v3393
      %v3395 = vrot.slane %v3184, 2
      %v3396 = vrot.slane %v3185, 2
      %v3397 = vsel %vm3349, %v3395, %v3396
      %v3398 = vrot.slane %v3186, 2
      %v3399 = vsel %vm3349, %v3396, %v3398
      %v3400 = vrot.slane %v3187, 2
      %v3401 = vrot.slane %v3188, 2
      %v3402 = vsel %vm3349, %v3400, %v3401
      %v3403 = vrot.slane %v3189, 2
      %v3404 = vsel %vm3349, %v3401, %v3403
      %v3405 = vrot.slane %v3190, 2
      %v3406 = vrot.slane %v3191, 2
      %v3407 = vsel %vm3349, %v3405, %v3406
      %v3408 = vrot.slane %v3192, 2
      %v3409 = vsel %vm3349, %v3406, %v3408
      %v3410 = vrot.slane %v3193, 2
      %v3411 = vrot.slane %v3194, 2
      %v3412 = vsel %vm3349, %v3410, %v3411
      %v3413 = vrot.slane %v3195, 2
      %v3414 = vsel %vm3349, %v3411, %v3413
      %v3415 = vrot.slane %v3196, 2
      %v3416 = vrot.slane %v3197, 2
      %v3417 = vsel %vm3349, %v3415, %v3416
      %v3418 = vrot.slane %v3198, 2
      %v3419 = vsel %vm3349, %v3416, %v3418
      %v3420 = vrot.slane %v3199, 2
      %v3421 = vrot.slane %v3200, 2
      %v3422 = vsel %vm3349, %v3420, %v3421
      %v3423 = vrot.slane %v3201, 2
      %v3424 = vsel %vm3349, %v3421, %v3423
      %v3425 = vrot.slane %v3202, 2
      %v3426 = vrot.slane %v3203, 2
      %v3427 = vsel %vm3349, %v3425, %v3426
      %v3428 = vrot.slane %v3204, 2
      %v3429 = vsel %vm3349, %v3426, %v3428
      %v3430 = vrot.slane %v3205, 2
      %v3431 = vrot.slane %v3206, 2
      %v3432 = vsel %vm3349, %v3430, %v3431
      %v3433 = vrot.slane %v3207, 2
      %v3434 = vsel %vm3349, %v3431, %v3433
      %v3435 = vrot.slane %v3208, 2
      %v3436 = vrot.slane %v3209, 2
      %v3437 = vsel %vm3349, %v3435, %v3436
      %v3438 = vrot.slane %v3210, 2
      %v3439 = vsel %vm3349, %v3436, %v3438
      %v3440 = vrot.slane %v3211, 2
      %v3441 = vrot.slane %v3212, 2
      %v3442 = vsel %vm3349, %v3440, %v3441
      %v3443 = vrot.slane %v3213, 2
      %v3444 = vsel %vm3349, %v3441, %v3443
      %v3445 = vrot.slane %v3214, 2
      %v3446 = vrot.slane %v3215, 2
      %v3447 = vsel %vm3349, %v3445, %v3446
      %v3448 = vrot.slane %v3216, 2
      %v3449 = vsel %vm3349, %v3446, %v3448
      %v3450 = vrot.slane %v3217, 2
      %v3451 = vrot.slane %v3218, 2
      %v3452 = vsel %vm3349, %v3450, %v3451
      %v3453 = vrot.slane %v3219, 2
      %v3454 = vsel %vm3349, %v3451, %v3453
      %v3455 = vrot.slane %v3220, 2
      %v3456 = vrot.slane %v3221, 2
      %v3457 = vsel %vm3349, %v3455, %v3456
      %v3458 = vrot.slane %v3222, 2
      %v3459 = vsel %vm3349, %v3456, %v3458
      %v3460 = vrot.slane %v3223, 2
      %v3461 = vrot.slane %v3224, 2
      %v3462 = vsel %vm3349, %v3460, %v3461
      %v3463 = vrot.slane %v3225, 2
      %v3464 = vsel %vm3349, %v3461, %v3463
      %v3465 = vrot.slane %v3226, 2
      %v3466 = vrot.slane %v3227, 2
      %v3467 = vsel %vm3349, %v3465, %v3466
      %v3468 = vrot.slane %v3228, 2
      %v3469 = vsel %vm3349, %v3466, %v3468
      %v3470 = vrot.slane %v3229, 2
      %v3471 = vrot.slane %v3230, 2
      %v3472 = vsel %vm3349, %v3470, %v3471
      %v3473 = vrot.slane %v3231, 2
      %v3474 = vsel %vm3349, %v3471, %v3473
      %v3475 = vrot.slane %v3232, 2
      %v3476 = vrot.slane %v3233, 2
      %v3477 = vsel %vm3349, %v3475, %v3476
      %v3478 = vrot.slane %v3234, 2
      %v3479 = vsel %vm3349, %v3476, %v3478
      %v3480 = vrot.slane %v3235, 2
      %v3481 = vrot.slane %v3236, 2
      %v3482 = vsel %vm3349, %v3480, %v3481
      %v3483 = vrot.slane %v3237, 2
      %v3484 = vsel %vm3349, %v3481, %v3483
      %v3485 = vrot.slane %v3238, 2
      %v3486 = vrot.slane %v3239, 2
      %v3487 = vsel %vm3349, %v3485, %v3486
      %v3488 = vrot.slane %v3240, 2
      %v3489 = vsel %vm3349, %v3486, %v3488
      %v3490 = vrot.slane %v3241, 2
      %v3491 = vrot.slane %v3242, 2
      %v3492 = vsel %vm3349, %v3490, %v3491
      %v3493 = vrot.slane %v3243, 2
      %v3494 = vsel %vm3349, %v3491, %v3493
      %v3495 = vrot.slane %v3244, 2
      %v3496 = vrot.slane %v3245, 2
      %v3497 = vsel %vm3349, %v3495, %v3496
      %v3498 = vrot.slane %v3246, 2
      %v3499 = vsel %vm3349, %v3496, %v3498
      %v3500 = vrot.slane %v3247, 2
      %v3501 = vrot.slane %v3248, 2
      %v3502 = vsel %vm3349, %v3500, %v3501
      %v3503 = vrot.slane %v3249, 2
      %v3504 = vsel %vm3349, %v3501, %v3503
      %v3505 = vrot.slane %v3250, 2
      %v3506 = vrot.slane %v3251, 2
      %v3507 = vsel %vm3349, %v3505, %v3506
      %v3508 = vrot.slane %v3252, 2
      %v3509 = vsel %vm3349, %v3506, %v3508
      %v3574 = vadd.f32 %v2772, %v3352
      %v3575 = vadd.f32 %v2773, %v3354
      %v3576 = vadd.f32 %v2774, %v3357
      %v3577 = vadd.f32 %v2775, %v3359
      %v3578 = vadd.f32 %v2776, %v3362
      %v3579 = vadd.f32 %v2777, %v3364
      %v3580 = vadd.f32 %v2778, %v3367
      %v3581 = vadd.f32 %v2779, %v3369
      %v3582 = vadd.f32 %v2780, %v3372
      %v3583 = vadd.f32 %v2781, %v3374
      %v3584 = vadd.f32 %v2782, %v3377
      %v3585 = vadd.f32 %v2783, %v3379
      %v3586 = vadd.f32 %v2784, %v3382
      %v3587 = vadd.f32 %v2785, %v3384
      %v3588 = vadd.f32 %v2786, %v3387
      %v3589 = vadd.f32 %v2787, %v3389
      %v3590 = vadd.f32 %v2788, %v3392
      %v3591 = vadd.f32 %v2789, %v3394
      %v3592 = vadd.f32 %v2790, %v3397
      %v3593 = vadd.f32 %v2791, %v3399
      %v3594 = vadd.f32 %v2792, %v3402
      %v3595 = vadd.f32 %v2793, %v3404
      %v3596 = vadd.f32 %v2794, %v3407
      %v3597 = vadd.f32 %v2795, %v3409
      %v3598 = vadd.f32 %v2796, %v3412
      %v3599 = vadd.f32 %v2797, %v3414
      %v3600 = vadd.f32 %v2798, %v3417
      %v3601 = vadd.f32 %v2799, %v3419
      %v3602 = vadd.f32 %v2800, %v3422
      %v3603 = vadd.f32 %v2801, %v3424
      %v3604 = vadd.f32 %v2802, %v3427
      %v3605 = vadd.f32 %v2803, %v3429
      %v3606 = vadd.f32 %v2804, %v3432
      %v3607 = vadd.f32 %v2805, %v3434
      %v3608 = vadd.f32 %v2806, %v3437
      %v3609 = vadd.f32 %v2807, %v3439
      %v3610 = vadd.f32 %v2808, %v3442
      %v3611 = vadd.f32 %v2809, %v3444
      %v3612 = vadd.f32 %v2810, %v3447
      %v3613 = vadd.f32 %v2811, %v3449
      %v3614 = vadd.f32 %v2812, %v3452
      %v3615 = vadd.f32 %v2813, %v3454
      %v3616 = vadd.f32 %v2814, %v3457
      %v3617 = vadd.f32 %v2815, %v3459
      %v3618 = vadd.f32 %v2816, %v3462
      %v3619 = vadd.f32 %v2817, %v3464
      %v3620 = vadd.f32 %v2818, %v3467
      %v3621 = vadd.f32 %v2819, %v3469
      %v3622 = vadd.f32 %v2820, %v3472
      %v3623 = vadd.f32 %v2821, %v3474
      %v3624 = vadd.f32 %v2822, %v3477
      %v3625 = vadd.f32 %v2823, %v3479
      %v3626 = vadd.f32 %v2824, %v3482
      %v3627 = vadd.f32 %v2825, %v3484
      %v3628 = vadd.f32 %v2826, %v3487
      %v3629 = vadd.f32 %v2827, %v3489
      %v3630 = vadd.f32 %v2828, %v3492
      %v3631 = vadd.f32 %v2829, %v3494
      %v3632 = vadd.f32 %v2830, %v3497
      %v3633 = vadd.f32 %v2831, %v3499
      %v3634 = vadd.f32 %v2832, %v3502
      %v3635 = vadd.f32 %v2833, %v3504
      %v3636 = vadd.f32 %v2834, %v3507
      %v3637 = vadd.f32 %v2835, %v3509
      %s3638 = scalar_lea.vmem %s183, 128
      %v3639 = vld [vmem:[%s3638] sm:$0x1]
      %v3640 = vld [vmem:[%s3638 + $0x1] sm:$0x1]
      %v3641 = vld [vmem:[%s3638 + $0x2] sm:$0x1]
      %v3642 = vld [vmem:[%s3638 + $0x3] sm:$0x1]
      %v3643 = vld [vmem:[%s3638 + $0x4] sm:$0x1]
      %v3644 = vld [vmem:[%s3638 + $0x5] sm:$0x1]
      %v3645 = vld [vmem:[%s3638 + $0x6] sm:$0x1]
      %v3646 = vld [vmem:[%s3638 + $0x7] sm:$0x1]
      %v3647 = vld [vmem:[%s3638 + $0x8] sm:$0x1]
      %v3648 = vld [vmem:[%s3638 + $0x9] sm:$0x1]
      %v3649 = vld [vmem:[%s3638 + $0xa] sm:$0x1]
      %v3650 = vld [vmem:[%s3638 + $0xb] sm:$0x1]
      %v3651 = vld [vmem:[%s3638 + $0xc] sm:$0x1]
      %v3652 = vld [vmem:[%s3638 + $0xd] sm:$0x1]
      %v3653 = vld [vmem:[%s3638 + $0xe] sm:$0x1]
      %v3654 = vld [vmem:[%s3638 + $0xf] sm:$0x1]
      %v3655 = vld [vmem:[%s3638 + $0x10] sm:$0x1]
      %v3656 = vld [vmem:[%s3638 + $0x11] sm:$0x1]
      %v3657 = vld [vmem:[%s3638 + $0x12] sm:$0x1]
      %v3658 = vld [vmem:[%s3638 + $0x13] sm:$0x1]
      %v3659 = vld [vmem:[%s3638 + $0x14] sm:$0x1]
      %v3660 = vld [vmem:[%s3638 + $0x15] sm:$0x1]
      %v3661 = vld [vmem:[%s3638 + $0x16] sm:$0x1]
      %v3662 = vld [vmem:[%s3638 + $0x17] sm:$0x1]
      %v3663 = vld [vmem:[%s3638 + $0x18] sm:$0x1]
      %v3664 = vld [vmem:[%s3638 + $0x19] sm:$0x1]
      %v3665 = vld [vmem:[%s3638 + $0x1a] sm:$0x1]
      %v3666 = vld [vmem:[%s3638 + $0x1b] sm:$0x1]
      %v3667 = vld [vmem:[%s3638 + $0x1c] sm:$0x1]
      %v3668 = vld [vmem:[%s3638 + $0x1d] sm:$0x1]
      %v3669 = vld [vmem:[%s3638 + $0x1e] sm:$0x1]
      %v3670 = vld [vmem:[%s3638 + $0x1f] sm:$0x1]
      %v3703 = vlaneseq
      %v3704 = vshrl.u32 %v3703, 7
      %v3705 = vsub.s32 0, %v3704
      %v3706 = vrot.slane %v3639, %v3705
      %v3707 = vlaneseq
      %v3708 = vshrl.u32 %v3707, 7
      %v3709 = vsub.s32 0, %v3708
      %v3710 = vrot.slane %v3640, %v3709
      %v3711 = vlaneseq
      %v3712 = vshrl.u32 %v3711, 7
      %v3713 = vsub.s32 0, %v3712
      %v3714 = vrot.slane %v3641, %v3713
      %v3715 = vlaneseq
      %v3716 = vshrl.u32 %v3715, 7
      %v3717 = vsub.s32 0, %v3716
      %v3718 = vrot.slane %v3642, %v3717
      %v3719 = vlaneseq
      %v3720 = vshrl.u32 %v3719, 7
      %v3721 = vsub.s32 0, %v3720
      %v3722 = vrot.slane %v3643, %v3721
      %v3723 = vlaneseq
      %v3724 = vshrl.u32 %v3723, 7
      %v3725 = vsub.s32 0, %v3724
      %v3726 = vrot.slane %v3644, %v3725
      %v3727 = vlaneseq
      %v3728 = vshrl.u32 %v3727, 7
      %v3729 = vsub.s32 0, %v3728
      %v3730 = vrot.slane %v3645, %v3729
      %v3731 = vlaneseq
      %v3732 = vshrl.u32 %v3731, 7
      %v3733 = vsub.s32 0, %v3732
      %v3734 = vrot.slane %v3646, %v3733
      %v3735 = vlaneseq
      %v3736 = vshrl.u32 %v3735, 7
      %v3737 = vsub.s32 0, %v3736
      %v3738 = vrot.slane %v3647, %v3737
      %v3739 = vlaneseq
      %v3740 = vshrl.u32 %v3739, 7
      %v3741 = vsub.s32 0, %v3740
      %v3742 = vrot.slane %v3648, %v3741
      %v3743 = vlaneseq
      %v3744 = vshrl.u32 %v3743, 7
      %v3745 = vsub.s32 0, %v3744
      %v3746 = vrot.slane %v3649, %v3745
      %v3747 = vlaneseq
      %v3748 = vshrl.u32 %v3747, 7
      %v3749 = vsub.s32 0, %v3748
      %v3750 = vrot.slane %v3650, %v3749
      %v3751 = vlaneseq
      %v3752 = vshrl.u32 %v3751, 7
      %v3753 = vsub.s32 0, %v3752
      %v3754 = vrot.slane %v3651, %v3753
      %v3755 = vlaneseq
      %v3756 = vshrl.u32 %v3755, 7
      %v3757 = vsub.s32 0, %v3756
      %v3758 = vrot.slane %v3652, %v3757
      %v3759 = vlaneseq
      %v3760 = vshrl.u32 %v3759, 7
      %v3761 = vsub.s32 0, %v3760
      %v3762 = vrot.slane %v3653, %v3761
      %v3763 = vlaneseq
      %v3764 = vshrl.u32 %v3763, 7
      %v3765 = vsub.s32 0, %v3764
      %v3766 = vrot.slane %v3654, %v3765
      %v3767 = vlaneseq
      %v3768 = vshrl.u32 %v3767, 7
      %v3769 = vsub.s32 0, %v3768
      %v3770 = vrot.slane %v3655, %v3769
      %v3771 = vlaneseq
      %v3772 = vshrl.u32 %v3771, 7
      %v3773 = vsub.s32 0, %v3772
      %v3774 = vrot.slane %v3656, %v3773
      %v3775 = vlaneseq
      %v3776 = vshrl.u32 %v3775, 7
      %v3777 = vsub.s32 0, %v3776
      %v3778 = vrot.slane %v3657, %v3777
      %v3779 = vlaneseq
      %v3780 = vshrl.u32 %v3779, 7
      %v3781 = vsub.s32 0, %v3780
      %v3782 = vrot.slane %v3658, %v3781
      %v3783 = vlaneseq
      %v3784 = vshrl.u32 %v3783, 7
      %v3785 = vsub.s32 0, %v3784
      %v3786 = vrot.slane %v3659, %v3785
      %v3787 = vlaneseq
      %v3788 = vshrl.u32 %v3787, 7
      %v3789 = vsub.s32 0, %v3788
      %v3790 = vrot.slane %v3660, %v3789
      %v3791 = vlaneseq
      %v3792 = vshrl.u32 %v3791, 7
      %v3793 = vsub.s32 0, %v3792
      %v3794 = vrot.slane %v3661, %v3793
      %v3795 = vlaneseq
      %v3796 = vshrl.u32 %v3795, 7
      %v3797 = vsub.s32 0, %v3796
      %v3798 = vrot.slane %v3662, %v3797
      %v3799 = vlaneseq
      %v3800 = vshrl.u32 %v3799, 7
      %v3801 = vsub.s32 0, %v3800
      %v3802 = vrot.slane %v3663, %v3801
      %v3803 = vlaneseq
      %v3804 = vshrl.u32 %v3803, 7
      %v3805 = vsub.s32 0, %v3804
      %v3806 = vrot.slane %v3664, %v3805
      %v3807 = vlaneseq
      %v3808 = vshrl.u32 %v3807, 7
      %v3809 = vsub.s32 0, %v3808
      %v3810 = vrot.slane %v3665, %v3809
      %v3811 = vlaneseq
      %v3812 = vshrl.u32 %v3811, 7
      %v3813 = vsub.s32 0, %v3812
      %v3814 = vrot.slane %v3666, %v3813
      %v3815 = vlaneseq
      %v3816 = vshrl.u32 %v3815, 7
      %v3817 = vsub.s32 0, %v3816
      %v3818 = vrot.slane %v3667, %v3817
      %v3819 = vlaneseq
      %v3820 = vshrl.u32 %v3819, 7
      %v3821 = vsub.s32 0, %v3820
      %v3822 = vrot.slane %v3668, %v3821
      %v3823 = vlaneseq
      %v3824 = vshrl.u32 %v3823, 7
      %v3825 = vsub.s32 0, %v3824
      %v3826 = vrot.slane %v3669, %v3825
      %v3827 = vlaneseq
      %v3828 = vshrl.u32 %v3827, 7
      %v3829 = vsub.s32 0, %v3828
      %v3830 = vrot.slane %v3670, %v3829
      %3831 = vset.pattern.permute.xlu0 0
      %3832 = vperm.xlu0 %3831, %v3706
      %v3833 = vpop.permute.xlu0 %3832
      %3835 = vset.pattern.permute.xlu0 0
      %3836 = vperm.xlu0 %3835, %v3710
      %v3837 = vpop.permute.xlu0 %3836
      %3839 = vset.pattern.permute.xlu0 0
      %3840 = vperm.xlu0 %3839, %v3714
      %v3841 = vpop.permute.xlu0 %3840
      %3843 = vset.pattern.permute.xlu0 0
      %3844 = vperm.xlu0 %3843, %v3718
      %v3845 = vpop.permute.xlu0 %3844
      %3847 = vset.pattern.permute.xlu0 0
      %3848 = vperm.xlu0 %3847, %v3722
      %v3849 = vpop.permute.xlu0 %3848
      %3851 = vset.pattern.permute.xlu0 0
      %3852 = vperm.xlu0 %3851, %v3726
      %v3853 = vpop.permute.xlu0 %3852
      %3855 = vset.pattern.permute.xlu0 0
      %3856 = vperm.xlu0 %3855, %v3730
      %v3857 = vpop.permute.xlu0 %3856
      %3859 = vset.pattern.permute.xlu0 0
      %3860 = vperm.xlu0 %3859, %v3734
      %v3861 = vpop.permute.xlu0 %3860
      %3863 = vset.pattern.permute.xlu0 0
      %3864 = vperm.xlu0 %3863, %v3738
      %v3865 = vpop.permute.xlu0 %3864
      %3867 = vset.pattern.permute.xlu0 0
      %3868 = vperm.xlu0 %3867, %v3742
      %v3869 = vpop.permute.xlu0 %3868
      %3871 = vset.pattern.permute.xlu0 0
      %3872 = vperm.xlu0 %3871, %v3746
      %v3873 = vpop.permute.xlu0 %3872
      %3875 = vset.pattern.permute.xlu0 0
      %3876 = vperm.xlu0 %3875, %v3750
      %v3877 = vpop.permute.xlu0 %3876
      %3879 = vset.pattern.permute.xlu0 0
      %3880 = vperm.xlu0 %3879, %v3754
      %v3881 = vpop.permute.xlu0 %3880
      %3883 = vset.pattern.permute.xlu0 0
      %3884 = vperm.xlu0 %3883, %v3758
      %v3885 = vpop.permute.xlu0 %3884
      %3887 = vset.pattern.permute.xlu0 0
      %3888 = vperm.xlu0 %3887, %v3762
      %v3889 = vpop.permute.xlu0 %3888
      %3891 = vset.pattern.permute.xlu0 0
      %3892 = vperm.xlu0 %3891, %v3766
      %v3893 = vpop.permute.xlu0 %3892
      %3895 = vset.pattern.permute.xlu0 0
      %3896 = vperm.xlu0 %3895, %v3770
      %v3897 = vpop.permute.xlu0 %3896
      %3899 = vset.pattern.permute.xlu0 0
      %3900 = vperm.xlu0 %3899, %v3774
      %v3901 = vpop.permute.xlu0 %3900
      %3903 = vset.pattern.permute.xlu0 0
      %3904 = vperm.xlu0 %3903, %v3778
      %v3905 = vpop.permute.xlu0 %3904
      %3907 = vset.pattern.permute.xlu0 0
      %3908 = vperm.xlu0 %3907, %v3782
      %v3909 = vpop.permute.xlu0 %3908
      %3911 = vset.pattern.permute.xlu0 0
      %3912 = vperm.xlu0 %3911, %v3786
      %v3913 = vpop.permute.xlu0 %3912
      %3915 = vset.pattern.permute.xlu0 0
      %3916 = vperm.xlu0 %3915, %v3790
      %v3917 = vpop.permute.xlu0 %3916
      %3919 = vset.pattern.permute.xlu0 0
      %3920 = vperm.xlu0 %3919, %v3794
      %v3921 = vpop.permute.xlu0 %3920
      %3923 = vset.pattern.permute.xlu0 0
      %3924 = vperm.xlu0 %3923, %v3798
      %v3925 = vpop.permute.xlu0 %3924
      %3927 = vset.pattern.permute.xlu0 0
      %3928 = vperm.xlu0 %3927, %v3802
      %v3929 = vpop.permute.xlu0 %3928
      %3931 = vset.pattern.permute.xlu0 0
      %3932 = vperm.xlu0 %3931, %v3806
      %v3933 = vpop.permute.xlu0 %3932
      %3935 = vset.pattern.permute.xlu0 0
      %3936 = vperm.xlu0 %3935, %v3810
      %v3937 = vpop.permute.xlu0 %3936
      %3939 = vset.pattern.permute.xlu0 0
      %3940 = vperm.xlu0 %3939, %v3814
      %v3941 = vpop.permute.xlu0 %3940
      %3943 = vset.pattern.permute.xlu0 0
      %3944 = vperm.xlu0 %3943, %v3818
      %v3945 = vpop.permute.xlu0 %3944
      %3947 = vset.pattern.permute.xlu0 0
      %3948 = vperm.xlu0 %3947, %v3822
      %v3949 = vpop.permute.xlu0 %3948
      %3951 = vset.pattern.permute.xlu0 0
      %3952 = vperm.xlu0 %3951, %v3826
      %v3953 = vpop.permute.xlu0 %3952
      %3955 = vset.pattern.permute.xlu0 0
      %3956 = vperm.xlu0 %3955, %v3830
      %v3957 = vpop.permute.xlu0 %3956
      %v3959 = vmul.f32 %v3833, %v914
      %v3960 = vmul.f32 %v3833, %v724
      %v3961 = vmul.f32 %v3833, %v946
      %v3962 = vmul.f32 %v3837, %v915
      %v3963 = vmul.f32 %v3837, %v727
      %v3964 = vmul.f32 %v3837, %v947
      %v3965 = vmul.f32 %v3841, %v916
      %v3966 = vmul.f32 %v3841, %v730
      %v3967 = vmul.f32 %v3841, %v948
      %v3968 = vmul.f32 %v3845, %v917
      %v3969 = vmul.f32 %v3845, %v733
      %v3970 = vmul.f32 %v3845, %v949
      %v3971 = vmul.f32 %v3849, %v918
      %v3972 = vmul.f32 %v3849, %v736
      %v3973 = vmul.f32 %v3849, %v950
      %v3974 = vmul.f32 %v3853, %v919
      %v3975 = vmul.f32 %v3853, %v739
      %v3976 = vmul.f32 %v3853, %v951
      %v3977 = vmul.f32 %v3857, %v920
      %v3978 = vmul.f32 %v3857, %v742
      %v3979 = vmul.f32 %v3857, %v952
      %v3980 = vmul.f32 %v3861, %v921
      %v3981 = vmul.f32 %v3861, %v745
      %v3982 = vmul.f32 %v3861, %v953
      %v3983 = vmul.f32 %v3865, %v922
      %v3984 = vmul.f32 %v3865, %v748
      %v3985 = vmul.f32 %v3865, %v954
      %v3986 = vmul.f32 %v3869, %v923
      %v3987 = vmul.f32 %v3869, %v751
      %v3988 = vmul.f32 %v3869, %v955
      %v3989 = vmul.f32 %v3873, %v924
      %v3990 = vmul.f32 %v3873, %v754
      %v3991 = vmul.f32 %v3873, %v956
      %v3992 = vmul.f32 %v3877, %v925
      %v3993 = vmul.f32 %v3877, %v757
      %v3994 = vmul.f32 %v3877, %v957
      %v3995 = vmul.f32 %v3881, %v926
      %v3996 = vmul.f32 %v3881, %v760
      %v3997 = vmul.f32 %v3881, %v958
      %v3998 = vmul.f32 %v3885, %v927
      %v3999 = vmul.f32 %v3885, %v763
      %v4000 = vmul.f32 %v3885, %v959
      %v4001 = vmul.f32 %v3889, %v928
      %v4002 = vmul.f32 %v3889, %v766
      %v4003 = vmul.f32 %v3889, %v960
      %v4004 = vmul.f32 %v3893, %v929
      %v4005 = vmul.f32 %v3893, %v769
      %v4006 = vmul.f32 %v3893, %v961
      %v4007 = vmul.f32 %v3897, %v930
      %v4008 = vmul.f32 %v3897, %v772
      %v4009 = vmul.f32 %v3897, %v962
      %v4010 = vmul.f32 %v3901, %v931
      %v4011 = vmul.f32 %v3901, %v775
      %v4012 = vmul.f32 %v3901, %v963
      %v4013 = vmul.f32 %v3905, %v932
      %v4014 = vmul.f32 %v3905, %v778
      %v4015 = vmul.f32 %v3905, %v964
      %v4016 = vmul.f32 %v3909, %v933
      %v4017 = vmul.f32 %v3909, %v781
      %v4018 = vmul.f32 %v3909, %v965
      %v4019 = vmul.f32 %v3913, %v934
      %v4020 = vmul.f32 %v3913, %v784
      %v4021 = vmul.f32 %v3913, %v966
      %v4022 = vmul.f32 %v3917, %v935
      %v4023 = vmul.f32 %v3917, %v787
      %v4024 = vmul.f32 %v3917, %v967
      %v4025 = vmul.f32 %v3921, %v936
      %v4026 = vmul.f32 %v3921, %v790
      %v4027 = vmul.f32 %v3921, %v968
      %v4028 = vmul.f32 %v3925, %v937
      %v4029 = vmul.f32 %v3925, %v793
      %v4030 = vmul.f32 %v3925, %v969
      %v4031 = vmul.f32 %v3929, %v938
      %v4032 = vmul.f32 %v3929, %v796
      %v4033 = vmul.f32 %v3929, %v970
      %v4034 = vmul.f32 %v3933, %v939
      %v4035 = vmul.f32 %v3933, %v799
      %v4036 = vmul.f32 %v3933, %v971
      %v4037 = vmul.f32 %v3937, %v940
      %v4038 = vmul.f32 %v3937, %v802
      %v4039 = vmul.f32 %v3937, %v972
      %v4040 = vmul.f32 %v3941, %v941
      %v4041 = vmul.f32 %v3941, %v805
      %v4042 = vmul.f32 %v3941, %v973
      %v4043 = vmul.f32 %v3945, %v942
      %v4044 = vmul.f32 %v3945, %v808
      %v4045 = vmul.f32 %v3945, %v974
      %v4046 = vmul.f32 %v3949, %v943
      %v4047 = vmul.f32 %v3949, %v811
      %v4048 = vmul.f32 %v3949, %v975
      %v4049 = vmul.f32 %v3953, %v944
      %v4050 = vmul.f32 %v3953, %v814
      %v4051 = vmul.f32 %v3953, %v976
      %v4052 = vmul.f32 %v3957, %v945
      %v4053 = vmul.f32 %v3957, %v817
      %v4054 = vmul.f32 %v3957, %v977
      %v4151 = vrot.slane %v3959, 2
      %v4152 = vrot.slane %v3960, 2
      %v4153 = vsel %vm3349, %v4151, %v4152
      %v4154 = vrot.slane %v3961, 2
      %v4155 = vsel %vm3349, %v4152, %v4154
      %v4156 = vrot.slane %v3962, 2
      %v4157 = vrot.slane %v3963, 2
      %v4158 = vsel %vm3349, %v4156, %v4157
      %v4159 = vrot.slane %v3964, 2
      %v4160 = vsel %vm3349, %v4157, %v4159
      %v4161 = vrot.slane %v3965, 2
      %v4162 = vrot.slane %v3966, 2
      %v4163 = vsel %vm3349, %v4161, %v4162
      %v4164 = vrot.slane %v3967, 2
      %v4165 = vsel %vm3349, %v4162, %v4164
      %v4166 = vrot.slane %v3968, 2
      %v4167 = vrot.slane %v3969, 2
      %v4168 = vsel %vm3349, %v4166, %v4167
      %v4169 = vrot.slane %v3970, 2
      %v4170 = vsel %vm3349, %v4167, %v4169
      %v4171 = vrot.slane %v3971, 2
      %v4172 = vrot.slane %v3972, 2
      %v4173 = vsel %vm3349, %v4171, %v4172
      %v4174 = vrot.slane %v3973, 2
      %v4175 = vsel %vm3349, %v4172, %v4174
      %v4176 = vrot.slane %v3974, 2
      %v4177 = vrot.slane %v3975, 2
      %v4178 = vsel %vm3349, %v4176, %v4177
      %v4179 = vrot.slane %v3976, 2
      %v4180 = vsel %vm3349, %v4177, %v4179
      %v4181 = vrot.slane %v3977, 2
      %v4182 = vrot.slane %v3978, 2
      %v4183 = vsel %vm3349, %v4181, %v4182
      %v4184 = vrot.slane %v3979, 2
      %v4185 = vsel %vm3349, %v4182, %v4184
      %v4186 = vrot.slane %v3980, 2
      %v4187 = vrot.slane %v3981, 2
      %v4188 = vsel %vm3349, %v4186, %v4187
      %v4189 = vrot.slane %v3982, 2
      %v4190 = vsel %vm3349, %v4187, %v4189
      %v4191 = vrot.slane %v3983, 2
      %v4192 = vrot.slane %v3984, 2
      %v4193 = vsel %vm3349, %v4191, %v4192
      %v4194 = vrot.slane %v3985, 2
      %v4195 = vsel %vm3349, %v4192, %v4194
      %v4196 = vrot.slane %v3986, 2
      %v4197 = vrot.slane %v3987, 2
      %v4198 = vsel %vm3349, %v4196, %v4197
      %v4199 = vrot.slane %v3988, 2
      %v4200 = vsel %vm3349, %v4197, %v4199
      %v4201 = vrot.slane %v3989, 2
      %v4202 = vrot.slane %v3990, 2
      %v4203 = vsel %vm3349, %v4201, %v4202
      %v4204 = vrot.slane %v3991, 2
      %v4205 = vsel %vm3349, %v4202, %v4204
      %v4206 = vrot.slane %v3992, 2
      %v4207 = vrot.slane %v3993, 2
      %v4208 = vsel %vm3349, %v4206, %v4207
      %v4209 = vrot.slane %v3994, 2
      %v4210 = vsel %vm3349, %v4207, %v4209
      %v4211 = vrot.slane %v3995, 2
      %v4212 = vrot.slane %v3996, 2
      %v4213 = vsel %vm3349, %v4211, %v4212
      %v4214 = vrot.slane %v3997, 2
      %v4215 = vsel %vm3349, %v4212, %v4214
      %v4216 = vrot.slane %v3998, 2
      %v4217 = vrot.slane %v3999, 2
      %v4218 = vsel %vm3349, %v4216, %v4217
      %v4219 = vrot.slane %v4000, 2
      %v4220 = vsel %vm3349, %v4217, %v4219
      %v4221 = vrot.slane %v4001, 2
      %v4222 = vrot.slane %v4002, 2
      %v4223 = vsel %vm3349, %v4221, %v4222
      %v4224 = vrot.slane %v4003, 2
      %v4225 = vsel %vm3349, %v4222, %v4224
      %v4226 = vrot.slane %v4004, 2
      %v4227 = vrot.slane %v4005, 2
      %v4228 = vsel %vm3349, %v4226, %v4227
      %v4229 = vrot.slane %v4006, 2
      %v4230 = vsel %vm3349, %v4227, %v4229
      %v4231 = vrot.slane %v4007, 2
      %v4232 = vrot.slane %v4008, 2
      %v4233 = vsel %vm3349, %v4231, %v4232
      %v4234 = vrot.slane %v4009, 2
      %v4235 = vsel %vm3349, %v4232, %v4234
      %v4236 = vrot.slane %v4010, 2
      %v4237 = vrot.slane %v4011, 2
      %v4238 = vsel %vm3349, %v4236, %v4237
      %v4239 = vrot.slane %v4012, 2
      %v4240 = vsel %vm3349, %v4237, %v4239
      %v4241 = vrot.slane %v4013, 2
      %v4242 = vrot.slane %v4014, 2
      %v4243 = vsel %vm3349, %v4241, %v4242
      %v4244 = vrot.slane %v4015, 2
      %v4245 = vsel %vm3349, %v4242, %v4244
      %v4246 = vrot.slane %v4016, 2
      %v4247 = vrot.slane %v4017, 2
      %v4248 = vsel %vm3349, %v4246, %v4247
      %v4249 = vrot.slane %v4018, 2
      %v4250 = vsel %vm3349, %v4247, %v4249
      %v4251 = vrot.slane %v4019, 2
      %v4252 = vrot.slane %v4020, 2
      %v4253 = vsel %vm3349, %v4251, %v4252
      %v4254 = vrot.slane %v4021, 2
      %v4255 = vsel %vm3349, %v4252, %v4254
      %v4256 = vrot.slane %v4022, 2
      %v4257 = vrot.slane %v4023, 2
      %v4258 = vsel %vm3349, %v4256, %v4257
      %v4259 = vrot.slane %v4024, 2
      %v4260 = vsel %vm3349, %v4257, %v4259
      %v4261 = vrot.slane %v4025, 2
      %v4262 = vrot.slane %v4026, 2
      %v4263 = vsel %vm3349, %v4261, %v4262
      %v4264 = vrot.slane %v4027, 2
      %v4265 = vsel %vm3349, %v4262, %v4264
      %v4266 = vrot.slane %v4028, 2
      %v4267 = vrot.slane %v4029, 2
      %v4268 = vsel %vm3349, %v4266, %v4267
      %v4269 = vrot.slane %v4030, 2
      %v4270 = vsel %vm3349, %v4267, %v4269
      %v4271 = vrot.slane %v4031, 2
      %v4272 = vrot.slane %v4032, 2
      %v4273 = vsel %vm3349, %v4271, %v4272
      %v4274 = vrot.slane %v4033, 2
      %v4275 = vsel %vm3349, %v4272, %v4274
      %v4276 = vrot.slane %v4034, 2
      %v4277 = vrot.slane %v4035, 2
      %v4278 = vsel %vm3349, %v4276, %v4277
      %v4279 = vrot.slane %v4036, 2
      %v4280 = vsel %vm3349, %v4277, %v4279
      %v4281 = vrot.slane %v4037, 2
      %v4282 = vrot.slane %v4038, 2
      %v4283 = vsel %vm3349, %v4281, %v4282
      %v4284 = vrot.slane %v4039, 2
      %v4285 = vsel %vm3349, %v4282, %v4284
      %v4286 = vrot.slane %v4040, 2
      %v4287 = vrot.slane %v4041, 2
      %v4288 = vsel %vm3349, %v4286, %v4287
      %v4289 = vrot.slane %v4042, 2
      %v4290 = vsel %vm3349, %v4287, %v4289
      %v4291 = vrot.slane %v4043, 2
      %v4292 = vrot.slane %v4044, 2
      %v4293 = vsel %vm3349, %v4291, %v4292
      %v4294 = vrot.slane %v4045, 2
      %v4295 = vsel %vm3349, %v4292, %v4294
      %v4296 = vrot.slane %v4046, 2
      %v4297 = vrot.slane %v4047, 2
      %v4298 = vsel %vm3349, %v4296, %v4297
      %v4299 = vrot.slane %v4048, 2
      %v4300 = vsel %vm3349, %v4297, %v4299
      %v4301 = vrot.slane %v4049, 2
      %v4302 = vrot.slane %v4050, 2
      %v4303 = vsel %vm3349, %v4301, %v4302
      %v4304 = vrot.slane %v4051, 2
      %v4305 = vsel %vm3349, %v4302, %v4304
      %v4306 = vrot.slane %v4052, 2
      %v4307 = vrot.slane %v4053, 2
      %v4308 = vsel %vm3349, %v4306, %v4307
      %v4309 = vrot.slane %v4054, 2
      %v4310 = vsel %vm3349, %v4307, %v4309
      %4311 = vrot.lane.b32.xlu0 %v4153, 126
      %v4312 = vpop.permute.xlu0 %4311
      %4313 = vrot.lane.b32.xlu0 %v4155, 126
      %v4314 = vpop.permute.xlu0 %4313
      %4315 = vrot.lane.b32.xlu0 %v4158, 126
      %v4316 = vpop.permute.xlu0 %4315
      %4317 = vrot.lane.b32.xlu0 %v4160, 126
      %v4318 = vpop.permute.xlu0 %4317
      %4319 = vrot.lane.b32.xlu0 %v4163, 126
      %v4320 = vpop.permute.xlu0 %4319
      %4321 = vrot.lane.b32.xlu0 %v4165, 126
      %v4322 = vpop.permute.xlu0 %4321
      %4323 = vrot.lane.b32.xlu0 %v4168, 126
      %v4324 = vpop.permute.xlu0 %4323
      %4325 = vrot.lane.b32.xlu0 %v4170, 126
      %v4326 = vpop.permute.xlu0 %4325
      %4327 = vrot.lane.b32.xlu0 %v4173, 126
      %v4328 = vpop.permute.xlu0 %4327
      %4329 = vrot.lane.b32.xlu0 %v4175, 126
      %v4330 = vpop.permute.xlu0 %4329
      %4331 = vrot.lane.b32.xlu0 %v4178, 126
      %v4332 = vpop.permute.xlu0 %4331
      %4333 = vrot.lane.b32.xlu0 %v4180, 126
      %v4334 = vpop.permute.xlu0 %4333
      %4335 = vrot.lane.b32.xlu0 %v4183, 126
      %v4336 = vpop.permute.xlu0 %4335
      %4337 = vrot.lane.b32.xlu0 %v4185, 126
      %v4338 = vpop.permute.xlu0 %4337
      %4339 = vrot.lane.b32.xlu0 %v4188, 126
      %v4340 = vpop.permute.xlu0 %4339
      %4341 = vrot.lane.b32.xlu0 %v4190, 126
      %v4342 = vpop.permute.xlu0 %4341
      %4343 = vrot.lane.b32.xlu0 %v4193, 126
      %v4344 = vpop.permute.xlu0 %4343
      %4345 = vrot.lane.b32.xlu0 %v4195, 126
      %v4346 = vpop.permute.xlu0 %4345
      %4347 = vrot.lane.b32.xlu0 %v4198, 126
      %v4348 = vpop.permute.xlu0 %4347
      %4349 = vrot.lane.b32.xlu0 %v4200, 126
      %v4350 = vpop.permute.xlu0 %4349
      %4351 = vrot.lane.b32.xlu0 %v4203, 126
      %v4352 = vpop.permute.xlu0 %4351
      %4353 = vrot.lane.b32.xlu0 %v4205, 126
      %v4354 = vpop.permute.xlu0 %4353
      %4355 = vrot.lane.b32.xlu0 %v4208, 126
      %v4356 = vpop.permute.xlu0 %4355
      %4357 = vrot.lane.b32.xlu0 %v4210, 126
      %v4358 = vpop.permute.xlu0 %4357
      %4359 = vrot.lane.b32.xlu0 %v4213, 126
      %v4360 = vpop.permute.xlu0 %4359
      %4361 = vrot.lane.b32.xlu0 %v4215, 126
      %v4362 = vpop.permute.xlu0 %4361
      %4363 = vrot.lane.b32.xlu0 %v4218, 126
      %v4364 = vpop.permute.xlu0 %4363
      %4365 = vrot.lane.b32.xlu0 %v4220, 126
      %v4366 = vpop.permute.xlu0 %4365
      %4367 = vrot.lane.b32.xlu0 %v4223, 126
      %v4368 = vpop.permute.xlu0 %4367
      %4369 = vrot.lane.b32.xlu0 %v4225, 126
      %v4370 = vpop.permute.xlu0 %4369
      %4371 = vrot.lane.b32.xlu0 %v4228, 126
      %v4372 = vpop.permute.xlu0 %4371
      %4373 = vrot.lane.b32.xlu0 %v4230, 126
      %v4374 = vpop.permute.xlu0 %4373
      %4375 = vrot.lane.b32.xlu0 %v4233, 126
      %v4376 = vpop.permute.xlu0 %4375
      %4377 = vrot.lane.b32.xlu0 %v4235, 126
      %v4378 = vpop.permute.xlu0 %4377
      %4379 = vrot.lane.b32.xlu0 %v4238, 126
      %v4380 = vpop.permute.xlu0 %4379
      %4381 = vrot.lane.b32.xlu0 %v4240, 126
      %v4382 = vpop.permute.xlu0 %4381
      %4383 = vrot.lane.b32.xlu0 %v4243, 126
      %v4384 = vpop.permute.xlu0 %4383
      %4385 = vrot.lane.b32.xlu0 %v4245, 126
      %v4386 = vpop.permute.xlu0 %4385
      %4387 = vrot.lane.b32.xlu0 %v4248, 126
      %v4388 = vpop.permute.xlu0 %4387
      %4389 = vrot.lane.b32.xlu0 %v4250, 126
      %v4390 = vpop.permute.xlu0 %4389
      %4391 = vrot.lane.b32.xlu0 %v4253, 126
      %v4392 = vpop.permute.xlu0 %4391
      %4393 = vrot.lane.b32.xlu0 %v4255, 126
      %v4394 = vpop.permute.xlu0 %4393
      %4395 = vrot.lane.b32.xlu0 %v4258, 126
      %v4396 = vpop.permute.xlu0 %4395
      %4397 = vrot.lane.b32.xlu0 %v4260, 126
      %v4398 = vpop.permute.xlu0 %4397
      %4399 = vrot.lane.b32.xlu0 %v4263, 126
      %v4400 = vpop.permute.xlu0 %4399
      %4401 = vrot.lane.b32.xlu0 %v4265, 126
      %v4402 = vpop.permute.xlu0 %4401
      %4403 = vrot.lane.b32.xlu0 %v4268, 126
      %v4404 = vpop.permute.xlu0 %4403
      %4405 = vrot.lane.b32.xlu0 %v4270, 126
      %v4406 = vpop.permute.xlu0 %4405
      %4407 = vrot.lane.b32.xlu0 %v4273, 126
      %v4408 = vpop.permute.xlu0 %4407
      %4409 = vrot.lane.b32.xlu0 %v4275, 126
      %v4410 = vpop.permute.xlu0 %4409
      %4411 = vrot.lane.b32.xlu0 %v4278, 126
      %v4412 = vpop.permute.xlu0 %4411
      %4413 = vrot.lane.b32.xlu0 %v4280, 126
      %v4414 = vpop.permute.xlu0 %4413
      %4415 = vrot.lane.b32.xlu0 %v4283, 126
      %v4416 = vpop.permute.xlu0 %4415
      %4417 = vrot.lane.b32.xlu0 %v4285, 126
      %v4418 = vpop.permute.xlu0 %4417
      %4419 = vrot.lane.b32.xlu0 %v4288, 126
      %v4420 = vpop.permute.xlu0 %4419
      %4421 = vrot.lane.b32.xlu0 %v4290, 126
      %v4422 = vpop.permute.xlu0 %4421
      %4423 = vrot.lane.b32.xlu0 %v4293, 126
      %v4424 = vpop.permute.xlu0 %4423
      %4425 = vrot.lane.b32.xlu0 %v4295, 126
      %v4426 = vpop.permute.xlu0 %4425
      %4427 = vrot.lane.b32.xlu0 %v4298, 126
      %v4428 = vpop.permute.xlu0 %4427
      %4429 = vrot.lane.b32.xlu0 %v4300, 126
      %v4430 = vpop.permute.xlu0 %4429
      %4431 = vrot.lane.b32.xlu0 %v4303, 126
      %v4432 = vpop.permute.xlu0 %4431
      %4433 = vrot.lane.b32.xlu0 %v4305, 126
      %v4434 = vpop.permute.xlu0 %4433
      %4435 = vrot.lane.b32.xlu0 %v4308, 126
      %v4436 = vpop.permute.xlu0 %4435
      %4437 = vrot.lane.b32.xlu0 %v4310, 126
      %v4438 = vpop.permute.xlu0 %4437
      %v4503 = vadd.f32 %v3574, %v4312
      %v4504 = vadd.f32 %v3575, %v4314
      %v4505 = vadd.f32 %v3576, %v4316
      %v4506 = vadd.f32 %v3577, %v4318
      %v4507 = vadd.f32 %v3578, %v4320
      %v4508 = vadd.f32 %v3579, %v4322
      %v4509 = vadd.f32 %v3580, %v4324
      %v4510 = vadd.f32 %v3581, %v4326
      %v4511 = vadd.f32 %v3582, %v4328
      %v4512 = vadd.f32 %v3583, %v4330
      %v4513 = vadd.f32 %v3584, %v4332
      %v4514 = vadd.f32 %v3585, %v4334
      %v4515 = vadd.f32 %v3586, %v4336
      %v4516 = vadd.f32 %v3587, %v4338
      %v4517 = vadd.f32 %v3588, %v4340
      %v4518 = vadd.f32 %v3589, %v4342
      %v4519 = vadd.f32 %v3590, %v4344
      %v4520 = vadd.f32 %v3591, %v4346
      %v4521 = vadd.f32 %v3592, %v4348
      %v4522 = vadd.f32 %v3593, %v4350
      %v4523 = vadd.f32 %v3594, %v4352
      %v4524 = vadd.f32 %v3595, %v4354
      %v4525 = vadd.f32 %v3596, %v4356
      %v4526 = vadd.f32 %v3597, %v4358
      %v4527 = vadd.f32 %v3598, %v4360
      %v4528 = vadd.f32 %v3599, %v4362
      %v4529 = vadd.f32 %v3600, %v4364
      %v4530 = vadd.f32 %v3601, %v4366
      %v4531 = vadd.f32 %v3602, %v4368
      %v4532 = vadd.f32 %v3603, %v4370
      %v4533 = vadd.f32 %v3604, %v4372
      %v4534 = vadd.f32 %v3605, %v4374
      %v4535 = vadd.f32 %v3606, %v4376
      %v4536 = vadd.f32 %v3607, %v4378
      %v4537 = vadd.f32 %v3608, %v4380
      %v4538 = vadd.f32 %v3609, %v4382
      %v4539 = vadd.f32 %v3610, %v4384
      %v4540 = vadd.f32 %v3611, %v4386
      %v4541 = vadd.f32 %v3612, %v4388
      %v4542 = vadd.f32 %v3613, %v4390
      %v4543 = vadd.f32 %v3614, %v4392
      %v4544 = vadd.f32 %v3615, %v4394
      %v4545 = vadd.f32 %v3616, %v4396
      %v4546 = vadd.f32 %v3617, %v4398
      %v4547 = vadd.f32 %v3618, %v4400
      %v4548 = vadd.f32 %v3619, %v4402
      %v4549 = vadd.f32 %v3620, %v4404
      %v4550 = vadd.f32 %v3621, %v4406
      %v4551 = vadd.f32 %v3622, %v4408
      %v4552 = vadd.f32 %v3623, %v4410
      %v4553 = vadd.f32 %v3624, %v4412
      %v4554 = vadd.f32 %v3625, %v4414
      %v4555 = vadd.f32 %v3626, %v4416
      %v4556 = vadd.f32 %v3627, %v4418
      %v4557 = vadd.f32 %v3628, %v4420
      %v4558 = vadd.f32 %v3629, %v4422
      %v4559 = vadd.f32 %v3630, %v4424
      %v4560 = vadd.f32 %v3631, %v4426
      %v4561 = vadd.f32 %v3632, %v4428
      %v4562 = vadd.f32 %v3633, %v4430
      %v4563 = vadd.f32 %v3634, %v4432
      %v4564 = vadd.f32 %v3635, %v4434
      %v4565 = vadd.f32 %v3636, %v4436
      %v4566 = vadd.f32 %v3637, %v4438
      %s4567 = scalar_lea.vmem %s183, 160
      %v4568 = vld [vmem:[%s4567] sm:$0x1]
      %v4569 = vld [vmem:[%s4567 + $0x1] sm:$0x1]
      %v4570 = vld [vmem:[%s4567 + $0x2] sm:$0x1]
      %v4571 = vld [vmem:[%s4567 + $0x3] sm:$0x1]
      %v4572 = vld [vmem:[%s4567 + $0x4] sm:$0x1]
      %v4573 = vld [vmem:[%s4567 + $0x5] sm:$0x1]
      %v4574 = vld [vmem:[%s4567 + $0x6] sm:$0x1]
      %v4575 = vld [vmem:[%s4567 + $0x7] sm:$0x1]
      %v4576 = vld [vmem:[%s4567 + $0x8] sm:$0x1]
      %v4577 = vld [vmem:[%s4567 + $0x9] sm:$0x1]
      %v4578 = vld [vmem:[%s4567 + $0xa] sm:$0x1]
      %v4579 = vld [vmem:[%s4567 + $0xb] sm:$0x1]
      %v4580 = vld [vmem:[%s4567 + $0xc] sm:$0x1]
      %v4581 = vld [vmem:[%s4567 + $0xd] sm:$0x1]
      %v4582 = vld [vmem:[%s4567 + $0xe] sm:$0x1]
      %v4583 = vld [vmem:[%s4567 + $0xf] sm:$0x1]
      %v4584 = vld [vmem:[%s4567 + $0x10] sm:$0x1]
      %v4585 = vld [vmem:[%s4567 + $0x11] sm:$0x1]
      %v4586 = vld [vmem:[%s4567 + $0x12] sm:$0x1]
      %v4587 = vld [vmem:[%s4567 + $0x13] sm:$0x1]
      %v4588 = vld [vmem:[%s4567 + $0x14] sm:$0x1]
      %v4589 = vld [vmem:[%s4567 + $0x15] sm:$0x1]
      %v4590 = vld [vmem:[%s4567 + $0x16] sm:$0x1]
      %v4591 = vld [vmem:[%s4567 + $0x17] sm:$0x1]
      %v4592 = vld [vmem:[%s4567 + $0x18] sm:$0x1]
      %v4593 = vld [vmem:[%s4567 + $0x19] sm:$0x1]
      %v4594 = vld [vmem:[%s4567 + $0x1a] sm:$0x1]
      %v4595 = vld [vmem:[%s4567 + $0x1b] sm:$0x1]
      %v4596 = vld [vmem:[%s4567 + $0x1c] sm:$0x1]
      %v4597 = vld [vmem:[%s4567 + $0x1d] sm:$0x1]
      %v4598 = vld [vmem:[%s4567 + $0x1e] sm:$0x1]
      %v4599 = vld [vmem:[%s4567 + $0x1f] sm:$0x1]
      %v4632 = vlaneseq
      %v4633 = vshrl.u32 %v4632, 7
      %v4634 = vsub.s32 0, %v4633
      %v4635 = vrot.slane %v4568, %v4634
      %v4636 = vlaneseq
      %v4637 = vshrl.u32 %v4636, 7
      %v4638 = vsub.s32 0, %v4637
      %v4639 = vrot.slane %v4569, %v4638
      %v4640 = vlaneseq
      %v4641 = vshrl.u32 %v4640, 7
      %v4642 = vsub.s32 0, %v4641
      %v4643 = vrot.slane %v4570, %v4642
      %v4644 = vlaneseq
      %v4645 = vshrl.u32 %v4644, 7
      %v4646 = vsub.s32 0, %v4645
      %v4647 = vrot.slane %v4571, %v4646
      %v4648 = vlaneseq
      %v4649 = vshrl.u32 %v4648, 7
      %v4650 = vsub.s32 0, %v4649
      %v4651 = vrot.slane %v4572, %v4650
      %v4652 = vlaneseq
      %v4653 = vshrl.u32 %v4652, 7
      %v4654 = vsub.s32 0, %v4653
      %v4655 = vrot.slane %v4573, %v4654
      %v4656 = vlaneseq
      %v4657 = vshrl.u32 %v4656, 7
      %v4658 = vsub.s32 0, %v4657
      %v4659 = vrot.slane %v4574, %v4658
      %v4660 = vlaneseq
      %v4661 = vshrl.u32 %v4660, 7
      %v4662 = vsub.s32 0, %v4661
      %v4663 = vrot.slane %v4575, %v4662
      %v4664 = vlaneseq
      %v4665 = vshrl.u32 %v4664, 7
      %v4666 = vsub.s32 0, %v4665
      %v4667 = vrot.slane %v4576, %v4666
      %v4668 = vlaneseq
      %v4669 = vshrl.u32 %v4668, 7
      %v4670 = vsub.s32 0, %v4669
      %v4671 = vrot.slane %v4577, %v4670
      %v4672 = vlaneseq
      %v4673 = vshrl.u32 %v4672, 7
      %v4674 = vsub.s32 0, %v4673
      %v4675 = vrot.slane %v4578, %v4674
      %v4676 = vlaneseq
      %v4677 = vshrl.u32 %v4676, 7
      %v4678 = vsub.s32 0, %v4677
      %v4679 = vrot.slane %v4579, %v4678
      %v4680 = vlaneseq
      %v4681 = vshrl.u32 %v4680, 7
      %v4682 = vsub.s32 0, %v4681
      %v4683 = vrot.slane %v4580, %v4682
      %v4684 = vlaneseq
      %v4685 = vshrl.u32 %v4684, 7
      %v4686 = vsub.s32 0, %v4685
      %v4687 = vrot.slane %v4581, %v4686
      %v4688 = vlaneseq
      %v4689 = vshrl.u32 %v4688, 7
      %v4690 = vsub.s32 0, %v4689
      %v4691 = vrot.slane %v4582, %v4690
      %v4692 = vlaneseq
      %v4693 = vshrl.u32 %v4692, 7
      %v4694 = vsub.s32 0, %v4693
      %v4695 = vrot.slane %v4583, %v4694
      %v4696 = vlaneseq
      %v4697 = vshrl.u32 %v4696, 7
      %v4698 = vsub.s32 0, %v4697
      %v4699 = vrot.slane %v4584, %v4698
      %v4700 = vlaneseq
      %v4701 = vshrl.u32 %v4700, 7
      %v4702 = vsub.s32 0, %v4701
      %v4703 = vrot.slane %v4585, %v4702
      %v4704 = vlaneseq
      %v4705 = vshrl.u32 %v4704, 7
      %v4706 = vsub.s32 0, %v4705
      %v4707 = vrot.slane %v4586, %v4706
      %v4708 = vlaneseq
      %v4709 = vshrl.u32 %v4708, 7
      %v4710 = vsub.s32 0, %v4709
      %v4711 = vrot.slane %v4587, %v4710
      %v4712 = vlaneseq
      %v4713 = vshrl.u32 %v4712, 7
      %v4714 = vsub.s32 0, %v4713
      %v4715 = vrot.slane %v4588, %v4714
      %v4716 = vlaneseq
      %v4717 = vshrl.u32 %v4716, 7
      %v4718 = vsub.s32 0, %v4717
      %v4719 = vrot.slane %v4589, %v4718
      %v4720 = vlaneseq
      %v4721 = vshrl.u32 %v4720, 7
      %v4722 = vsub.s32 0, %v4721
      %v4723 = vrot.slane %v4590, %v4722
      %v4724 = vlaneseq
      %v4725 = vshrl.u32 %v4724, 7
      %v4726 = vsub.s32 0, %v4725
      %v4727 = vrot.slane %v4591, %v4726
      %v4728 = vlaneseq
      %v4729 = vshrl.u32 %v4728, 7
      %v4730 = vsub.s32 0, %v4729
      %v4731 = vrot.slane %v4592, %v4730
      %v4732 = vlaneseq
      %v4733 = vshrl.u32 %v4732, 7
      %v4734 = vsub.s32 0, %v4733
      %v4735 = vrot.slane %v4593, %v4734
      %v4736 = vlaneseq
      %v4737 = vshrl.u32 %v4736, 7
      %v4738 = vsub.s32 0, %v4737
      %v4739 = vrot.slane %v4594, %v4738
      %v4740 = vlaneseq
      %v4741 = vshrl.u32 %v4740, 7
      %v4742 = vsub.s32 0, %v4741
      %v4743 = vrot.slane %v4595, %v4742
      %v4744 = vlaneseq
      %v4745 = vshrl.u32 %v4744, 7
      %v4746 = vsub.s32 0, %v4745
      %v4747 = vrot.slane %v4596, %v4746
      %v4748 = vlaneseq
      %v4749 = vshrl.u32 %v4748, 7
      %v4750 = vsub.s32 0, %v4749
      %v4751 = vrot.slane %v4597, %v4750
      %v4752 = vlaneseq
      %v4753 = vshrl.u32 %v4752, 7
      %v4754 = vsub.s32 0, %v4753
      %v4755 = vrot.slane %v4598, %v4754
      %v4756 = vlaneseq
      %v4757 = vshrl.u32 %v4756, 7
      %v4758 = vsub.s32 0, %v4757
      %v4759 = vrot.slane %v4599, %v4758
      %4760 = vset.pattern.permute.xlu0 0
      %4761 = vperm.xlu0 %4760, %v4635
      %v4762 = vpop.permute.xlu0 %4761
      %4764 = vset.pattern.permute.xlu0 0
      %4765 = vperm.xlu0 %4764, %v4639
      %v4766 = vpop.permute.xlu0 %4765
      %4768 = vset.pattern.permute.xlu0 0
      %4769 = vperm.xlu0 %4768, %v4643
      %v4770 = vpop.permute.xlu0 %4769
      %4772 = vset.pattern.permute.xlu0 0
      %4773 = vperm.xlu0 %4772, %v4647
      %v4774 = vpop.permute.xlu0 %4773
      %4776 = vset.pattern.permute.xlu0 0
      %4777 = vperm.xlu0 %4776, %v4651
      %v4778 = vpop.permute.xlu0 %4777
      %4780 = vset.pattern.permute.xlu0 0
      %4781 = vperm.xlu0 %4780, %v4655
      %v4782 = vpop.permute.xlu0 %4781
      %4784 = vset.pattern.permute.xlu0 0
      %4785 = vperm.xlu0 %4784, %v4659
      %v4786 = vpop.permute.xlu0 %4785
      %4788 = vset.pattern.permute.xlu0 0
      %4789 = vperm.xlu0 %4788, %v4663
      %v4790 = vpop.permute.xlu0 %4789
      %4792 = vset.pattern.permute.xlu0 0
      %4793 = vperm.xlu0 %4792, %v4667
      %v4794 = vpop.permute.xlu0 %4793
      %4796 = vset.pattern.permute.xlu0 0
      %4797 = vperm.xlu0 %4796, %v4671
      %v4798 = vpop.permute.xlu0 %4797
      %4800 = vset.pattern.permute.xlu0 0
      %4801 = vperm.xlu0 %4800, %v4675
      %v4802 = vpop.permute.xlu0 %4801
      %4804 = vset.pattern.permute.xlu0 0
      %4805 = vperm.xlu0 %4804, %v4679
      %v4806 = vpop.permute.xlu0 %4805
      %4808 = vset.pattern.permute.xlu0 0
      %4809 = vperm.xlu0 %4808, %v4683
      %v4810 = vpop.permute.xlu0 %4809
      %4812 = vset.pattern.permute.xlu0 0
      %4813 = vperm.xlu0 %4812, %v4687
      %v4814 = vpop.permute.xlu0 %4813
      %4816 = vset.pattern.permute.xlu0 0
      %4817 = vperm.xlu0 %4816, %v4691
      %v4818 = vpop.permute.xlu0 %4817
      %4820 = vset.pattern.permute.xlu0 0
      %4821 = vperm.xlu0 %4820, %v4695
      %v4822 = vpop.permute.xlu0 %4821
      %4824 = vset.pattern.permute.xlu0 0
      %4825 = vperm.xlu0 %4824, %v4699
      %v4826 = vpop.permute.xlu0 %4825
      %4828 = vset.pattern.permute.xlu0 0
      %4829 = vperm.xlu0 %4828, %v4703
      %v4830 = vpop.permute.xlu0 %4829
      %4832 = vset.pattern.permute.xlu0 0
      %4833 = vperm.xlu0 %4832, %v4707
      %v4834 = vpop.permute.xlu0 %4833
      %4836 = vset.pattern.permute.xlu0 0
      %4837 = vperm.xlu0 %4836, %v4711
      %v4838 = vpop.permute.xlu0 %4837
      %4840 = vset.pattern.permute.xlu0 0
      %4841 = vperm.xlu0 %4840, %v4715
      %v4842 = vpop.permute.xlu0 %4841
      %4844 = vset.pattern.permute.xlu0 0
      %4845 = vperm.xlu0 %4844, %v4719
      %v4846 = vpop.permute.xlu0 %4845
      %4848 = vset.pattern.permute.xlu0 0
      %4849 = vperm.xlu0 %4848, %v4723
      %v4850 = vpop.permute.xlu0 %4849
      %4852 = vset.pattern.permute.xlu0 0
      %4853 = vperm.xlu0 %4852, %v4727
      %v4854 = vpop.permute.xlu0 %4853
      %4856 = vset.pattern.permute.xlu0 0
      %4857 = vperm.xlu0 %4856, %v4731
      %v4858 = vpop.permute.xlu0 %4857
      %4860 = vset.pattern.permute.xlu0 0
      %4861 = vperm.xlu0 %4860, %v4735
      %v4862 = vpop.permute.xlu0 %4861
      %4864 = vset.pattern.permute.xlu0 0
      %4865 = vperm.xlu0 %4864, %v4739
      %v4866 = vpop.permute.xlu0 %4865
      %4868 = vset.pattern.permute.xlu0 0
      %4869 = vperm.xlu0 %4868, %v4743
      %v4870 = vpop.permute.xlu0 %4869
      %4872 = vset.pattern.permute.xlu0 0
      %4873 = vperm.xlu0 %4872, %v4747
      %v4874 = vpop.permute.xlu0 %4873
      %4876 = vset.pattern.permute.xlu0 0
      %4877 = vperm.xlu0 %4876, %v4751
      %v4878 = vpop.permute.xlu0 %4877
      %4880 = vset.pattern.permute.xlu0 0
      %4881 = vperm.xlu0 %4880, %v4755
      %v4882 = vpop.permute.xlu0 %4881
      %4884 = vset.pattern.permute.xlu0 0
      %4885 = vperm.xlu0 %4884, %v4759
      %v4886 = vpop.permute.xlu0 %4885
      %v4888 = vmul.f32 %v4762, %v914
      %v4889 = vmul.f32 %v4762, %v724
      %v4890 = vmul.f32 %v4762, %v946
      %v4891 = vmul.f32 %v4766, %v915
      %v4892 = vmul.f32 %v4766, %v727
      %v4893 = vmul.f32 %v4766, %v947
      %v4894 = vmul.f32 %v4770, %v916
      %v4895 = vmul.f32 %v4770, %v730
      %v4896 = vmul.f32 %v4770, %v948
      %v4897 = vmul.f32 %v4774, %v917
      %v4898 = vmul.f32 %v4774, %v733
      %v4899 = vmul.f32 %v4774, %v949
      %v4900 = vmul.f32 %v4778, %v918
      %v4901 = vmul.f32 %v4778, %v736
      %v4902 = vmul.f32 %v4778, %v950
      %v4903 = vmul.f32 %v4782, %v919
      %v4904 = vmul.f32 %v4782, %v739
      %v4905 = vmul.f32 %v4782, %v951
      %v4906 = vmul.f32 %v4786, %v920
      %v4907 = vmul.f32 %v4786, %v742
      %v4908 = vmul.f32 %v4786, %v952
      %v4909 = vmul.f32 %v4790, %v921
      %v4910 = vmul.f32 %v4790, %v745
      %v4911 = vmul.f32 %v4790, %v953
      %v4912 = vmul.f32 %v4794, %v922
      %v4913 = vmul.f32 %v4794, %v748
      %v4914 = vmul.f32 %v4794, %v954
      %v4915 = vmul.f32 %v4798, %v923
      %v4916 = vmul.f32 %v4798, %v751
      %v4917 = vmul.f32 %v4798, %v955
      %v4918 = vmul.f32 %v4802, %v924
      %v4919 = vmul.f32 %v4802, %v754
      %v4920 = vmul.f32 %v4802, %v956
      %v4921 = vmul.f32 %v4806, %v925
      %v4922 = vmul.f32 %v4806, %v757
      %v4923 = vmul.f32 %v4806, %v957
      %v4924 = vmul.f32 %v4810, %v926
      %v4925 = vmul.f32 %v4810, %v760
      %v4926 = vmul.f32 %v4810, %v958
      %v4927 = vmul.f32 %v4814, %v927
      %v4928 = vmul.f32 %v4814, %v763
      %v4929 = vmul.f32 %v4814, %v959
      %v4930 = vmul.f32 %v4818, %v928
      %v4931 = vmul.f32 %v4818, %v766
      %v4932 = vmul.f32 %v4818, %v960
      %v4933 = vmul.f32 %v4822, %v929
      %v4934 = vmul.f32 %v4822, %v769
      %v4935 = vmul.f32 %v4822, %v961
      %v4936 = vmul.f32 %v4826, %v930
      %v4937 = vmul.f32 %v4826, %v772
      %v4938 = vmul.f32 %v4826, %v962
      %v4939 = vmul.f32 %v4830, %v931
      %v4940 = vmul.f32 %v4830, %v775
      %v4941 = vmul.f32 %v4830, %v963
      %v4942 = vmul.f32 %v4834, %v932
      %v4943 = vmul.f32 %v4834, %v778
      %v4944 = vmul.f32 %v4834, %v964
      %v4945 = vmul.f32 %v4838, %v933
      %v4946 = vmul.f32 %v4838, %v781
      %v4947 = vmul.f32 %v4838, %v965
      %v4948 = vmul.f32 %v4842, %v934
      %v4949 = vmul.f32 %v4842, %v784
      %v4950 = vmul.f32 %v4842, %v966
      %v4951 = vmul.f32 %v4846, %v935
      %v4952 = vmul.f32 %v4846, %v787
      %v4953 = vmul.f32 %v4846, %v967
      %v4954 = vmul.f32 %v4850, %v936
      %v4955 = vmul.f32 %v4850, %v790
      %v4956 = vmul.f32 %v4850, %v968
      %v4957 = vmul.f32 %v4854, %v937
      %v4958 = vmul.f32 %v4854, %v793
      %v4959 = vmul.f32 %v4854, %v969
      %v4960 = vmul.f32 %v4858, %v938
      %v4961 = vmul.f32 %v4858, %v796
      %v4962 = vmul.f32 %v4858, %v970
      %v4963 = vmul.f32 %v4862, %v939
      %v4964 = vmul.f32 %v4862, %v799
      %v4965 = vmul.f32 %v4862, %v971
      %v4966 = vmul.f32 %v4866, %v940
      %v4967 = vmul.f32 %v4866, %v802
      %v4968 = vmul.f32 %v4866, %v972
      %v4969 = vmul.f32 %v4870, %v941
      %v4970 = vmul.f32 %v4870, %v805
      %v4971 = vmul.f32 %v4870, %v973
      %v4972 = vmul.f32 %v4874, %v942
      %v4973 = vmul.f32 %v4874, %v808
      %v4974 = vmul.f32 %v4874, %v974
      %v4975 = vmul.f32 %v4878, %v943
      %v4976 = vmul.f32 %v4878, %v811
      %v4977 = vmul.f32 %v4878, %v975
      %v4978 = vmul.f32 %v4882, %v944
      %v4979 = vmul.f32 %v4882, %v814
      %v4980 = vmul.f32 %v4882, %v976
      %v4981 = vmul.f32 %v4886, %v945
      %v4982 = vmul.f32 %v4886, %v817
      %v4983 = vmul.f32 %v4886, %v977
      %v5080 = vrot.slane %v4888, 2
      %v5081 = vrot.slane %v4889, 2
      %v5082 = vsel %vm3349, %v5080, %v5081
      %v5083 = vrot.slane %v4890, 2
      %v5084 = vsel %vm3349, %v5081, %v5083
      %v5085 = vrot.slane %v4891, 2
      %v5086 = vrot.slane %v4892, 2
      %v5087 = vsel %vm3349, %v5085, %v5086
      %v5088 = vrot.slane %v4893, 2
      %v5089 = vsel %vm3349, %v5086, %v5088
      %v5090 = vrot.slane %v4894, 2
      %v5091 = vrot.slane %v4895, 2
      %v5092 = vsel %vm3349, %v5090, %v5091
      %v5093 = vrot.slane %v4896, 2
      %v5094 = vsel %vm3349, %v5091, %v5093
      %v5095 = vrot.slane %v4897, 2
      %v5096 = vrot.slane %v4898, 2
      %v5097 = vsel %vm3349, %v5095, %v5096
      %v5098 = vrot.slane %v4899, 2
      %v5099 = vsel %vm3349, %v5096, %v5098
      %v5100 = vrot.slane %v4900, 2
      %v5101 = vrot.slane %v4901, 2
      %v5102 = vsel %vm3349, %v5100, %v5101
      %v5103 = vrot.slane %v4902, 2
      %v5104 = vsel %vm3349, %v5101, %v5103
      %v5105 = vrot.slane %v4903, 2
      %v5106 = vrot.slane %v4904, 2
      %v5107 = vsel %vm3349, %v5105, %v5106
      %v5108 = vrot.slane %v4905, 2
      %v5109 = vsel %vm3349, %v5106, %v5108
      %v5110 = vrot.slane %v4906, 2
      %v5111 = vrot.slane %v4907, 2
      %v5112 = vsel %vm3349, %v5110, %v5111
      %v5113 = vrot.slane %v4908, 2
      %v5114 = vsel %vm3349, %v5111, %v5113
      %v5115 = vrot.slane %v4909, 2
      %v5116 = vrot.slane %v4910, 2
      %v5117 = vsel %vm3349, %v5115, %v5116
      %v5118 = vrot.slane %v4911, 2
      %v5119 = vsel %vm3349, %v5116, %v5118
      %v5120 = vrot.slane %v4912, 2
      %v5121 = vrot.slane %v4913, 2
      %v5122 = vsel %vm3349, %v5120, %v5121
      %v5123 = vrot.slane %v4914, 2
      %v5124 = vsel %vm3349, %v5121, %v5123
      %v5125 = vrot.slane %v4915, 2
      %v5126 = vrot.slane %v4916, 2
      %v5127 = vsel %vm3349, %v5125, %v5126
      %v5128 = vrot.slane %v4917, 2
      %v5129 = vsel %vm3349, %v5126, %v5128
      %v5130 = vrot.slane %v4918, 2
      %v5131 = vrot.slane %v4919, 2
      %v5132 = vsel %vm3349, %v5130, %v5131
      %v5133 = vrot.slane %v4920, 2
      %v5134 = vsel %vm3349, %v5131, %v5133
      %v5135 = vrot.slane %v4921, 2
      %v5136 = vrot.slane %v4922, 2
      %v5137 = vsel %vm3349, %v5135, %v5136
      %v5138 = vrot.slane %v4923, 2
      %v5139 = vsel %vm3349, %v5136, %v5138
      %v5140 = vrot.slane %v4924, 2
      %v5141 = vrot.slane %v4925, 2
      %v5142 = vsel %vm3349, %v5140, %v5141
      %v5143 = vrot.slane %v4926, 2
      %v5144 = vsel %vm3349, %v5141, %v5143
      %v5145 = vrot.slane %v4927, 2
      %v5146 = vrot.slane %v4928, 2
      %v5147 = vsel %vm3349, %v5145, %v5146
      %v5148 = vrot.slane %v4929, 2
      %v5149 = vsel %vm3349, %v5146, %v5148
      %v5150 = vrot.slane %v4930, 2
      %v5151 = vrot.slane %v4931, 2
      %v5152 = vsel %vm3349, %v5150, %v5151
      %v5153 = vrot.slane %v4932, 2
      %v5154 = vsel %vm3349, %v5151, %v5153
      %v5155 = vrot.slane %v4933, 2
      %v5156 = vrot.slane %v4934, 2
      %v5157 = vsel %vm3349, %v5155, %v5156
      %v5158 = vrot.slane %v4935, 2
      %v5159 = vsel %vm3349, %v5156, %v5158
      %v5160 = vrot.slane %v4936, 2
      %v5161 = vrot.slane %v4937, 2
      %v5162 = vsel %vm3349, %v5160, %v5161
      %v5163 = vrot.slane %v4938, 2
      %v5164 = vsel %vm3349, %v5161, %v5163
      %v5165 = vrot.slane %v4939, 2
      %v5166 = vrot.slane %v4940, 2
      %v5167 = vsel %vm3349, %v5165, %v5166
      %v5168 = vrot.slane %v4941, 2
      %v5169 = vsel %vm3349, %v5166, %v5168
      %v5170 = vrot.slane %v4942, 2
      %v5171 = vrot.slane %v4943, 2
      %v5172 = vsel %vm3349, %v5170, %v5171
      %v5173 = vrot.slane %v4944, 2
      %v5174 = vsel %vm3349, %v5171, %v5173
      %v5175 = vrot.slane %v4945, 2
      %v5176 = vrot.slane %v4946, 2
      %v5177 = vsel %vm3349, %v5175, %v5176
      %v5178 = vrot.slane %v4947, 2
      %v5179 = vsel %vm3349, %v5176, %v5178
      %v5180 = vrot.slane %v4948, 2
      %v5181 = vrot.slane %v4949, 2
      %v5182 = vsel %vm3349, %v5180, %v5181
      %v5183 = vrot.slane %v4950, 2
      %v5184 = vsel %vm3349, %v5181, %v5183
      %v5185 = vrot.slane %v4951, 2
      %v5186 = vrot.slane %v4952, 2
      %v5187 = vsel %vm3349, %v5185, %v5186
      %v5188 = vrot.slane %v4953, 2
      %v5189 = vsel %vm3349, %v5186, %v5188
      %v5190 = vrot.slane %v4954, 2
      %v5191 = vrot.slane %v4955, 2
      %v5192 = vsel %vm3349, %v5190, %v5191
      %v5193 = vrot.slane %v4956, 2
      %v5194 = vsel %vm3349, %v5191, %v5193
      %v5195 = vrot.slane %v4957, 2
      %v5196 = vrot.slane %v4958, 2
      %v5197 = vsel %vm3349, %v5195, %v5196
      %v5198 = vrot.slane %v4959, 2
      %v5199 = vsel %vm3349, %v5196, %v5198
      %v5200 = vrot.slane %v4960, 2
      %v5201 = vrot.slane %v4961, 2
      %v5202 = vsel %vm3349, %v5200, %v5201
      %v5203 = vrot.slane %v4962, 2
      %v5204 = vsel %vm3349, %v5201, %v5203
      %v5205 = vrot.slane %v4963, 2
      %v5206 = vrot.slane %v4964, 2
      %v5207 = vsel %vm3349, %v5205, %v5206
      %v5208 = vrot.slane %v4965, 2
      %v5209 = vsel %vm3349, %v5206, %v5208
      %v5210 = vrot.slane %v4966, 2
      %v5211 = vrot.slane %v4967, 2
      %v5212 = vsel %vm3349, %v5210, %v5211
      %v5213 = vrot.slane %v4968, 2
      %v5214 = vsel %vm3349, %v5211, %v5213
      %v5215 = vrot.slane %v4969, 2
      %v5216 = vrot.slane %v4970, 2
      %v5217 = vsel %vm3349, %v5215, %v5216
      %v5218 = vrot.slane %v4971, 2
      %v5219 = vsel %vm3349, %v5216, %v5218
      %v5220 = vrot.slane %v4972, 2
      %v5221 = vrot.slane %v4973, 2
      %v5222 = vsel %vm3349, %v5220, %v5221
      %v5223 = vrot.slane %v4974, 2
      %v5224 = vsel %vm3349, %v5221, %v5223
      %v5225 = vrot.slane %v4975, 2
      %v5226 = vrot.slane %v4976, 2
      %v5227 = vsel %vm3349, %v5225, %v5226
      %v5228 = vrot.slane %v4977, 2
      %v5229 = vsel %vm3349, %v5226, %v5228
      %v5230 = vrot.slane %v4978, 2
      %v5231 = vrot.slane %v4979, 2
      %v5232 = vsel %vm3349, %v5230, %v5231
      %v5233 = vrot.slane %v4980, 2
      %v5234 = vsel %vm3349, %v5231, %v5233
      %v5235 = vrot.slane %v4981, 2
      %v5236 = vrot.slane %v4982, 2
      %v5237 = vsel %vm3349, %v5235, %v5236
      %v5238 = vrot.slane %v4983, 2
      %v5239 = vsel %vm3349, %v5236, %v5238
      %5240 = vrot.lane.b32.xlu0 %v5082, 124
      %v5241 = vpop.permute.xlu0 %5240
      %5242 = vrot.lane.b32.xlu0 %v5084, 124
      %v5243 = vpop.permute.xlu0 %5242
      %5244 = vrot.lane.b32.xlu0 %v5087, 124
      %v5245 = vpop.permute.xlu0 %5244
      %5246 = vrot.lane.b32.xlu0 %v5089, 124
      %v5247 = vpop.permute.xlu0 %5246
      %5248 = vrot.lane.b32.xlu0 %v5092, 124
      %v5249 = vpop.permute.xlu0 %5248
      %5250 = vrot.lane.b32.xlu0 %v5094, 124
      %v5251 = vpop.permute.xlu0 %5250
      %5252 = vrot.lane.b32.xlu0 %v5097, 124
      %v5253 = vpop.permute.xlu0 %5252
      %5254 = vrot.lane.b32.xlu0 %v5099, 124
      %v5255 = vpop.permute.xlu0 %5254
      %5256 = vrot.lane.b32.xlu0 %v5102, 124
      %v5257 = vpop.permute.xlu0 %5256
      %5258 = vrot.lane.b32.xlu0 %v5104, 124
      %v5259 = vpop.permute.xlu0 %5258
      %5260 = vrot.lane.b32.xlu0 %v5107, 124
      %v5261 = vpop.permute.xlu0 %5260
      %5262 = vrot.lane.b32.xlu0 %v5109, 124
      %v5263 = vpop.permute.xlu0 %5262
      %5264 = vrot.lane.b32.xlu0 %v5112, 124
      %v5265 = vpop.permute.xlu0 %5264
      %5266 = vrot.lane.b32.xlu0 %v5114, 124
      %v5267 = vpop.permute.xlu0 %5266
      %5268 = vrot.lane.b32.xlu0 %v5117, 124
      %v5269 = vpop.permute.xlu0 %5268
      %5270 = vrot.lane.b32.xlu0 %v5119, 124
      %v5271 = vpop.permute.xlu0 %5270
      %5272 = vrot.lane.b32.xlu0 %v5122, 124
      %v5273 = vpop.permute.xlu0 %5272
      %5274 = vrot.lane.b32.xlu0 %v5124, 124
      %v5275 = vpop.permute.xlu0 %5274
      %5276 = vrot.lane.b32.xlu0 %v5127, 124
      %v5277 = vpop.permute.xlu0 %5276
      %5278 = vrot.lane.b32.xlu0 %v5129, 124
      %v5279 = vpop.permute.xlu0 %5278
      %5280 = vrot.lane.b32.xlu0 %v5132, 124
      %v5281 = vpop.permute.xlu0 %5280
      %5282 = vrot.lane.b32.xlu0 %v5134, 124
      %v5283 = vpop.permute.xlu0 %5282
      %5284 = vrot.lane.b32.xlu0 %v5137, 124
      %v5285 = vpop.permute.xlu0 %5284
      %5286 = vrot.lane.b32.xlu0 %v5139, 124
      %v5287 = vpop.permute.xlu0 %5286
      %5288 = vrot.lane.b32.xlu0 %v5142, 124
      %v5289 = vpop.permute.xlu0 %5288
      %5290 = vrot.lane.b32.xlu0 %v5144, 124
      %v5291 = vpop.permute.xlu0 %5290
      %5292 = vrot.lane.b32.xlu0 %v5147, 124
      %v5293 = vpop.permute.xlu0 %5292
      %5294 = vrot.lane.b32.xlu0 %v5149, 124
      %v5295 = vpop.permute.xlu0 %5294
      %5296 = vrot.lane.b32.xlu0 %v5152, 124
      %v5297 = vpop.permute.xlu0 %5296
      %5298 = vrot.lane.b32.xlu0 %v5154, 124
      %v5299 = vpop.permute.xlu0 %5298
      %5300 = vrot.lane.b32.xlu0 %v5157, 124
      %v5301 = vpop.permute.xlu0 %5300
      %5302 = vrot.lane.b32.xlu0 %v5159, 124
      %v5303 = vpop.permute.xlu0 %5302
      %5304 = vrot.lane.b32.xlu0 %v5162, 124
      %v5305 = vpop.permute.xlu0 %5304
      %5306 = vrot.lane.b32.xlu0 %v5164, 124
      %v5307 = vpop.permute.xlu0 %5306
      %5308 = vrot.lane.b32.xlu0 %v5167, 124
      %v5309 = vpop.permute.xlu0 %5308
      %5310 = vrot.lane.b32.xlu0 %v5169, 124
      %v5311 = vpop.permute.xlu0 %5310
      %5312 = vrot.lane.b32.xlu0 %v5172, 124
      %v5313 = vpop.permute.xlu0 %5312
      %5314 = vrot.lane.b32.xlu0 %v5174, 124
      %v5315 = vpop.permute.xlu0 %5314
      %5316 = vrot.lane.b32.xlu0 %v5177, 124
      %v5317 = vpop.permute.xlu0 %5316
      %5318 = vrot.lane.b32.xlu0 %v5179, 124
      %v5319 = vpop.permute.xlu0 %5318
      %5320 = vrot.lane.b32.xlu0 %v5182, 124
      %v5321 = vpop.permute.xlu0 %5320
      %5322 = vrot.lane.b32.xlu0 %v5184, 124
      %v5323 = vpop.permute.xlu0 %5322
      %5324 = vrot.lane.b32.xlu0 %v5187, 124
      %v5325 = vpop.permute.xlu0 %5324
      %5326 = vrot.lane.b32.xlu0 %v5189, 124
      %v5327 = vpop.permute.xlu0 %5326
      %5328 = vrot.lane.b32.xlu0 %v5192, 124
      %v5329 = vpop.permute.xlu0 %5328
      %5330 = vrot.lane.b32.xlu0 %v5194, 124
      %v5331 = vpop.permute.xlu0 %5330
      %5332 = vrot.lane.b32.xlu0 %v5197, 124
      %v5333 = vpop.permute.xlu0 %5332
      %5334 = vrot.lane.b32.xlu0 %v5199, 124
      %v5335 = vpop.permute.xlu0 %5334
      %5336 = vrot.lane.b32.xlu0 %v5202, 124
      %v5337 = vpop.permute.xlu0 %5336
      %5338 = vrot.lane.b32.xlu0 %v5204, 124
      %v5339 = vpop.permute.xlu0 %5338
      %5340 = vrot.lane.b32.xlu0 %v5207, 124
      %v5341 = vpop.permute.xlu0 %5340
      %5342 = vrot.lane.b32.xlu0 %v5209, 124
      %v5343 = vpop.permute.xlu0 %5342
      %5344 = vrot.lane.b32.xlu0 %v5212, 124
      %v5345 = vpop.permute.xlu0 %5344
      %5346 = vrot.lane.b32.xlu0 %v5214, 124
      %v5347 = vpop.permute.xlu0 %5346
      %5348 = vrot.lane.b32.xlu0 %v5217, 124
      %v5349 = vpop.permute.xlu0 %5348
      %5350 = vrot.lane.b32.xlu0 %v5219, 124
      %v5351 = vpop.permute.xlu0 %5350
      %5352 = vrot.lane.b32.xlu0 %v5222, 124
      %v5353 = vpop.permute.xlu0 %5352
      %5354 = vrot.lane.b32.xlu0 %v5224, 124
      %v5355 = vpop.permute.xlu0 %5354
      %5356 = vrot.lane.b32.xlu0 %v5227, 124
      %v5357 = vpop.permute.xlu0 %5356
      %5358 = vrot.lane.b32.xlu0 %v5229, 124
      %v5359 = vpop.permute.xlu0 %5358
      %5360 = vrot.lane.b32.xlu0 %v5232, 124
      %v5361 = vpop.permute.xlu0 %5360
      %5362 = vrot.lane.b32.xlu0 %v5234, 124
      %v5363 = vpop.permute.xlu0 %5362
      %5364 = vrot.lane.b32.xlu0 %v5237, 124
      %v5365 = vpop.permute.xlu0 %5364
      %5366 = vrot.lane.b32.xlu0 %v5239, 124
      %v5367 = vpop.permute.xlu0 %5366
      %v5432 = vadd.f32 %v4503, %v5241
      %v5433 = vadd.f32 %v4504, %v5243
      %v5434 = vadd.f32 %v4505, %v5245
      %v5435 = vadd.f32 %v4506, %v5247
      %v5436 = vadd.f32 %v4507, %v5249
      %v5437 = vadd.f32 %v4508, %v5251
      %v5438 = vadd.f32 %v4509, %v5253
      %v5439 = vadd.f32 %v4510, %v5255
      %v5440 = vadd.f32 %v4511, %v5257
      %v5441 = vadd.f32 %v4512, %v5259
      %v5442 = vadd.f32 %v4513, %v5261
      %v5443 = vadd.f32 %v4514, %v5263
      %v5444 = vadd.f32 %v4515, %v5265
      %v5445 = vadd.f32 %v4516, %v5267
      %v5446 = vadd.f32 %v4517, %v5269
      %v5447 = vadd.f32 %v4518, %v5271
      %v5448 = vadd.f32 %v4519, %v5273
      %v5449 = vadd.f32 %v4520, %v5275
      %v5450 = vadd.f32 %v4521, %v5277
      %v5451 = vadd.f32 %v4522, %v5279
      %v5452 = vadd.f32 %v4523, %v5281
      %v5453 = vadd.f32 %v4524, %v5283
      %v5454 = vadd.f32 %v4525, %v5285
      %v5455 = vadd.f32 %v4526, %v5287
      %v5456 = vadd.f32 %v4527, %v5289
      %v5457 = vadd.f32 %v4528, %v5291
      %v5458 = vadd.f32 %v4529, %v5293
      %v5459 = vadd.f32 %v4530, %v5295
      %v5460 = vadd.f32 %v4531, %v5297
      %v5461 = vadd.f32 %v4532, %v5299
      %v5462 = vadd.f32 %v4533, %v5301
      %v5463 = vadd.f32 %v4534, %v5303
      %v5464 = vadd.f32 %v4535, %v5305
      %v5465 = vadd.f32 %v4536, %v5307
      %v5466 = vadd.f32 %v4537, %v5309
      %v5467 = vadd.f32 %v4538, %v5311
      %v5468 = vadd.f32 %v4539, %v5313
      %v5469 = vadd.f32 %v4540, %v5315
      %v5470 = vadd.f32 %v4541, %v5317
      %v5471 = vadd.f32 %v4542, %v5319
      %v5472 = vadd.f32 %v4543, %v5321
      %v5473 = vadd.f32 %v4544, %v5323
      %v5474 = vadd.f32 %v4545, %v5325
      %v5475 = vadd.f32 %v4546, %v5327
      %v5476 = vadd.f32 %v4547, %v5329
      %v5477 = vadd.f32 %v4548, %v5331
      %v5478 = vadd.f32 %v4549, %v5333
      %v5479 = vadd.f32 %v4550, %v5335
      %v5480 = vadd.f32 %v4551, %v5337
      %v5481 = vadd.f32 %v4552, %v5339
      %v5482 = vadd.f32 %v4553, %v5341
      %v5483 = vadd.f32 %v4554, %v5343
      %v5484 = vadd.f32 %v4555, %v5345
      %v5485 = vadd.f32 %v4556, %v5347
      %v5486 = vadd.f32 %v4557, %v5349
      %v5487 = vadd.f32 %v4558, %v5351
      %v5488 = vadd.f32 %v4559, %v5353
      %v5489 = vadd.f32 %v4560, %v5355
      %v5490 = vadd.f32 %v4561, %v5357
      %v5491 = vadd.f32 %v4562, %v5359
      %v5492 = vadd.f32 %v4563, %v5361
      %v5493 = vadd.f32 %v4564, %v5363
      %v5494 = vadd.f32 %v4565, %v5365
      %v5495 = vadd.f32 %v4566, %v5367
      %s5496 = scalar_lea.vmem %s183, 192
      %v5497 = vld [vmem:[%s5496] sm:$0x1]
      %v5498 = vld [vmem:[%s5496 + $0x1] sm:$0x1]
      %v5499 = vld [vmem:[%s5496 + $0x2] sm:$0x1]
      %v5500 = vld [vmem:[%s5496 + $0x3] sm:$0x1]
      %v5501 = vld [vmem:[%s5496 + $0x4] sm:$0x1]
      %v5502 = vld [vmem:[%s5496 + $0x5] sm:$0x1]
      %v5503 = vld [vmem:[%s5496 + $0x6] sm:$0x1]
      %v5504 = vld [vmem:[%s5496 + $0x7] sm:$0x1]
      %v5505 = vld [vmem:[%s5496 + $0x8] sm:$0x1]
      %v5506 = vld [vmem:[%s5496 + $0x9] sm:$0x1]
      %v5507 = vld [vmem:[%s5496 + $0xa] sm:$0x1]
      %v5508 = vld [vmem:[%s5496 + $0xb] sm:$0x1]
      %v5509 = vld [vmem:[%s5496 + $0xc] sm:$0x1]
      %v5510 = vld [vmem:[%s5496 + $0xd] sm:$0x1]
      %v5511 = vld [vmem:[%s5496 + $0xe] sm:$0x1]
      %v5512 = vld [vmem:[%s5496 + $0xf] sm:$0x1]
      %v5513 = vld [vmem:[%s5496 + $0x10] sm:$0x1]
      %v5514 = vld [vmem:[%s5496 + $0x11] sm:$0x1]
      %v5515 = vld [vmem:[%s5496 + $0x12] sm:$0x1]
      %v5516 = vld [vmem:[%s5496 + $0x13] sm:$0x1]
      %v5517 = vld [vmem:[%s5496 + $0x14] sm:$0x1]
      %v5518 = vld [vmem:[%s5496 + $0x15] sm:$0x1]
      %v5519 = vld [vmem:[%s5496 + $0x16] sm:$0x1]
      %v5520 = vld [vmem:[%s5496 + $0x17] sm:$0x1]
      %v5521 = vld [vmem:[%s5496 + $0x18] sm:$0x1]
      %v5522 = vld [vmem:[%s5496 + $0x19] sm:$0x1]
      %v5523 = vld [vmem:[%s5496 + $0x1a] sm:$0x1]
      %v5524 = vld [vmem:[%s5496 + $0x1b] sm:$0x1]
      %v5525 = vld [vmem:[%s5496 + $0x1c] sm:$0x1]
      %v5526 = vld [vmem:[%s5496 + $0x1d] sm:$0x1]
      %v5527 = vld [vmem:[%s5496 + $0x1e] sm:$0x1]
      %v5528 = vld [vmem:[%s5496 + $0x1f] sm:$0x1]
      %v5561 = vlaneseq
      %v5562 = vshrl.u32 %v5561, 7
      %v5563 = vsub.s32 0, %v5562
      %v5564 = vrot.slane %v5497, %v5563
      %v5565 = vlaneseq
      %v5566 = vshrl.u32 %v5565, 7
      %v5567 = vsub.s32 0, %v5566
      %v5568 = vrot.slane %v5498, %v5567
      %v5569 = vlaneseq
      %v5570 = vshrl.u32 %v5569, 7
      %v5571 = vsub.s32 0, %v5570
      %v5572 = vrot.slane %v5499, %v5571
      %v5573 = vlaneseq
      %v5574 = vshrl.u32 %v5573, 7
      %v5575 = vsub.s32 0, %v5574
      %v5576 = vrot.slane %v5500, %v5575
      %v5577 = vlaneseq
      %v5578 = vshrl.u32 %v5577, 7
      %v5579 = vsub.s32 0, %v5578
      %v5580 = vrot.slane %v5501, %v5579
      %v5581 = vlaneseq
      %v5582 = vshrl.u32 %v5581, 7
      %v5583 = vsub.s32 0, %v5582
      %v5584 = vrot.slane %v5502, %v5583
      %v5585 = vlaneseq
      %v5586 = vshrl.u32 %v5585, 7
      %v5587 = vsub.s32 0, %v5586
      %v5588 = vrot.slane %v5503, %v5587
      %v5589 = vlaneseq
      %v5590 = vshrl.u32 %v5589, 7
      %v5591 = vsub.s32 0, %v5590
      %v5592 = vrot.slane %v5504, %v5591
      %v5593 = vlaneseq
      %v5594 = vshrl.u32 %v5593, 7
      %v5595 = vsub.s32 0, %v5594
      %v5596 = vrot.slane %v5505, %v5595
      %v5597 = vlaneseq
      %v5598 = vshrl.u32 %v5597, 7
      %v5599 = vsub.s32 0, %v5598
      %v5600 = vrot.slane %v5506, %v5599
      %v5601 = vlaneseq
      %v5602 = vshrl.u32 %v5601, 7
      %v5603 = vsub.s32 0, %v5602
      %v5604 = vrot.slane %v5507, %v5603
      %v5605 = vlaneseq
      %v5606 = vshrl.u32 %v5605, 7
      %v5607 = vsub.s32 0, %v5606
      %v5608 = vrot.slane %v5508, %v5607
      %v5609 = vlaneseq
      %v5610 = vshrl.u32 %v5609, 7
      %v5611 = vsub.s32 0, %v5610
      %v5612 = vrot.slane %v5509, %v5611
      %v5613 = vlaneseq
      %v5614 = vshrl.u32 %v5613, 7
      %v5615 = vsub.s32 0, %v5614
      %v5616 = vrot.slane %v5510, %v5615
      %v5617 = vlaneseq
      %v5618 = vshrl.u32 %v5617, 7
      %v5619 = vsub.s32 0, %v5618
      %v5620 = vrot.slane %v5511, %v5619
      %v5621 = vlaneseq
      %v5622 = vshrl.u32 %v5621, 7
      %v5623 = vsub.s32 0, %v5622
      %v5624 = vrot.slane %v5512, %v5623
      %v5625 = vlaneseq
      %v5626 = vshrl.u32 %v5625, 7
      %v5627 = vsub.s32 0, %v5626
      %v5628 = vrot.slane %v5513, %v5627
      %v5629 = vlaneseq
      %v5630 = vshrl.u32 %v5629, 7
      %v5631 = vsub.s32 0, %v5630
      %v5632 = vrot.slane %v5514, %v5631
      %v5633 = vlaneseq
      %v5634 = vshrl.u32 %v5633, 7
      %v5635 = vsub.s32 0, %v5634
      %v5636 = vrot.slane %v5515, %v5635
      %v5637 = vlaneseq
      %v5638 = vshrl.u32 %v5637, 7
      %v5639 = vsub.s32 0, %v5638
      %v5640 = vrot.slane %v5516, %v5639
      %v5641 = vlaneseq
      %v5642 = vshrl.u32 %v5641, 7
      %v5643 = vsub.s32 0, %v5642
      %v5644 = vrot.slane %v5517, %v5643
      %v5645 = vlaneseq
      %v5646 = vshrl.u32 %v5645, 7
      %v5647 = vsub.s32 0, %v5646
      %v5648 = vrot.slane %v5518, %v5647
      %v5649 = vlaneseq
      %v5650 = vshrl.u32 %v5649, 7
      %v5651 = vsub.s32 0, %v5650
      %v5652 = vrot.slane %v5519, %v5651
      %v5653 = vlaneseq
      %v5654 = vshrl.u32 %v5653, 7
      %v5655 = vsub.s32 0, %v5654
      %v5656 = vrot.slane %v5520, %v5655
      %v5657 = vlaneseq
      %v5658 = vshrl.u32 %v5657, 7
      %v5659 = vsub.s32 0, %v5658
      %v5660 = vrot.slane %v5521, %v5659
      %v5661 = vlaneseq
      %v5662 = vshrl.u32 %v5661, 7
      %v5663 = vsub.s32 0, %v5662
      %v5664 = vrot.slane %v5522, %v5663
      %v5665 = vlaneseq
      %v5666 = vshrl.u32 %v5665, 7
      %v5667 = vsub.s32 0, %v5666
      %v5668 = vrot.slane %v5523, %v5667
      %v5669 = vlaneseq
      %v5670 = vshrl.u32 %v5669, 7
      %v5671 = vsub.s32 0, %v5670
      %v5672 = vrot.slane %v5524, %v5671
      %v5673 = vlaneseq
      %v5674 = vshrl.u32 %v5673, 7
      %v5675 = vsub.s32 0, %v5674
      %v5676 = vrot.slane %v5525, %v5675
      %v5677 = vlaneseq
      %v5678 = vshrl.u32 %v5677, 7
      %v5679 = vsub.s32 0, %v5678
      %v5680 = vrot.slane %v5526, %v5679
      %v5681 = vlaneseq
      %v5682 = vshrl.u32 %v5681, 7
      %v5683 = vsub.s32 0, %v5682
      %v5684 = vrot.slane %v5527, %v5683
      %v5685 = vlaneseq
      %v5686 = vshrl.u32 %v5685, 7
      %v5687 = vsub.s32 0, %v5686
      %v5688 = vrot.slane %v5528, %v5687
      %5689 = vset.pattern.permute.xlu0 0
      %5690 = vperm.xlu0 %5689, %v5564
      %v5691 = vpop.permute.xlu0 %5690
      %5693 = vset.pattern.permute.xlu0 0
      %5694 = vperm.xlu0 %5693, %v5568
      %v5695 = vpop.permute.xlu0 %5694
      %5697 = vset.pattern.permute.xlu0 0
      %5698 = vperm.xlu0 %5697, %v5572
      %v5699 = vpop.permute.xlu0 %5698
      %5701 = vset.pattern.permute.xlu0 0
      %5702 = vperm.xlu0 %5701, %v5576
      %v5703 = vpop.permute.xlu0 %5702
      %5705 = vset.pattern.permute.xlu0 0
      %5706 = vperm.xlu0 %5705, %v5580
      %v5707 = vpop.permute.xlu0 %5706
      %5709 = vset.pattern.permute.xlu0 0
      %5710 = vperm.xlu0 %5709, %v5584
      %v5711 = vpop.permute.xlu0 %5710
      %5713 = vset.pattern.permute.xlu0 0
      %5714 = vperm.xlu0 %5713, %v5588
      %v5715 = vpop.permute.xlu0 %5714
      %5717 = vset.pattern.permute.xlu0 0
      %5718 = vperm.xlu0 %5717, %v5592
      %v5719 = vpop.permute.xlu0 %5718
      %5721 = vset.pattern.permute.xlu0 0
      %5722 = vperm.xlu0 %5721, %v5596
      %v5723 = vpop.permute.xlu0 %5722
      %5725 = vset.pattern.permute.xlu0 0
      %5726 = vperm.xlu0 %5725, %v5600
      %v5727 = vpop.permute.xlu0 %5726
      %5729 = vset.pattern.permute.xlu0 0
      %5730 = vperm.xlu0 %5729, %v5604
      %v5731 = vpop.permute.xlu0 %5730
      %5733 = vset.pattern.permute.xlu0 0
      %5734 = vperm.xlu0 %5733, %v5608
      %v5735 = vpop.permute.xlu0 %5734
      %5737 = vset.pattern.permute.xlu0 0
      %5738 = vperm.xlu0 %5737, %v5612
      %v5739 = vpop.permute.xlu0 %5738
      %5741 = vset.pattern.permute.xlu0 0
      %5742 = vperm.xlu0 %5741, %v5616
      %v5743 = vpop.permute.xlu0 %5742
      %5745 = vset.pattern.permute.xlu0 0
      %5746 = vperm.xlu0 %5745, %v5620
      %v5747 = vpop.permute.xlu0 %5746
      %5749 = vset.pattern.permute.xlu0 0
      %5750 = vperm.xlu0 %5749, %v5624
      %v5751 = vpop.permute.xlu0 %5750
      %5753 = vset.pattern.permute.xlu0 0
      %5754 = vperm.xlu0 %5753, %v5628
      %v5755 = vpop.permute.xlu0 %5754
      %5757 = vset.pattern.permute.xlu0 0
      %5758 = vperm.xlu0 %5757, %v5632
      %v5759 = vpop.permute.xlu0 %5758
      %5761 = vset.pattern.permute.xlu0 0
      %5762 = vperm.xlu0 %5761, %v5636
      %v5763 = vpop.permute.xlu0 %5762
      %5765 = vset.pattern.permute.xlu0 0
      %5766 = vperm.xlu0 %5765, %v5640
      %v5767 = vpop.permute.xlu0 %5766
      %5769 = vset.pattern.permute.xlu0 0
      %5770 = vperm.xlu0 %5769, %v5644
      %v5771 = vpop.permute.xlu0 %5770
      %5773 = vset.pattern.permute.xlu0 0
      %5774 = vperm.xlu0 %5773, %v5648
      %v5775 = vpop.permute.xlu0 %5774
      %5777 = vset.pattern.permute.xlu0 0
      %5778 = vperm.xlu0 %5777, %v5652
      %v5779 = vpop.permute.xlu0 %5778
      %5781 = vset.pattern.permute.xlu0 0
      %5782 = vperm.xlu0 %5781, %v5656
      %v5783 = vpop.permute.xlu0 %5782
      %5785 = vset.pattern.permute.xlu0 0
      %5786 = vperm.xlu0 %5785, %v5660
      %v5787 = vpop.permute.xlu0 %5786
      %5789 = vset.pattern.permute.xlu0 0
      %5790 = vperm.xlu0 %5789, %v5664
      %v5791 = vpop.permute.xlu0 %5790
      %5793 = vset.pattern.permute.xlu0 0
      %5794 = vperm.xlu0 %5793, %v5668
      %v5795 = vpop.permute.xlu0 %5794
      %5797 = vset.pattern.permute.xlu0 0
      %5798 = vperm.xlu0 %5797, %v5672
      %v5799 = vpop.permute.xlu0 %5798
      %5801 = vset.pattern.permute.xlu0 0
      %5802 = vperm.xlu0 %5801, %v5676
      %v5803 = vpop.permute.xlu0 %5802
      %5805 = vset.pattern.permute.xlu0 0
      %5806 = vperm.xlu0 %5805, %v5680
      %v5807 = vpop.permute.xlu0 %5806
      %5809 = vset.pattern.permute.xlu0 0
      %5810 = vperm.xlu0 %5809, %v5684
      %v5811 = vpop.permute.xlu0 %5810
      %5813 = vset.pattern.permute.xlu0 0
      %5814 = vperm.xlu0 %5813, %v5688
      %v5815 = vpop.permute.xlu0 %5814
      %v5817 = vmul.f32 %v5691, %v914
      %v5818 = vmul.f32 %v5691, %v724
      %v5819 = vmul.f32 %v5691, %v946
      %v5820 = vmul.f32 %v5695, %v915
      %v5821 = vmul.f32 %v5695, %v727
      %v5822 = vmul.f32 %v5695, %v947
      %v5823 = vmul.f32 %v5699, %v916
      %v5824 = vmul.f32 %v5699, %v730
      %v5825 = vmul.f32 %v5699, %v948
      %v5826 = vmul.f32 %v5703, %v917
      %v5827 = vmul.f32 %v5703, %v733
      %v5828 = vmul.f32 %v5703, %v949
      %v5829 = vmul.f32 %v5707, %v918
      %v5830 = vmul.f32 %v5707, %v736
      %v5831 = vmul.f32 %v5707, %v950
      %v5832 = vmul.f32 %v5711, %v919
      %v5833 = vmul.f32 %v5711, %v739
      %v5834 = vmul.f32 %v5711, %v951
      %v5835 = vmul.f32 %v5715, %v920
      %v5836 = vmul.f32 %v5715, %v742
      %v5837 = vmul.f32 %v5715, %v952
      %v5838 = vmul.f32 %v5719, %v921
      %v5839 = vmul.f32 %v5719, %v745
      %v5840 = vmul.f32 %v5719, %v953
      %v5841 = vmul.f32 %v5723, %v922
      %v5842 = vmul.f32 %v5723, %v748
      %v5843 = vmul.f32 %v5723, %v954
      %v5844 = vmul.f32 %v5727, %v923
      %v5845 = vmul.f32 %v5727, %v751
      %v5846 = vmul.f32 %v5727, %v955
      %v5847 = vmul.f32 %v5731, %v924
      %v5848 = vmul.f32 %v5731, %v754
      %v5849 = vmul.f32 %v5731, %v956
      %v5850 = vmul.f32 %v5735, %v925
      %v5851 = vmul.f32 %v5735, %v757
      %v5852 = vmul.f32 %v5735, %v957
      %v5853 = vmul.f32 %v5739, %v926
      %v5854 = vmul.f32 %v5739, %v760
      %v5855 = vmul.f32 %v5739, %v958
      %v5856 = vmul.f32 %v5743, %v927
      %v5857 = vmul.f32 %v5743, %v763
      %v5858 = vmul.f32 %v5743, %v959
      %v5859 = vmul.f32 %v5747, %v928
      %v5860 = vmul.f32 %v5747, %v766
      %v5861 = vmul.f32 %v5747, %v960
      %v5862 = vmul.f32 %v5751, %v929
      %v5863 = vmul.f32 %v5751, %v769
      %v5864 = vmul.f32 %v5751, %v961
      %v5865 = vmul.f32 %v5755, %v930
      %v5866 = vmul.f32 %v5755, %v772
      %v5867 = vmul.f32 %v5755, %v962
      %v5868 = vmul.f32 %v5759, %v931
      %v5869 = vmul.f32 %v5759, %v775
      %v5870 = vmul.f32 %v5759, %v963
      %v5871 = vmul.f32 %v5763, %v932
      %v5872 = vmul.f32 %v5763, %v778
      %v5873 = vmul.f32 %v5763, %v964
      %v5874 = vmul.f32 %v5767, %v933
      %v5875 = vmul.f32 %v5767, %v781
      %v5876 = vmul.f32 %v5767, %v965
      %v5877 = vmul.f32 %v5771, %v934
      %v5878 = vmul.f32 %v5771, %v784
      %v5879 = vmul.f32 %v5771, %v966
      %v5880 = vmul.f32 %v5775, %v935
      %v5881 = vmul.f32 %v5775, %v787
      %v5882 = vmul.f32 %v5775, %v967
      %v5883 = vmul.f32 %v5779, %v936
      %v5884 = vmul.f32 %v5779, %v790
      %v5885 = vmul.f32 %v5779, %v968
      %v5886 = vmul.f32 %v5783, %v937
      %v5887 = vmul.f32 %v5783, %v793
      %v5888 = vmul.f32 %v5783, %v969
      %v5889 = vmul.f32 %v5787, %v938
      %v5890 = vmul.f32 %v5787, %v796
      %v5891 = vmul.f32 %v5787, %v970
      %v5892 = vmul.f32 %v5791, %v939
      %v5893 = vmul.f32 %v5791, %v799
      %v5894 = vmul.f32 %v5791, %v971
      %v5895 = vmul.f32 %v5795, %v940
      %v5896 = vmul.f32 %v5795, %v802
      %v5897 = vmul.f32 %v5795, %v972
      %v5898 = vmul.f32 %v5799, %v941
      %v5899 = vmul.f32 %v5799, %v805
      %v5900 = vmul.f32 %v5799, %v973
      %v5901 = vmul.f32 %v5803, %v942
      %v5902 = vmul.f32 %v5803, %v808
      %v5903 = vmul.f32 %v5803, %v974
      %v5904 = vmul.f32 %v5807, %v943
      %v5905 = vmul.f32 %v5807, %v811
      %v5906 = vmul.f32 %v5807, %v975
      %v5907 = vmul.f32 %v5811, %v944
      %v5908 = vmul.f32 %v5811, %v814
      %v5909 = vmul.f32 %v5811, %v976
      %v5910 = vmul.f32 %v5815, %v945
      %v5911 = vmul.f32 %v5815, %v817
      %v5912 = vmul.f32 %v5815, %v977
      %vm6009 = vcmask 1043456
      %v6010 = vrot.slane %v5817, 4
      %v6011 = vrot.slane %v5818, 4
      %v6012 = vsel %vm6009, %v6010, %v6011
      %v6013 = vrot.slane %v5819, 4
      %v6014 = vsel %vm6009, %v6011, %v6013
      %v6015 = vrot.slane %v5820, 4
      %v6016 = vrot.slane %v5821, 4
      %v6017 = vsel %vm6009, %v6015, %v6016
      %v6018 = vrot.slane %v5822, 4
      %v6019 = vsel %vm6009, %v6016, %v6018
      %v6020 = vrot.slane %v5823, 4
      %v6021 = vrot.slane %v5824, 4
      %v6022 = vsel %vm6009, %v6020, %v6021
      %v6023 = vrot.slane %v5825, 4
      %v6024 = vsel %vm6009, %v6021, %v6023
      %v6025 = vrot.slane %v5826, 4
      %v6026 = vrot.slane %v5827, 4
      %v6027 = vsel %vm6009, %v6025, %v6026
      %v6028 = vrot.slane %v5828, 4
      %v6029 = vsel %vm6009, %v6026, %v6028
      %v6030 = vrot.slane %v5829, 4
      %v6031 = vrot.slane %v5830, 4
      %v6032 = vsel %vm6009, %v6030, %v6031
      %v6033 = vrot.slane %v5831, 4
      %v6034 = vsel %vm6009, %v6031, %v6033
      %v6035 = vrot.slane %v5832, 4
      %v6036 = vrot.slane %v5833, 4
      %v6037 = vsel %vm6009, %v6035, %v6036
      %v6038 = vrot.slane %v5834, 4
      %v6039 = vsel %vm6009, %v6036, %v6038
      %v6040 = vrot.slane %v5835, 4
      %v6041 = vrot.slane %v5836, 4
      %v6042 = vsel %vm6009, %v6040, %v6041
      %v6043 = vrot.slane %v5837, 4
      %v6044 = vsel %vm6009, %v6041, %v6043
      %v6045 = vrot.slane %v5838, 4
      %v6046 = vrot.slane %v5839, 4
      %v6047 = vsel %vm6009, %v6045, %v6046
      %v6048 = vrot.slane %v5840, 4
      %v6049 = vsel %vm6009, %v6046, %v6048
      %v6050 = vrot.slane %v5841, 4
      %v6051 = vrot.slane %v5842, 4
      %v6052 = vsel %vm6009, %v6050, %v6051
      %v6053 = vrot.slane %v5843, 4
      %v6054 = vsel %vm6009, %v6051, %v6053
      %v6055 = vrot.slane %v5844, 4
      %v6056 = vrot.slane %v5845, 4
      %v6057 = vsel %vm6009, %v6055, %v6056
      %v6058 = vrot.slane %v5846, 4
      %v6059 = vsel %vm6009, %v6056, %v6058
      %v6060 = vrot.slane %v5847, 4
      %v6061 = vrot.slane %v5848, 4
      %v6062 = vsel %vm6009, %v6060, %v6061
      %v6063 = vrot.slane %v5849, 4
      %v6064 = vsel %vm6009, %v6061, %v6063
      %v6065 = vrot.slane %v5850, 4
      %v6066 = vrot.slane %v5851, 4
      %v6067 = vsel %vm6009, %v6065, %v6066
      %v6068 = vrot.slane %v5852, 4
      %v6069 = vsel %vm6009, %v6066, %v6068
      %v6070 = vrot.slane %v5853, 4
      %v6071 = vrot.slane %v5854, 4
      %v6072 = vsel %vm6009, %v6070, %v6071
      %v6073 = vrot.slane %v5855, 4
      %v6074 = vsel %vm6009, %v6071, %v6073
      %v6075 = vrot.slane %v5856, 4
      %v6076 = vrot.slane %v5857, 4
      %v6077 = vsel %vm6009, %v6075, %v6076
      %v6078 = vrot.slane %v5858, 4
      %v6079 = vsel %vm6009, %v6076, %v6078
      %v6080 = vrot.slane %v5859, 4
      %v6081 = vrot.slane %v5860, 4
      %v6082 = vsel %vm6009, %v6080, %v6081
      %v6083 = vrot.slane %v5861, 4
      %v6084 = vsel %vm6009, %v6081, %v6083
      %v6085 = vrot.slane %v5862, 4
      %v6086 = vrot.slane %v5863, 4
      %v6087 = vsel %vm6009, %v6085, %v6086
      %v6088 = vrot.slane %v5864, 4
      %v6089 = vsel %vm6009, %v6086, %v6088
      %v6090 = vrot.slane %v5865, 4
      %v6091 = vrot.slane %v5866, 4
      %v6092 = vsel %vm6009, %v6090, %v6091
      %v6093 = vrot.slane %v5867, 4
      %v6094 = vsel %vm6009, %v6091, %v6093
      %v6095 = vrot.slane %v5868, 4
      %v6096 = vrot.slane %v5869, 4
      %v6097 = vsel %vm6009, %v6095, %v6096
      %v6098 = vrot.slane %v5870, 4
      %v6099 = vsel %vm6009, %v6096, %v6098
      %v6100 = vrot.slane %v5871, 4
      %v6101 = vrot.slane %v5872, 4
      %v6102 = vsel %vm6009, %v6100, %v6101
      %v6103 = vrot.slane %v5873, 4
      %v6104 = vsel %vm6009, %v6101, %v6103
      %v6105 = vrot.slane %v5874, 4
      %v6106 = vrot.slane %v5875, 4
      %v6107 = vsel %vm6009, %v6105, %v6106
      %v6108 = vrot.slane %v5876, 4
      %v6109 = vsel %vm6009, %v6106, %v6108
      %v6110 = vrot.slane %v5877, 4
      %v6111 = vrot.slane %v5878, 4
      %v6112 = vsel %vm6009, %v6110, %v6111
      %v6113 = vrot.slane %v5879, 4
      %v6114 = vsel %vm6009, %v6111, %v6113
      %v6115 = vrot.slane %v5880, 4
      %v6116 = vrot.slane %v5881, 4
      %v6117 = vsel %vm6009, %v6115, %v6116
      %v6118 = vrot.slane %v5882, 4
      %v6119 = vsel %vm6009, %v6116, %v6118
      %v6120 = vrot.slane %v5883, 4
      %v6121 = vrot.slane %v5884, 4
      %v6122 = vsel %vm6009, %v6120, %v6121
      %v6123 = vrot.slane %v5885, 4
      %v6124 = vsel %vm6009, %v6121, %v6123
      %v6125 = vrot.slane %v5886, 4
      %v6126 = vrot.slane %v5887, 4
      %v6127 = vsel %vm6009, %v6125, %v6126
      %v6128 = vrot.slane %v5888, 4
      %v6129 = vsel %vm6009, %v6126, %v6128
      %v6130 = vrot.slane %v5889, 4
      %v6131 = vrot.slane %v5890, 4
      %v6132 = vsel %vm6009, %v6130, %v6131
      %v6133 = vrot.slane %v5891, 4
      %v6134 = vsel %vm6009, %v6131, %v6133
      %v6135 = vrot.slane %v5892, 4
      %v6136 = vrot.slane %v5893, 4
      %v6137 = vsel %vm6009, %v6135, %v6136
      %v6138 = vrot.slane %v5894, 4
      %v6139 = vsel %vm6009, %v6136, %v6138
      %v6140 = vrot.slane %v5895, 4
      %v6141 = vrot.slane %v5896, 4
      %v6142 = vsel %vm6009, %v6140, %v6141
      %v6143 = vrot.slane %v5897, 4
      %v6144 = vsel %vm6009, %v6141, %v6143
      %v6145 = vrot.slane %v5898, 4
      %v6146 = vrot.slane %v5899, 4
      %v6147 = vsel %vm6009, %v6145, %v6146
      %v6148 = vrot.slane %v5900, 4
      %v6149 = vsel %vm6009, %v6146, %v6148
      %v6150 = vrot.slane %v5901, 4
      %v6151 = vrot.slane %v5902, 4
      %v6152 = vsel %vm6009, %v6150, %v6151
      %v6153 = vrot.slane %v5903, 4
      %v6154 = vsel %vm6009, %v6151, %v6153
      %v6155 = vrot.slane %v5904, 4
      %v6156 = vrot.slane %v5905, 4
      %v6157 = vsel %vm6009, %v6155, %v6156
      %v6158 = vrot.slane %v5906, 4
      %v6159 = vsel %vm6009, %v6156, %v6158
      %v6160 = vrot.slane %v5907, 4
      %v6161 = vrot.slane %v5908, 4
      %v6162 = vsel %vm6009, %v6160, %v6161
      %v6163 = vrot.slane %v5909, 4
      %v6164 = vsel %vm6009, %v6161, %v6163
      %v6165 = vrot.slane %v5910, 4
      %v6166 = vrot.slane %v5911, 4
      %v6167 = vsel %vm6009, %v6165, %v6166
      %v6168 = vrot.slane %v5912, 4
      %v6169 = vsel %vm6009, %v6166, %v6168
      %v6234 = vadd.f32 %v5432, %v6012
      %v6235 = vadd.f32 %v5433, %v6014
      %v6236 = vadd.f32 %v5434, %v6017
      %v6237 = vadd.f32 %v5435, %v6019
      %v6238 = vadd.f32 %v5436, %v6022
      %v6239 = vadd.f32 %v5437, %v6024
      %v6240 = vadd.f32 %v5438, %v6027
      %v6241 = vadd.f32 %v5439, %v6029
      %v6242 = vadd.f32 %v5440, %v6032
      %v6243 = vadd.f32 %v5441, %v6034
      %v6244 = vadd.f32 %v5442, %v6037
      %v6245 = vadd.f32 %v5443, %v6039
      %v6246 = vadd.f32 %v5444, %v6042
      %v6247 = vadd.f32 %v5445, %v6044
      %v6248 = vadd.f32 %v5446, %v6047
      %v6249 = vadd.f32 %v5447, %v6049
      %v6250 = vadd.f32 %v5448, %v6052
      %v6251 = vadd.f32 %v5449, %v6054
      %v6252 = vadd.f32 %v5450, %v6057
      %v6253 = vadd.f32 %v5451, %v6059
      %v6254 = vadd.f32 %v5452, %v6062
      %v6255 = vadd.f32 %v5453, %v6064
      %v6256 = vadd.f32 %v5454, %v6067
      %v6257 = vadd.f32 %v5455, %v6069
      %v6258 = vadd.f32 %v5456, %v6072
      %v6259 = vadd.f32 %v5457, %v6074
      %v6260 = vadd.f32 %v5458, %v6077
      %v6261 = vadd.f32 %v5459, %v6079
      %v6262 = vadd.f32 %v5460, %v6082
      %v6263 = vadd.f32 %v5461, %v6084
      %v6264 = vadd.f32 %v5462, %v6087
      %v6265 = vadd.f32 %v5463, %v6089
      %v6266 = vadd.f32 %v5464, %v6092
      %v6267 = vadd.f32 %v5465, %v6094
      %v6268 = vadd.f32 %v5466, %v6097
      %v6269 = vadd.f32 %v5467, %v6099
      %v6270 = vadd.f32 %v5468, %v6102
      %v6271 = vadd.f32 %v5469, %v6104
      %v6272 = vadd.f32 %v5470, %v6107
      %v6273 = vadd.f32 %v5471, %v6109
      %v6274 = vadd.f32 %v5472, %v6112
      %v6275 = vadd.f32 %v5473, %v6114
      %v6276 = vadd.f32 %v5474, %v6117
      %v6277 = vadd.f32 %v5475, %v6119
      %v6278 = vadd.f32 %v5476, %v6122
      %v6279 = vadd.f32 %v5477, %v6124
      %v6280 = vadd.f32 %v5478, %v6127
      %v6281 = vadd.f32 %v5479, %v6129
      %v6282 = vadd.f32 %v5480, %v6132
      %v6283 = vadd.f32 %v5481, %v6134
      %v6284 = vadd.f32 %v5482, %v6137
      %v6285 = vadd.f32 %v5483, %v6139
      %v6286 = vadd.f32 %v5484, %v6142
      %v6287 = vadd.f32 %v5485, %v6144
      %v6288 = vadd.f32 %v5486, %v6147
      %v6289 = vadd.f32 %v5487, %v6149
      %v6290 = vadd.f32 %v5488, %v6152
      %v6291 = vadd.f32 %v5489, %v6154
      %v6292 = vadd.f32 %v5490, %v6157
      %v6293 = vadd.f32 %v5491, %v6159
      %v6294 = vadd.f32 %v5492, %v6162
      %v6295 = vadd.f32 %v5493, %v6164
      %v6296 = vadd.f32 %v5494, %v6167
      %v6297 = vadd.f32 %v5495, %v6169
      %s6298 = scalar_lea.vmem %s183, 224
      %v6299 = vld [vmem:[%s6298] sm:$0x1]
      %v6300 = vld [vmem:[%s6298 + $0x1] sm:$0x1]
      %v6301 = vld [vmem:[%s6298 + $0x2] sm:$0x1]
      %v6302 = vld [vmem:[%s6298 + $0x3] sm:$0x1]
      %v6303 = vld [vmem:[%s6298 + $0x4] sm:$0x1]
      %v6304 = vld [vmem:[%s6298 + $0x5] sm:$0x1]
      %v6305 = vld [vmem:[%s6298 + $0x6] sm:$0x1]
      %v6306 = vld [vmem:[%s6298 + $0x7] sm:$0x1]
      %v6307 = vld [vmem:[%s6298 + $0x8] sm:$0x1]
      %v6308 = vld [vmem:[%s6298 + $0x9] sm:$0x1]
      %v6309 = vld [vmem:[%s6298 + $0xa] sm:$0x1]
      %v6310 = vld [vmem:[%s6298 + $0xb] sm:$0x1]
      %v6311 = vld [vmem:[%s6298 + $0xc] sm:$0x1]
      %v6312 = vld [vmem:[%s6298 + $0xd] sm:$0x1]
      %v6313 = vld [vmem:[%s6298 + $0xe] sm:$0x1]
      %v6314 = vld [vmem:[%s6298 + $0xf] sm:$0x1]
      %v6315 = vld [vmem:[%s6298 + $0x10] sm:$0x1]
      %v6316 = vld [vmem:[%s6298 + $0x11] sm:$0x1]
      %v6317 = vld [vmem:[%s6298 + $0x12] sm:$0x1]
      %v6318 = vld [vmem:[%s6298 + $0x13] sm:$0x1]
      %v6319 = vld [vmem:[%s6298 + $0x14] sm:$0x1]
      %v6320 = vld [vmem:[%s6298 + $0x15] sm:$0x1]
      %v6321 = vld [vmem:[%s6298 + $0x16] sm:$0x1]
      %v6322 = vld [vmem:[%s6298 + $0x17] sm:$0x1]
      %v6323 = vld [vmem:[%s6298 + $0x18] sm:$0x1]
      %v6324 = vld [vmem:[%s6298 + $0x19] sm:$0x1]
      %v6325 = vld [vmem:[%s6298 + $0x1a] sm:$0x1]
      %v6326 = vld [vmem:[%s6298 + $0x1b] sm:$0x1]
      %v6327 = vld [vmem:[%s6298 + $0x1c] sm:$0x1]
      %v6328 = vld [vmem:[%s6298 + $0x1d] sm:$0x1]
      %v6329 = vld [vmem:[%s6298 + $0x1e] sm:$0x1]
      %v6330 = vld [vmem:[%s6298 + $0x1f] sm:$0x1]
      %v6363 = vlaneseq
      %v6364 = vshrl.u32 %v6363, 7
      %v6365 = vsub.s32 0, %v6364
      %v6366 = vrot.slane %v6299, %v6365
      %v6367 = vlaneseq
      %v6368 = vshrl.u32 %v6367, 7
      %v6369 = vsub.s32 0, %v6368
      %v6370 = vrot.slane %v6300, %v6369
      %v6371 = vlaneseq
      %v6372 = vshrl.u32 %v6371, 7
      %v6373 = vsub.s32 0, %v6372
      %v6374 = vrot.slane %v6301, %v6373
      %v6375 = vlaneseq
      %v6376 = vshrl.u32 %v6375, 7
      %v6377 = vsub.s32 0, %v6376
      %v6378 = vrot.slane %v6302, %v6377
      %v6379 = vlaneseq
      %v6380 = vshrl.u32 %v6379, 7
      %v6381 = vsub.s32 0, %v6380
      %v6382 = vrot.slane %v6303, %v6381
      %v6383 = vlaneseq
      %v6384 = vshrl.u32 %v6383, 7
      %v6385 = vsub.s32 0, %v6384
      %v6386 = vrot.slane %v6304, %v6385
      %v6387 = vlaneseq
      %v6388 = vshrl.u32 %v6387, 7
      %v6389 = vsub.s32 0, %v6388
      %v6390 = vrot.slane %v6305, %v6389
      %v6391 = vlaneseq
      %v6392 = vshrl.u32 %v6391, 7
      %v6393 = vsub.s32 0, %v6392
      %v6394 = vrot.slane %v6306, %v6393
      %v6395 = vlaneseq
      %v6396 = vshrl.u32 %v6395, 7
      %v6397 = vsub.s32 0, %v6396
      %v6398 = vrot.slane %v6307, %v6397
      %v6399 = vlaneseq
      %v6400 = vshrl.u32 %v6399, 7
      %v6401 = vsub.s32 0, %v6400
      %v6402 = vrot.slane %v6308, %v6401
      %v6403 = vlaneseq
      %v6404 = vshrl.u32 %v6403, 7
      %v6405 = vsub.s32 0, %v6404
      %v6406 = vrot.slane %v6309, %v6405
      %v6407 = vlaneseq
      %v6408 = vshrl.u32 %v6407, 7
      %v6409 = vsub.s32 0, %v6408
      %v6410 = vrot.slane %v6310, %v6409
      %v6411 = vlaneseq
      %v6412 = vshrl.u32 %v6411, 7
      %v6413 = vsub.s32 0, %v6412
      %v6414 = vrot.slane %v6311, %v6413
      %v6415 = vlaneseq
      %v6416 = vshrl.u32 %v6415, 7
      %v6417 = vsub.s32 0, %v6416
      %v6418 = vrot.slane %v6312, %v6417
      %v6419 = vlaneseq
      %v6420 = vshrl.u32 %v6419, 7
      %v6421 = vsub.s32 0, %v6420
      %v6422 = vrot.slane %v6313, %v6421
      %v6423 = vlaneseq
      %v6424 = vshrl.u32 %v6423, 7
      %v6425 = vsub.s32 0, %v6424
      %v6426 = vrot.slane %v6314, %v6425
      %v6427 = vlaneseq
      %v6428 = vshrl.u32 %v6427, 7
      %v6429 = vsub.s32 0, %v6428
      %v6430 = vrot.slane %v6315, %v6429
      %v6431 = vlaneseq
      %v6432 = vshrl.u32 %v6431, 7
      %v6433 = vsub.s32 0, %v6432
      %v6434 = vrot.slane %v6316, %v6433
      %v6435 = vlaneseq
      %v6436 = vshrl.u32 %v6435, 7
      %v6437 = vsub.s32 0, %v6436
      %v6438 = vrot.slane %v6317, %v6437
      %v6439 = vlaneseq
      %v6440 = vshrl.u32 %v6439, 7
      %v6441 = vsub.s32 0, %v6440
      %v6442 = vrot.slane %v6318, %v6441
      %v6443 = vlaneseq
      %v6444 = vshrl.u32 %v6443, 7
      %v6445 = vsub.s32 0, %v6444
      %v6446 = vrot.slane %v6319, %v6445
      %v6447 = vlaneseq
      %v6448 = vshrl.u32 %v6447, 7
      %v6449 = vsub.s32 0, %v6448
      %v6450 = vrot.slane %v6320, %v6449
      %v6451 = vlaneseq
      %v6452 = vshrl.u32 %v6451, 7
      %v6453 = vsub.s32 0, %v6452
      %v6454 = vrot.slane %v6321, %v6453
      %v6455 = vlaneseq
      %v6456 = vshrl.u32 %v6455, 7
      %v6457 = vsub.s32 0, %v6456
      %v6458 = vrot.slane %v6322, %v6457
      %v6459 = vlaneseq
      %v6460 = vshrl.u32 %v6459, 7
      %v6461 = vsub.s32 0, %v6460
      %v6462 = vrot.slane %v6323, %v6461
      %v6463 = vlaneseq
      %v6464 = vshrl.u32 %v6463, 7
      %v6465 = vsub.s32 0, %v6464
      %v6466 = vrot.slane %v6324, %v6465
      %v6467 = vlaneseq
      %v6468 = vshrl.u32 %v6467, 7
      %v6469 = vsub.s32 0, %v6468
      %v6470 = vrot.slane %v6325, %v6469
      %v6471 = vlaneseq
      %v6472 = vshrl.u32 %v6471, 7
      %v6473 = vsub.s32 0, %v6472
      %v6474 = vrot.slane %v6326, %v6473
      %v6475 = vlaneseq
      %v6476 = vshrl.u32 %v6475, 7
      %v6477 = vsub.s32 0, %v6476
      %v6478 = vrot.slane %v6327, %v6477
      %v6479 = vlaneseq
      %v6480 = vshrl.u32 %v6479, 7
      %v6481 = vsub.s32 0, %v6480
      %v6482 = vrot.slane %v6328, %v6481
      %v6483 = vlaneseq
      %v6484 = vshrl.u32 %v6483, 7
      %v6485 = vsub.s32 0, %v6484
      %v6486 = vrot.slane %v6329, %v6485
      %v6487 = vlaneseq
      %v6488 = vshrl.u32 %v6487, 7
      %v6489 = vsub.s32 0, %v6488
      %v6490 = vrot.slane %v6330, %v6489
      %6491 = vset.pattern.permute.xlu0 0
      %6492 = vperm.xlu0 %6491, %v6366
      %v6493 = vpop.permute.xlu0 %6492
      %6495 = vset.pattern.permute.xlu0 0
      %6496 = vperm.xlu0 %6495, %v6370
      %v6497 = vpop.permute.xlu0 %6496
      %6499 = vset.pattern.permute.xlu0 0
      %6500 = vperm.xlu0 %6499, %v6374
      %v6501 = vpop.permute.xlu0 %6500
      %6503 = vset.pattern.permute.xlu0 0
      %6504 = vperm.xlu0 %6503, %v6378
      %v6505 = vpop.permute.xlu0 %6504
      %6507 = vset.pattern.permute.xlu0 0
      %6508 = vperm.xlu0 %6507, %v6382
      %v6509 = vpop.permute.xlu0 %6508
      %6511 = vset.pattern.permute.xlu0 0
      %6512 = vperm.xlu0 %6511, %v6386
      %v6513 = vpop.permute.xlu0 %6512
      %6515 = vset.pattern.permute.xlu0 0
      %6516 = vperm.xlu0 %6515, %v6390
      %v6517 = vpop.permute.xlu0 %6516
      %6519 = vset.pattern.permute.xlu0 0
      %6520 = vperm.xlu0 %6519, %v6394
      %v6521 = vpop.permute.xlu0 %6520
      %6523 = vset.pattern.permute.xlu0 0
      %6524 = vperm.xlu0 %6523, %v6398
      %v6525 = vpop.permute.xlu0 %6524
      %6527 = vset.pattern.permute.xlu0 0
      %6528 = vperm.xlu0 %6527, %v6402
      %v6529 = vpop.permute.xlu0 %6528
      %6531 = vset.pattern.permute.xlu0 0
      %6532 = vperm.xlu0 %6531, %v6406
      %v6533 = vpop.permute.xlu0 %6532
      %6535 = vset.pattern.permute.xlu0 0
      %6536 = vperm.xlu0 %6535, %v6410
      %v6537 = vpop.permute.xlu0 %6536
      %6539 = vset.pattern.permute.xlu0 0
      %6540 = vperm.xlu0 %6539, %v6414
      %v6541 = vpop.permute.xlu0 %6540
      %6543 = vset.pattern.permute.xlu0 0
      %6544 = vperm.xlu0 %6543, %v6418
      %v6545 = vpop.permute.xlu0 %6544
      %6547 = vset.pattern.permute.xlu0 0
      %6548 = vperm.xlu0 %6547, %v6422
      %v6549 = vpop.permute.xlu0 %6548
      %6551 = vset.pattern.permute.xlu0 0
      %6552 = vperm.xlu0 %6551, %v6426
      %v6553 = vpop.permute.xlu0 %6552
      %6555 = vset.pattern.permute.xlu0 0
      %6556 = vperm.xlu0 %6555, %v6430
      %v6557 = vpop.permute.xlu0 %6556
      %6559 = vset.pattern.permute.xlu0 0
      %6560 = vperm.xlu0 %6559, %v6434
      %v6561 = vpop.permute.xlu0 %6560
      %6563 = vset.pattern.permute.xlu0 0
      %6564 = vperm.xlu0 %6563, %v6438
      %v6565 = vpop.permute.xlu0 %6564
      %6567 = vset.pattern.permute.xlu0 0
      %6568 = vperm.xlu0 %6567, %v6442
      %v6569 = vpop.permute.xlu0 %6568
      %6571 = vset.pattern.permute.xlu0 0
      %6572 = vperm.xlu0 %6571, %v6446
      %v6573 = vpop.permute.xlu0 %6572
      %6575 = vset.pattern.permute.xlu0 0
      %6576 = vperm.xlu0 %6575, %v6450
      %v6577 = vpop.permute.xlu0 %6576
      %6579 = vset.pattern.permute.xlu0 0
      %6580 = vperm.xlu0 %6579, %v6454
      %v6581 = vpop.permute.xlu0 %6580
      %6583 = vset.pattern.permute.xlu0 0
      %6584 = vperm.xlu0 %6583, %v6458
      %v6585 = vpop.permute.xlu0 %6584
      %6587 = vset.pattern.permute.xlu0 0
      %6588 = vperm.xlu0 %6587, %v6462
      %v6589 = vpop.permute.xlu0 %6588
      %6591 = vset.pattern.permute.xlu0 0
      %6592 = vperm.xlu0 %6591, %v6466
      %v6593 = vpop.permute.xlu0 %6592
      %6595 = vset.pattern.permute.xlu0 0
      %6596 = vperm.xlu0 %6595, %v6470
      %v6597 = vpop.permute.xlu0 %6596
      %6599 = vset.pattern.permute.xlu0 0
      %6600 = vperm.xlu0 %6599, %v6474
      %v6601 = vpop.permute.xlu0 %6600
      %6603 = vset.pattern.permute.xlu0 0
      %6604 = vperm.xlu0 %6603, %v6478
      %v6605 = vpop.permute.xlu0 %6604
      %6607 = vset.pattern.permute.xlu0 0
      %6608 = vperm.xlu0 %6607, %v6482
      %v6609 = vpop.permute.xlu0 %6608
      %6611 = vset.pattern.permute.xlu0 0
      %6612 = vperm.xlu0 %6611, %v6486
      %v6613 = vpop.permute.xlu0 %6612
      %6615 = vset.pattern.permute.xlu0 0
      %6616 = vperm.xlu0 %6615, %v6490
      %v6617 = vpop.permute.xlu0 %6616
      %v6619 = vmul.f32 %v6493, %v914
      %v6620 = vmul.f32 %v6493, %v724
      %v6621 = vmul.f32 %v6493, %v946
      %v6622 = vmul.f32 %v6497, %v915
      %v6623 = vmul.f32 %v6497, %v727
      %v6624 = vmul.f32 %v6497, %v947
      %v6625 = vmul.f32 %v6501, %v916
      %v6626 = vmul.f32 %v6501, %v730
      %v6627 = vmul.f32 %v6501, %v948
      %v6628 = vmul.f32 %v6505, %v917
      %v6629 = vmul.f32 %v6505, %v733
      %v6630 = vmul.f32 %v6505, %v949
      %v6631 = vmul.f32 %v6509, %v918
      %v6632 = vmul.f32 %v6509, %v736
      %v6633 = vmul.f32 %v6509, %v950
      %v6634 = vmul.f32 %v6513, %v919
      %v6635 = vmul.f32 %v6513, %v739
      %v6636 = vmul.f32 %v6513, %v951
      %v6637 = vmul.f32 %v6517, %v920
      %v6638 = vmul.f32 %v6517, %v742
      %v6639 = vmul.f32 %v6517, %v952
      %v6640 = vmul.f32 %v6521, %v921
      %v6641 = vmul.f32 %v6521, %v745
      %v6642 = vmul.f32 %v6521, %v953
      %v6643 = vmul.f32 %v6525, %v922
      %v6644 = vmul.f32 %v6525, %v748
      %v6645 = vmul.f32 %v6525, %v954
      %v6646 = vmul.f32 %v6529, %v923
      %v6647 = vmul.f32 %v6529, %v751
      %v6648 = vmul.f32 %v6529, %v955
      %v6649 = vmul.f32 %v6533, %v924
      %v6650 = vmul.f32 %v6533, %v754
      %v6651 = vmul.f32 %v6533, %v956
      %v6652 = vmul.f32 %v6537, %v925
      %v6653 = vmul.f32 %v6537, %v757
      %v6654 = vmul.f32 %v6537, %v957
      %v6655 = vmul.f32 %v6541, %v926
      %v6656 = vmul.f32 %v6541, %v760
      %v6657 = vmul.f32 %v6541, %v958
      %v6658 = vmul.f32 %v6545, %v927
      %v6659 = vmul.f32 %v6545, %v763
      %v6660 = vmul.f32 %v6545, %v959
      %v6661 = vmul.f32 %v6549, %v928
      %v6662 = vmul.f32 %v6549, %v766
      %v6663 = vmul.f32 %v6549, %v960
      %v6664 = vmul.f32 %v6553, %v929
      %v6665 = vmul.f32 %v6553, %v769
      %v6666 = vmul.f32 %v6553, %v961
      %v6667 = vmul.f32 %v6557, %v930
      %v6668 = vmul.f32 %v6557, %v772
      %v6669 = vmul.f32 %v6557, %v962
      %v6670 = vmul.f32 %v6561, %v931
      %v6671 = vmul.f32 %v6561, %v775
      %v6672 = vmul.f32 %v6561, %v963
      %v6673 = vmul.f32 %v6565, %v932
      %v6674 = vmul.f32 %v6565, %v778
      %v6675 = vmul.f32 %v6565, %v964
      %v6676 = vmul.f32 %v6569, %v933
      %v6677 = vmul.f32 %v6569, %v781
      %v6678 = vmul.f32 %v6569, %v965
      %v6679 = vmul.f32 %v6573, %v934
      %v6680 = vmul.f32 %v6573, %v784
      %v6681 = vmul.f32 %v6573, %v966
      %v6682 = vmul.f32 %v6577, %v935
      %v6683 = vmul.f32 %v6577, %v787
      %v6684 = vmul.f32 %v6577, %v967
      %v6685 = vmul.f32 %v6581, %v936
      %v6686 = vmul.f32 %v6581, %v790
      %v6687 = vmul.f32 %v6581, %v968
      %v6688 = vmul.f32 %v6585, %v937
      %v6689 = vmul.f32 %v6585, %v793
      %v6690 = vmul.f32 %v6585, %v969
      %v6691 = vmul.f32 %v6589, %v938
      %v6692 = vmul.f32 %v6589, %v796
      %v6693 = vmul.f32 %v6589, %v970
      %v6694 = vmul.f32 %v6593, %v939
      %v6695 = vmul.f32 %v6593, %v799
      %v6696 = vmul.f32 %v6593, %v971
      %v6697 = vmul.f32 %v6597, %v940
      %v6698 = vmul.f32 %v6597, %v802
      %v6699 = vmul.f32 %v6597, %v972
      %v6700 = vmul.f32 %v6601, %v941
      %v6701 = vmul.f32 %v6601, %v805
      %v6702 = vmul.f32 %v6601, %v973
      %v6703 = vmul.f32 %v6605, %v942
      %v6704 = vmul.f32 %v6605, %v808
      %v6705 = vmul.f32 %v6605, %v974
      %v6706 = vmul.f32 %v6609, %v943
      %v6707 = vmul.f32 %v6609, %v811
      %v6708 = vmul.f32 %v6609, %v975
      %v6709 = vmul.f32 %v6613, %v944
      %v6710 = vmul.f32 %v6613, %v814
      %v6711 = vmul.f32 %v6613, %v976
      %v6712 = vmul.f32 %v6617, %v945
      %v6713 = vmul.f32 %v6617, %v817
      %v6714 = vmul.f32 %v6617, %v977
      %v6811 = vrot.slane %v6619, 4
      %v6812 = vrot.slane %v6620, 4
      %v6813 = vsel %vm6009, %v6811, %v6812
      %v6814 = vrot.slane %v6621, 4
      %v6815 = vsel %vm6009, %v6812, %v6814
      %v6816 = vrot.slane %v6622, 4
      %v6817 = vrot.slane %v6623, 4
      %v6818 = vsel %vm6009, %v6816, %v6817
      %v6819 = vrot.slane %v6624, 4
      %v6820 = vsel %vm6009, %v6817, %v6819
      %v6821 = vrot.slane %v6625, 4
      %v6822 = vrot.slane %v6626, 4
      %v6823 = vsel %vm6009, %v6821, %v6822
      %v6824 = vrot.slane %v6627, 4
      %v6825 = vsel %vm6009, %v6822, %v6824
      %v6826 = vrot.slane %v6628, 4
      %v6827 = vrot.slane %v6629, 4
      %v6828 = vsel %vm6009, %v6826, %v6827
      %v6829 = vrot.slane %v6630, 4
      %v6830 = vsel %vm6009, %v6827, %v6829
      %v6831 = vrot.slane %v6631, 4
      %v6832 = vrot.slane %v6632, 4
      %v6833 = vsel %vm6009, %v6831, %v6832
      %v6834 = vrot.slane %v6633, 4
      %v6835 = vsel %vm6009, %v6832, %v6834
      %v6836 = vrot.slane %v6634, 4
      %v6837 = vrot.slane %v6635, 4
      %v6838 = vsel %vm6009, %v6836, %v6837
      %v6839 = vrot.slane %v6636, 4
      %v6840 = vsel %vm6009, %v6837, %v6839
      %v6841 = vrot.slane %v6637, 4
      %v6842 = vrot.slane %v6638, 4
      %v6843 = vsel %vm6009, %v6841, %v6842
      %v6844 = vrot.slane %v6639, 4
      %v6845 = vsel %vm6009, %v6842, %v6844
      %v6846 = vrot.slane %v6640, 4
      %v6847 = vrot.slane %v6641, 4
      %v6848 = vsel %vm6009, %v6846, %v6847
      %v6849 = vrot.slane %v6642, 4
      %v6850 = vsel %vm6009, %v6847, %v6849
      %v6851 = vrot.slane %v6643, 4
      %v6852 = vrot.slane %v6644, 4
      %v6853 = vsel %vm6009, %v6851, %v6852
      %v6854 = vrot.slane %v6645, 4
      %v6855 = vsel %vm6009, %v6852, %v6854
      %v6856 = vrot.slane %v6646, 4
      %v6857 = vrot.slane %v6647, 4
      %v6858 = vsel %vm6009, %v6856, %v6857
      %v6859 = vrot.slane %v6648, 4
      %v6860 = vsel %vm6009, %v6857, %v6859
      %v6861 = vrot.slane %v6649, 4
      %v6862 = vrot.slane %v6650, 4
      %v6863 = vsel %vm6009, %v6861, %v6862
      %v6864 = vrot.slane %v6651, 4
      %v6865 = vsel %vm6009, %v6862, %v6864
      %v6866 = vrot.slane %v6652, 4
      %v6867 = vrot.slane %v6653, 4
      %v6868 = vsel %vm6009, %v6866, %v6867
      %v6869 = vrot.slane %v6654, 4
      %v6870 = vsel %vm6009, %v6867, %v6869
      %v6871 = vrot.slane %v6655, 4
      %v6872 = vrot.slane %v6656, 4
      %v6873 = vsel %vm6009, %v6871, %v6872
      %v6874 = vrot.slane %v6657, 4
      %v6875 = vsel %vm6009, %v6872, %v6874
      %v6876 = vrot.slane %v6658, 4
      %v6877 = vrot.slane %v6659, 4
      %v6878 = vsel %vm6009, %v6876, %v6877
      %v6879 = vrot.slane %v6660, 4
      %v6880 = vsel %vm6009, %v6877, %v6879
      %v6881 = vrot.slane %v6661, 4
      %v6882 = vrot.slane %v6662, 4
      %v6883 = vsel %vm6009, %v6881, %v6882
      %v6884 = vrot.slane %v6663, 4
      %v6885 = vsel %vm6009, %v6882, %v6884
      %v6886 = vrot.slane %v6664, 4
      %v6887 = vrot.slane %v6665, 4
      %v6888 = vsel %vm6009, %v6886, %v6887
      %v6889 = vrot.slane %v6666, 4
      %v6890 = vsel %vm6009, %v6887, %v6889
      %v6891 = vrot.slane %v6667, 4
      %v6892 = vrot.slane %v6668, 4
      %v6893 = vsel %vm6009, %v6891, %v6892
      %v6894 = vrot.slane %v6669, 4
      %v6895 = vsel %vm6009, %v6892, %v6894
      %v6896 = vrot.slane %v6670, 4
      %v6897 = vrot.slane %v6671, 4
      %v6898 = vsel %vm6009, %v6896, %v6897
      %v6899 = vrot.slane %v6672, 4
      %v6900 = vsel %vm6009, %v6897, %v6899
      %v6901 = vrot.slane %v6673, 4
      %v6902 = vrot.slane %v6674, 4
      %v6903 = vsel %vm6009, %v6901, %v6902
      %v6904 = vrot.slane %v6675, 4
      %v6905 = vsel %vm6009, %v6902, %v6904
      %v6906 = vrot.slane %v6676, 4
      %v6907 = vrot.slane %v6677, 4
      %v6908 = vsel %vm6009, %v6906, %v6907
      %v6909 = vrot.slane %v6678, 4
      %v6910 = vsel %vm6009, %v6907, %v6909
      %v6911 = vrot.slane %v6679, 4
      %v6912 = vrot.slane %v6680, 4
      %v6913 = vsel %vm6009, %v6911, %v6912
      %v6914 = vrot.slane %v6681, 4
      %v6915 = vsel %vm6009, %v6912, %v6914
      %v6916 = vrot.slane %v6682, 4
      %v6917 = vrot.slane %v6683, 4
      %v6918 = vsel %vm6009, %v6916, %v6917
      %v6919 = vrot.slane %v6684, 4
      %v6920 = vsel %vm6009, %v6917, %v6919
      %v6921 = vrot.slane %v6685, 4
      %v6922 = vrot.slane %v6686, 4
      %v6923 = vsel %vm6009, %v6921, %v6922
      %v6924 = vrot.slane %v6687, 4
      %v6925 = vsel %vm6009, %v6922, %v6924
      %v6926 = vrot.slane %v6688, 4
      %v6927 = vrot.slane %v6689, 4
      %v6928 = vsel %vm6009, %v6926, %v6927
      %v6929 = vrot.slane %v6690, 4
      %v6930 = vsel %vm6009, %v6927, %v6929
      %v6931 = vrot.slane %v6691, 4
      %v6932 = vrot.slane %v6692, 4
      %v6933 = vsel %vm6009, %v6931, %v6932
      %v6934 = vrot.slane %v6693, 4
      %v6935 = vsel %vm6009, %v6932, %v6934
      %v6936 = vrot.slane %v6694, 4
      %v6937 = vrot.slane %v6695, 4
      %v6938 = vsel %vm6009, %v6936, %v6937
      %v6939 = vrot.slane %v6696, 4
      %v6940 = vsel %vm6009, %v6937, %v6939
      %v6941 = vrot.slane %v6697, 4
      %v6942 = vrot.slane %v6698, 4
      %v6943 = vsel %vm6009, %v6941, %v6942
      %v6944 = vrot.slane %v6699, 4
      %v6945 = vsel %vm6009, %v6942, %v6944
      %v6946 = vrot.slane %v6700, 4
      %v6947 = vrot.slane %v6701, 4
      %v6948 = vsel %vm6009, %v6946, %v6947
      %v6949 = vrot.slane %v6702, 4
      %v6950 = vsel %vm6009, %v6947, %v6949
      %v6951 = vrot.slane %v6703, 4
      %v6952 = vrot.slane %v6704, 4
      %v6953 = vsel %vm6009, %v6951, %v6952
      %v6954 = vrot.slane %v6705, 4
      %v6955 = vsel %vm6009, %v6952, %v6954
      %v6956 = vrot.slane %v6706, 4
      %v6957 = vrot.slane %v6707, 4
      %v6958 = vsel %vm6009, %v6956, %v6957
      %v6959 = vrot.slane %v6708, 4
      %v6960 = vsel %vm6009, %v6957, %v6959
      %v6961 = vrot.slane %v6709, 4
      %v6962 = vrot.slane %v6710, 4
      %v6963 = vsel %vm6009, %v6961, %v6962
      %v6964 = vrot.slane %v6711, 4
      %v6965 = vsel %vm6009, %v6962, %v6964
      %v6966 = vrot.slane %v6712, 4
      %v6967 = vrot.slane %v6713, 4
      %v6968 = vsel %vm6009, %v6966, %v6967
      %v6969 = vrot.slane %v6714, 4
      %v6970 = vsel %vm6009, %v6967, %v6969
      %6971 = vrot.lane.b32.xlu0 %v6813, 126
      %v6972 = vpop.permute.xlu0 %6971
      %6973 = vrot.lane.b32.xlu0 %v6815, 126
      %v6974 = vpop.permute.xlu0 %6973
      %6975 = vrot.lane.b32.xlu0 %v6818, 126
      %v6976 = vpop.permute.xlu0 %6975
      %6977 = vrot.lane.b32.xlu0 %v6820, 126
      %v6978 = vpop.permute.xlu0 %6977
      %6979 = vrot.lane.b32.xlu0 %v6823, 126
      %v6980 = vpop.permute.xlu0 %6979
      %6981 = vrot.lane.b32.xlu0 %v6825, 126
      %v6982 = vpop.permute.xlu0 %6981
      %6983 = vrot.lane.b32.xlu0 %v6828, 126
      %v6984 = vpop.permute.xlu0 %6983
      %6985 = vrot.lane.b32.xlu0 %v6830, 126
      %v6986 = vpop.permute.xlu0 %6985
      %6987 = vrot.lane.b32.xlu0 %v6833, 126
      %v6988 = vpop.permute.xlu0 %6987
      %6989 = vrot.lane.b32.xlu0 %v6835, 126
      %v6990 = vpop.permute.xlu0 %6989
      %6991 = vrot.lane.b32.xlu0 %v6838, 126
      %v6992 = vpop.permute.xlu0 %6991
      %6993 = vrot.lane.b32.xlu0 %v6840, 126
      %v6994 = vpop.permute.xlu0 %6993
      %6995 = vrot.lane.b32.xlu0 %v6843, 126
      %v6996 = vpop.permute.xlu0 %6995
      %6997 = vrot.lane.b32.xlu0 %v6845, 126
      %v6998 = vpop.permute.xlu0 %6997
      %6999 = vrot.lane.b32.xlu0 %v6848, 126
      %v7000 = vpop.permute.xlu0 %6999
      %7001 = vrot.lane.b32.xlu0 %v6850, 126
      %v7002 = vpop.permute.xlu0 %7001
      %7003 = vrot.lane.b32.xlu0 %v6853, 126
      %v7004 = vpop.permute.xlu0 %7003
      %7005 = vrot.lane.b32.xlu0 %v6855, 126
      %v7006 = vpop.permute.xlu0 %7005
      %7007 = vrot.lane.b32.xlu0 %v6858, 126
      %v7008 = vpop.permute.xlu0 %7007
      %7009 = vrot.lane.b32.xlu0 %v6860, 126
      %v7010 = vpop.permute.xlu0 %7009
      %7011 = vrot.lane.b32.xlu0 %v6863, 126
      %v7012 = vpop.permute.xlu0 %7011
      %7013 = vrot.lane.b32.xlu0 %v6865, 126
      %v7014 = vpop.permute.xlu0 %7013
      %7015 = vrot.lane.b32.xlu0 %v6868, 126
      %v7016 = vpop.permute.xlu0 %7015
      %7017 = vrot.lane.b32.xlu0 %v6870, 126
      %v7018 = vpop.permute.xlu0 %7017
      %7019 = vrot.lane.b32.xlu0 %v6873, 126
      %v7020 = vpop.permute.xlu0 %7019
      %7021 = vrot.lane.b32.xlu0 %v6875, 126
      %v7022 = vpop.permute.xlu0 %7021
      %7023 = vrot.lane.b32.xlu0 %v6878, 126
      %v7024 = vpop.permute.xlu0 %7023
      %7025 = vrot.lane.b32.xlu0 %v6880, 126
      %v7026 = vpop.permute.xlu0 %7025
      %7027 = vrot.lane.b32.xlu0 %v6883, 126
      %v7028 = vpop.permute.xlu0 %7027
      %7029 = vrot.lane.b32.xlu0 %v6885, 126
      %v7030 = vpop.permute.xlu0 %7029
      %7031 = vrot.lane.b32.xlu0 %v6888, 126
      %v7032 = vpop.permute.xlu0 %7031
      %7033 = vrot.lane.b32.xlu0 %v6890, 126
      %v7034 = vpop.permute.xlu0 %7033
      %7035 = vrot.lane.b32.xlu0 %v6893, 126
      %v7036 = vpop.permute.xlu0 %7035
      %7037 = vrot.lane.b32.xlu0 %v6895, 126
      %v7038 = vpop.permute.xlu0 %7037
      %7039 = vrot.lane.b32.xlu0 %v6898, 126
      %v7040 = vpop.permute.xlu0 %7039
      %7041 = vrot.lane.b32.xlu0 %v6900, 126
      %v7042 = vpop.permute.xlu0 %7041
      %7043 = vrot.lane.b32.xlu0 %v6903, 126
      %v7044 = vpop.permute.xlu0 %7043
      %7045 = vrot.lane.b32.xlu0 %v6905, 126
      %v7046 = vpop.permute.xlu0 %7045
      %7047 = vrot.lane.b32.xlu0 %v6908, 126
      %v7048 = vpop.permute.xlu0 %7047
      %7049 = vrot.lane.b32.xlu0 %v6910, 126
      %v7050 = vpop.permute.xlu0 %7049
      %7051 = vrot.lane.b32.xlu0 %v6913, 126
      %v7052 = vpop.permute.xlu0 %7051
      %7053 = vrot.lane.b32.xlu0 %v6915, 126
      %v7054 = vpop.permute.xlu0 %7053
      %7055 = vrot.lane.b32.xlu0 %v6918, 126
      %v7056 = vpop.permute.xlu0 %7055
      %7057 = vrot.lane.b32.xlu0 %v6920, 126
      %v7058 = vpop.permute.xlu0 %7057
      %7059 = vrot.lane.b32.xlu0 %v6923, 126
      %v7060 = vpop.permute.xlu0 %7059
      %7061 = vrot.lane.b32.xlu0 %v6925, 126
      %v7062 = vpop.permute.xlu0 %7061
      %7063 = vrot.lane.b32.xlu0 %v6928, 126
      %v7064 = vpop.permute.xlu0 %7063
      %7065 = vrot.lane.b32.xlu0 %v6930, 126
      %v7066 = vpop.permute.xlu0 %7065
      %7067 = vrot.lane.b32.xlu0 %v6933, 126
      %v7068 = vpop.permute.xlu0 %7067
      %7069 = vrot.lane.b32.xlu0 %v6935, 126
      %v7070 = vpop.permute.xlu0 %7069
      %7071 = vrot.lane.b32.xlu0 %v6938, 126
      %v7072 = vpop.permute.xlu0 %7071
      %7073 = vrot.lane.b32.xlu0 %v6940, 126
      %v7074 = vpop.permute.xlu0 %7073
      %7075 = vrot.lane.b32.xlu0 %v6943, 126
      %v7076 = vpop.permute.xlu0 %7075
      %7077 = vrot.lane.b32.xlu0 %v6945, 126
      %v7078 = vpop.permute.xlu0 %7077
      %7079 = vrot.lane.b32.xlu0 %v6948, 126
      %v7080 = vpop.permute.xlu0 %7079
      %7081 = vrot.lane.b32.xlu0 %v6950, 126
      %v7082 = vpop.permute.xlu0 %7081
      %7083 = vrot.lane.b32.xlu0 %v6953, 126
      %v7084 = vpop.permute.xlu0 %7083
      %7085 = vrot.lane.b32.xlu0 %v6955, 126
      %v7086 = vpop.permute.xlu0 %7085
      %7087 = vrot.lane.b32.xlu0 %v6958, 126
      %v7088 = vpop.permute.xlu0 %7087
      %7089 = vrot.lane.b32.xlu0 %v6960, 126
      %v7090 = vpop.permute.xlu0 %7089
      %7091 = vrot.lane.b32.xlu0 %v6963, 126
      %v7092 = vpop.permute.xlu0 %7091
      %7093 = vrot.lane.b32.xlu0 %v6965, 126
      %v7094 = vpop.permute.xlu0 %7093
      %7095 = vrot.lane.b32.xlu0 %v6968, 126
      %v7096 = vpop.permute.xlu0 %7095
      %7097 = vrot.lane.b32.xlu0 %v6970, 126
      %v7098 = vpop.permute.xlu0 %7097
      %v7163 = vadd.f32 %v6234, %v6972
      %v7164 = vadd.f32 %v6235, %v6974
      %v7165 = vadd.f32 %v6236, %v6976
      %v7166 = vadd.f32 %v6237, %v6978
      %v7167 = vadd.f32 %v6238, %v6980
      %v7168 = vadd.f32 %v6239, %v6982
      %v7169 = vadd.f32 %v6240, %v6984
      %v7170 = vadd.f32 %v6241, %v6986
      %v7171 = vadd.f32 %v6242, %v6988
      %v7172 = vadd.f32 %v6243, %v6990
      %v7173 = vadd.f32 %v6244, %v6992
      %v7174 = vadd.f32 %v6245, %v6994
      %v7175 = vadd.f32 %v6246, %v6996
      %v7176 = vadd.f32 %v6247, %v6998
      %v7177 = vadd.f32 %v6248, %v7000
      %v7178 = vadd.f32 %v6249, %v7002
      %v7179 = vadd.f32 %v6250, %v7004
      %v7180 = vadd.f32 %v6251, %v7006
      %v7181 = vadd.f32 %v6252, %v7008
      %v7182 = vadd.f32 %v6253, %v7010
      %v7183 = vadd.f32 %v6254, %v7012
      %v7184 = vadd.f32 %v6255, %v7014
      %v7185 = vadd.f32 %v6256, %v7016
      %v7186 = vadd.f32 %v6257, %v7018
      %v7187 = vadd.f32 %v6258, %v7020
      %v7188 = vadd.f32 %v6259, %v7022
      %v7189 = vadd.f32 %v6260, %v7024
      %v7190 = vadd.f32 %v6261, %v7026
      %v7191 = vadd.f32 %v6262, %v7028
      %v7192 = vadd.f32 %v6263, %v7030
      %v7193 = vadd.f32 %v6264, %v7032
      %v7194 = vadd.f32 %v6265, %v7034
      %v7195 = vadd.f32 %v6266, %v7036
      %v7196 = vadd.f32 %v6267, %v7038
      %v7197 = vadd.f32 %v6268, %v7040
      %v7198 = vadd.f32 %v6269, %v7042
      %v7199 = vadd.f32 %v6270, %v7044
      %v7200 = vadd.f32 %v6271, %v7046
      %v7201 = vadd.f32 %v6272, %v7048
      %v7202 = vadd.f32 %v6273, %v7050
      %v7203 = vadd.f32 %v6274, %v7052
      %v7204 = vadd.f32 %v6275, %v7054
      %v7205 = vadd.f32 %v6276, %v7056
      %v7206 = vadd.f32 %v6277, %v7058
      %v7207 = vadd.f32 %v6278, %v7060
      %v7208 = vadd.f32 %v6279, %v7062
      %v7209 = vadd.f32 %v6280, %v7064
      %v7210 = vadd.f32 %v6281, %v7066
      %v7211 = vadd.f32 %v6282, %v7068
      %v7212 = vadd.f32 %v6283, %v7070
      %v7213 = vadd.f32 %v6284, %v7072
      %v7214 = vadd.f32 %v6285, %v7074
      %v7215 = vadd.f32 %v6286, %v7076
      %v7216 = vadd.f32 %v6287, %v7078
      %v7217 = vadd.f32 %v6288, %v7080
      %v7218 = vadd.f32 %v6289, %v7082
      %v7219 = vadd.f32 %v6290, %v7084
      %v7220 = vadd.f32 %v6291, %v7086
      %v7221 = vadd.f32 %v6292, %v7088
      %v7222 = vadd.f32 %v6293, %v7090
      %v7223 = vadd.f32 %v6294, %v7092
      %v7224 = vadd.f32 %v6295, %v7094
      %v7225 = vadd.f32 %v6296, %v7096
      %v7226 = vadd.f32 %v6297, %v7098
      %s7227 = scalar_lea.vmem %s183, 256
      %v7228 = vld [vmem:[%s7227] sm:$0x1]
      %v7229 = vld [vmem:[%s7227 + $0x1] sm:$0x1]
      %v7230 = vld [vmem:[%s7227 + $0x2] sm:$0x1]
      %v7231 = vld [vmem:[%s7227 + $0x3] sm:$0x1]
      %v7232 = vld [vmem:[%s7227 + $0x4] sm:$0x1]
      %v7233 = vld [vmem:[%s7227 + $0x5] sm:$0x1]
      %v7234 = vld [vmem:[%s7227 + $0x6] sm:$0x1]
      %v7235 = vld [vmem:[%s7227 + $0x7] sm:$0x1]
      %v7236 = vld [vmem:[%s7227 + $0x8] sm:$0x1]
      %v7237 = vld [vmem:[%s7227 + $0x9] sm:$0x1]
      %v7238 = vld [vmem:[%s7227 + $0xa] sm:$0x1]
      %v7239 = vld [vmem:[%s7227 + $0xb] sm:$0x1]
      %v7240 = vld [vmem:[%s7227 + $0xc] sm:$0x1]
      %v7241 = vld [vmem:[%s7227 + $0xd] sm:$0x1]
      %v7242 = vld [vmem:[%s7227 + $0xe] sm:$0x1]
      %v7243 = vld [vmem:[%s7227 + $0xf] sm:$0x1]
      %v7244 = vld [vmem:[%s7227 + $0x10] sm:$0x1]
      %v7245 = vld [vmem:[%s7227 + $0x11] sm:$0x1]
      %v7246 = vld [vmem:[%s7227 + $0x12] sm:$0x1]
      %v7247 = vld [vmem:[%s7227 + $0x13] sm:$0x1]
      %v7248 = vld [vmem:[%s7227 + $0x14] sm:$0x1]
      %v7249 = vld [vmem:[%s7227 + $0x15] sm:$0x1]
      %v7250 = vld [vmem:[%s7227 + $0x16] sm:$0x1]
      %v7251 = vld [vmem:[%s7227 + $0x17] sm:$0x1]
      %v7252 = vld [vmem:[%s7227 + $0x18] sm:$0x1]
      %v7253 = vld [vmem:[%s7227 + $0x19] sm:$0x1]
      %v7254 = vld [vmem:[%s7227 + $0x1a] sm:$0x1]
      %v7255 = vld [vmem:[%s7227 + $0x1b] sm:$0x1]
      %v7256 = vld [vmem:[%s7227 + $0x1c] sm:$0x1]
      %v7257 = vld [vmem:[%s7227 + $0x1d] sm:$0x1]
      %v7258 = vld [vmem:[%s7227 + $0x1e] sm:$0x1]
      %v7259 = vld [vmem:[%s7227 + $0x1f] sm:$0x1]
      %v7292 = vlaneseq
      %v7293 = vshrl.u32 %v7292, 7
      %v7294 = vsub.s32 0, %v7293
      %v7295 = vrot.slane %v7228, %v7294
      %v7296 = vlaneseq
      %v7297 = vshrl.u32 %v7296, 7
      %v7298 = vsub.s32 0, %v7297
      %v7299 = vrot.slane %v7229, %v7298
      %v7300 = vlaneseq
      %v7301 = vshrl.u32 %v7300, 7
      %v7302 = vsub.s32 0, %v7301
      %v7303 = vrot.slane %v7230, %v7302
      %v7304 = vlaneseq
      %v7305 = vshrl.u32 %v7304, 7
      %v7306 = vsub.s32 0, %v7305
      %v7307 = vrot.slane %v7231, %v7306
      %v7308 = vlaneseq
      %v7309 = vshrl.u32 %v7308, 7
      %v7310 = vsub.s32 0, %v7309
      %v7311 = vrot.slane %v7232, %v7310
      %v7312 = vlaneseq
      %v7313 = vshrl.u32 %v7312, 7
      %v7314 = vsub.s32 0, %v7313
      %v7315 = vrot.slane %v7233, %v7314
      %v7316 = vlaneseq
      %v7317 = vshrl.u32 %v7316, 7
      %v7318 = vsub.s32 0, %v7317
      %v7319 = vrot.slane %v7234, %v7318
      %v7320 = vlaneseq
      %v7321 = vshrl.u32 %v7320, 7
      %v7322 = vsub.s32 0, %v7321
      %v7323 = vrot.slane %v7235, %v7322
      %v7324 = vlaneseq
      %v7325 = vshrl.u32 %v7324, 7
      %v7326 = vsub.s32 0, %v7325
      %v7327 = vrot.slane %v7236, %v7326
      %v7328 = vlaneseq
      %v7329 = vshrl.u32 %v7328, 7
      %v7330 = vsub.s32 0, %v7329
      %v7331 = vrot.slane %v7237, %v7330
      %v7332 = vlaneseq
      %v7333 = vshrl.u32 %v7332, 7
      %v7334 = vsub.s32 0, %v7333
      %v7335 = vrot.slane %v7238, %v7334
      %v7336 = vlaneseq
      %v7337 = vshrl.u32 %v7336, 7
      %v7338 = vsub.s32 0, %v7337
      %v7339 = vrot.slane %v7239, %v7338
      %v7340 = vlaneseq
      %v7341 = vshrl.u32 %v7340, 7
      %v7342 = vsub.s32 0, %v7341
      %v7343 = vrot.slane %v7240, %v7342
      %v7344 = vlaneseq
      %v7345 = vshrl.u32 %v7344, 7
      %v7346 = vsub.s32 0, %v7345
      %v7347 = vrot.slane %v7241, %v7346
      %v7348 = vlaneseq
      %v7349 = vshrl.u32 %v7348, 7
      %v7350 = vsub.s32 0, %v7349
      %v7351 = vrot.slane %v7242, %v7350
      %v7352 = vlaneseq
      %v7353 = vshrl.u32 %v7352, 7
      %v7354 = vsub.s32 0, %v7353
      %v7355 = vrot.slane %v7243, %v7354
      %v7356 = vlaneseq
      %v7357 = vshrl.u32 %v7356, 7
      %v7358 = vsub.s32 0, %v7357
      %v7359 = vrot.slane %v7244, %v7358
      %v7360 = vlaneseq
      %v7361 = vshrl.u32 %v7360, 7
      %v7362 = vsub.s32 0, %v7361
      %v7363 = vrot.slane %v7245, %v7362
      %v7364 = vlaneseq
      %v7365 = vshrl.u32 %v7364, 7
      %v7366 = vsub.s32 0, %v7365
      %v7367 = vrot.slane %v7246, %v7366
      %v7368 = vlaneseq
      %v7369 = vshrl.u32 %v7368, 7
      %v7370 = vsub.s32 0, %v7369
      %v7371 = vrot.slane %v7247, %v7370
      %v7372 = vlaneseq
      %v7373 = vshrl.u32 %v7372, 7
      %v7374 = vsub.s32 0, %v7373
      %v7375 = vrot.slane %v7248, %v7374
      %v7376 = vlaneseq
      %v7377 = vshrl.u32 %v7376, 7
      %v7378 = vsub.s32 0, %v7377
      %v7379 = vrot.slane %v7249, %v7378
      %v7380 = vlaneseq
      %v7381 = vshrl.u32 %v7380, 7
      %v7382 = vsub.s32 0, %v7381
      %v7383 = vrot.slane %v7250, %v7382
      %v7384 = vlaneseq
      %v7385 = vshrl.u32 %v7384, 7
      %v7386 = vsub.s32 0, %v7385
      %v7387 = vrot.slane %v7251, %v7386
      %v7388 = vlaneseq
      %v7389 = vshrl.u32 %v7388, 7
      %v7390 = vsub.s32 0, %v7389
      %v7391 = vrot.slane %v7252, %v7390
      %v7392 = vlaneseq
      %v7393 = vshrl.u32 %v7392, 7
      %v7394 = vsub.s32 0, %v7393
      %v7395 = vrot.slane %v7253, %v7394
      %v7396 = vlaneseq
      %v7397 = vshrl.u32 %v7396, 7
      %v7398 = vsub.s32 0, %v7397
      %v7399 = vrot.slane %v7254, %v7398
      %v7400 = vlaneseq
      %v7401 = vshrl.u32 %v7400, 7
      %v7402 = vsub.s32 0, %v7401
      %v7403 = vrot.slane %v7255, %v7402
      %v7404 = vlaneseq
      %v7405 = vshrl.u32 %v7404, 7
      %v7406 = vsub.s32 0, %v7405
      %v7407 = vrot.slane %v7256, %v7406
      %v7408 = vlaneseq
      %v7409 = vshrl.u32 %v7408, 7
      %v7410 = vsub.s32 0, %v7409
      %v7411 = vrot.slane %v7257, %v7410
      %v7412 = vlaneseq
      %v7413 = vshrl.u32 %v7412, 7
      %v7414 = vsub.s32 0, %v7413
      %v7415 = vrot.slane %v7258, %v7414
      %v7416 = vlaneseq
      %v7417 = vshrl.u32 %v7416, 7
      %v7418 = vsub.s32 0, %v7417
      %v7419 = vrot.slane %v7259, %v7418
      %7420 = vset.pattern.permute.xlu0 0
      %7421 = vperm.xlu0 %7420, %v7295
      %v7422 = vpop.permute.xlu0 %7421
      %7424 = vset.pattern.permute.xlu0 0
      %7425 = vperm.xlu0 %7424, %v7299
      %v7426 = vpop.permute.xlu0 %7425
      %7428 = vset.pattern.permute.xlu0 0
      %7429 = vperm.xlu0 %7428, %v7303
      %v7430 = vpop.permute.xlu0 %7429
      %7432 = vset.pattern.permute.xlu0 0
      %7433 = vperm.xlu0 %7432, %v7307
      %v7434 = vpop.permute.xlu0 %7433
      %7436 = vset.pattern.permute.xlu0 0
      %7437 = vperm.xlu0 %7436, %v7311
      %v7438 = vpop.permute.xlu0 %7437
      %7440 = vset.pattern.permute.xlu0 0
      %7441 = vperm.xlu0 %7440, %v7315
      %v7442 = vpop.permute.xlu0 %7441
      %7444 = vset.pattern.permute.xlu0 0
      %7445 = vperm.xlu0 %7444, %v7319
      %v7446 = vpop.permute.xlu0 %7445
      %7448 = vset.pattern.permute.xlu0 0
      %7449 = vperm.xlu0 %7448, %v7323
      %v7450 = vpop.permute.xlu0 %7449
      %7452 = vset.pattern.permute.xlu0 0
      %7453 = vperm.xlu0 %7452, %v7327
      %v7454 = vpop.permute.xlu0 %7453
      %7456 = vset.pattern.permute.xlu0 0
      %7457 = vperm.xlu0 %7456, %v7331
      %v7458 = vpop.permute.xlu0 %7457
      %7460 = vset.pattern.permute.xlu0 0
      %7461 = vperm.xlu0 %7460, %v7335
      %v7462 = vpop.permute.xlu0 %7461
      %7464 = vset.pattern.permute.xlu0 0
      %7465 = vperm.xlu0 %7464, %v7339
      %v7466 = vpop.permute.xlu0 %7465
      %7468 = vset.pattern.permute.xlu0 0
      %7469 = vperm.xlu0 %7468, %v7343
      %v7470 = vpop.permute.xlu0 %7469
      %7472 = vset.pattern.permute.xlu0 0
      %7473 = vperm.xlu0 %7472, %v7347
      %v7474 = vpop.permute.xlu0 %7473
      %7476 = vset.pattern.permute.xlu0 0
      %7477 = vperm.xlu0 %7476, %v7351
      %v7478 = vpop.permute.xlu0 %7477
      %7480 = vset.pattern.permute.xlu0 0
      %7481 = vperm.xlu0 %7480, %v7355
      %v7482 = vpop.permute.xlu0 %7481
      %7484 = vset.pattern.permute.xlu0 0
      %7485 = vperm.xlu0 %7484, %v7359
      %v7486 = vpop.permute.xlu0 %7485
      %7488 = vset.pattern.permute.xlu0 0
      %7489 = vperm.xlu0 %7488, %v7363
      %v7490 = vpop.permute.xlu0 %7489
      %7492 = vset.pattern.permute.xlu0 0
      %7493 = vperm.xlu0 %7492, %v7367
      %v7494 = vpop.permute.xlu0 %7493
      %7496 = vset.pattern.permute.xlu0 0
      %7497 = vperm.xlu0 %7496, %v7371
      %v7498 = vpop.permute.xlu0 %7497
      %7500 = vset.pattern.permute.xlu0 0
      %7501 = vperm.xlu0 %7500, %v7375
      %v7502 = vpop.permute.xlu0 %7501
      %7504 = vset.pattern.permute.xlu0 0
      %7505 = vperm.xlu0 %7504, %v7379
      %v7506 = vpop.permute.xlu0 %7505
      %7508 = vset.pattern.permute.xlu0 0
      %7509 = vperm.xlu0 %7508, %v7383
      %v7510 = vpop.permute.xlu0 %7509
      %7512 = vset.pattern.permute.xlu0 0
      %7513 = vperm.xlu0 %7512, %v7387
      %v7514 = vpop.permute.xlu0 %7513
      %7516 = vset.pattern.permute.xlu0 0
      %7517 = vperm.xlu0 %7516, %v7391
      %v7518 = vpop.permute.xlu0 %7517
      %7520 = vset.pattern.permute.xlu0 0
      %7521 = vperm.xlu0 %7520, %v7395
      %v7522 = vpop.permute.xlu0 %7521
      %7524 = vset.pattern.permute.xlu0 0
      %7525 = vperm.xlu0 %7524, %v7399
      %v7526 = vpop.permute.xlu0 %7525
      %7528 = vset.pattern.permute.xlu0 0
      %7529 = vperm.xlu0 %7528, %v7403
      %v7530 = vpop.permute.xlu0 %7529
      %7532 = vset.pattern.permute.xlu0 0
      %7533 = vperm.xlu0 %7532, %v7407
      %v7534 = vpop.permute.xlu0 %7533
      %7536 = vset.pattern.permute.xlu0 0
      %7537 = vperm.xlu0 %7536, %v7411
      %v7538 = vpop.permute.xlu0 %7537
      %7540 = vset.pattern.permute.xlu0 0
      %7541 = vperm.xlu0 %7540, %v7415
      %v7542 = vpop.permute.xlu0 %7541
      %7544 = vset.pattern.permute.xlu0 0
      %7545 = vperm.xlu0 %7544, %v7419
      %v7546 = vpop.permute.xlu0 %7545
      %v7548 = vmul.f32 %v7422, %v914
      %v7549 = vmul.f32 %v7422, %v724
      %v7550 = vmul.f32 %v7422, %v946
      %v7551 = vmul.f32 %v7426, %v915
      %v7552 = vmul.f32 %v7426, %v727
      %v7553 = vmul.f32 %v7426, %v947
      %v7554 = vmul.f32 %v7430, %v916
      %v7555 = vmul.f32 %v7430, %v730
      %v7556 = vmul.f32 %v7430, %v948
      %v7557 = vmul.f32 %v7434, %v917
      %v7558 = vmul.f32 %v7434, %v733
      %v7559 = vmul.f32 %v7434, %v949
      %v7560 = vmul.f32 %v7438, %v918
      %v7561 = vmul.f32 %v7438, %v736
      %v7562 = vmul.f32 %v7438, %v950
      %v7563 = vmul.f32 %v7442, %v919
      %v7564 = vmul.f32 %v7442, %v739
      %v7565 = vmul.f32 %v7442, %v951
      %v7566 = vmul.f32 %v7446, %v920
      %v7567 = vmul.f32 %v7446, %v742
      %v7568 = vmul.f32 %v7446, %v952
      %v7569 = vmul.f32 %v7450, %v921
      %v7570 = vmul.f32 %v7450, %v745
      %v7571 = vmul.f32 %v7450, %v953
      %v7572 = vmul.f32 %v7454, %v922
      %v7573 = vmul.f32 %v7454, %v748
      %v7574 = vmul.f32 %v7454, %v954
      %v7575 = vmul.f32 %v7458, %v923
      %v7576 = vmul.f32 %v7458, %v751
      %v7577 = vmul.f32 %v7458, %v955
      %v7578 = vmul.f32 %v7462, %v924
      %v7579 = vmul.f32 %v7462, %v754
      %v7580 = vmul.f32 %v7462, %v956
      %v7581 = vmul.f32 %v7466, %v925
      %v7582 = vmul.f32 %v7466, %v757
      %v7583 = vmul.f32 %v7466, %v957
      %v7584 = vmul.f32 %v7470, %v926
      %v7585 = vmul.f32 %v7470, %v760
      %v7586 = vmul.f32 %v7470, %v958
      %v7587 = vmul.f32 %v7474, %v927
      %v7588 = vmul.f32 %v7474, %v763
      %v7589 = vmul.f32 %v7474, %v959
      %v7590 = vmul.f32 %v7478, %v928
      %v7591 = vmul.f32 %v7478, %v766
      %v7592 = vmul.f32 %v7478, %v960
      %v7593 = vmul.f32 %v7482, %v929
      %v7594 = vmul.f32 %v7482, %v769
      %v7595 = vmul.f32 %v7482, %v961
      %v7596 = vmul.f32 %v7486, %v930
      %v7597 = vmul.f32 %v7486, %v772
      %v7598 = vmul.f32 %v7486, %v962
      %v7599 = vmul.f32 %v7490, %v931
      %v7600 = vmul.f32 %v7490, %v775
      %v7601 = vmul.f32 %v7490, %v963
      %v7602 = vmul.f32 %v7494, %v932
      %v7603 = vmul.f32 %v7494, %v778
      %v7604 = vmul.f32 %v7494, %v964
      %v7605 = vmul.f32 %v7498, %v933
      %v7606 = vmul.f32 %v7498, %v781
      %v7607 = vmul.f32 %v7498, %v965
      %v7608 = vmul.f32 %v7502, %v934
      %v7609 = vmul.f32 %v7502, %v784
      %v7610 = vmul.f32 %v7502, %v966
      %v7611 = vmul.f32 %v7506, %v935
      %v7612 = vmul.f32 %v7506, %v787
      %v7613 = vmul.f32 %v7506, %v967
      %v7614 = vmul.f32 %v7510, %v936
      %v7615 = vmul.f32 %v7510, %v790
      %v7616 = vmul.f32 %v7510, %v968
      %v7617 = vmul.f32 %v7514, %v937
      %v7618 = vmul.f32 %v7514, %v793
      %v7619 = vmul.f32 %v7514, %v969
      %v7620 = vmul.f32 %v7518, %v938
      %v7621 = vmul.f32 %v7518, %v796
      %v7622 = vmul.f32 %v7518, %v970
      %v7623 = vmul.f32 %v7522, %v939
      %v7624 = vmul.f32 %v7522, %v799
      %v7625 = vmul.f32 %v7522, %v971
      %v7626 = vmul.f32 %v7526, %v940
      %v7627 = vmul.f32 %v7526, %v802
      %v7628 = vmul.f32 %v7526, %v972
      %v7629 = vmul.f32 %v7530, %v941
      %v7630 = vmul.f32 %v7530, %v805
      %v7631 = vmul.f32 %v7530, %v973
      %v7632 = vmul.f32 %v7534, %v942
      %v7633 = vmul.f32 %v7534, %v808
      %v7634 = vmul.f32 %v7534, %v974
      %v7635 = vmul.f32 %v7538, %v943
      %v7636 = vmul.f32 %v7538, %v811
      %v7637 = vmul.f32 %v7538, %v975
      %v7638 = vmul.f32 %v7542, %v944
      %v7639 = vmul.f32 %v7542, %v814
      %v7640 = vmul.f32 %v7542, %v976
      %v7641 = vmul.f32 %v7546, %v945
      %v7642 = vmul.f32 %v7546, %v817
      %v7643 = vmul.f32 %v7546, %v977
      %v7740 = vrot.slane %v7548, 4
      %v7741 = vrot.slane %v7549, 4
      %v7742 = vsel %vm6009, %v7740, %v7741
      %v7743 = vrot.slane %v7550, 4
      %v7744 = vsel %vm6009, %v7741, %v7743
      %v7745 = vrot.slane %v7551, 4
      %v7746 = vrot.slane %v7552, 4
      %v7747 = vsel %vm6009, %v7745, %v7746
      %v7748 = vrot.slane %v7553, 4
      %v7749 = vsel %vm6009, %v7746, %v7748
      %v7750 = vrot.slane %v7554, 4
      %v7751 = vrot.slane %v7555, 4
      %v7752 = vsel %vm6009, %v7750, %v7751
      %v7753 = vrot.slane %v7556, 4
      %v7754 = vsel %vm6009, %v7751, %v7753
      %v7755 = vrot.slane %v7557, 4
      %v7756 = vrot.slane %v7558, 4
      %v7757 = vsel %vm6009, %v7755, %v7756
      %v7758 = vrot.slane %v7559, 4
      %v7759 = vsel %vm6009, %v7756, %v7758
      %v7760 = vrot.slane %v7560, 4
      %v7761 = vrot.slane %v7561, 4
      %v7762 = vsel %vm6009, %v7760, %v7761
      %v7763 = vrot.slane %v7562, 4
      %v7764 = vsel %vm6009, %v7761, %v7763
      %v7765 = vrot.slane %v7563, 4
      %v7766 = vrot.slane %v7564, 4
      %v7767 = vsel %vm6009, %v7765, %v7766
      %v7768 = vrot.slane %v7565, 4
      %v7769 = vsel %vm6009, %v7766, %v7768
      %v7770 = vrot.slane %v7566, 4
      %v7771 = vrot.slane %v7567, 4
      %v7772 = vsel %vm6009, %v7770, %v7771
      %v7773 = vrot.slane %v7568, 4
      %v7774 = vsel %vm6009, %v7771, %v7773
      %v7775 = vrot.slane %v7569, 4
      %v7776 = vrot.slane %v7570, 4
      %v7777 = vsel %vm6009, %v7775, %v7776
      %v7778 = vrot.slane %v7571, 4
      %v7779 = vsel %vm6009, %v7776, %v7778
      %v7780 = vrot.slane %v7572, 4
      %v7781 = vrot.slane %v7573, 4
      %v7782 = vsel %vm6009, %v7780, %v7781
      %v7783 = vrot.slane %v7574, 4
      %v7784 = vsel %vm6009, %v7781, %v7783
      %v7785 = vrot.slane %v7575, 4
      %v7786 = vrot.slane %v7576, 4
      %v7787 = vsel %vm6009, %v7785, %v7786
      %v7788 = vrot.slane %v7577, 4
      %v7789 = vsel %vm6009, %v7786, %v7788
      %v7790 = vrot.slane %v7578, 4
      %v7791 = vrot.slane %v7579, 4
      %v7792 = vsel %vm6009, %v7790, %v7791
      %v7793 = vrot.slane %v7580, 4
      %v7794 = vsel %vm6009, %v7791, %v7793
      %v7795 = vrot.slane %v7581, 4
      %v7796 = vrot.slane %v7582, 4
      %v7797 = vsel %vm6009, %v7795, %v7796
      %v7798 = vrot.slane %v7583, 4
      %v7799 = vsel %vm6009, %v7796, %v7798
      %v7800 = vrot.slane %v7584, 4
      %v7801 = vrot.slane %v7585, 4
      %v7802 = vsel %vm6009, %v7800, %v7801
      %v7803 = vrot.slane %v7586, 4
      %v7804 = vsel %vm6009, %v7801, %v7803
      %v7805 = vrot.slane %v7587, 4
      %v7806 = vrot.slane %v7588, 4
      %v7807 = vsel %vm6009, %v7805, %v7806
      %v7808 = vrot.slane %v7589, 4
      %v7809 = vsel %vm6009, %v7806, %v7808
      %v7810 = vrot.slane %v7590, 4
      %v7811 = vrot.slane %v7591, 4
      %v7812 = vsel %vm6009, %v7810, %v7811
      %v7813 = vrot.slane %v7592, 4
      %v7814 = vsel %vm6009, %v7811, %v7813
      %v7815 = vrot.slane %v7593, 4
      %v7816 = vrot.slane %v7594, 4
      %v7817 = vsel %vm6009, %v7815, %v7816
      %v7818 = vrot.slane %v7595, 4
      %v7819 = vsel %vm6009, %v7816, %v7818
      %v7820 = vrot.slane %v7596, 4
      %v7821 = vrot.slane %v7597, 4
      %v7822 = vsel %vm6009, %v7820, %v7821
      %v7823 = vrot.slane %v7598, 4
      %v7824 = vsel %vm6009, %v7821, %v7823
      %v7825 = vrot.slane %v7599, 4
      %v7826 = vrot.slane %v7600, 4
      %v7827 = vsel %vm6009, %v7825, %v7826
      %v7828 = vrot.slane %v7601, 4
      %v7829 = vsel %vm6009, %v7826, %v7828
      %v7830 = vrot.slane %v7602, 4
      %v7831 = vrot.slane %v7603, 4
      %v7832 = vsel %vm6009, %v7830, %v7831
      %v7833 = vrot.slane %v7604, 4
      %v7834 = vsel %vm6009, %v7831, %v7833
      %v7835 = vrot.slane %v7605, 4
      %v7836 = vrot.slane %v7606, 4
      %v7837 = vsel %vm6009, %v7835, %v7836
      %v7838 = vrot.slane %v7607, 4
      %v7839 = vsel %vm6009, %v7836, %v7838
      %v7840 = vrot.slane %v7608, 4
      %v7841 = vrot.slane %v7609, 4
      %v7842 = vsel %vm6009, %v7840, %v7841
      %v7843 = vrot.slane %v7610, 4
      %v7844 = vsel %vm6009, %v7841, %v7843
      %v7845 = vrot.slane %v7611, 4
      %v7846 = vrot.slane %v7612, 4
      %v7847 = vsel %vm6009, %v7845, %v7846
      %v7848 = vrot.slane %v7613, 4
      %v7849 = vsel %vm6009, %v7846, %v7848
      %v7850 = vrot.slane %v7614, 4
      %v7851 = vrot.slane %v7615, 4
      %v7852 = vsel %vm6009, %v7850, %v7851
      %v7853 = vrot.slane %v7616, 4
      %v7854 = vsel %vm6009, %v7851, %v7853
      %v7855 = vrot.slane %v7617, 4
      %v7856 = vrot.slane %v7618, 4
      %v7857 = vsel %vm6009, %v7855, %v7856
      %v7858 = vrot.slane %v7619, 4
      %v7859 = vsel %vm6009, %v7856, %v7858
      %v7860 = vrot.slane %v7620, 4
      %v7861 = vrot.slane %v7621, 4
      %v7862 = vsel %vm6009, %v7860, %v7861
      %v7863 = vrot.slane %v7622, 4
      %v7864 = vsel %vm6009, %v7861, %v7863
      %v7865 = vrot.slane %v7623, 4
      %v7866 = vrot.slane %v7624, 4
      %v7867 = vsel %vm6009, %v7865, %v7866
      %v7868 = vrot.slane %v7625, 4
      %v7869 = vsel %vm6009, %v7866, %v7868
      %v7870 = vrot.slane %v7626, 4
      %v7871 = vrot.slane %v7627, 4
      %v7872 = vsel %vm6009, %v7870, %v7871
      %v7873 = vrot.slane %v7628, 4
      %v7874 = vsel %vm6009, %v7871, %v7873
      %v7875 = vrot.slane %v7629, 4
      %v7876 = vrot.slane %v7630, 4
      %v7877 = vsel %vm6009, %v7875, %v7876
      %v7878 = vrot.slane %v7631, 4
      %v7879 = vsel %vm6009, %v7876, %v7878
      %v7880 = vrot.slane %v7632, 4
      %v7881 = vrot.slane %v7633, 4
      %v7882 = vsel %vm6009, %v7880, %v7881
      %v7883 = vrot.slane %v7634, 4
      %v7884 = vsel %vm6009, %v7881, %v7883
      %v7885 = vrot.slane %v7635, 4
      %v7886 = vrot.slane %v7636, 4
      %v7887 = vsel %vm6009, %v7885, %v7886
      %v7888 = vrot.slane %v7637, 4
      %v7889 = vsel %vm6009, %v7886, %v7888
      %v7890 = vrot.slane %v7638, 4
      %v7891 = vrot.slane %v7639, 4
      %v7892 = vsel %vm6009, %v7890, %v7891
      %v7893 = vrot.slane %v7640, 4
      %v7894 = vsel %vm6009, %v7891, %v7893
      %v7895 = vrot.slane %v7641, 4
      %v7896 = vrot.slane %v7642, 4
      %v7897 = vsel %vm6009, %v7895, %v7896
      %v7898 = vrot.slane %v7643, 4
      %v7899 = vsel %vm6009, %v7896, %v7898
      %7900 = vrot.lane.b32.xlu0 %v7742, 124
      %v7901 = vpop.permute.xlu0 %7900
      %7902 = vrot.lane.b32.xlu0 %v7744, 124
      %v7903 = vpop.permute.xlu0 %7902
      %7904 = vrot.lane.b32.xlu0 %v7747, 124
      %v7905 = vpop.permute.xlu0 %7904
      %7906 = vrot.lane.b32.xlu0 %v7749, 124
      %v7907 = vpop.permute.xlu0 %7906
      %7908 = vrot.lane.b32.xlu0 %v7752, 124
      %v7909 = vpop.permute.xlu0 %7908
      %7910 = vrot.lane.b32.xlu0 %v7754, 124
      %v7911 = vpop.permute.xlu0 %7910
      %7912 = vrot.lane.b32.xlu0 %v7757, 124
      %v7913 = vpop.permute.xlu0 %7912
      %7914 = vrot.lane.b32.xlu0 %v7759, 124
      %v7915 = vpop.permute.xlu0 %7914
      %7916 = vrot.lane.b32.xlu0 %v7762, 124
      %v7917 = vpop.permute.xlu0 %7916
      %7918 = vrot.lane.b32.xlu0 %v7764, 124
      %v7919 = vpop.permute.xlu0 %7918
      %7920 = vrot.lane.b32.xlu0 %v7767, 124
      %v7921 = vpop.permute.xlu0 %7920
      %7922 = vrot.lane.b32.xlu0 %v7769, 124
      %v7923 = vpop.permute.xlu0 %7922
      %7924 = vrot.lane.b32.xlu0 %v7772, 124
      %v7925 = vpop.permute.xlu0 %7924
      %7926 = vrot.lane.b32.xlu0 %v7774, 124
      %v7927 = vpop.permute.xlu0 %7926
      %7928 = vrot.lane.b32.xlu0 %v7777, 124
      %v7929 = vpop.permute.xlu0 %7928
      %7930 = vrot.lane.b32.xlu0 %v7779, 124
      %v7931 = vpop.permute.xlu0 %7930
      %7932 = vrot.lane.b32.xlu0 %v7782, 124
      %v7933 = vpop.permute.xlu0 %7932
      %7934 = vrot.lane.b32.xlu0 %v7784, 124
      %v7935 = vpop.permute.xlu0 %7934
      %7936 = vrot.lane.b32.xlu0 %v7787, 124
      %v7937 = vpop.permute.xlu0 %7936
      %7938 = vrot.lane.b32.xlu0 %v7789, 124
      %v7939 = vpop.permute.xlu0 %7938
      %7940 = vrot.lane.b32.xlu0 %v7792, 124
      %v7941 = vpop.permute.xlu0 %7940
      %7942 = vrot.lane.b32.xlu0 %v7794, 124
      %v7943 = vpop.permute.xlu0 %7942
      %7944 = vrot.lane.b32.xlu0 %v7797, 124
      %v7945 = vpop.permute.xlu0 %7944
      %7946 = vrot.lane.b32.xlu0 %v7799, 124
      %v7947 = vpop.permute.xlu0 %7946
      %7948 = vrot.lane.b32.xlu0 %v7802, 124
      %v7949 = vpop.permute.xlu0 %7948
      %7950 = vrot.lane.b32.xlu0 %v7804, 124
      %v7951 = vpop.permute.xlu0 %7950
      %7952 = vrot.lane.b32.xlu0 %v7807, 124
      %v7953 = vpop.permute.xlu0 %7952
      %7954 = vrot.lane.b32.xlu0 %v7809, 124
      %v7955 = vpop.permute.xlu0 %7954
      %7956 = vrot.lane.b32.xlu0 %v7812, 124
      %v7957 = vpop.permute.xlu0 %7956
      %7958 = vrot.lane.b32.xlu0 %v7814, 124
      %v7959 = vpop.permute.xlu0 %7958
      %7960 = vrot.lane.b32.xlu0 %v7817, 124
      %v7961 = vpop.permute.xlu0 %7960
      %7962 = vrot.lane.b32.xlu0 %v7819, 124
      %v7963 = vpop.permute.xlu0 %7962
      %7964 = vrot.lane.b32.xlu0 %v7822, 124
      %v7965 = vpop.permute.xlu0 %7964
      %7966 = vrot.lane.b32.xlu0 %v7824, 124
      %v7967 = vpop.permute.xlu0 %7966
      %7968 = vrot.lane.b32.xlu0 %v7827, 124
      %v7969 = vpop.permute.xlu0 %7968
      %7970 = vrot.lane.b32.xlu0 %v7829, 124
      %v7971 = vpop.permute.xlu0 %7970
      %7972 = vrot.lane.b32.xlu0 %v7832, 124
      %v7973 = vpop.permute.xlu0 %7972
      %7974 = vrot.lane.b32.xlu0 %v7834, 124
      %v7975 = vpop.permute.xlu0 %7974
      %7976 = vrot.lane.b32.xlu0 %v7837, 124
      %v7977 = vpop.permute.xlu0 %7976
      %7978 = vrot.lane.b32.xlu0 %v7839, 124
      %v7979 = vpop.permute.xlu0 %7978
      %7980 = vrot.lane.b32.xlu0 %v7842, 124
      %v7981 = vpop.permute.xlu0 %7980
      %7982 = vrot.lane.b32.xlu0 %v7844, 124
      %v7983 = vpop.permute.xlu0 %7982
      %7984 = vrot.lane.b32.xlu0 %v7847, 124
      %v7985 = vpop.permute.xlu0 %7984
      %7986 = vrot.lane.b32.xlu0 %v7849, 124
      %v7987 = vpop.permute.xlu0 %7986
      %7988 = vrot.lane.b32.xlu0 %v7852, 124
      %v7989 = vpop.permute.xlu0 %7988
      %7990 = vrot.lane.b32.xlu0 %v7854, 124
      %v7991 = vpop.permute.xlu0 %7990
      %7992 = vrot.lane.b32.xlu0 %v7857, 124
      %v7993 = vpop.permute.xlu0 %7992
      %7994 = vrot.lane.b32.xlu0 %v7859, 124
      %v7995 = vpop.permute.xlu0 %7994
      %7996 = vrot.lane.b32.xlu0 %v7862, 124
      %v7997 = vpop.permute.xlu0 %7996
      %7998 = vrot.lane.b32.xlu0 %v7864, 124
      %v7999 = vpop.permute.xlu0 %7998
      %8000 = vrot.lane.b32.xlu0 %v7867, 124
      %v8001 = vpop.permute.xlu0 %8000
      %8002 = vrot.lane.b32.xlu0 %v7869, 124
      %v8003 = vpop.permute.xlu0 %8002
      %8004 = vrot.lane.b32.xlu0 %v7872, 124
      %v8005 = vpop.permute.xlu0 %8004
      %8006 = vrot.lane.b32.xlu0 %v7874, 124
      %v8007 = vpop.permute.xlu0 %8006
      %8008 = vrot.lane.b32.xlu0 %v7877, 124
      %v8009 = vpop.permute.xlu0 %8008
      %8010 = vrot.lane.b32.xlu0 %v7879, 124
      %v8011 = vpop.permute.xlu0 %8010
      %8012 = vrot.lane.b32.xlu0 %v7882, 124
      %v8013 = vpop.permute.xlu0 %8012
      %8014 = vrot.lane.b32.xlu0 %v7884, 124
      %v8015 = vpop.permute.xlu0 %8014
      %8016 = vrot.lane.b32.xlu0 %v7887, 124
      %v8017 = vpop.permute.xlu0 %8016
      %8018 = vrot.lane.b32.xlu0 %v7889, 124
      %v8019 = vpop.permute.xlu0 %8018
      %8020 = vrot.lane.b32.xlu0 %v7892, 124
      %v8021 = vpop.permute.xlu0 %8020
      %8022 = vrot.lane.b32.xlu0 %v7894, 124
      %v8023 = vpop.permute.xlu0 %8022
      %8024 = vrot.lane.b32.xlu0 %v7897, 124
      %v8025 = vpop.permute.xlu0 %8024
      %8026 = vrot.lane.b32.xlu0 %v7899, 124
      %v8027 = vpop.permute.xlu0 %8026
      %v8092 = vadd.f32 %v7163, %v7901
      %v8093 = vadd.f32 %v7164, %v7903
      %v8094 = vadd.f32 %v7165, %v7905
      %v8095 = vadd.f32 %v7166, %v7907
      %v8096 = vadd.f32 %v7167, %v7909
      %v8097 = vadd.f32 %v7168, %v7911
      %v8098 = vadd.f32 %v7169, %v7913
      %v8099 = vadd.f32 %v7170, %v7915
      %v8100 = vadd.f32 %v7171, %v7917
      %v8101 = vadd.f32 %v7172, %v7919
      %v8102 = vadd.f32 %v7173, %v7921
      %v8103 = vadd.f32 %v7174, %v7923
      %v8104 = vadd.f32 %v7175, %v7925
      %v8105 = vadd.f32 %v7176, %v7927
      %v8106 = vadd.f32 %v7177, %v7929
      %v8107 = vadd.f32 %v7178, %v7931
      %v8108 = vadd.f32 %v7179, %v7933
      %v8109 = vadd.f32 %v7180, %v7935
      %v8110 = vadd.f32 %v7181, %v7937
      %v8111 = vadd.f32 %v7182, %v7939
      %v8112 = vadd.f32 %v7183, %v7941
      %v8113 = vadd.f32 %v7184, %v7943
      %v8114 = vadd.f32 %v7185, %v7945
      %v8115 = vadd.f32 %v7186, %v7947
      %v8116 = vadd.f32 %v7187, %v7949
      %v8117 = vadd.f32 %v7188, %v7951
      %v8118 = vadd.f32 %v7189, %v7953
      %v8119 = vadd.f32 %v7190, %v7955
      %v8120 = vadd.f32 %v7191, %v7957
      %v8121 = vadd.f32 %v7192, %v7959
      %v8122 = vadd.f32 %v7193, %v7961
      %v8123 = vadd.f32 %v7194, %v7963
      %v8124 = vadd.f32 %v7195, %v7965
      %v8125 = vadd.f32 %v7196, %v7967
      %v8126 = vadd.f32 %v7197, %v7969
      %v8127 = vadd.f32 %v7198, %v7971
      %v8128 = vadd.f32 %v7199, %v7973
      %v8129 = vadd.f32 %v7200, %v7975
      %v8130 = vadd.f32 %v7201, %v7977
      %v8131 = vadd.f32 %v7202, %v7979
      %v8132 = vadd.f32 %v7203, %v7981
      %v8133 = vadd.f32 %v7204, %v7983
      %v8134 = vadd.f32 %v7205, %v7985
      %v8135 = vadd.f32 %v7206, %v7987
      %v8136 = vadd.f32 %v7207, %v7989
      %v8137 = vadd.f32 %v7208, %v7991
      %v8138 = vadd.f32 %v7209, %v7993
      %v8139 = vadd.f32 %v7210, %v7995
      %v8140 = vadd.f32 %v7211, %v7997
      %v8141 = vadd.f32 %v7212, %v7999
      %v8142 = vadd.f32 %v7213, %v8001
      %v8143 = vadd.f32 %v7214, %v8003
      %v8144 = vadd.f32 %v7215, %v8005
      %v8145 = vadd.f32 %v7216, %v8007
      %v8146 = vadd.f32 %v7217, %v8009
      %v8147 = vadd.f32 %v7218, %v8011
      %v8148 = vadd.f32 %v7219, %v8013
      %v8149 = vadd.f32 %v7220, %v8015
      %v8150 = vadd.f32 %v7221, %v8017
      %v8151 = vadd.f32 %v7222, %v8019
      %v8152 = vadd.f32 %v7223, %v8021
      %v8153 = vadd.f32 %v7224, %v8023
      %v8154 = vadd.f32 %v7225, %v8025
      %v8155 = vadd.f32 %v7226, %v8027
      %vm8156 = vcmask 130048
      %8157 = vst.msk [vmem:[%s205] sm:$0xff] %vm8156, %v8092
      %8158 = vst.msk [vmem:[%s205 + $0x8] sm:$0xff] %vm8156, %v8093
      %8159 = vst.msk [vmem:[%s205 + $0x10] sm:$0xff] %vm8156, %v8094
      %8160 = vst.msk [vmem:[%s205 + $0x18] sm:$0xff] %vm8156, %v8095
      %8161 = vst.msk [vmem:[%s205 + $0x20] sm:$0xff] %vm8156, %v8096
      %8162 = vst.msk [vmem:[%s205 + $0x28] sm:$0xff] %vm8156, %v8097
      %8163 = vst.msk [vmem:[%s205 + $0x30] sm:$0xff] %vm8156, %v8098
      %8164 = vst.msk [vmem:[%s205 + $0x38] sm:$0xff] %vm8156, %v8099
      %8165 = vst.msk [vmem:[%s205 + $0x40] sm:$0xff] %vm8156, %v8100
      %8166 = vst.msk [vmem:[%s205 + $0x48] sm:$0xff] %vm8156, %v8101
      %8167 = vst.msk [vmem:[%s205 + $0x50] sm:$0xff] %vm8156, %v8102
      %8168 = vst.msk [vmem:[%s205 + $0x58] sm:$0xff] %vm8156, %v8103
      %8169 = vst.msk [vmem:[%s205 + $0x60] sm:$0xff] %vm8156, %v8104
      %8170 = vst.msk [vmem:[%s205 + $0x68] sm:$0xff] %vm8156, %v8105
      %8171 = vst.msk [vmem:[%s205 + $0x70] sm:$0xff] %vm8156, %v8106
      %8172 = vst.msk [vmem:[%s205 + $0x78] sm:$0xff] %vm8156, %v8107
      %8173 = vst.msk [vmem:[%s205 + $0x80] sm:$0xff] %vm8156, %v8108
      %8174 = vst.msk [vmem:[%s205 + $0x88] sm:$0xff] %vm8156, %v8109
      %8175 = vst.msk [vmem:[%s205 + $0x90] sm:$0xff] %vm8156, %v8110
      %8176 = vst.msk [vmem:[%s205 + $0x98] sm:$0xff] %vm8156, %v8111
      %8177 = vst.msk [vmem:[%s205 + $0xa0] sm:$0xff] %vm8156, %v8112
      %8178 = vst.msk [vmem:[%s205 + $0xa8] sm:$0xff] %vm8156, %v8113
      %8179 = vst.msk [vmem:[%s205 + $0xb0] sm:$0xff] %vm8156, %v8114
      %8180 = vst.msk [vmem:[%s205 + $0xb8] sm:$0xff] %vm8156, %v8115
      %8181 = vst.msk [vmem:[%s205 + $0xc0] sm:$0xff] %vm8156, %v8116
      %8182 = vst.msk [vmem:[%s205 + $0xc8] sm:$0xff] %vm8156, %v8117
      %8183 = vst.msk [vmem:[%s205 + $0xd0] sm:$0xff] %vm8156, %v8118
      %8184 = vst.msk [vmem:[%s205 + $0xd8] sm:$0xff] %vm8156, %v8119
      %8185 = vst.msk [vmem:[%s205 + $0xe0] sm:$0xff] %vm8156, %v8120
      %8186 = vst.msk [vmem:[%s205 + $0xe8] sm:$0xff] %vm8156, %v8121
      %8187 = vst.msk [vmem:[%s205 + $0xf0] sm:$0xff] %vm8156, %v8122
      %8188 = vst.msk [vmem:[%s205 + $0xf8] sm:$0xff] %vm8156, %v8123
      %8189 = vst.msk [vmem:[%s205 + $0x100] sm:$0xff] %vm8156, %v8124
      %8190 = vst.msk [vmem:[%s205 + $0x108] sm:$0xff] %vm8156, %v8125
      %8191 = vst.msk [vmem:[%s205 + $0x110] sm:$0xff] %vm8156, %v8126
      %8192 = vst.msk [vmem:[%s205 + $0x118] sm:$0xff] %vm8156, %v8127
      %8193 = vst.msk [vmem:[%s205 + $0x120] sm:$0xff] %vm8156, %v8128
      %8194 = vst.msk [vmem:[%s205 + $0x128] sm:$0xff] %vm8156, %v8129
      %8195 = vst.msk [vmem:[%s205 + $0x130] sm:$0xff] %vm8156, %v8130
      %8196 = vst.msk [vmem:[%s205 + $0x138] sm:$0xff] %vm8156, %v8131
      %8197 = vst.msk [vmem:[%s205 + $0x140] sm:$0xff] %vm8156, %v8132
      %8198 = vst.msk [vmem:[%s205 + $0x148] sm:$0xff] %vm8156, %v8133
      %8199 = vst.msk [vmem:[%s205 + $0x150] sm:$0xff] %vm8156, %v8134
      %8200 = vst.msk [vmem:[%s205 + $0x158] sm:$0xff] %vm8156, %v8135
      %8201 = vst.msk [vmem:[%s205 + $0x160] sm:$0xff] %vm8156, %v8136
      %8202 = vst.msk [vmem:[%s205 + $0x168] sm:$0xff] %vm8156, %v8137
      %8203 = vst.msk [vmem:[%s205 + $0x170] sm:$0xff] %vm8156, %v8138
      %8204 = vst.msk [vmem:[%s205 + $0x178] sm:$0xff] %vm8156, %v8139
      %8205 = vst.msk [vmem:[%s205 + $0x180] sm:$0xff] %vm8156, %v8140
      %8206 = vst.msk [vmem:[%s205 + $0x188] sm:$0xff] %vm8156, %v8141
      %8207 = vst.msk [vmem:[%s205 + $0x190] sm:$0xff] %vm8156, %v8142
      %8208 = vst.msk [vmem:[%s205 + $0x198] sm:$0xff] %vm8156, %v8143
      %8209 = vst.msk [vmem:[%s205 + $0x1a0] sm:$0xff] %vm8156, %v8144
      %8210 = vst.msk [vmem:[%s205 + $0x1a8] sm:$0xff] %vm8156, %v8145
      %8211 = vst.msk [vmem:[%s205 + $0x1b0] sm:$0xff] %vm8156, %v8146
      %8212 = vst.msk [vmem:[%s205 + $0x1b8] sm:$0xff] %vm8156, %v8147
      %8213 = vst.msk [vmem:[%s205 + $0x1c0] sm:$0xff] %vm8156, %v8148
      %8214 = vst.msk [vmem:[%s205 + $0x1c8] sm:$0xff] %vm8156, %v8149
      %8215 = vst.msk [vmem:[%s205 + $0x1d0] sm:$0xff] %vm8156, %v8150
      %8216 = vst.msk [vmem:[%s205 + $0x1d8] sm:$0xff] %vm8156, %v8151
      %8217 = vst.msk [vmem:[%s205 + $0x1e0] sm:$0xff] %vm8156, %v8152
      %8218 = vst.msk [vmem:[%s205 + $0x1e8] sm:$0xff] %vm8156, %v8153
      %8219 = vst.msk [vmem:[%s205 + $0x1f0] sm:$0xff] %vm8156, %v8154
      %8220 = vst.msk [vmem:[%s205 + $0x1f8] sm:$0xff] %vm8156, %v8155
      %s8221 = smul.u32 32, %s18
      %p8222 = scmp.lt.s32.totalorder %s17, 1
      %s8223 = scalar_select %p8222, %s17, 1
      %p8224 = scmp.lt.s32.totalorder %s8221, 31
      %s8225 = scalar_select %p8224, %s8221, 31
      %s8226 = smul.addr %s8225, 2
      %s8227 = smul.addr %s8223, 64
      %s8228 = sadd.s32 %s8226, %s8227
      %s8229 = smul.addr %s8228, 8
      %s8230 = scalar_lea.vmem %s2, %s8229
      // Predicated region
      $region29: #{feedforward_forward.4} parent=27 // pred_check
        %p8231 = pneg %p99
      $region30: #{feedforward_forward.4} parent=27 // pred_check_branch
        %8233 = sbr.rel (%p8231) target = $region32
      $region31: #{feedforward_forward.4} parent=27 // pred_region
        %s8234 = smul.u32 32, %s18
      $region32: #{feedforward_forward.4} parent=27 // pred_fallthru
        _
    $region28: #{feedforward_forward.4} parent=5 // pred_fallthru
      _
    %p8235 = scmp.le.s32.totalorder 2, %s8
    // Predicated region
    $region33: #{feedforward_forward.4} parent=5 // pred_check
      %p8236 = pneg %p8235
    $region34: #{feedforward_forward.4} parent=5 // pred_check_branch
      %8238 = sbr.rel (%p8236) target = $region36
    $region35: #{feedforward_forward.4} parent=5 // pred_region
      %s8239 = ssub.s32 %s8, 2
      // Predicated region
      $region37: #{feedforward_forward.4} parent=35 // pred_check
        %p8240 = pneg %p105
      $region38: #{feedforward_forward.4} parent=35 // pred_check_branch
        %8242 = sbr.rel (%p8240) target = $region40
      $region39: #{feedforward_forward.4} parent=35 // pred_region
        %s8243 = smul.u32 32, %s20
        %p8244 = scmp.lt.s32.totalorder %s19, 1
        %s8245 = scalar_select %p8244, %s19, 1
        %p8246 = scmp.lt.s32.totalorder %s8243, 31
        %s8247 = scalar_select %p8246, %s8243, 31
        %s8248 = smul.addr %s8247, 2
        %s8249 = smul.addr %s8245, 64
        %s8250 = sadd.s32 %s8248, %s8249
        %s8251 = smul.addr %s8250, 8
        %s8252 = scalar_lea.vmem %s2, %s8251
      $region40: #{feedforward_forward.4} parent=35 // pred_fallthru
        _
    $region36: #{feedforward_forward.4} parent=5 // pred_fallthru
      _
  $region6: #{feedforward_forward.4} parent=0 // loop_footer
    %s12 = sadd.s32 1, %s8
  $region7: #{feedforward_forward.4} parent=0 // loop_footer_branch
    %7 = sbr.rel target = $region3
  $region8: #{feedforward_forward.4} parent=0 // loop_exit
    _

// kernel: reverse.1
$region0: #{reverse.1}
  #allocation0 [shape = 's32[1]{0}', space=sflag, size = 0x4, scoped, tag = 'scoped memory for reverse.1']
  %s0 = inlined_call_operand.vmem [shape: f32[2,32,16,7], index: 0, kind: input, shape index: {}]
  %s1 = inlined_call_operand.vmem [shape: f32[2,32,16,7], index: 1, kind: output, shape index: {}]
  %s2 = scalar_lea.vmem %s0, 96
  %v3 = vld [vmem:[%s2] sm:$0xff]
  %4 = vst [vmem:[%s1] sm:$0xff] %v3
  %s5 = scalar_lea.vmem %s0, 208
  %v6 = vld [vmem:[%s5] sm:$0xff]
  %s7 = scalar_lea.vmem %s1, 112
  %8 = vst [vmem:[%s7] sm:$0xff] %v6
  %s9 = scalar_lea.vmem %s0, 80
  %v10 = vld [vmem:[%s9] sm:$0xff]
  %s11 = scalar_lea.vmem %s1, 16
  %12 = vst [vmem:[%s11] sm:$0xff] %v10
  %s13 = scalar_lea.vmem %s0, 192
  %v14 = vld [vmem:[%s13] sm:$0xff]
  %s15 = scalar_lea.vmem %s1, 128
  %16 = vst [vmem:[%s15] sm:$0xff] %v14
  %s17 = scalar_lea.vmem %s0, 64
  %v18 = vld [vmem:[%s17] sm:$0xff]
  %s19 = scalar_lea.vmem %s1, 32
  %20 = vst [vmem:[%s19] sm:$0xff] %v18
  %s21 = scalar_lea.vmem %s0, 176
  %v22 = vld [vmem:[%s21] sm:$0xff]
  %s23 = scalar_lea.vmem %s1, 144
  %24 = vst [vmem:[%s23] sm:$0xff] %v22
  %s25 = scalar_lea.vmem %s0, 48
  %v26 = vld [vmem:[%s25] sm:$0xff]
  %s27 = scalar_lea.vmem %s1, 48
  %28 = vst [vmem:[%s27] sm:$0xff] %v26
  %s29 = scalar_lea.vmem %s0, 160
  %v30 = vld [vmem:[%s29] sm:$0xff]
  %s31 = scalar_lea.vmem %s1, 160
  %32 = vst [vmem:[%s31] sm:$0xff] %v30
  %s33 = scalar_lea.vmem %s0, 32
  %v34 = vld [vmem:[%s33] sm:$0xff]
  %s35 = scalar_lea.vmem %s1, 64
  %36 = vst [vmem:[%s35] sm:$0xff] %v34
  %s37 = scalar_lea.vmem %s0, 144
  %v38 = vld [vmem:[%s37] sm:$0xff]
  %s39 = scalar_lea.vmem %s1, 176
  %40 = vst [vmem:[%s39] sm:$0xff] %v38
  %s41 = scalar_lea.vmem %s0, 16
  %v42 = vld [vmem:[%s41] sm:$0xff]
  %s43 = scalar_lea.vmem %s1, 80
  %44 = vst [vmem:[%s43] sm:$0xff] %v42
  %s45 = scalar_lea.vmem %s0, 128
  %v46 = vld [vmem:[%s45] sm:$0xff]
  %s47 = scalar_lea.vmem %s1, 192
  %48 = vst [vmem:[%s47] sm:$0xff] %v46
  %v49 = vld [vmem:[%s0] sm:$0xff]
  %s50 = scalar_lea.vmem %s1, 96
  %51 = vst [vmem:[%s50] sm:$0xff] %v49
  %s52 = scalar_lea.vmem %s0, 112
  %v53 = vld [vmem:[%s52] sm:$0xff]
  %s54 = scalar_lea.vmem %s1, 208
  %55 = vst [vmem:[%s54] sm:$0xff] %v53
  %s56 = scalar_lea.vmem %s0, 104
  %v57 = vld [vmem:[%s56] sm:$0xff]
  %s58 = scalar_lea.vmem %s1, 8
  %59 = vst [vmem:[%s58] sm:$0xff] %v57
  %s60 = scalar_lea.vmem %s0, 216
  %v61 = vld [vmem:[%s60] sm:$0xff]
  %s62 = scalar_lea.vmem %s1, 120
  %63 = vst [vmem:[%s62] sm:$0xff] %v61
  %s64 = scalar_lea.vmem %s0, 88
  %v65 = vld [vmem:[%s64] sm:$0xff]
  %s66 = scalar_lea.vmem %s1, 24
  %67 = vst [vmem:[%s66] sm:$0xff] %v65
  %s68 = scalar_lea.vmem %s0, 200
  %v69 = vld [vmem:[%s68] sm:$0xff]
  %s70 = scalar_lea.vmem %s1, 136
  %71 = vst [vmem:[%s70] sm:$0xff] %v69
  %s72 = scalar_lea.vmem %s0, 72
  %v73 = vld [vmem:[%s72] sm:$0xff]
  %s74 = scalar_lea.vmem %s1, 40
  %75 = vst [vmem:[%s74] sm:$0xff] %v73
  %s76 = scalar_lea.vmem %s0, 184
  %v77 = vld [vmem:[%s76] sm:$0xff]
  %s78 = scalar_lea.vmem %s1, 152
  %79 = vst [vmem:[%s78] sm:$0xff] %v77
  %s80 = scalar_lea.vmem %s0, 56
  %v81 = vld [vmem:[%s80] sm:$0xff]
  %s82 = scalar_lea.vmem %s1, 56
  %83 = vst [vmem:[%s82] sm:$0xff] %v81
  %s84 = scalar_lea.vmem %s0, 168
  %v85 = vld [vmem:[%s84] sm:$0xff]
  %s86 = scalar_lea.vmem %s1, 168
  %87 = vst [vmem:[%s86] sm:$0xff] %v85
  %s88 = scalar_lea.vmem %s0, 40
  %v89 = vld [vmem:[%s88] sm:$0xff]
  %s90 = scalar_lea.vmem %s1, 72
  %91 = vst [vmem:[%s90] sm:$0xff] %v89
  %s92 = scalar_lea.vmem %s0, 152
  %v93 = vld [vmem:[%s92] sm:$0xff]
  %s94 = scalar_lea.vmem %s1, 184
  %95 = vst [vmem:[%s94] sm:$0xff] %v93
  %s96 = scalar_lea.vmem %s0, 24
  %v97 = vld [vmem:[%s96] sm:$0xff]
  %s98 = scalar_lea.vmem %s1, 88
  %99 = vst [vmem:[%s98] sm:$0xff] %v97
  %s100 = scalar_lea.vmem %s0, 136
  %v101 = vld [vmem:[%s100] sm:$0xff]
  %s102 = scalar_lea.vmem %s1, 200
  %103 = vst [vmem:[%s102] sm:$0xff] %v101
  %s104 = scalar_lea.vmem %s0, 8
  %v105 = vld [vmem:[%s104] sm:$0xff]
  %s106 = scalar_lea.vmem %s1, 104
  %107 = vst [vmem:[%s106] sm:$0xff] %v105
  %s108 = scalar_lea.vmem %s0, 120
  %v109 = vld [vmem:[%s108] sm:$0xff]
  %s110 = scalar_lea.vmem %s1, 216
  %111 = vst [vmem:[%s110] sm:$0xff] %v109

// kernel: feedforward_forward.5
$region0: #{feedforward_forward.5}
  #allocation0 [shape = 'u32[]', space=smem, size = 0x4, offset = 0x4, fixed_abs, tag = 'smem constant byte address 0x4 - core index']
  #allocation1 [shape = 'u32[144,128]{1,0:T(1,128)}', space=vmem, size = 0x12000, scoped, tag = 'internal scratch']
  %s0 = inlined_call_operand.vmem [shape: f32[8,16], index: 0, kind: input, shape index: {}]
  %s1 = inlined_call_operand.vmem [shape: f32[2,32,256], index: 1, kind: input, shape index: {}]
  %s2 = inlined_call_operand.vmem [shape: f32[2,8,256], index: 2, kind: output, shape index: {}]
  %s3 = sld [smem:[#allocation0]]
  $region41: #{feedforward_forward.5} parent=0
    _
  %s5 = ssub.s32 1, %s3
  %s6 = scalar_select 0, %s5, %s3
  loop: start=0, step=1, limit=4
  $region2: #{feedforward_forward.5} parent=0 // loop_pre_header
    _
  $region3: #{feedforward_forward.5} parent=0 // loop_header
    %s8 = sphi 0, %s12
    %p9 = scmp.ge.s32.totalorder %s8, 4
    %s15 = sphi 0, %s27
    %s16 = sphi 0, %s23
    %s17 = sphi 0, %s15
    %s18 = sphi 0, %s16
    %s19 = sphi 0, %s17
    %s20 = sphi 0, %s18
    %s28 = sphi 0, %s28
    %s30 = sphi 0, %s28
    %s31 = sphi 0, %s30
    %s45 = sphi 0, %s31
    %s53 = sphi 0, %s55
    %s56 = sphi 0, %s53
    %s57 = sphi 0, %s56
    %s73 = sphi 0, %s57
    %s81 = sphi 0, %s83
    %s84 = sphi 0, %s81
    %s85 = sphi 0, %s84
    %s101 = sphi 0, %s85
  $region4: #{feedforward_forward.5} parent=0 // loop_header_branch
    %11 = sbr.rel (%p9) target = $region8
  $region5: #{feedforward_forward.5} parent=0 // loop_body
    %s13 = ssub.s32 %s8, 1
    %s14 = ssub.s32 %s8, 2
    %s21 = sadd.s32 1, %s16
    %p22 = scmp.ge.s32.totalorder %s21, 1
    %s23 = scalar_select %p22, 0, %s21
    %s24 = sadd.s32 1, %s15
    %s25 = scalar_select %p22, %s24, %s15
    %p26 = scmp.ge.s32.totalorder %s25, 2
    %s27 = scalar_select %p26, 0, %s25
    %s29 = sadd.s32 %s28, 1
    %p32 = scmp.eq.s32.totalorder %s8, 1
    %p33 = scmp.ne.s32.totalorder %s28, %s30
    %p34 = scmp.eq.s32.totalorder %s8, 0
    %p35 = por %p33, %p34
    %p36 = scmp.ne.s32.totalorder %s28, %s30
    %p37 = scmp.eq.s32.totalorder %s13, 1
    %p38 = por %p36, %p37
    %p39 = scmp.ne.s32.totalorder %s30, %s31
    %p40 = scmp.eq.s32.totalorder %s13, 0
    %p41 = por %p39, %p40
    %p42 = scmp.ne.s32.totalorder %s30, %s31
    %p43 = scmp.eq.s32.totalorder %s14, 1
    %p44 = por %p42, %p43
    %p46 = scmp.ne.s32.totalorder %s31, %s45
    %p47 = scmp.eq.s32.totalorder %s14, 0
    %p48 = por %p46, %p47
    %s49 = ssub.s32 %s15, %s27
    %s50 = ssub.s32 %s16, %s23
    %s51 = sor.u32 %s49, %s50
    %p52 = scmp.eq.s32.totalorder %s51, 0
    %s54 = sadd.s32 %s53, 1
    %s55 = scalar_select %p52, %s53, %s54
    %p58 = pneg %p52
    %p59 = scmp.eq.s32.totalorder %s8, 1
    %p60 = por %p58, %p59
    %p61 = scmp.ne.s32.totalorder %s53, %s56
    %p62 = scmp.eq.s32.totalorder %s8, 0
    %p63 = por %p61, %p62
    %p64 = scmp.ne.s32.totalorder %s53, %s56
    %p65 = scmp.eq.s32.totalorder %s13, 1
    %p66 = por %p64, %p65
    %p67 = scmp.ne.s32.totalorder %s56, %s57
    %p68 = scmp.eq.s32.totalorder %s13, 0
    %p69 = por %p67, %p68
    %p70 = scmp.ne.s32.totalorder %s56, %s57
    %p71 = scmp.eq.s32.totalorder %s14, 1
    %p72 = por %p70, %p71
    %p74 = scmp.ne.s32.totalorder %s57, %s73
    %p75 = scmp.eq.s32.totalorder %s14, 0
    %p76 = por %p74, %p75
    %s77 = ssub.s32 %s15, %s27
    %s78 = ssub.s32 %s16, %s23
    %s79 = sor.u32 %s77, %s78
    %p80 = scmp.eq.s32.totalorder %s79, 0
    %s82 = sadd.s32 %s81, 1
    %s83 = scalar_select %p80, %s81, %s82
    %p86 = pneg %p80
    %p87 = scmp.eq.s32.totalorder %s8, 1
    %p88 = por %p86, %p87
    %p89 = scmp.ne.s32.totalorder %s81, %s84
    %p90 = scmp.eq.s32.totalorder %s8, 0
    %p91 = por %p89, %p90
    %p92 = scmp.ne.s32.totalorder %s81, %s84
    %p93 = scmp.eq.s32.totalorder %s13, 1
    %p94 = por %p92, %p93
    %p95 = scmp.ne.s32.totalorder %s84, %s85
    %p96 = scmp.eq.s32.totalorder %s13, 0
    %p97 = por %p95, %p96
    %p98 = scmp.ne.s32.totalorder %s84, %s85
    %p99 = scmp.eq.s32.totalorder %s14, 1
    %p100 = por %p98, %p99
    %p102 = scmp.ne.s32.totalorder %s85, %s101
    %p103 = scmp.eq.s32.totalorder %s14, 0
    %p104 = por %p102, %p103
    %p105 = scmp.le.s32.totalorder 1, %s8
    %p106 = scmp.lt.s32.totalorder %s8, 3
    %p107 = pnand %p105, %p106
    %p108 = pneg %p107
    // Predicated region
    $region9: #{feedforward_forward.5} parent=5 // pred_check
      _
    $region10: #{feedforward_forward.5} parent=5 // pred_check_branch
      %110 = sbr.rel (%p107) target = $region12
    $region11: #{feedforward_forward.5} parent=5 // pred_region
      %s111 = ssub.s32 %s8, 1
      // Predicated region
      $region13: #{feedforward_forward.5} parent=11 // pred_check
        %p112 = pneg %p41
      $region14: #{feedforward_forward.5} parent=11 // pred_check_branch
        %114 = sbr.rel (%p112) target = $region16
      $region15: #{feedforward_forward.5} parent=11 // pred_region
        _
      $region16: #{feedforward_forward.5} parent=11 // pred_fallthru
        _
    $region12: #{feedforward_forward.5} parent=5 // pred_fallthru
      _
    %p115 = scmp.lt.s32.totalorder %s8, 2
    // Predicated region
    $region17: #{feedforward_forward.5} parent=5 // pred_check
      %p116 = pneg %p115
    $region18: #{feedforward_forward.5} parent=5 // pred_check_branch
      %118 = sbr.rel (%p116) target = $region20
    $region19: #{feedforward_forward.5} parent=5 // pred_region
      // Predicated region
      $region21: #{feedforward_forward.5} parent=19 // pred_check
        %p119 = pneg %p63
      $region22: #{feedforward_forward.5} parent=19 // pred_check_branch
        %121 = sbr.rel (%p119) target = $region24
      $region23: #{feedforward_forward.5} parent=19 // pred_region
        %s122 = smul.u32 2, %s16
        %p123 = scmp.lt.s32.totalorder %s15, 1
        %s124 = scalar_select %p123, %s15, 1
        %p125 = scmp.lt.s32.totalorder %s122, 1
        %s126 = scalar_select %p125, %s122, 1
        %s127 = smul.addr %s124, 8
        %s128 = sadd.s32 %s126, %s127
        %s129 = smul.addr %s128, 8
        %s130 = scalar_lea.vmem %s1, %s129
        %s131 = smul.u32 2, %s16
      $region24: #{feedforward_forward.5} parent=19 // pred_fallthru
        _
    $region20: #{feedforward_forward.5} parent=5 // pred_fallthru
      _
    %p132 = scmp.le.s32.totalorder 1, %s8
    %p133 = scmp.lt.s32.totalorder %s8, 3
    %p134 = pnand %p132, %p133
    %p135 = pneg %p134
    // Predicated region
    $region25: #{feedforward_forward.5} parent=5 // pred_check
      _
    $region26: #{feedforward_forward.5} parent=5 // pred_check_branch
      %137 = sbr.rel (%p134) target = $region28
    $region27: #{feedforward_forward.5} parent=5 // pred_region
      %s138 = ssub.s32 %s8, 1
      %p139 = pneg %p41
      %p140 = pneg %p38
      %s141 = smul.u32 2, %s18
      %p142 = scmp.lt.s32.totalorder %s17, 1
      %s143 = scalar_select %p142, %s17, 1
      %p144 = scmp.lt.s32.totalorder %s141, 1
      %s145 = scalar_select %p144, %s141, 1
      %s146 = smul.addr %s143, 8
      %s147 = sadd.s32 %s145, %s146
      %s148 = smul.addr %s147, 8
      %s149 = scalar_lea.vmem %s1, %s148
      %p150 = pneg %p69
      %p151 = pneg %p66
      %p152 = pneg %p97
      %p153 = pneg %p94
      %s154 = smul.u32 2, %s18
      %p155 = scmp.lt.s32.totalorder %s17, 1
      %s156 = scalar_select %p155, %s17, 1
      %p157 = scmp.lt.s32.totalorder %s154, 1
      %s158 = scalar_select %p157, %s154, 1
      %s159 = smul.addr %s156, 2
      %s160 = sadd.s32 %s158, %s159
      %s161 = smul.addr %s160, 8
      %s162 = scalar_lea.vmem %s2, %s161
      %s163 = smul.u32 2, %s18
      %p164 = scmp.lt.s32.totalorder %s17, 1
      %s165 = scalar_select %p164, %s17, 1
      %p166 = scmp.lt.s32.totalorder %s163, 1
      %s167 = scalar_select %p166, %s163, 1
      %s168 = smul.addr %s165, 8
      %s169 = sadd.s32 %s167, %s168
      %s170 = smul.addr %s169, 8
      %s171 = scalar_lea.vmem %s1, %s170
      %s172 = smul.u32 2, %s18
      %s173 = smul.u32 2, %s18
      %p174 = scmp.lt.s32.totalorder %s17, 1
      %s175 = scalar_select %p174, %s17, 1
      %p176 = scmp.lt.s32.totalorder %s173, 1
      %s177 = scalar_select %p176, %s173, 1
      %s178 = smul.addr %s175, 2
      %s179 = sadd.s32 %s177, %s178
      %s180 = smul.addr %s179, 8
      %s181 = scalar_lea.vmem %s2, %s180
      %s182 = smul.u32 2, %s18
      %v183 = vld [vmem:[%s171] sm:$0xff]
      %v184 = vld [vmem:[%s171 + $0x8] sm:$0xff]
      %v185 = vld [vmem:[%s171 + $0x10] sm:$0xff]
      %v186 = vld [vmem:[%s171 + $0x18] sm:$0xff]
      %v187 = vld [vmem:[%s171 + $0x20] sm:$0xff]
      %v188 = vld [vmem:[%s171 + $0x28] sm:$0xff]
      %v189 = vld [vmem:[%s171 + $0x30] sm:$0xff]
      %v190 = vld [vmem:[%s171 + $0x38] sm:$0xff]
      %v191 = vsub.f32 0.0, %v183
      %v192 = vsub.f32 0.0, %v184
      %v193 = vsub.f32 0.0, %v185
      %v194 = vsub.f32 0.0, %v186
      %v195 = vmul.f32 %v191, 1.442695
      %v196 = vpow.pop %v195
      %v197 = vmul.f32 %v192, 1.442695
      %v198 = vpow.pop %v197
      %v199 = vmul.f32 %v193, 1.442695
      %v200 = vpow.pop %v199
      %v201 = vmul.f32 %v194, 1.442695
      %v202 = vpow.pop %v201
      %v203 = vadd.f32 %v196, 1.0
      %v204 = vadd.f32 %v198, 1.0
      %v205 = vadd.f32 %v200, 1.0
      %v206 = vadd.f32 %v202, 1.0
      %v207 = vrcp.pop %v203
      %v208 = vmul.f32 1.0, %v207
      %v209 = vrcp.pop %v204
      %v210 = vmul.f32 1.0, %v209
      %v211 = vrcp.pop %v205
      %v212 = vmul.f32 1.0, %v211
      %v213 = vrcp.pop %v206
      %v214 = vmul.f32 1.0, %v213
      %v215 = vmul.f32 %v183, %v208
      %v216 = vmul.f32 %v184, %v210
      %v217 = vmul.f32 %v185, %v212
      %v218 = vmul.f32 %v186, %v214
      %v219 = vmul.f32 %v215, %v187
      %v220 = vmul.f32 %v216, %v188
      %v221 = vmul.f32 %v217, %v189
      %v222 = vmul.f32 %v218, %v190
      %v223 = vld [vmem:[%s0] sm:$0xff]
      %vm224 = vcmask 130048
      %v226 = vsel %vm224, %v223, 0
      %228 = vmatprep.subr.mxu0 %v220
      %229 = vmatpush1.msra.mxu0 %v219
      %230 = vmatprep.subr.mxu0 %v222
      %231 = vmatpush1.msra.mxu0 %v221
      %232 = vmatprep.subr.mxu0 0.0
      %233 = vmatpush1.msra.mxu0 0.0
      %234 = vmatprep.subr.mxu0 0.0
      %235 = vmatpush1.msra.mxu0 0.0
      %236 = vmatprep.subr.mxu0 0.0
      %237 = vmatpush1.msra.mxu0 0.0
      %238 = vmatprep.subr.mxu0 0.0
      %239 = vmatpush1.msra.mxu0 0.0
      %240 = vmatprep.subr.mxu0 0.0
      %241 = vmatpush1.msra.mxu0 0.0
      %242 = vmatprep.subr.mxu0 0.0
      %243 = vmatpush1.msra.mxu0 0.0
      %244 = vmatprep.subr.mxu0 0.0
      %245 = vmatpush1.msra.mxu0 0.0
      %246 = vmatprep.subr.mxu0 0.0
      %247 = vmatpush1.msra.mxu0 0.0
      %248 = vmatprep.subr.mxu0 0.0
      %249 = vmatpush1.msra.mxu0 0.0
      %250 = vmatprep.subr.mxu0 0.0
      %251 = vmatpush1.msra.mxu0 0.0
      %252 = vmatprep.subr.mxu0 0.0
      %253 = vmatpush1.msra.mxu0 0.0
      %254 = vmatprep.subr.mxu0 0.0
      %255 = vmatpush1.msra.mxu0 0.0
      %256 = vmatprep.subr.mxu0 0.0
      %257 = vmatpush1.msra.mxu0 0.0
      %258 = vmatprep.subr.mxu0 0.0
      %259 = vmatpush1.msra.mxu0 0.0
      %260 = vmatprep.subr.mxu0 0.0
      %261 = vmatpush1.msra.mxu0 0.0
      %262 = vmatprep.subr.mxu0 0.0
      %263 = vmatpush1.msra.mxu0 0.0
      %264 = vmatprep.subr.mxu0 0.0
      %265 = vmatpush1.msra.mxu0 0.0
      %266 = vmatprep.subr.mxu0 0.0
      %267 = vmatpush1.msra.mxu0 0.0
      %268 = vmatprep.subr.mxu0 0.0
      %269 = vmatpush1.msra.mxu0 0.0
      %270 = vmatprep.subr.mxu0 0.0
      %271 = vmatpush1.msra.mxu0 0.0
      %272 = vmatprep.subr.mxu0 0.0
      %273 = vmatpush1.msra.mxu0 0.0
      %274 = vmatprep.subr.mxu0 0.0
      %275 = vmatpush1.msra.mxu0 0.0
      %276 = vmatprep.subr.mxu0 0.0
      %277 = vmatpush1.msra.mxu0 0.0
      %278 = vmatprep.subr.mxu0 0.0
      %279 = vmatpush1.msra.mxu0 0.0
      %280 = vmatprep.subr.mxu0 0.0
      %281 = vmatpush1.msra.mxu0 0.0
      %282 = vmatprep.subr.mxu0 0.0
      %283 = vmatpush1.msra.mxu0 0.0
      %284 = vmatprep.subr.mxu0 0.0
      %285 = vmatpush1.msra.mxu0 0.0
      %286 = vmatprep.subr.mxu0 0.0
      %287 = vmatpush1.msra.mxu0 0.0
      %288 = vmatprep.subr.mxu0 0.0
      %289 = vmatpush1.msra.mxu0 0.0
      %290 = vmatprep.subr.mxu0 0.0
      %291 = vmatpush1.msra.mxu0 0.0
      %292 = vmatprep.mubr.f32.mxu0 0.0
      %293 = vmatmul.mubr.f32.gmra.mrb[0].mxu0 %v226
      %v294 = vpop.f32.mrb[0].mxu0
      %v295 = vadd.f32 0.0, %v294
      %v296 = vpop.f32.mrb[0].mxu0
      %v297 = vadd.f32 0.0, %v296
      %298 = vdwg.mxu0
      %299 = vst [vmem:[%s181] sm:$0xff] %v295
      %300 = vst [vmem:[%s181 + $0x8] sm:$0xff] %v297
      %s301 = smul.u32 2, %s18
      %p302 = scmp.lt.s32.totalorder %s17, 1
      %s303 = scalar_select %p302, %s17, 1
      %p304 = scmp.lt.s32.totalorder %s301, 1
      %s305 = scalar_select %p304, %s301, 1
      %s306 = smul.addr %s303, 2
      %s307 = sadd.s32 %s305, %s306
      %s308 = smul.addr %s307, 8
      %s309 = scalar_lea.vmem %s2, %s308
      // Predicated region
      $region29: #{feedforward_forward.5} parent=27 // pred_check
        %p310 = pneg %p94
      $region30: #{feedforward_forward.5} parent=27 // pred_check_branch
        %312 = sbr.rel (%p310) target = $region32
      $region31: #{feedforward_forward.5} parent=27 // pred_region
        %s313 = smul.u32 2, %s18
      $region32: #{feedforward_forward.5} parent=27 // pred_fallthru
        _
    $region28: #{feedforward_forward.5} parent=5 // pred_fallthru
      _
    %p314 = scmp.le.s32.totalorder 2, %s8
    // Predicated region
    $region33: #{feedforward_forward.5} parent=5 // pred_check
      %p315 = pneg %p314
    $region34: #{feedforward_forward.5} parent=5 // pred_check_branch
      %317 = sbr.rel (%p315) target = $region36
    $region35: #{feedforward_forward.5} parent=5 // pred_region
      %s318 = ssub.s32 %s8, 2
      // Predicated region
      $region37: #{feedforward_forward.5} parent=35 // pred_check
        %p319 = pneg %p100
      $region38: #{feedforward_forward.5} parent=35 // pred_check_branch
        %321 = sbr.rel (%p319) target = $region40
      $region39: #{feedforward_forward.5} parent=35 // pred_region
        %s322 = smul.u32 2, %s20
        %p323 = scmp.lt.s32.totalorder %s19, 1
        %s324 = scalar_select %p323, %s19, 1
        %p325 = scmp.lt.s32.totalorder %s322, 1
        %s326 = scalar_select %p325, %s322, 1
        %s327 = smul.addr %s324, 2
        %s328 = sadd.s32 %s326, %s327
        %s329 = smul.addr %s328, 8
        %s330 = scalar_lea.vmem %s2, %s329
      $region40: #{feedforward_forward.5} parent=35 // pred_fallthru
        _
    $region36: #{feedforward_forward.5} parent=5 // pred_fallthru
      _
  $region6: #{feedforward_forward.5} parent=0 // loop_footer
    %s12 = sadd.s32 1, %s8
  $region7: #{feedforward_forward.5} parent=0 // loop_footer_branch
    %7 = sbr.rel target = $region3
  $region8: #{feedforward_forward.5} parent=0 // loop_exit
    _

</llo_original>
